<compile_context>
chip_gen: v7x
topology: tpu7x:2x2x1
jax: 0.10.0
libtpu: 0.0.40
codegen_flags: <defaults>
</compile_context>

<pallas_src>
import math
import functools

import jax
import jax.numpy as jnp
from jax.experimental import pallas as pl
from jax.experimental.pallas import tpu as pltpu


# --------------------------- in-kernel building blocks --------------------------- #

def _ln(x2, g, b, eps=1e-5):
    """LayerNorm over last dim. x2: (M, D); g, b: (1, D). Matches torch (biased var, eps)."""
    mu = jnp.mean(x2, axis=-1, keepdims=True)
    var = jnp.mean((x2 - mu) ** 2, axis=-1, keepdims=True)
    return (x2 - mu) * jax.lax.rsqrt(var + eps) * g + b


def _gelu(x):
    return jax.nn.gelu(x, approximate=True)   # tanh approximation (EUP friendly)


def _mh_attention_proj(q3, k3, v3, wo, bo, n_heads, causal):
    """Multi-head scaled-dot-product attention with the output projection fused in.

    q3: (B, Lq, D); k3, v3: (B, Lk, D); wo: (D, D); bo: (1, D).
    Returns a lane-dense (B*Lq, D) slab (already projected through Wo + bo).
    """
    B, Lq, D = q3.shape
    Lk = k3.shape[1]
    dk = D // n_heads
    scale = 1.0 / math.sqrt(dk)

    keep = None
    if causal:  # mask iota hoisted out of the head loop (shared by all heads)
        row = jax.lax.broadcasted_iota(jnp.int32, (1, Lq, Lk), 1)
        col = jax.lax.broadcasted_iota(jnp.int32, (1, Lq, Lk), 2)
        keep = col <= row

    acc = None
    for h in range(n_heads):                          # static unroll, n_heads is small
        sl = slice(h * dk, (h + 1) * dk)
        s = jnp.einsum("bqd,bkd->bqk", q3[:, :, sl], k3[:, :, sl],
                       preferred_element_type=jnp.float32) * scale
        if causal:
            s = jnp.where(keep, s, jnp.float32(-1e30))
        m = jnp.max(s, axis=-1, keepdims=True)
        p = jnp.exp(s - m)
        p = p * pl.reciprocal(jnp.sum(p, axis=-1, keepdims=True), approx=True)
        o_h = jnp.einsum("bqk,bkd->bqd", p, v3[:, :, sl],
                         preferred_element_type=jnp.float32).reshape(B * Lq, dk)
        # Fused output projection: per-head row-slice of Wo keeps the accumulator
        # lane-dense at width D (no dk-wide partial stores, no lane concat).
        contrib = jnp.dot(o_h, wo[sl, :], preferred_element_type=jnp.float32)
        acc = contrib if acc is None else acc + contrib
    return acc + bo


# --------------------------------- Pallas kernels --------------------------------- #

def _embedding_kernel(cols_ref, mark_ref, wtok_ref, wtim_ref, pe_ref, o_ref):
    """DataEmbedding: token Conv1d(k=3,circular) (as im2col matmul) + time-feature linear
    + positional embedding, all fused."""
    B, L, C3 = cols_ref.shape
    D = wtok_ref.shape[1]
    cols = cols_ref[...].reshape(B * L, C3)
    mark = mark_ref[...].reshape(B * L, mark_ref.shape[2])
    y = jnp.dot(cols, wtok_ref[...], preferred_element_type=jnp.float32)
    y = y + jnp.dot(mark, wtim_ref[...], preferred_element_type=jnp.float32)
    o_ref[...] = y.reshape(B, L, D) + pe_ref[...]


def _encoder_layer_kernel(x_ref, wqkv_ref, bqkv_ref, wo_ref, bo_ref,
                          n1g_ref, n1b_ref, w1_ref, b1_ref, w2_ref, b2_ref,
                          n2g_ref, n2b_ref, o_ref, *, n_heads):
    B, L, D = x_ref.shape
    x2 = x_ref[...].reshape(B * L, D)

    # Fused QKV projection (one (M, 3D) matmul instead of three launches).
    qkv = jnp.dot(x2, wqkv_ref[...], preferred_element_type=jnp.float32) + bqkv_ref[...]
    q3 = qkv[:, :D].reshape(B, L, D)
    k3 = qkv[:, D:2 * D].reshape(B, L, D)
    v3 = qkv[:, 2 * D:].reshape(B, L, D)
    a = _mh_attention_proj(q3, k3, v3, wo_ref[...], bo_ref[...], n_heads, causal=False)

    x2 = _ln(x2 + a, n1g_ref[...], n1b_ref[...])                      # residual + LN fused

    # Position-wise FFN (Conv1d kernel_size=1 == matmul), intermediate stays in VMEM.
    y = _gelu(jnp.dot(x2, w1_ref[...], preferred_element_type=jnp.float32) + b1_ref[...])
    y = jnp.dot(y, w2_ref[...], preferred_element_type=jnp.float32) + b2_ref[...]
    o_ref[...] = _ln(x2 + y, n2g_ref[...], n2b_ref[...]).reshape(B, L, D)


def _decoder_layer_kernel(x_ref, cross_ref,
                          s_wqkv_ref, s_bqkv_ref, s_wo_ref, s_bo_ref,
                          c_wq_ref, c_bq_ref, c_wkv_ref, c_bkv_ref, c_wo_ref, c_bo_ref,
                          n1g_ref, n1b_ref, n2g_ref, n2b_ref, n3g_ref, n3b_ref,
                          w1_ref, b1_ref, w2_ref, b2_ref,
                          o_ref, *, n_heads):
    B, Ld, D = x_ref.shape
    Le = cross_ref.shape[1]
    x2 = x_ref[...].reshape(B * Ld, D)
    cr2 = cross_ref[...].reshape(B * Le, D)

    # Masked (causal) self-attention, fused QKV.
    qkv = jnp.dot(x2, s_wqkv_ref[...], preferred_element_type=jnp.float32) + s_bqkv_ref[...]
    q3 = qkv[:, :D].reshape(B, Ld, D)
    k3 = qkv[:, D:2 * D].reshape(B, Ld, D)
    v3 = qkv[:, 2 * D:].reshape(B, Ld, D)
    a = _mh_attention_proj(q3, k3, v3, s_wo_ref[...], s_bo_ref[...], n_heads, causal=True)
    x2 = _ln(x2 + a, n1g_ref[...], n1b_ref[...])

    # Cross-attention: queries from decoder, fused K/V projection from encoder output.
    q = jnp.dot(x2, c_wq_ref[...], preferred_element_type=jnp.float32) + c_bq_ref[...]
    kv = jnp.dot(cr2, c_wkv_ref[...], preferred_element_type=jnp.float32) + c_bkv_ref[...]
    q3 = q.reshape(B, Ld, D)
    k3 = kv[:, :D].reshape(B, Le, D)
    v3 = kv[:, D:].reshape(B, Le, D)
    a = _mh_attention_proj(q3, k3, v3, c_wo_ref[...], c_bo_ref[...], n_heads, causal=False)
    x2 = _ln(x2 + a, n2g_ref[...], n2b_ref[...])

    # FFN.
    y = _gelu(jnp.dot(x2, w1_ref[...], preferred_element_type=jnp.float32) + b1_ref[...])
    y = jnp.dot(y, w2_ref[...], preferred_element_type=jnp.float32) + b2_ref[...]
    o_ref[...] = _ln(x2 + y, n3g_ref[...], n3b_ref[...]).reshape(B, Ld, D)


def _layernorm_kernel(x_ref, g_ref, b_ref, o_ref):
    B, L, D = x_ref.shape
    o_ref[...] = _ln(x_ref[...].reshape(B * L, D), g_ref[...], b_ref[...]).reshape(B, L, D)


def _final_kernel(x_ref, g_ref, b_ref, wp_ref, bp_ref, o_ref):
    """Decoder final LayerNorm fused with the output projection."""
    B, L, D = x_ref.shape
    C = wp_ref.shape[1]
    x2 = _ln(x_ref[...].reshape(B * L, D), g_ref[...], b_ref[...])
    y = jnp.dot(x2, wp_ref[...], preferred_element_type=jnp.float32) + bp_ref[...]
    o_ref[...] = y.reshape(B, L, C)


# --------------------------------- pallas wrapper --------------------------------- #

def _call_full(kernel, out_shape, *arrays, **static_kwargs):
    """Run `kernel` as a single fused pallas_call with whole-array VMEM blocks.

    At these toy sizes every operand (and all layer weights, ~50-100 KB) trivially fits
    VMEM on v5e/v6e/v7x, so a single grid step with full blocks minimizes launch overhead.
    # TODO(synk): at realistic d_model/seq/batch, tile M (rows) with >=512-row blocks,
    # mark that axis "parallel" (v7x dual TC) and set vmem_limit_bytes explicitly.
    """
    arrays = [jnp.asarray(a, jnp.float32) for a in arrays]
    kern = functools.partial(kernel, **static_kwargs) if static_kwargs else kernel
    return pl.pallas_call(
        kern,
        grid=(1,),
        out_shape=jax.ShapeDtypeStruct(out_shape, jnp.float32),
        in_specs=[pl.BlockSpec(a.shape, (lambda i, _r=a.ndim: (0,) * _r)) for a in arrays],
        out_specs=pl.BlockSpec(out_shape, lambda i: (0,) * len(out_shape)),
        compiler_params=pltpu.CompilerParams(dimension_semantics=("arbitrary",)),
    )(*arrays)


# ----------------------------- model components ----------------------------- #

def positional_embedding(L, d_model):
    position = jnp.arange(L, dtype=jnp.float32)[:, None]
    div_term = jnp.exp(
        jnp.arange(0, d_model, 2, dtype=jnp.float32) * -(math.log(10000.0) / d_model))
    pe = jnp.zeros((L, d_model), jnp.float32)
    pe = pe.at[:, 0::2].set(jnp.sin(position * div_term))
    pe = pe.at[:, 1::2].set(jnp.cos(position * div_term))
    return pe


def _token_im2col(x):
    """Circular-pad im2col for Conv1d(k=3, padding=1, padding_mode='circular'), (B,L,C)->(B,L,3C)."""
    B, L, C = x.shape
    xp = jnp.concatenate([x[:, -1:, :], x, x[:, :1, :]], axis=1)
    return jnp.concatenate([xp[:, k:k + L, :] for k in range(3)], axis=-1)


def data_embedding(x, x_mark, p, d_model):
    B, L, _ = x.shape
    cols = _token_im2col(x)                                   # tiny XLA prep
    pe = positional_embedding(L, d_model)[None]               # (1, L, D)
    return _call_full(_embedding_kernel, (B, L, d_model),
                      cols, x_mark, p["token_w_mat"], p["timef_w"], pe)


def encoder_layer(x, p, n_heads):
    B, L, D = x.shape
    a = p["attn"]
    return _call_full(
        _encoder_layer_kernel, (B, L, D),
        x,
        a["w_qkv"], a["b_qkv"].reshape(1, -1), a["w_o"], a["b_o"].reshape(1, -1),
        p["norm1_g"].reshape(1, -1), p["norm1_b"].reshape(1, -1),
        p["conv1_w"], p["conv1_b"].reshape(1, -1),
        p["conv2_w"], p["conv2_b"].reshape(1, -1),
        p["norm2_g"].reshape(1, -1), p["norm2_b"].reshape(1, -1),
        n_heads=n_heads)


def decoder_layer(x, cross, p, n_heads):
    B, L, D = x.shape
    sa, ca = p["self_attn"], p["cross_attn"]
    return _call_full(
        _decoder_layer_kernel, (B, L, D),
        x, cross,
        sa["w_qkv"], sa["b_qkv"].reshape(1, -1), sa["w_o"], sa["b_o"].reshape(1, -1),
        ca["w_q"], ca["b_q"].reshape(1, -1), ca["w_kv"], ca["b_kv"].reshape(1, -1),
        ca["w_o"], ca["b_o"].reshape(1, -1),
        p["norm1_g"].reshape(1, -1), p["norm1_b"].reshape(1, -1),
        p["norm2_g"].reshape(1, -1), p["norm2_b"].reshape(1, -1),
        p["norm3_g"].reshape(1, -1), p["norm3_b"].reshape(1, -1),
        p["conv1_w"], p["conv1_b"].reshape(1, -1),
        p["conv2_w"], p["conv2_b"].reshape(1, -1),
        n_heads=n_heads)


def model_forward(params, cfg, batch_x, batch_x_mark, dec_inp, batch_y_mark):
    d_model, n_heads = cfg["d_model"], cfg["n_heads"]

    enc = data_embedding(batch_x, batch_x_mark, params["enc_emb"], d_model)
    for lp in params["enc_layers"]:
        enc = encoder_layer(enc, lp, n_heads)
    B, Le, D = enc.shape
    enc = _call_full(_layernorm_kernel, (B, Le, D), enc,
                     params["enc_norm_g"].reshape(1, -1), params["enc_norm_b"].reshape(1, -1))

    dec = data_embedding(dec_inp, batch_y_mark, params["dec_emb"], d_model)
    for lp in params["dec_layers"]:
        dec = decoder_layer(dec, enc, lp, n_heads)
    B, Ld, D = dec.shape
    c_out = params["proj_w"].shape[1]
    dec = _call_full(_final_kernel, (B, Ld, c_out), dec,
                     params["dec_norm_g"].reshape(1, -1), params["dec_norm_b"].reshape(1, -1),
                     params["proj_w"], params["proj_b"].reshape(1, -1))

    output = dec[:, -cfg["pred_len"]:, :]
    # sub_space / out_space disabled -> all disagreements are None -> sums stay 0.0 (as reference)
    disagreement_loss = jnp.float32(0.0) * jnp.float32(cfg["diversity_weight"])
    return {"output": output, "disagreement_loss": disagreement_loss}


# ----------------------------- parameter init ----------------------------- #

def _w(key, shape, scale=0.05):
    return scale * jax.random.normal(key, shape, dtype=jnp.float32)


def _attn_self_params(key, d_model):
    ks = jax.random.split(key, 4)
    return {"w_qkv": _w(ks[0], (d_model, 3 * d_model)),   # fused Q|K|V projection
            "b_qkv": _w(ks[1], (3 * d_model,)),
            "w_o": _w(ks[2], (d_model, d_model)),
            "b_o": _w(ks[3], (d_model,))}


def _attn_cross_params(key, d_model):
    ks = jax.random.split(key, 6)
    return {"w_q": _w(ks[0], (d_model, d_model)), "b_q": _w(ks[1], (d_model,)),
            "w_kv": _w(ks[2], (d_model, 2 * d_model)),     # fused K|V projection
            "b_kv": _w(ks[3], (2 * d_model,)),
            "w_o": _w(ks[4], (d_model, d_model)), "b_o": _w(ks[5], (d_model,))}


def init_params(key, cfg):
    d_model, d_ff = cfg["d_model"], cfg["d_ff"]
    keys = iter(jax.random.split(key, 256))

    def emb(c_in):
        # torch Conv1d weight (d_model, c_in, 3) converted once to matmul layout (3*c_in, d_model)
        w_conv = _w(next(keys), (d_model, c_in, 3))
        w_mat = jnp.transpose(w_conv, (2, 1, 0)).reshape(3 * c_in, d_model)
        return {"token_w_mat": w_mat,
                "timef_w": _w(next(keys), (cfg["mark_dim"], d_model))}   # bias=False

    def enc_layer():
        return {"attn": _attn_self_params(next(keys), d_model),
                "conv1_w": _w(next(keys), (d_model, d_ff)), "conv1_b": _w(next(keys), (d_ff,)),
                "conv2_w": _w(next(keys), (d_ff, d_model)), "conv2_b": _w(next(keys), (d_model,)),
                "norm1_g": jnp.ones((d_model,)), "norm1_b": jnp.zeros((d_model,)),
                "norm2_g": jnp.ones((d_model,)), "norm2_b": jnp.zeros((d_model,))}

    def dec_layer():
        return {"self_attn": _attn_self_params(next(keys), d_model),
                "cross_attn": _attn_cross_params(next(keys), d_model),
                "conv1_w": _w(next(keys), (d_model, d_ff)), "conv1_b": _w(next(keys), (d_ff,)),
                "conv2_w": _w(next(keys), (d_ff, d_model)), "conv2_b": _w(next(keys), (d_model,)),
                "norm1_g": jnp.ones((d_model,)), "norm1_b": jnp.zeros((d_model,)),
                "norm2_g": jnp.ones((d_model,)), "norm2_b": jnp.zeros((d_model,)),
                "norm3_g": jnp.ones((d_model,)), "norm3_b": jnp.zeros((d_model,))}

    return {"enc_emb": emb(cfg["enc_in"]),
            "dec_emb": emb(cfg["dec_in"]),
            "enc_layers": [enc_layer() for _ in range(cfg["e_layers"])],
            "enc_norm_g": jnp.ones((d_model,)), "enc_norm_b": jnp.zeros((d_model,)),
            "dec_layers": [dec_layer() for _ in range(cfg["d_layers"])],
            "dec_norm_g": jnp.ones((d_model,)), "dec_norm_b": jnp.zeros((d_model,)),
            "proj_w": _w(next(keys), (d_model, cfg["c_out"])),
            "proj_b": _w(next(keys), (cfg["c_out"],))}


# ----------------------------- main ----------------------------- #

if __name__ == "__main__":
    cfg = dict(
        enc_in=4, dec_in=4, c_out=4, d_model=32, n_heads=4, d_ff=64,
        e_layers=1, d_layers=1, seq_len=16, label_len=8, pred_len=8,
        mark_dim=4,                 # freq='h' -> 4 time features
        diversity_weight=0.1,
    )

    key = jax.random.PRNGKey(0)
    k_param, k1, k2, k3, k4 = jax.random.split(key, 5)
    params = init_params(k_param, cfg)

    B = 2
    batch_x = jax.random.normal(k1, (B, cfg["seq_len"], cfg["enc_in"]), jnp.float32)
    batch_x_mark = jax.random.normal(k2, (B, cfg["seq_len"], cfg["mark_dim"]), jnp.float32)
    dec_len = cfg["label_len"] + cfg["pred_len"]
    dec_inp = jax.random.normal(k3, (B, dec_len, cfg["dec_in"]), jnp.float32)
    batch_y_mark = jax.random.normal(k4, (B, dec_len, cfg["mark_dim"]), jnp.float32)

    fwd = jax.jit(lambda p, a, b, c, d: model_forward(p, cfg, a, b, c, d))
    out = fwd(params, batch_x, batch_x_mark, dec_inp, batch_y_mark)
    jax.block_until_ready(out["output"])
    jax.block_until_ready(out["disagreement_loss"])
    assert out["output"].shape == (B, cfg["pred_len"], cfg["c_out"])
    print("KERNEL_OK")
</pallas_src>

<mosaic_0001>
module attributes {stable_mosaic.version = 11 : i64} {
  func.func @_embedding_kernel(%arg0: i32, %arg1: memref<2x16x12xf32, #tpu.memory_space<vmem>>, %arg2: memref<2x16x4xf32, #tpu.memory_space<vmem>>, %arg3: memref<12x32xf32, #tpu.memory_space<vmem>>, %arg4: memref<4x32xf32, #tpu.memory_space<vmem>>, %arg5: memref<1x16x32xf32, #tpu.memory_space<vmem>>, %arg6: memref<2x16x32xf32, #tpu.memory_space<vmem>>) attributes {dimension_semantics = [#tpu.dimension_semantics<arbitrary>], iteration_bounds = array<i64: 1>, scalar_prefetch = 0 : i64, scratch_operands = 0 : i64, tpu.core_type = #tpu.core_type<tc>, window_params = [{pipeline_mode = #tpu.pipeline_mode<synchronous>, transform_indices = @transform_0, window_bounds = array<i64: 2, 16, 12>}, {pipeline_mode = #tpu.pipeline_mode<synchronous>, transform_indices = @transform_1, window_bounds = array<i64: 2, 16, 4>}, {pipeline_mode = #tpu.pipeline_mode<synchronous>, transform_indices = @transform_2, window_bounds = array<i64: 12, 32>}, {pipeline_mode = #tpu.pipeline_mode<synchronous>, transform_indices = @transform_3, window_bounds = array<i64: 4, 32>}, {pipeline_mode = #tpu.pipeline_mode<synchronous>, transform_indices = @transform_4, window_bounds = array<i64: 1, 16, 32>}, {pipeline_mode = #tpu.pipeline_mode<synchronous>, transform_indices = @transform_5, window_bounds = array<i64: 2, 16, 32>}]} {
    %c0 = arith.constant 0 : index
    %c0_0 = arith.constant 0 : index
    %c0_1 = arith.constant 0 : index
    %0 = vector.load %arg1[%c0, %c0_0, %c0_1] : memref<2x16x12xf32, #tpu.memory_space<vmem>>, vector<2x16x12xf32>
    %1 = vector.shape_cast %0 : vector<2x16x12xf32> to vector<32x12xf32>
    %c0_2 = arith.constant 0 : index
    %c0_3 = arith.constant 0 : index
    %c0_4 = arith.constant 0 : index
    %2 = vector.load %arg2[%c0_2, %c0_3, %c0_4] : memref<2x16x4xf32, #tpu.memory_space<vmem>>, vector<2x16x4xf32>
    %3 = vector.shape_cast %2 : vector<2x16x4xf32> to vector<32x4xf32>
    %c0_5 = arith.constant 0 : index
    %c0_6 = arith.constant 0 : index
    %4 = vector.load %arg3[%c0_5, %c0_6] : memref<12x32xf32, #tpu.memory_space<vmem>>, vector<12x32xf32>
    %cst = arith.constant dense<0.000000e+00> : vector<32x32xf32>
    %5 = tpu.matmul %1, %4, %cst {dimension_numbers = #tpu.dot_dimension_numbers<[1], [0], [0], [1], [0, 0, 1, 1], [], []>} : vector<32x12xf32>, vector<12x32xf32>, vector<32x32xf32> -> vector<32x32xf32>
    %c0_7 = arith.constant 0 : index
    %c0_8 = arith.constant 0 : index
    %6 = vector.load %arg4[%c0_7, %c0_8] : memref<4x32xf32, #tpu.memory_space<vmem>>, vector<4x32xf32>
    %cst_9 = arith.constant dense<0.000000e+00> : vector<32x32xf32>
    %7 = tpu.matmul %3, %6, %cst_9 {dimension_numbers = #tpu.dot_dimension_numbers<[1], [0], [0], [1], [0, 0, 1, 1], [], []>} : vector<32x4xf32>, vector<4x32xf32>, vector<32x32xf32> -> vector<32x32xf32>
    %8 = arith.addf %5, %7 : vector<32x32xf32>
    %9 = vector.shape_cast %8 : vector<32x32xf32> to vector<2x16x32xf32>
    %c0_10 = arith.constant 0 : index
    %c0_11 = arith.constant 0 : index
    %c0_12 = arith.constant 0 : index
    %10 = vector.load %arg5[%c0_10, %c0_11, %c0_12] : memref<1x16x32xf32, #tpu.memory_space<vmem>>, vector<1x16x32xf32>
    %11 = vector.broadcast %10 : vector<1x16x32xf32> to vector<2x16x32xf32>
    %12 = arith.addf %9, %11 : vector<2x16x32xf32>
    %c0_13 = arith.constant 0 : index
    %c0_14 = arith.constant 0 : index
    %c0_15 = arith.constant 0 : index
    %13 = vector.load %arg6[%c0_13, %c0_14, %c0_15] : memref<2x16x32xf32, #tpu.memory_space<vmem>>, vector<2x16x32xf32>
    tpu.vector_store %arg6[%c0_13, %c0_14, %c0_15], %12 {strides = array<i32>} : memref<2x16x32xf32, #tpu.memory_space<vmem>>, vector<2x16x32xf32>,
    return
  }
  func.func @transform_0(%arg0: i32) -> (i32, i32, i32) {
    %c0_i32 = arith.constant 0 : i32
    %c0_i32_0 = arith.constant 0 : i32
    %c0_i32_1 = arith.constant 0 : i32
    %c0_i32_2 = arith.constant 0 : i32
    return %c0_i32, %c0_i32_0, %c0_i32_1 : i32, i32, i32
  }
  func.func @transform_1(%arg0: i32) -> (i32, i32, i32) {
    %c0_i32 = arith.constant 0 : i32
    %c0_i32_0 = arith.constant 0 : i32
    %c0_i32_1 = arith.constant 0 : i32
    %c0_i32_2 = arith.constant 0 : i32
    return %c0_i32, %c0_i32_0, %c0_i32_1 : i32, i32, i32
  }
  func.func @transform_2(%arg0: i32) -> (i32, i32) {
    %c0_i32 = arith.constant 0 : i32
    %c0_i32_0 = arith.constant 0 : i32
    %c0_i32_1 = arith.constant 0 : i32
    return %c0_i32, %c0_i32_0 : i32, i32
  }
  func.func @transform_3(%arg0: i32) -> (i32, i32) {
    %c0_i32 = arith.constant 0 : i32
    %c0_i32_0 = arith.constant 0 : i32
    %c0_i32_1 = arith.constant 0 : i32
    return %c0_i32, %c0_i32_0 : i32, i32
  }
  func.func @transform_4(%arg0: i32) -> (i32, i32, i32) {
    %c0_i32 = arith.constant 0 : i32
    %c0_i32_0 = arith.constant 0 : i32
    %c0_i32_1 = arith.constant 0 : i32
    %c0_i32_2 = arith.constant 0 : i32
    return %c0_i32, %c0_i32_0, %c0_i32_1 : i32, i32, i32
  }
  func.func @transform_5(%arg0: i32) -> (i32, i32, i32) {
    %c0_i32 = arith.constant 0 : i32
    %c0_i32_0 = arith.constant 0 : i32
    %c0_i32_1 = arith.constant 0 : i32
    %c0_i32_2 = arith.constant 0 : i32
    return %c0_i32, %c0_i32_0, %c0_i32_1 : i32, i32, i32
  }
}

module attributes {stable_mosaic.version = 11 : i64} {
  func.func @_encoder_layer_kernel(%arg0: i32, %arg1: memref<2x16x32xf32, #tpu.memory_space<vmem>>, %arg2: memref<32x96xf32, #tpu.memory_space<vmem>>, %arg3: memref<1x96xf32, #tpu.memory_space<vmem>>, %arg4: memref<32x32xf32, #tpu.memory_space<vmem>>, %arg5: memref<1x32xf32, #tpu.memory_space<vmem>>, %arg6: memref<1x32xf32, #tpu.memory_space<vmem>>, %arg7: memref<1x32xf32, #tpu.memory_space<vmem>>, %arg8: memref<32x64xf32, #tpu.memory_space<vmem>>, %arg9: memref<1x64xf32, #tpu.memory_space<vmem>>, %arg10: memref<64x32xf32, #tpu.memory_space<vmem>>, %arg11: memref<1x32xf32, #tpu.memory_space<vmem>>, %arg12: memref<1x32xf32, #tpu.memory_space<vmem>>, %arg13: memref<1x32xf32, #tpu.memory_space<vmem>>, %arg14: memref<2x16x32xf32, #tpu.memory_space<vmem>>) attributes {dimension_semantics = [#tpu.dimension_semantics<arbitrary>], iteration_bounds = array<i64: 1>, scalar_prefetch = 0 : i64, scratch_operands = 0 : i64, tpu.core_type = #tpu.core_type<tc>, window_params = [{pipeline_mode = #tpu.pipeline_mode<synchronous>, transform_indices = @transform_0, window_bounds = array<i64: 2, 16, 32>}, {pipeline_mode = #tpu.pipeline_mode<synchronous>, transform_indices = @transform_1, window_bounds = array<i64: 32, 96>}, {pipeline_mode = #tpu.pipeline_mode<synchronous>, transform_indices = @transform_2, window_bounds = array<i64: 1, 96>}, {pipeline_mode = #tpu.pipeline_mode<synchronous>, transform_indices = @transform_3, window_bounds = array<i64: 32, 32>}, {pipeline_mode = #tpu.pipeline_mode<synchronous>, transform_indices = @transform_4, window_bounds = array<i64: 1, 32>}, {pipeline_mode = #tpu.pipeline_mode<synchronous>, transform_indices = @transform_5, window_bounds = array<i64: 1, 32>}, {pipeline_mode = #tpu.pipeline_mode<synchronous>, transform_indices = @transform_6, window_bounds = array<i64: 1, 32>}, {pipeline_mode = #tpu.pipeline_mode<synchronous>, transform_indices = @transform_7, window_bounds = array<i64: 32, 64>}, {pipeline_mode = #tpu.pipeline_mode<synchronous>, transform_indices = @transform_8, window_bounds = array<i64: 1, 64>}, {pipeline_mode = #tpu.pipeline_mode<synchronous>, transform_indices = @transform_9, window_bounds = array<i64: 64, 32>}, {pipeline_mode = #tpu.pipeline_mode<synchronous>, transform_indices = @transform_10, window_bounds = array<i64: 1, 32>}, {pipeline_mode = #tpu.pipeline_mode<synchronous>, transform_indices = @transform_11, window_bounds = array<i64: 1, 32>}, {pipeline_mode = #tpu.pipeline_mode<synchronous>, transform_indices = @transform_12, window_bounds = array<i64: 1, 32>}, {pipeline_mode = #tpu.pipeline_mode<synchronous>, transform_indices = @transform_13, window_bounds = array<i64: 2, 16, 32>}]} {
    %c0 = arith.constant 0 : index
    %c0_0 = arith.constant 0 : index
    %c0_1 = arith.constant 0 : index
    %0 = vector.load %arg1[%c0, %c0_0, %c0_1] : memref<2x16x32xf32, #tpu.memory_space<vmem>>, vector<2x16x32xf32>
    %1 = vector.shape_cast %0 : vector<2x16x32xf32> to vector<32x32xf32>
    %c0_2 = arith.constant 0 : index
    %c0_3 = arith.constant 0 : index
    %2 = vector.load %arg2[%c0_2, %c0_3] : memref<32x96xf32, #tpu.memory_space<vmem>>, vector<32x96xf32>
    %cst = arith.constant dense<0.000000e+00> : vector<32x96xf32>
    %3 = tpu.matmul %1, %2, %cst {dimension_numbers = #tpu.dot_dimension_numbers<[1], [0], [0], [1], [0, 0, 1, 1], [], []>} : vector<32x32xf32>, vector<32x96xf32>, vector<32x96xf32> -> vector<32x96xf32>
    %c0_4 = arith.constant 0 : index
    %c0_5 = arith.constant 0 : index
    %4 = vector.load %arg3[%c0_4, %c0_5] : memref<1x96xf32, #tpu.memory_space<vmem>>, vector<1x96xf32>
    %5 = vector.broadcast %4 : vector<1x96xf32> to vector<32x96xf32>
    %6 = arith.addf %3, %5 : vector<32x96xf32>
    %7 = vector.extract_strided_slice %6 {offsets = [0, 0], sizes = [32, 32], strides = [1, 1]} : vector<32x96xf32> to vector<32x32xf32>
    %8 = vector.shape_cast %7 : vector<32x32xf32> to vector<2x16x32xf32>
    %9 = vector.extract_strided_slice %6 {offsets = [0, 32], sizes = [32, 32], strides = [1, 1]} : vector<32x96xf32> to vector<32x32xf32>
    %10 = vector.shape_cast %9 : vector<32x32xf32> to vector<2x16x32xf32>
    %11 = vector.extract_strided_slice %6 {offsets = [0, 64], sizes = [32, 32], strides = [1, 1]} : vector<32x96xf32> to vector<32x32xf32>
    %12 = vector.shape_cast %11 : vector<32x32xf32> to vector<2x16x32xf32>
    %c0_6 = arith.constant 0 : index
    %c0_7 = arith.constant 0 : index
    %13 = vector.load %arg4[%c0_6, %c0_7] : memref<32x32xf32, #tpu.memory_space<vmem>>, vector<32x32xf32>
    %c0_8 = arith.constant 0 : index
    %c0_9 = arith.constant 0 : index
    %14 = vector.load %arg5[%c0_8, %c0_9] : memref<1x32xf32, #tpu.memory_space<vmem>>, vector<1x32xf32>
    %15 = vector.extract_strided_slice %8 {offsets = [0, 0, 0], sizes = [2, 16, 8], strides = [1, 1, 1]} : vector<2x16x32xf32> to vector<2x16x8xf32>
    %16 = vector.extract_strided_slice %10 {offsets = [0, 0, 0], sizes = [2, 16, 8], strides = [1, 1, 1]} : vector<2x16x32xf32> to vector<2x16x8xf32>
    "tpu.trace_start"() <{level = 10 : i32, message = "bqd,bkd->bqk"}> : () -> ()
    %cst_10 = arith.constant dense<0.000000e+00> : vector<2x16x16xf32>
    %17 = tpu.matmul %15, %16, %cst_10 {dimension_numbers = #tpu.dot_dimension_numbers<[2], [2], [1], [1], [0, 0, 0, 1, 1, 1], [0], [0]>} : vector<2x16x8xf32>, vector<2x16x8xf32>, vector<2x16x16xf32> -> vector<2x16x16xf32>
    "tpu.trace_stop"() : () -> ()
    %cst_11 = arith.constant 0.353553385 : f32
    %18 = vector.broadcast %cst_11 : f32 to vector<2x16x16xf32>
    %19 = arith.mulf %17, %18 : vector<2x16x16xf32>
    %cst_12 = arith.constant dense<0xFF800000> : vector<2x16xf32>
    %20 = vector.multi_reduction <maximumf>, %19, %cst_12 [2] : vector<2x16x16xf32> to vector<2x16xf32>
    %21 = vector.shape_cast %20 : vector<2x16xf32> to vector<2x16x1xf32>
    %22 = vector.broadcast %21 : vector<2x16x1xf32> to vector<2x16x16xf32>
    %23 = arith.subf %19, %22 : vector<2x16x16xf32>
    %24 = math.exp %23 : vector<2x16x16xf32>
    %cst_13 = arith.constant dense<0.000000e+00> : vector<2x16xf32>
    %25 = vector.multi_reduction <add>, %24, %cst_13 [2] : vector<2x16x16xf32> to vector<2x16xf32>
    %26 = vector.shape_cast %25 : vector<2x16xf32> to vector<2x16x1xf32>
    %27 = tpu.reciprocal %26 {approx = true} : vector<2x16x1xf32> -> vector<2x16x1xf32>
    %28 = vector.broadcast %27 : vector<2x16x1xf32> to vector<2x16x16xf32>
    %29 = arith.mulf %24, %28 : vector<2x16x16xf32>
    %30 = vector.extract_strided_slice %12 {offsets = [0, 0, 0], sizes = [2, 16, 8], strides = [1, 1, 1]} : vector<2x16x32xf32> to vector<2x16x8xf32>
    "tpu.trace_start"() <{level = 10 : i32, message = "bqk,bkd->bqd"}> : () -> ()
    %cst_14 = arith.constant dense<0.000000e+00> : vector<2x16x8xf32>
    %31 = tpu.matmul %29, %30, %cst_14 {dimension_numbers = #tpu.dot_dimension_numbers<[2], [1], [1], [2], [0, 0, 0, 1, 1, 2], [0], [0]>} : vector<2x16x16xf32>, vector<2x16x8xf32>, vector<2x16x8xf32> -> vector<2x16x8xf32>
    "tpu.trace_stop"() : () -> ()
    %32 = vector.shape_cast %31 : vector<2x16x8xf32> to vector<32x8xf32>
    %33 = vector.extract_strided_slice %13 {offsets = [0, 0], sizes = [8, 32], strides = [1, 1]} : vector<32x32xf32> to vector<8x32xf32>
    %cst_15 = arith.constant dense<0.000000e+00> : vector<32x32xf32>
    %34 = tpu.matmul %32, %33, %cst_15 {dimension_numbers = #tpu.dot_dimension_numbers<[1], [0], [0], [1], [0, 0, 1, 1], [], []>} : vector<32x8xf32>, vector<8x32xf32>, vector<32x32xf32> -> vector<32x32xf32>
    %35 = vector.extract_strided_slice %8 {offsets = [0, 0, 8], sizes = [2, 16, 8], strides = [1, 1, 1]} : vector<2x16x32xf32> to vector<2x16x8xf32>
    %36 = vector.extract_strided_slice %10 {offsets = [0, 0, 8], sizes = [2, 16, 8], strides = [1, 1, 1]} : vector<2x16x32xf32> to vector<2x16x8xf32>
    "tpu.trace_start"() <{level = 10 : i32, message = "bqd,bkd->bqk"}> : () -> ()
    %cst_16 = arith.constant dense<0.000000e+00> : vector<2x16x16xf32>
    %37 = tpu.matmul %35, %36, %cst_16 {dimension_numbers = #tpu.dot_dimension_numbers<[2], [2], [1], [1], [0, 0, 0, 1, 1, 1], [0], [0]>} : vector<2x16x8xf32>, vector<2x16x8xf32>, vector<2x16x16xf32> -> vector<2x16x16xf32>
    "tpu.trace_stop"() : () -> ()
    %cst_17 = arith.constant 0.353553385 : f32
    %38 = vector.broadcast %cst_17 : f32 to vector<2x16x16xf32>
    %39 = arith.mulf %37, %38 : vector<2x16x16xf32>
    %cst_18 = arith.constant dense<0xFF800000> : vector<2x16xf32>
    %40 = vector.multi_reduction <maximumf>, %39, %cst_18 [2] : vector<2x16x16xf32> to vector<2x16xf32>
    %41 = vector.shape_cast %40 : vector<2x16xf32> to vector<2x16x1xf32>
    %42 = vector.broadcast %41 : vector<2x16x1xf32> to vector<2x16x16xf32>
    %43 = arith.subf %39, %42 : vector<2x16x16xf32>
    %44 = math.exp %43 : vector<2x16x16xf32>
    %cst_19 = arith.constant dense<0.000000e+00> : vector<2x16xf32>
    %45 = vector.multi_reduction <add>, %44, %cst_19 [2] : vector<2x16x16xf32> to vector<2x16xf32>
    %46 = vector.shape_cast %45 : vector<2x16xf32> to vector<2x16x1xf32>
    %47 = tpu.reciprocal %46 {approx = true} : vector<2x16x1xf32> -> vector<2x16x1xf32>
    %48 = vector.broadcast %47 : vector<2x16x1xf32> to vector<2x16x16xf32>
    %49 = arith.mulf %44, %48 : vector<2x16x16xf32>
    %50 = vector.extract_strided_slice %12 {offsets = [0, 0, 8], sizes = [2, 16, 8], strides = [1, 1, 1]} : vector<2x16x32xf32> to vector<2x16x8xf32>
    "tpu.trace_start"() <{level = 10 : i32, message = "bqk,bkd->bqd"}> : () -> ()
    %cst_20 = arith.constant dense<0.000000e+00> : vector<2x16x8xf32>
    %51 = tpu.matmul %49, %50, %cst_20 {dimension_numbers = #tpu.dot_dimension_numbers<[2], [1], [1], [2], [0, 0, 0, 1, 1, 2], [0], [0]>} : vector<2x16x16xf32>, vector<2x16x8xf32>, vector<2x16x8xf32> -> vector<2x16x8xf32>
    "tpu.trace_stop"() : () -> ()
    %52 = vector.shape_cast %51 : vector<2x16x8xf32> to vector<32x8xf32>
    %53 = vector.extract_strided_slice %13 {offsets = [8, 0], sizes = [8, 32], strides = [1, 1]} : vector<32x32xf32> to vector<8x32xf32>
    %cst_21 = arith.constant dense<0.000000e+00> : vector<32x32xf32>
    %54 = tpu.matmul %52, %53, %cst_21 {dimension_numbers = #tpu.dot_dimension_numbers<[1], [0], [0], [1], [0, 0, 1, 1], [], []>} : vector<32x8xf32>, vector<8x32xf32>, vector<32x32xf32> -> vector<32x32xf32>
    %55 = arith.addf %34, %54 : vector<32x32xf32>
    %56 = vector.extract_strided_slice %8 {offsets = [0, 0, 16], sizes = [2, 16, 8], strides = [1, 1, 1]} : vector<2x16x32xf32> to vector<2x16x8xf32>
    %57 = vector.extract_strided_slice %10 {offsets = [0, 0, 16], sizes = [2, 16, 8], strides = [1, 1, 1]} : vector<2x16x32xf32> to vector<2x16x8xf32>
    "tpu.trace_start"() <{level = 10 : i32, message = "bqd,bkd->bqk"}> : () -> ()
    %cst_22 = arith.constant dense<0.000000e+00> : vector<2x16x16xf32>
    %58 = tpu.matmul %56, %57, %cst_22 {dimension_numbers = #tpu.dot_dimension_numbers<[2], [2], [1], [1], [0, 0, 0, 1, 1, 1], [0], [0]>} : vector<2x16x8xf32>, vector<2x16x8xf32>, vector<2x16x16xf32> -> vector<2x16x16xf32>
    "tpu.trace_stop"() : () -> ()
    %cst_23 = arith.constant 0.353553385 : f32
    %59 = vector.broadcast %cst_23 : f32 to vector<2x16x16xf32>
    %60 = arith.mulf %58, %59 : vector<2x16x16xf32>
    %cst_24 = arith.constant dense<0xFF800000> : vector<2x16xf32>
    %61 = vector.multi_reduction <maximumf>, %60, %cst_24 [2] : vector<2x16x16xf32> to vector<2x16xf32>
    %62 = vector.shape_cast %61 : vector<2x16xf32> to vector<2x16x1xf32>
    %63 = vector.broadcast %62 : vector<2x16x1xf32> to vector<2x16x16xf32>
    %64 = arith.subf %60, %63 : vector<2x16x16xf32>
    %65 = math.exp %64 : vector<2x16x16xf32>
    %cst_25 = arith.constant dense<0.000000e+00> : vector<2x16xf32>
    %66 = vector.multi_reduction <add>, %65, %cst_25 [2] : vector<2x16x16xf32> to vector<2x16xf32>
    %67 = vector.shape_cast %66 : vector<2x16xf32> to vector<2x16x1xf32>
    %68 = tpu.reciprocal %67 {approx = true} : vector<2x16x1xf32> -> vector<2x16x1xf32>
    %69 = vector.broadcast %68 : vector<2x16x1xf32> to vector<2x16x16xf32>
    %70 = arith.mulf %65, %69 : vector<2x16x16xf32>
    %71 = vector.extract_strided_slice %12 {offsets = [0, 0, 16], sizes = [2, 16, 8], strides = [1, 1, 1]} : vector<2x16x32xf32> to vector<2x16x8xf32>
    "tpu.trace_start"() <{level = 10 : i32, message = "bqk,bkd->bqd"}> : () -> ()
    %cst_26 = arith.constant dense<0.000000e+00> : vector<2x16x8xf32>
    %72 = tpu.matmul %70, %71, %cst_26 {dimension_numbers = #tpu.dot_dimension_numbers<[2], [1], [1], [2], [0, 0, 0, 1, 1, 2], [0], [0]>} : vector<2x16x16xf32>, vector<2x16x8xf32>, vector<2x16x8xf32> -> vector<2x16x8xf32>
    "tpu.trace_stop"() : () -> ()
    %73 = vector.shape_cast %72 : vector<2x16x8xf32> to vector<32x8xf32>
    %74 = vector.extract_strided_slice %13 {offsets = [16, 0], sizes = [8, 32], strides = [1, 1]} : vector<32x32xf32> to vector<8x32xf32>
    %cst_27 = arith.constant dense<0.000000e+00> : vector<32x32xf32>
    %75 = tpu.matmul %73, %74, %cst_27 {dimension_numbers = #tpu.dot_dimension_numbers<[1], [0], [0], [1], [0, 0, 1, 1], [], []>} : vector<32x8xf32>, vector<8x32xf32>, vector<32x32xf32> -> vector<32x32xf32>
    %76 = arith.addf %55, %75 : vector<32x32xf32>
    %77 = vector.extract_strided_slice %8 {offsets = [0, 0, 24], sizes = [2, 16, 8], strides = [1, 1, 1]} : vector<2x16x32xf32> to vector<2x16x8xf32>
    %78 = vector.extract_strided_slice %10 {offsets = [0, 0, 24], sizes = [2, 16, 8], strides = [1, 1, 1]} : vector<2x16x32xf32> to vector<2x16x8xf32>
    "tpu.trace_start"() <{level = 10 : i32, message = "bqd,bkd->bqk"}> : () -> ()
    %cst_28 = arith.constant dense<0.000000e+00> : vector<2x16x16xf32>
    %79 = tpu.matmul %77, %78, %cst_28 {dimension_numbers = #tpu.dot_dimension_numbers<[2], [2], [1], [1], [0, 0, 0, 1, 1, 1], [0], [0]>} : vector<2x16x8xf32>, vector<2x16x8xf32>, vector<2x16x16xf32> -> vector<2x16x16xf32>
    "tpu.trace_stop"() : () -> ()
    %cst_29 = arith.constant 0.353553385 : f32
    %80 = vector.broadcast %cst_29 : f32 to vector<2x16x16xf32>
    %81 = arith.mulf %79, %80 : vector<2x16x16xf32>
    %cst_30 = arith.constant dense<0xFF800000> : vector<2x16xf32>
    %82 = vector.multi_reduction <maximumf>, %81, %cst_30 [2] : vector<2x16x16xf32> to vector<2x16xf32>
    %83 = vector.shape_cast %82 : vector<2x16xf32> to vector<2x16x1xf32>
    %84 = vector.broadcast %83 : vector<2x16x1xf32> to vector<2x16x16xf32>
    %85 = arith.subf %81, %84 : vector<2x16x16xf32>
    %86 = math.exp %85 : vector<2x16x16xf32>
    %cst_31 = arith.constant dense<0.000000e+00> : vector<2x16xf32>
    %87 = vector.multi_reduction <add>, %86, %cst_31 [2] : vector<2x16x16xf32> to vector<2x16xf32>
    %88 = vector.shape_cast %87 : vector<2x16xf32> to vector<2x16x1xf32>
    %89 = tpu.reciprocal %88 {approx = true} : vector<2x16x1xf32> -> vector<2x16x1xf32>
    %90 = vector.broadcast %89 : vector<2x16x1xf32> to vector<2x16x16xf32>
    %91 = arith.mulf %86, %90 : vector<2x16x16xf32>
    %92 = vector.extract_strided_slice %12 {offsets = [0, 0, 24], sizes = [2, 16, 8], strides = [1, 1, 1]} : vector<2x16x32xf32> to vector<2x16x8xf32>
    "tpu.trace_start"() <{level = 10 : i32, message = "bqk,bkd->bqd"}> : () -> ()
    %cst_32 = arith.constant dense<0.000000e+00> : vector<2x16x8xf32>
    %93 = tpu.matmul %91, %92, %cst_32 {dimension_numbers = #tpu.dot_dimension_numbers<[2], [1], [1], [2], [0, 0, 0, 1, 1, 2], [0], [0]>} : vector<2x16x16xf32>, vector<2x16x8xf32>, vector<2x16x8xf32> -> vector<2x16x8xf32>
    "tpu.trace_stop"() : () -> ()
    %94 = vector.shape_cast %93 : vector<2x16x8xf32> to vector<32x8xf32>
    %95 = vector.extract_strided_slice %13 {offsets = [24, 0], sizes = [8, 32], strides = [1, 1]} : vector<32x32xf32> to vector<8x32xf32>
    %cst_33 = arith.constant dense<0.000000e+00> : vector<32x32xf32>
    %96 = tpu.matmul %94, %95, %cst_33 {dimension_numbers = #tpu.dot_dimension_numbers<[1], [0], [0], [1], [0, 0, 1, 1], [], []>} : vector<32x8xf32>, vector<8x32xf32>, vector<32x32xf32> -> vector<32x32xf32>
    %97 = arith.addf %76, %96 : vector<32x32xf32>
    %98 = vector.broadcast %14 : vector<1x32xf32> to vector<32x32xf32>
    %99 = arith.addf %97, %98 : vector<32x32xf32>
    %100 = arith.addf %1, %99 : vector<32x32xf32>
    %c0_34 = arith.constant 0 : index
    %c0_35 = arith.constant 0 : index
    %101 = vector.load %arg6[%c0_34, %c0_35] : memref<1x32xf32, #tpu.memory_space<vmem>>, vector<1x32xf32>
    %c0_36 = arith.constant 0 : index
    %c0_37 = arith.constant 0 : index
    %102 = vector.load %arg7[%c0_36, %c0_37] : memref<1x32xf32, #tpu.memory_space<vmem>>, vector<1x32xf32>
    %cst_38 = arith.constant dense<0.000000e+00> : vector<32xf32>
    %103 = vector.multi_reduction <add>, %100, %cst_38 [1] : vector<32x32xf32> to vector<32xf32>
    %104 = vector.shape_cast %103 : vector<32xf32> to vector<32x1xf32>
    %cst_39 = arith.constant 3.200000e+01 : f32
    %105 = vector.broadcast %cst_39 : f32 to vector<32x1xf32>
    %106 = arith.divf %104, %105 : vector<32x1xf32>
    %107 = vector.broadcast %106 : vector<32x1xf32> to vector<32x32xf32>
    %108 = arith.subf %100, %107 : vector<32x32xf32>
    %109 = arith.mulf %108, %108 : vector<32x32xf32>
    %cst_40 = arith.constant dense<0.000000e+00> : vector<32xf32>
    %110 = vector.multi_reduction <add>, %109, %cst_40 [1] : vector<32x32xf32> to vector<32xf32>
    %111 = vector.shape_cast %110 : vector<32xf32> to vector<32x1xf32>
    %cst_41 = arith.constant 3.200000e+01 : f32
    %112 = vector.broadcast %cst_41 : f32 to vector<32x1xf32>
    %113 = arith.divf %111, %112 : vector<32x1xf32>
    %114 = vector.broadcast %106 : vector<32x1xf32> to vector<32x32xf32>
    %115 = arith.subf %100, %114 : vector<32x32xf32>
    %cst_42 = arith.constant 9.99999974E-6 : f32
    %116 = vector.broadcast %cst_42 : f32 to vector<32x1xf32>
    %117 = arith.addf %113, %116 : vector<32x1xf32>
    %118 = math.rsqrt %117 : vector<32x1xf32>
    %119 = vector.broadcast %118 : vector<32x1xf32> to vector<32x32xf32>
    %120 = arith.mulf %115, %119 : vector<32x32xf32>
    %121 = vector.broadcast %101 : vector<1x32xf32> to vector<32x32xf32>
    %122 = arith.mulf %120, %121 : vector<32x32xf32>
    %123 = vector.broadcast %102 : vector<1x32xf32> to vector<32x32xf32>
    %124 = arith.addf %122, %123 : vector<32x32xf32>
    %c0_43 = arith.constant 0 : index
    %c0_44 = arith.constant 0 : index
    %125 = vector.load %arg8[%c0_43, %c0_44] : memref<32x64xf32, #tpu.memory_space<vmem>>, vector<32x64xf32>
    %cst_45 = arith.constant dense<0.000000e+00> : vector<32x64xf32>
    %126 = tpu.matmul %124, %125, %cst_45 {dimension_numbers = #tpu.dot_dimension_numbers<[1], [0], [0], [1], [0, 0, 1, 1], [], []>} : vector<32x32xf32>, vector<32x64xf32>, vector<32x64xf32> -> vector<32x64xf32>
    %c0_46 = arith.constant 0 : index
    %c0_47 = arith.constant 0 : index
    %127 = vector.load %arg9[%c0_46, %c0_47] : memref<1x64xf32, #tpu.memory_space<vmem>>, vector<1x64xf32>
    %128 = vector.broadcast %127 : vector<1x64xf32> to vector<32x64xf32>
    %129 = arith.addf %126, %128 : vector<32x64xf32>
    %130 = arith.mulf %129, %129 : vector<32x64xf32>
    %131 = arith.mulf %129, %130 : vector<32x64xf32>
    %cst_48 = arith.constant 4.471500e-02 : f32
    %132 = vector.broadcast %cst_48 : f32 to vector<32x64xf32>
    %133 = arith.mulf %132, %131 : vector<32x64xf32>
    %134 = arith.addf %129, %133 : vector<32x64xf32>
    %cst_49 = arith.constant 0.797884583 : f32
    %135 = vector.broadcast %cst_49 : f32 to vector<32x64xf32>
    %136 = arith.mulf %135, %134 : vector<32x64xf32>
    %137 = math.tanh %136 : vector<32x64xf32>
    %cst_50 = arith.constant 1.000000e+00 : f32
    %138 = vector.broadcast %cst_50 : f32 to vector<32x64xf32>
    %139 = arith.addf %138, %137 : vector<32x64xf32>
    %cst_51 = arith.constant 5.000000e-01 : f32
    %140 = vector.broadcast %cst_51 : f32 to vector<32x64xf32>
    %141 = arith.mulf %140, %139 : vector<32x64xf32>
    %142 = arith.mulf %129, %141 : vector<32x64xf32>
    %c0_52 = arith.constant 0 : index
    %c0_53 = arith.constant 0 : index
    %143 = vector.load %arg10[%c0_52, %c0_53] : memref<64x32xf32, #tpu.memory_space<vmem>>, vector<64x32xf32>
    %cst_54 = arith.constant dense<0.000000e+00> : vector<32x32xf32>
    %144 = tpu.matmul %142, %143, %cst_54 {dimension_numbers = #tpu.dot_dimension_numbers<[1], [0], [0], [1], [0, 0, 1, 1], [], []>} : vector<32x64xf32>, vector<64x32xf32>, vector<32x32xf32> -> vector<32x32xf32>
    %c0_55 = arith.constant 0 : index
    %c0_56 = arith.constant 0 : index
    %145 = vector.load %arg11[%c0_55, %c0_56] : memref<1x32xf32, #tpu.memory_space<vmem>>, vector<1x32xf32>
    %146 = vector.broadcast %145 : vector<1x32xf32> to vector<32x32xf32>
    %147 = arith.addf %144, %146 : vector<32x32xf32>
    %148 = arith.addf %124, %147 : vector<32x32xf32>
    %c0_57 = arith.constant 0 : index
    %c0_58 = arith.constant 0 : index
    %149 = vector.load %arg12[%c0_57, %c0_58] : memref<1x32xf32, #tpu.memory_space<vmem>>, vector<1x32xf32>
    %c0_59 = arith.constant 0 : index
    %c0_60 = arith.constant 0 : index
    %150 = vector.load %arg13[%c0_59, %c0_60] : memref<1x32xf32, #tpu.memory_space<vmem>>, vector<1x32xf32>
    %cst_61 = arith.constant dense<0.000000e+00> : vector<32xf32>
    %151 = vector.multi_reduction <add>, %148, %cst_61 [1] : vector<32x32xf32> to vector<32xf32>
    %152 = vector.shape_cast %151 : vector<32xf32> to vector<32x1xf32>
    %cst_62 = arith.constant 3.200000e+01 : f32
    %153 = vector.broadcast %cst_62 : f32 to vector<32x1xf32>
    %154 = arith.divf %152, %153 : vector<32x1xf32>
    %155 = vector.broadcast %154 : vector<32x1xf32> to vector<32x32xf32>
    %156 = arith.subf %148, %155 : vector<32x32xf32>
    %157 = arith.mulf %156, %156 : vector<32x32xf32>
    %cst_63 = arith.constant dense<0.000000e+00> : vector<32xf32>
    %158 = vector.multi_reduction <add>, %157, %cst_63 [1] : vector<32x32xf32> to vector<32xf32>
    %159 = vector.shape_cast %158 : vector<32xf32> to vector<32x1xf32>
    %cst_64 = arith.constant 3.200000e+01 : f32
    %160 = vector.broadcast %cst_64 : f32 to vector<32x1xf32>
    %161 = arith.divf %159, %160 : vector<32x1xf32>
    %162 = vector.broadcast %154 : vector<32x1xf32> to vector<32x32xf32>
    %163 = arith.subf %148, %162 : vector<32x32xf32>
    %cst_65 = arith.constant 9.99999974E-6 : f32
    %164 = vector.broadcast %cst_65 : f32 to vector<32x1xf32>
    %165 = arith.addf %161, %164 : vector<32x1xf32>
    %166 = math.rsqrt %165 : vector<32x1xf32>
    %167 = vector.broadcast %166 : vector<32x1xf32> to vector<32x32xf32>
    %168 = arith.mulf %163, %167 : vector<32x32xf32>
    %169 = vector.broadcast %149 : vector<1x32xf32> to vector<32x32xf32>
    %170 = arith.mulf %168, %169 : vector<32x32xf32>
    %171 = vector.broadcast %150 : vector<1x32xf32> to vector<32x32xf32>
    %172 = arith.addf %170, %171 : vector<32x32xf32>
    %173 = vector.shape_cast %172 : vector<32x32xf32> to vector<2x16x32xf32>
    %c0_66 = arith.constant 0 : index
    %c0_67 = arith.constant 0 : index
    %c0_68 = arith.constant 0 : index
    %174 = vector.load %arg14[%c0_66, %c0_67, %c0_68] : memref<2x16x32xf32, #tpu.memory_space<vmem>>, vector<2x16x32xf32>
    tpu.vector_store %arg14[%c0_66, %c0_67, %c0_68], %173 {strides = array<i32>} : memref<2x16x32xf32, #tpu.memory_space<vmem>>, vector<2x16x32xf32>,
    return
  }
  func.func @transform_0(%arg0: i32) -> (i32, i32, i32) {
    %c0_i32 = arith.constant 0 : i32
    %c0_i32_0 = arith.constant 0 : i32
    %c0_i32_1 = arith.constant 0 : i32
    %c0_i32_2 = arith.constant 0 : i32
    return %c0_i32, %c0_i32_0, %c0_i32_1 : i32, i32, i32
  }
  func.func @transform_1(%arg0: i32) -> (i32, i32) {
    %c0_i32 = arith.constant 0 : i32
    %c0_i32_0 = arith.constant 0 : i32
    %c0_i32_1 = arith.constant 0 : i32
    return %c0_i32, %c0_i32_0 : i32, i32
  }
  func.func @transform_2(%arg0: i32) -> (i32, i32) {
    %c0_i32 = arith.constant 0 : i32
    %c0_i32_0 = arith.constant 0 : i32
    %c0_i32_1 = arith.constant 0 : i32
    return %c0_i32, %c0_i32_0 : i32, i32
  }
  func.func @transform_3(%arg0: i32) -> (i32, i32) {
    %c0_i32 = arith.constant 0 : i32
    %c0_i32_0 = arith.constant 0 : i32
    %c0_i32_1 = arith.constant 0 : i32
    return %c0_i32, %c0_i32_0 : i32, i32
  }
  func.func @transform_4(%arg0: i32) -> (i32, i32) {
    %c0_i32 = arith.constant 0 : i32
    %c0_i32_0 = arith.constant 0 : i32
    %c0_i32_1 = arith.constant 0 : i32
    return %c0_i32, %c0_i32_0 : i32, i32
  }
  func.func @transform_5(%arg0: i32) -> (i32, i32) {
    %c0_i32 = arith.constant 0 : i32
    %c0_i32_0 = arith.constant 0 : i32
    %c0_i32_1 = arith.constant 0 : i32
    return %c0_i32, %c0_i32_0 : i32, i32
  }
  func.func @transform_6(%arg0: i32) -> (i32, i32) {
    %c0_i32 = arith.constant 0 : i32
    %c0_i32_0 = arith.constant 0 : i32
    %c0_i32_1 = arith.constant 0 : i32
    return %c0_i32, %c0_i32_0 : i32, i32
  }
  func.func @transform_7(%arg0: i32) -> (i32, i32) {
    %c0_i32 = arith.constant 0 : i32
    %c0_i32_0 = arith.constant 0 : i32
    %c0_i32_1 = arith.constant 0 : i32
    return %c0_i32, %c0_i32_0 : i32, i32
  }
  func.func @transform_8(%arg0: i32) -> (i32, i32) {
    %c0_i32 = arith.constant 0 : i32
    %c0_i32_0 = arith.constant 0 : i32
    %c0_i32_1 = arith.constant 0 : i32
    return %c0_i32, %c0_i32_0 : i32, i32
  }
  func.func @transform_9(%arg0: i32) -> (i32, i32) {
    %c0_i32 = arith.constant 0 : i32
    %c0_i32_0 = arith.constant 0 : i32
    %c0_i32_1 = arith.constant 0 : i32
    return %c0_i32, %c0_i32_0 : i32, i32
  }
  func.func @transform_10(%arg0: i32) -> (i32, i32) {
    %c0_i32 = arith.constant 0 : i32
    %c0_i32_0 = arith.constant 0 : i32
    %c0_i32_1 = arith.constant 0 : i32
    return %c0_i32, %c0_i32_0 : i32, i32
  }
  func.func @transform_11(%arg0: i32) -> (i32, i32) {
    %c0_i32 = arith.constant 0 : i32
    %c0_i32_0 = arith.constant 0 : i32
    %c0_i32_1 = arith.constant 0 : i32
    return %c0_i32, %c0_i32_0 : i32, i32
  }
  func.func @transform_12(%arg0: i32) -> (i32, i32) {
    %c0_i32 = arith.constant 0 : i32
    %c0_i32_0 = arith.constant 0 : i32
    %c0_i32_1 = arith.constant 0 : i32
    return %c0_i32, %c0_i32_0 : i32, i32
  }
  func.func @transform_13(%arg0: i32) -> (i32, i32, i32) {
    %c0_i32 = arith.constant 0 : i32
    %c0_i32_0 = arith.constant 0 : i32
    %c0_i32_1 = arith.constant 0 : i32
    %c0_i32_2 = arith.constant 0 : i32
    return %c0_i32, %c0_i32_0, %c0_i32_1 : i32, i32, i32
  }
}

module attributes {stable_mosaic.version = 11 : i64} {
  func.func @_layernorm_kernel(%arg0: i32, %arg1: memref<2x16x32xf32, #tpu.memory_space<vmem>>, %arg2: memref<1x32xf32, #tpu.memory_space<vmem>>, %arg3: memref<1x32xf32, #tpu.memory_space<vmem>>, %arg4: memref<2x16x32xf32, #tpu.memory_space<vmem>>) attributes {dimension_semantics = [#tpu.dimension_semantics<arbitrary>], iteration_bounds = array<i64: 1>, scalar_prefetch = 0 : i64, scratch_operands = 0 : i64, tpu.core_type = #tpu.core_type<tc>, window_params = [{pipeline_mode = #tpu.pipeline_mode<synchronous>, transform_indices = @transform_0, window_bounds = array<i64: 2, 16, 32>}, {pipeline_mode = #tpu.pipeline_mode<synchronous>, transform_indices = @transform_1, window_bounds = array<i64: 1, 32>}, {pipeline_mode = #tpu.pipeline_mode<synchronous>, transform_indices = @transform_2, window_bounds = array<i64: 1, 32>}, {pipeline_mode = #tpu.pipeline_mode<synchronous>, transform_indices = @transform_3, window_bounds = array<i64: 2, 16, 32>}]} {
    %c0 = arith.constant 0 : index
    %c0_0 = arith.constant 0 : index
    %c0_1 = arith.constant 0 : index
    %0 = vector.load %arg1[%c0, %c0_0, %c0_1] : memref<2x16x32xf32, #tpu.memory_space<vmem>>, vector<2x16x32xf32>
    %1 = vector.shape_cast %0 : vector<2x16x32xf32> to vector<32x32xf32>
    %c0_2 = arith.constant 0 : index
    %c0_3 = arith.constant 0 : index
    %2 = vector.load %arg2[%c0_2, %c0_3] : memref<1x32xf32, #tpu.memory_space<vmem>>, vector<1x32xf32>
    %c0_4 = arith.constant 0 : index
    %c0_5 = arith.constant 0 : index
    %3 = vector.load %arg3[%c0_4, %c0_5] : memref<1x32xf32, #tpu.memory_space<vmem>>, vector<1x32xf32>
    %cst = arith.constant dense<0.000000e+00> : vector<32xf32>
    %4 = vector.multi_reduction <add>, %1, %cst [1] : vector<32x32xf32> to vector<32xf32>
    %5 = vector.shape_cast %4 : vector<32xf32> to vector<32x1xf32>
    %cst_6 = arith.constant 3.200000e+01 : f32
    %6 = vector.broadcast %cst_6 : f32 to vector<32x1xf32>
    %7 = arith.divf %5, %6 : vector<32x1xf32>
    %8 = vector.broadcast %7 : vector<32x1xf32> to vector<32x32xf32>
    %9 = arith.subf %1, %8 : vector<32x32xf32>
    %10 = arith.mulf %9, %9 : vector<32x32xf32>
    %cst_7 = arith.constant dense<0.000000e+00> : vector<32xf32>
    %11 = vector.multi_reduction <add>, %10, %cst_7 [1] : vector<32x32xf32> to vector<32xf32>
    %12 = vector.shape_cast %11 : vector<32xf32> to vector<32x1xf32>
    %cst_8 = arith.constant 3.200000e+01 : f32
    %13 = vector.broadcast %cst_8 : f32 to vector<32x1xf32>
    %14 = arith.divf %12, %13 : vector<32x1xf32>
    %15 = vector.broadcast %7 : vector<32x1xf32> to vector<32x32xf32>
    %16 = arith.subf %1, %15 : vector<32x32xf32>
    %cst_9 = arith.constant 9.99999974E-6 : f32
    %17 = vector.broadcast %cst_9 : f32 to vector<32x1xf32>
    %18 = arith.addf %14, %17 : vector<32x1xf32>
    %19 = math.rsqrt %18 : vector<32x1xf32>
    %20 = vector.broadcast %19 : vector<32x1xf32> to vector<32x32xf32>
    %21 = arith.mulf %16, %20 : vector<32x32xf32>
    %22 = vector.broadcast %2 : vector<1x32xf32> to vector<32x32xf32>
    %23 = arith.mulf %21, %22 : vector<32x32xf32>
    %24 = vector.broadcast %3 : vector<1x32xf32> to vector<32x32xf32>
    %25 = arith.addf %23, %24 : vector<32x32xf32>
    %26 = vector.shape_cast %25 : vector<32x32xf32> to vector<2x16x32xf32>
    %c0_10 = arith.constant 0 : index
    %c0_11 = arith.constant 0 : index
    %c0_12 = arith.constant 0 : index
    %27 = vector.load %arg4[%c0_10, %c0_11, %c0_12] : memref<2x16x32xf32, #tpu.memory_space<vmem>>, vector<2x16x32xf32>
    tpu.vector_store %arg4[%c0_10, %c0_11, %c0_12], %26 {strides = array<i32>} : memref<2x16x32xf32, #tpu.memory_space<vmem>>, vector<2x16x32xf32>,
    return
  }
  func.func @transform_0(%arg0: i32) -> (i32, i32, i32) {
    %c0_i32 = arith.constant 0 : i32
    %c0_i32_0 = arith.constant 0 : i32
    %c0_i32_1 = arith.constant 0 : i32
    %c0_i32_2 = arith.constant 0 : i32
    return %c0_i32, %c0_i32_0, %c0_i32_1 : i32, i32, i32
  }
  func.func @transform_1(%arg0: i32) -> (i32, i32) {
    %c0_i32 = arith.constant 0 : i32
    %c0_i32_0 = arith.constant 0 : i32
    %c0_i32_1 = arith.constant 0 : i32
    return %c0_i32, %c0_i32_0 : i32, i32
  }
  func.func @transform_2(%arg0: i32) -> (i32, i32) {
    %c0_i32 = arith.constant 0 : i32
    %c0_i32_0 = arith.constant 0 : i32
    %c0_i32_1 = arith.constant 0 : i32
    return %c0_i32, %c0_i32_0 : i32, i32
  }
  func.func @transform_3(%arg0: i32) -> (i32, i32, i32) {
    %c0_i32 = arith.constant 0 : i32
    %c0_i32_0 = arith.constant 0 : i32
    %c0_i32_1 = arith.constant 0 : i32
    %c0_i32_2 = arith.constant 0 : i32
    return %c0_i32, %c0_i32_0, %c0_i32_1 : i32, i32, i32
  }
}

module attributes {stable_mosaic.version = 11 : i64} {
  func.func @_decoder_layer_kernel(%arg0: i32, %arg1: memref<2x16x32xf32, #tpu.memory_space<vmem>>, %arg2: memref<2x16x32xf32, #tpu.memory_space<vmem>>, %arg3: memref<32x96xf32, #tpu.memory_space<vmem>>, %arg4: memref<1x96xf32, #tpu.memory_space<vmem>>, %arg5: memref<32x32xf32, #tpu.memory_space<vmem>>, %arg6: memref<1x32xf32, #tpu.memory_space<vmem>>, %arg7: memref<32x32xf32, #tpu.memory_space<vmem>>, %arg8: memref<1x32xf32, #tpu.memory_space<vmem>>, %arg9: memref<32x64xf32, #tpu.memory_space<vmem>>, %arg10: memref<1x64xf32, #tpu.memory_space<vmem>>, %arg11: memref<32x32xf32, #tpu.memory_space<vmem>>, %arg12: memref<1x32xf32, #tpu.memory_space<vmem>>, %arg13: memref<1x32xf32, #tpu.memory_space<vmem>>, %arg14: memref<1x32xf32, #tpu.memory_space<vmem>>, %arg15: memref<1x32xf32, #tpu.memory_space<vmem>>, %arg16: memref<1x32xf32, #tpu.memory_space<vmem>>, %arg17: memref<1x32xf32, #tpu.memory_space<vmem>>, %arg18: memref<1x32xf32, #tpu.memory_space<vmem>>, %arg19: memref<32x64xf32, #tpu.memory_space<vmem>>, %arg20: memref<1x64xf32, #tpu.memory_space<vmem>>, %arg21: memref<64x32xf32, #tpu.memory_space<vmem>>, %arg22: memref<1x32xf32, #tpu.memory_space<vmem>>, %arg23: memref<2x16x32xf32, #tpu.memory_space<vmem>>) attributes {dimension_semantics = [#tpu.dimension_semantics<arbitrary>], iteration_bounds = array<i64: 1>, scalar_prefetch = 0 : i64, scratch_operands = 0 : i64, tpu.core_type = #tpu.core_type<tc>, window_params = [{pipeline_mode = #tpu.pipeline_mode<synchronous>, transform_indices = @transform_0, window_bounds = array<i64: 2, 16, 32>}, {pipeline_mode = #tpu.pipeline_mode<synchronous>, transform_indices = @transform_1, window_bounds = array<i64: 2, 16, 32>}, {pipeline_mode = #tpu.pipeline_mode<synchronous>, transform_indices = @transform_2, window_bounds = array<i64: 32, 96>}, {pipeline_mode = #tpu.pipeline_mode<synchronous>, transform_indices = @transform_3, window_bounds = array<i64: 1, 96>}, {pipeline_mode = #tpu.pipeline_mode<synchronous>, transform_indices = @transform_4, window_bounds = array<i64: 32, 32>}, {pipeline_mode = #tpu.pipeline_mode<synchronous>, transform_indices = @transform_5, window_bounds = array<i64: 1, 32>}, {pipeline_mode = #tpu.pipeline_mode<synchronous>, transform_indices = @transform_6, window_bounds = array<i64: 32, 32>}, {pipeline_mode = #tpu.pipeline_mode<synchronous>, transform_indices = @transform_7, window_bounds = array<i64: 1, 32>}, {pipeline_mode = #tpu.pipeline_mode<synchronous>, transform_indices = @transform_8, window_bounds = array<i64: 32, 64>}, {pipeline_mode = #tpu.pipeline_mode<synchronous>, transform_indices = @transform_9, window_bounds = array<i64: 1, 64>}, {pipeline_mode = #tpu.pipeline_mode<synchronous>, transform_indices = @transform_10, window_bounds = array<i64: 32, 32>}, {pipeline_mode = #tpu.pipeline_mode<synchronous>, transform_indices = @transform_11, window_bounds = array<i64: 1, 32>}, {pipeline_mode = #tpu.pipeline_mode<synchronous>, transform_indices = @transform_12, window_bounds = array<i64: 1, 32>}, {pipeline_mode = #tpu.pipeline_mode<synchronous>, transform_indices = @transform_13, window_bounds = array<i64: 1, 32>}, {pipeline_mode = #tpu.pipeline_mode<synchronous>, transform_indices = @transform_14, window_bounds = array<i64: 1, 32>}, {pipeline_mode = #tpu.pipeline_mode<synchronous>, transform_indices = @transform_15, window_bounds = array<i64: 1, 32>}, {pipeline_mode = #tpu.pipeline_mode<synchronous>, transform_indices = @transform_16, window_bounds = array<i64: 1, 32>}, {pipeline_mode = #tpu.pipeline_mode<synchronous>, transform_indices = @transform_17, window_bounds = array<i64: 1, 32>}, {pipeline_mode = #tpu.pipeline_mode<synchronous>, transform_indices = @transform_18, window_bounds = array<i64: 32, 64>}, {pipeline_mode = #tpu.pipeline_mode<synchronous>, transform_indices = @transform_19, window_bounds = array<i64: 1, 64>}, {pipeline_mode = #tpu.pipeline_mode<synchronous>, transform_indices = @transform_20, window_bounds = array<i64: 64, 32>}, {pipeline_mode = #tpu.pipeline_mode<synchronous>, transform_indices = @transform_21, window_bounds = array<i64: 1, 32>}, {pipeline_mode = #tpu.pipeline_mode<synchronous>, transform_indices = @transform_22, window_bounds = array<i64: 2, 16, 32>}]} {
    %c0 = arith.constant 0 : index
    %c0_0 = arith.constant 0 : index
    %c0_1 = arith.constant 0 : index
    %0 = vector.load %arg1[%c0, %c0_0, %c0_1] : memref<2x16x32xf32, #tpu.memory_space<vmem>>, vector<2x16x32xf32>
    %1 = vector.shape_cast %0 : vector<2x16x32xf32> to vector<32x32xf32>
    %c0_2 = arith.constant 0 : index
    %c0_3 = arith.constant 0 : index
    %c0_4 = arith.constant 0 : index
    %2 = vector.load %arg2[%c0_2, %c0_3, %c0_4] : memref<2x16x32xf32, #tpu.memory_space<vmem>>, vector<2x16x32xf32>
    %3 = vector.shape_cast %2 : vector<2x16x32xf32> to vector<32x32xf32>
    %c0_5 = arith.constant 0 : index
    %c0_6 = arith.constant 0 : index
    %4 = vector.load %arg3[%c0_5, %c0_6] : memref<32x96xf32, #tpu.memory_space<vmem>>, vector<32x96xf32>
    %cst = arith.constant dense<0.000000e+00> : vector<32x96xf32>
    %5 = tpu.matmul %1, %4, %cst {dimension_numbers = #tpu.dot_dimension_numbers<[1], [0], [0], [1], [0, 0, 1, 1], [], []>} : vector<32x32xf32>, vector<32x96xf32>, vector<32x96xf32> -> vector<32x96xf32>
    %c0_7 = arith.constant 0 : index
    %c0_8 = arith.constant 0 : index
    %6 = vector.load %arg4[%c0_7, %c0_8] : memref<1x96xf32, #tpu.memory_space<vmem>>, vector<1x96xf32>
    %7 = vector.broadcast %6 : vector<1x96xf32> to vector<32x96xf32>
    %8 = arith.addf %5, %7 : vector<32x96xf32>
    %9 = vector.extract_strided_slice %8 {offsets = [0, 0], sizes = [32, 32], strides = [1, 1]} : vector<32x96xf32> to vector<32x32xf32>
    %10 = vector.shape_cast %9 : vector<32x32xf32> to vector<2x16x32xf32>
    %11 = vector.extract_strided_slice %8 {offsets = [0, 32], sizes = [32, 32], strides = [1, 1]} : vector<32x96xf32> to vector<32x32xf32>
    %12 = vector.shape_cast %11 : vector<32x32xf32> to vector<2x16x32xf32>
    %13 = vector.extract_strided_slice %8 {offsets = [0, 64], sizes = [32, 32], strides = [1, 1]} : vector<32x96xf32> to vector<32x32xf32>
    %14 = vector.shape_cast %13 : vector<32x32xf32> to vector<2x16x32xf32>
    %c0_9 = arith.constant 0 : index
    %c0_10 = arith.constant 0 : index
    %15 = vector.load %arg5[%c0_9, %c0_10] : memref<32x32xf32, #tpu.memory_space<vmem>>, vector<32x32xf32>
    %c0_11 = arith.constant 0 : index
    %c0_12 = arith.constant 0 : index
    %16 = vector.load %arg6[%c0_11, %c0_12] : memref<1x32xf32, #tpu.memory_space<vmem>>, vector<1x32xf32>
    %17 = tpu.iota {dimensions = array<i32: 1>} : vector<1x16x16xi32>
    %18 = tpu.iota {dimensions = array<i32: 2>} : vector<1x16x16xi32>
    %19 = arith.cmpi sle, %18, %17 : vector<1x16x16xi32>
    %20 = vector.extract_strided_slice %10 {offsets = [0, 0, 0], sizes = [2, 16, 8], strides = [1, 1, 1]} : vector<2x16x32xf32> to vector<2x16x8xf32>
    %21 = vector.extract_strided_slice %12 {offsets = [0, 0, 0], sizes = [2, 16, 8], strides = [1, 1, 1]} : vector<2x16x32xf32> to vector<2x16x8xf32>
    "tpu.trace_start"() <{level = 10 : i32, message = "bqd,bkd->bqk"}> : () -> ()
    %cst_13 = arith.constant dense<0.000000e+00> : vector<2x16x16xf32>
    %22 = tpu.matmul %20, %21, %cst_13 {dimension_numbers = #tpu.dot_dimension_numbers<[2], [2], [1], [1], [0, 0, 0, 1, 1, 1], [0], [0]>} : vector<2x16x8xf32>, vector<2x16x8xf32>, vector<2x16x16xf32> -> vector<2x16x16xf32>
    "tpu.trace_stop"() : () -> ()
    %cst_14 = arith.constant 0.353553385 : f32
    %23 = vector.broadcast %cst_14 : f32 to vector<2x16x16xf32>
    %24 = arith.mulf %22, %23 : vector<2x16x16xf32>
    %cst_15 = arith.constant -1.000000e+30 : f32
    %25 = vector.shape_cast %19 : vector<1x16x16xi1> to vector<1x16x16xi1>
    %26 = vector.broadcast %25 : vector<1x16x16xi1> to vector<2x16x16xi1>
    %27 = vector.broadcast %cst_15 : f32 to vector<2x16x16xf32>
    %28 = arith.select %26, %24, %27 : vector<2x16x16xi1>, vector<2x16x16xf32>
    %cst_16 = arith.constant dense<0xFF800000> : vector<2x16xf32>
    %29 = vector.multi_reduction <maximumf>, %28, %cst_16 [2] : vector<2x16x16xf32> to vector<2x16xf32>
    %30 = vector.shape_cast %29 : vector<2x16xf32> to vector<2x16x1xf32>
    %31 = vector.broadcast %30 : vector<2x16x1xf32> to vector<2x16x16xf32>
    %32 = arith.subf %28, %31 : vector<2x16x16xf32>
    %33 = math.exp %32 : vector<2x16x16xf32>
    %cst_17 = arith.constant dense<0.000000e+00> : vector<2x16xf32>
    %34 = vector.multi_reduction <add>, %33, %cst_17 [2] : vector<2x16x16xf32> to vector<2x16xf32>
    %35 = vector.shape_cast %34 : vector<2x16xf32> to vector<2x16x1xf32>
    %36 = tpu.reciprocal %35 {approx = true} : vector<2x16x1xf32> -> vector<2x16x1xf32>
    %37 = vector.broadcast %36 : vector<2x16x1xf32> to vector<2x16x16xf32>
    %38 = arith.mulf %33, %37 : vector<2x16x16xf32>
    %39 = vector.extract_strided_slice %14 {offsets = [0, 0, 0], sizes = [2, 16, 8], strides = [1, 1, 1]} : vector<2x16x32xf32> to vector<2x16x8xf32>
    "tpu.trace_start"() <{level = 10 : i32, message = "bqk,bkd->bqd"}> : () -> ()
    %cst_18 = arith.constant dense<0.000000e+00> : vector<2x16x8xf32>
    %40 = tpu.matmul %38, %39, %cst_18 {dimension_numbers = #tpu.dot_dimension_numbers<[2], [1], [1], [2], [0, 0, 0, 1, 1, 2], [0], [0]>} : vector<2x16x16xf32>, vector<2x16x8xf32>, vector<2x16x8xf32> -> vector<2x16x8xf32>
    "tpu.trace_stop"() : () -> ()
    %41 = vector.shape_cast %40 : vector<2x16x8xf32> to vector<32x8xf32>
    %42 = vector.extract_strided_slice %15 {offsets = [0, 0], sizes = [8, 32], strides = [1, 1]} : vector<32x32xf32> to vector<8x32xf32>
    %cst_19 = arith.constant dense<0.000000e+00> : vector<32x32xf32>
    %43 = tpu.matmul %41, %42, %cst_19 {dimension_numbers = #tpu.dot_dimension_numbers<[1], [0], [0], [1], [0, 0, 1, 1], [], []>} : vector<32x8xf32>, vector<8x32xf32>, vector<32x32xf32> -> vector<32x32xf32>
    %44 = vector.extract_strided_slice %10 {offsets = [0, 0, 8], sizes = [2, 16, 8], strides = [1, 1, 1]} : vector<2x16x32xf32> to vector<2x16x8xf32>
    %45 = vector.extract_strided_slice %12 {offsets = [0, 0, 8], sizes = [2, 16, 8], strides = [1, 1, 1]} : vector<2x16x32xf32> to vector<2x16x8xf32>
    "tpu.trace_start"() <{level = 10 : i32, message = "bqd,bkd->bqk"}> : () -> ()
    %cst_20 = arith.constant dense<0.000000e+00> : vector<2x16x16xf32>
    %46 = tpu.matmul %44, %45, %cst_20 {dimension_numbers = #tpu.dot_dimension_numbers<[2], [2], [1], [1], [0, 0, 0, 1, 1, 1], [0], [0]>} : vector<2x16x8xf32>, vector<2x16x8xf32>, vector<2x16x16xf32> -> vector<2x16x16xf32>
    "tpu.trace_stop"() : () -> ()
    %cst_21 = arith.constant 0.353553385 : f32
    %47 = vector.broadcast %cst_21 : f32 to vector<2x16x16xf32>
    %48 = arith.mulf %46, %47 : vector<2x16x16xf32>
    %cst_22 = arith.constant -1.000000e+30 : f32
    %49 = vector.shape_cast %19 : vector<1x16x16xi1> to vector<1x16x16xi1>
    %50 = vector.broadcast %49 : vector<1x16x16xi1> to vector<2x16x16xi1>
    %51 = vector.broadcast %cst_22 : f32 to vector<2x16x16xf32>
    %52 = arith.select %50, %48, %51 : vector<2x16x16xi1>, vector<2x16x16xf32>
    %cst_23 = arith.constant dense<0xFF800000> : vector<2x16xf32>
    %53 = vector.multi_reduction <maximumf>, %52, %cst_23 [2] : vector<2x16x16xf32> to vector<2x16xf32>
    %54 = vector.shape_cast %53 : vector<2x16xf32> to vector<2x16x1xf32>
    %55 = vector.broadcast %54 : vector<2x16x1xf32> to vector<2x16x16xf32>
    %56 = arith.subf %52, %55 : vector<2x16x16xf32>
    %57 = math.exp %56 : vector<2x16x16xf32>
    %cst_24 = arith.constant dense<0.000000e+00> : vector<2x16xf32>
    %58 = vector.multi_reduction <add>, %57, %cst_24 [2] : vector<2x16x16xf32> to vector<2x16xf32>
    %59 = vector.shape_cast %58 : vector<2x16xf32> to vector<2x16x1xf32>
    %60 = tpu.reciprocal %59 {approx = true} : vector<2x16x1xf32> -> vector<2x16x1xf32>
    %61 = vector.broadcast %60 : vector<2x16x1xf32> to vector<2x16x16xf32>
    %62 = arith.mulf %57, %61 : vector<2x16x16xf32>
    %63 = vector.extract_strided_slice %14 {offsets = [0, 0, 8], sizes = [2, 16, 8], strides = [1, 1, 1]} : vector<2x16x32xf32> to vector<2x16x8xf32>
    "tpu.trace_start"() <{level = 10 : i32, message = "bqk,bkd->bqd"}> : () -> ()
    %cst_25 = arith.constant dense<0.000000e+00> : vector<2x16x8xf32>
    %64 = tpu.matmul %62, %63, %cst_25 {dimension_numbers = #tpu.dot_dimension_numbers<[2], [1], [1], [2], [0, 0, 0, 1, 1, 2], [0], [0]>} : vector<2x16x16xf32>, vector<2x16x8xf32>, vector<2x16x8xf32> -> vector<2x16x8xf32>
    "tpu.trace_stop"() : () -> ()
    %65 = vector.shape_cast %64 : vector<2x16x8xf32> to vector<32x8xf32>
    %66 = vector.extract_strided_slice %15 {offsets = [8, 0], sizes = [8, 32], strides = [1, 1]} : vector<32x32xf32> to vector<8x32xf32>
    %cst_26 = arith.constant dense<0.000000e+00> : vector<32x32xf32>
    %67 = tpu.matmul %65, %66, %cst_26 {dimension_numbers = #tpu.dot_dimension_numbers<[1], [0], [0], [1], [0, 0, 1, 1], [], []>} : vector<32x8xf32>, vector<8x32xf32>, vector<32x32xf32> -> vector<32x32xf32>
    %68 = arith.addf %43, %67 : vector<32x32xf32>
    %69 = vector.extract_strided_slice %10 {offsets = [0, 0, 16], sizes = [2, 16, 8], strides = [1, 1, 1]} : vector<2x16x32xf32> to vector<2x16x8xf32>
    %70 = vector.extract_strided_slice %12 {offsets = [0, 0, 16], sizes = [2, 16, 8], strides = [1, 1, 1]} : vector<2x16x32xf32> to vector<2x16x8xf32>
    "tpu.trace_start"() <{level = 10 : i32, message = "bqd,bkd->bqk"}> : () -> ()
    %cst_27 = arith.constant dense<0.000000e+00> : vector<2x16x16xf32>
    %71 = tpu.matmul %69, %70, %cst_27 {dimension_numbers = #tpu.dot_dimension_numbers<[2], [2], [1], [1], [0, 0, 0, 1, 1, 1], [0], [0]>} : vector<2x16x8xf32>, vector<2x16x8xf32>, vector<2x16x16xf32> -> vector<2x16x16xf32>
    "tpu.trace_stop"() : () -> ()
    %cst_28 = arith.constant 0.353553385 : f32
    %72 = vector.broadcast %cst_28 : f32 to vector<2x16x16xf32>
    %73 = arith.mulf %71, %72 : vector<2x16x16xf32>
    %cst_29 = arith.constant -1.000000e+30 : f32
    %74 = vector.shape_cast %19 : vector<1x16x16xi1> to vector<1x16x16xi1>
    %75 = vector.broadcast %74 : vector<1x16x16xi1> to vector<2x16x16xi1>
    %76 = vector.broadcast %cst_29 : f32 to vector<2x16x16xf32>
    %77 = arith.select %75, %73, %76 : vector<2x16x16xi1>, vector<2x16x16xf32>
    %cst_30 = arith.constant dense<0xFF800000> : vector<2x16xf32>
    %78 = vector.multi_reduction <maximumf>, %77, %cst_30 [2] : vector<2x16x16xf32> to vector<2x16xf32>
    %79 = vector.shape_cast %78 : vector<2x16xf32> to vector<2x16x1xf32>
    %80 = vector.broadcast %79 : vector<2x16x1xf32> to vector<2x16x16xf32>
    %81 = arith.subf %77, %80 : vector<2x16x16xf32>
    %82 = math.exp %81 : vector<2x16x16xf32>
    %cst_31 = arith.constant dense<0.000000e+00> : vector<2x16xf32>
    %83 = vector.multi_reduction <add>, %82, %cst_31 [2] : vector<2x16x16xf32> to vector<2x16xf32>
    %84 = vector.shape_cast %83 : vector<2x16xf32> to vector<2x16x1xf32>
    %85 = tpu.reciprocal %84 {approx = true} : vector<2x16x1xf32> -> vector<2x16x1xf32>
    %86 = vector.broadcast %85 : vector<2x16x1xf32> to vector<2x16x16xf32>
    %87 = arith.mulf %82, %86 : vector<2x16x16xf32>
    %88 = vector.extract_strided_slice %14 {offsets = [0, 0, 16], sizes = [2, 16, 8], strides = [1, 1, 1]} : vector<2x16x32xf32> to vector<2x16x8xf32>
    "tpu.trace_start"() <{level = 10 : i32, message = "bqk,bkd->bqd"}> : () -> ()
    %cst_32 = arith.constant dense<0.000000e+00> : vector<2x16x8xf32>
    %89 = tpu.matmul %87, %88, %cst_32 {dimension_numbers = #tpu.dot_dimension_numbers<[2], [1], [1], [2], [0, 0, 0, 1, 1, 2], [0], [0]>} : vector<2x16x16xf32>, vector<2x16x8xf32>, vector<2x16x8xf32> -> vector<2x16x8xf32>
    "tpu.trace_stop"() : () -> ()
    %90 = vector.shape_cast %89 : vector<2x16x8xf32> to vector<32x8xf32>
    %91 = vector.extract_strided_slice %15 {offsets = [16, 0], sizes = [8, 32], strides = [1, 1]} : vector<32x32xf32> to vector<8x32xf32>
    %cst_33 = arith.constant dense<0.000000e+00> : vector<32x32xf32>
    %92 = tpu.matmul %90, %91, %cst_33 {dimension_numbers = #tpu.dot_dimension_numbers<[1], [0], [0], [1], [0, 0, 1, 1], [], []>} : vector<32x8xf32>, vector<8x32xf32>, vector<32x32xf32> -> vector<32x32xf32>
    %93 = arith.addf %68, %92 : vector<32x32xf32>
    %94 = vector.extract_strided_slice %10 {offsets = [0, 0, 24], sizes = [2, 16, 8], strides = [1, 1, 1]} : vector<2x16x32xf32> to vector<2x16x8xf32>
    %95 = vector.extract_strided_slice %12 {offsets = [0, 0, 24], sizes = [2, 16, 8], strides = [1, 1, 1]} : vector<2x16x32xf32> to vector<2x16x8xf32>
    "tpu.trace_start"() <{level = 10 : i32, message = "bqd,bkd->bqk"}> : () -> ()
    %cst_34 = arith.constant dense<0.000000e+00> : vector<2x16x16xf32>
    %96 = tpu.matmul %94, %95, %cst_34 {dimension_numbers = #tpu.dot_dimension_numbers<[2], [2], [1], [1], [0, 0, 0, 1, 1, 1], [0], [0]>} : vector<2x16x8xf32>, vector<2x16x8xf32>, vector<2x16x16xf32> -> vector<2x16x16xf32>
    "tpu.trace_stop"() : () -> ()
    %cst_35 = arith.constant 0.353553385 : f32
    %97 = vector.broadcast %cst_35 : f32 to vector<2x16x16xf32>
    %98 = arith.mulf %96, %97 : vector<2x16x16xf32>
    %cst_36 = arith.constant -1.000000e+30 : f32
    %99 = vector.shape_cast %19 : vector<1x16x16xi1> to vector<1x16x16xi1>
    %100 = vector.broadcast %99 : vector<1x16x16xi1> to vector<2x16x16xi1>
    %101 = vector.broadcast %cst_36 : f32 to vector<2x16x16xf32>
    %102 = arith.select %100, %98, %101 : vector<2x16x16xi1>, vector<2x16x16xf32>
    %cst_37 = arith.constant dense<0xFF800000> : vector<2x16xf32>
    %103 = vector.multi_reduction <maximumf>, %102, %cst_37 [2] : vector<2x16x16xf32> to vector<2x16xf32>
    %104 = vector.shape_cast %103 : vector<2x16xf32> to vector<2x16x1xf32>
    %105 = vector.broadcast %104 : vector<2x16x1xf32> to vector<2x16x16xf32>
    %106 = arith.subf %102, %105 : vector<2x16x16xf32>
    %107 = math.exp %106 : vector<2x16x16xf32>
    %cst_38 = arith.constant dense<0.000000e+00> : vector<2x16xf32>
    %108 = vector.multi_reduction <add>, %107, %cst_38 [2] : vector<2x16x16xf32> to vector<2x16xf32>
    %109 = vector.shape_cast %108 : vector<2x16xf32> to vector<2x16x1xf32>
    %110 = tpu.reciprocal %109 {approx = true} : vector<2x16x1xf32> -> vector<2x16x1xf32>
    %111 = vector.broadcast %110 : vector<2x16x1xf32> to vector<2x16x16xf32>
    %112 = arith.mulf %107, %111 : vector<2x16x16xf32>
    %113 = vector.extract_strided_slice %14 {offsets = [0, 0, 24], sizes = [2, 16, 8], strides = [1, 1, 1]} : vector<2x16x32xf32> to vector<2x16x8xf32>
    "tpu.trace_start"() <{level = 10 : i32, message = "bqk,bkd->bqd"}> : () -> ()
    %cst_39 = arith.constant dense<0.000000e+00> : vector<2x16x8xf32>
    %114 = tpu.matmul %112, %113, %cst_39 {dimension_numbers = #tpu.dot_dimension_numbers<[2], [1], [1], [2], [0, 0, 0, 1, 1, 2], [0], [0]>} : vector<2x16x16xf32>, vector<2x16x8xf32>, vector<2x16x8xf32> -> vector<2x16x8xf32>
    "tpu.trace_stop"() : () -> ()
    %115 = vector.shape_cast %114 : vector<2x16x8xf32> to vector<32x8xf32>
    %116 = vector.extract_strided_slice %15 {offsets = [24, 0], sizes = [8, 32], strides = [1, 1]} : vector<32x32xf32> to vector<8x32xf32>
    %cst_40 = arith.constant dense<0.000000e+00> : vector<32x32xf32>
    %117 = tpu.matmul %115, %116, %cst_40 {dimension_numbers = #tpu.dot_dimension_numbers<[1], [0], [0], [1], [0, 0, 1, 1], [], []>} : vector<32x8xf32>, vector<8x32xf32>, vector<32x32xf32> -> vector<32x32xf32>
    %118 = arith.addf %93, %117 : vector<32x32xf32>
    %119 = vector.broadcast %16 : vector<1x32xf32> to vector<32x32xf32>
    %120 = arith.addf %118, %119 : vector<32x32xf32>
    %121 = arith.addf %1, %120 : vector<32x32xf32>
    %c0_41 = arith.constant 0 : index
    %c0_42 = arith.constant 0 : index
    %122 = vector.load %arg13[%c0_41, %c0_42] : memref<1x32xf32, #tpu.memory_space<vmem>>, vector<1x32xf32>
    %c0_43 = arith.constant 0 : index
    %c0_44 = arith.constant 0 : index
    %123 = vector.load %arg14[%c0_43, %c0_44] : memref<1x32xf32, #tpu.memory_space<vmem>>, vector<1x32xf32>
    %cst_45 = arith.constant dense<0.000000e+00> : vector<32xf32>
    %124 = vector.multi_reduction <add>, %121, %cst_45 [1] : vector<32x32xf32> to vector<32xf32>
    %125 = vector.shape_cast %124 : vector<32xf32> to vector<32x1xf32>
    %cst_46 = arith.constant 3.200000e+01 : f32
    %126 = vector.broadcast %cst_46 : f32 to vector<32x1xf32>
    %127 = arith.divf %125, %126 : vector<32x1xf32>
    %128 = vector.broadcast %127 : vector<32x1xf32> to vector<32x32xf32>
    %129 = arith.subf %121, %128 : vector<32x32xf32>
    %130 = arith.mulf %129, %129 : vector<32x32xf32>
    %cst_47 = arith.constant dense<0.000000e+00> : vector<32xf32>
    %131 = vector.multi_reduction <add>, %130, %cst_47 [1] : vector<32x32xf32> to vector<32xf32>
    %132 = vector.shape_cast %131 : vector<32xf32> to vector<32x1xf32>
    %cst_48 = arith.constant 3.200000e+01 : f32
    %133 = vector.broadcast %cst_48 : f32 to vector<32x1xf32>
    %134 = arith.divf %132, %133 : vector<32x1xf32>
    %135 = vector.broadcast %127 : vector<32x1xf32> to vector<32x32xf32>
    %136 = arith.subf %121, %135 : vector<32x32xf32>
    %cst_49 = arith.constant 9.99999974E-6 : f32
    %137 = vector.broadcast %cst_49 : f32 to vector<32x1xf32>
    %138 = arith.addf %134, %137 : vector<32x1xf32>
    %139 = math.rsqrt %138 : vector<32x1xf32>
    %140 = vector.broadcast %139 : vector<32x1xf32> to vector<32x32xf32>
    %141 = arith.mulf %136, %140 : vector<32x32xf32>
    %142 = vector.broadcast %122 : vector<1x32xf32> to vector<32x32xf32>
    %143 = arith.mulf %141, %142 : vector<32x32xf32>
    %144 = vector.broadcast %123 : vector<1x32xf32> to vector<32x32xf32>
    %145 = arith.addf %143, %144 : vector<32x32xf32>
    %c0_50 = arith.constant 0 : index
    %c0_51 = arith.constant 0 : index
    %146 = vector.load %arg7[%c0_50, %c0_51] : memref<32x32xf32, #tpu.memory_space<vmem>>, vector<32x32xf32>
    %cst_52 = arith.constant dense<0.000000e+00> : vector<32x32xf32>
    %147 = tpu.matmul %145, %146, %cst_52 {dimension_numbers = #tpu.dot_dimension_numbers<[1], [0], [0], [1], [0, 0, 1, 1], [], []>} : vector<32x32xf32>, vector<32x32xf32>, vector<32x32xf32> -> vector<32x32xf32>
    %c0_53 = arith.constant 0 : index
    %c0_54 = arith.constant 0 : index
    %148 = vector.load %arg8[%c0_53, %c0_54] : memref<1x32xf32, #tpu.memory_space<vmem>>, vector<1x32xf32>
    %149 = vector.broadcast %148 : vector<1x32xf32> to vector<32x32xf32>
    %150 = arith.addf %147, %149 : vector<32x32xf32>
    %c0_55 = arith.constant 0 : index
    %c0_56 = arith.constant 0 : index
    %151 = vector.load %arg9[%c0_55, %c0_56] : memref<32x64xf32, #tpu.memory_space<vmem>>, vector<32x64xf32>
    %cst_57 = arith.constant dense<0.000000e+00> : vector<32x64xf32>
    %152 = tpu.matmul %3, %151, %cst_57 {dimension_numbers = #tpu.dot_dimension_numbers<[1], [0], [0], [1], [0, 0, 1, 1], [], []>} : vector<32x32xf32>, vector<32x64xf32>, vector<32x64xf32> -> vector<32x64xf32>
    %c0_58 = arith.constant 0 : index
    %c0_59 = arith.constant 0 : index
    %153 = vector.load %arg10[%c0_58, %c0_59] : memref<1x64xf32, #tpu.memory_space<vmem>>, vector<1x64xf32>
    %154 = vector.broadcast %153 : vector<1x64xf32> to vector<32x64xf32>
    %155 = arith.addf %152, %154 : vector<32x64xf32>
    %156 = vector.shape_cast %150 : vector<32x32xf32> to vector<2x16x32xf32>
    %157 = vector.extract_strided_slice %155 {offsets = [0, 0], sizes = [32, 32], strides = [1, 1]} : vector<32x64xf32> to vector<32x32xf32>
    %158 = vector.shape_cast %157 : vector<32x32xf32> to vector<2x16x32xf32>
    %159 = vector.extract_strided_slice %155 {offsets = [0, 32], sizes = [32, 32], strides = [1, 1]} : vector<32x64xf32> to vector<32x32xf32>
    %160 = vector.shape_cast %159 : vector<32x32xf32> to vector<2x16x32xf32>
    %c0_60 = arith.constant 0 : index
    %c0_61 = arith.constant 0 : index
    %161 = vector.load %arg11[%c0_60, %c0_61] : memref<32x32xf32, #tpu.memory_space<vmem>>, vector<32x32xf32>
    %c0_62 = arith.constant 0 : index
    %c0_63 = arith.constant 0 : index
    %162 = vector.load %arg12[%c0_62, %c0_63] : memref<1x32xf32, #tpu.memory_space<vmem>>, vector<1x32xf32>
    %163 = vector.extract_strided_slice %156 {offsets = [0, 0, 0], sizes = [2, 16, 8], strides = [1, 1, 1]} : vector<2x16x32xf32> to vector<2x16x8xf32>
    %164 = vector.extract_strided_slice %158 {offsets = [0, 0, 0], sizes = [2, 16, 8], strides = [1, 1, 1]} : vector<2x16x32xf32> to vector<2x16x8xf32>
    "tpu.trace_start"() <{level = 10 : i32, message = "bqd,bkd->bqk"}> : () -> ()
    %cst_64 = arith.constant dense<0.000000e+00> : vector<2x16x16xf32>
    %165 = tpu.matmul %163, %164, %cst_64 {dimension_numbers = #tpu.dot_dimension_numbers<[2], [2], [1], [1], [0, 0, 0, 1, 1, 1], [0], [0]>} : vector<2x16x8xf32>, vector<2x16x8xf32>, vector<2x16x16xf32> -> vector<2x16x16xf32>
    "tpu.trace_stop"() : () -> ()
    %cst_65 = arith.constant 0.353553385 : f32
    %166 = vector.broadcast %cst_65 : f32 to vector<2x16x16xf32>
    %167 = arith.mulf %165, %166 : vector<2x16x16xf32>
    %cst_66 = arith.constant dense<0xFF800000> : vector<2x16xf32>
    %168 = vector.multi_reduction <maximumf>, %167, %cst_66 [2] : vector<2x16x16xf32> to vector<2x16xf32>
    %169 = vector.shape_cast %168 : vector<2x16xf32> to vector<2x16x1xf32>
    %170 = vector.broadcast %169 : vector<2x16x1xf32> to vector<2x16x16xf32>
    %171 = arith.subf %167, %170 : vector<2x16x16xf32>
    %172 = math.exp %171 : vector<2x16x16xf32>
    %cst_67 = arith.constant dense<0.000000e+00> : vector<2x16xf32>
    %173 = vector.multi_reduction <add>, %172, %cst_67 [2] : vector<2x16x16xf32> to vector<2x16xf32>
    %174 = vector.shape_cast %173 : vector<2x16xf32> to vector<2x16x1xf32>
    %175 = tpu.reciprocal %174 {approx = true} : vector<2x16x1xf32> -> vector<2x16x1xf32>
    %176 = vector.broadcast %175 : vector<2x16x1xf32> to vector<2x16x16xf32>
    %177 = arith.mulf %172, %176 : vector<2x16x16xf32>
    %178 = vector.extract_strided_slice %160 {offsets = [0, 0, 0], sizes = [2, 16, 8], strides = [1, 1, 1]} : vector<2x16x32xf32> to vector<2x16x8xf32>
    "tpu.trace_start"() <{level = 10 : i32, message = "bqk,bkd->bqd"}> : () -> ()
    %cst_68 = arith.constant dense<0.000000e+00> : vector<2x16x8xf32>
    %179 = tpu.matmul %177, %178, %cst_68 {dimension_numbers = #tpu.dot_dimension_numbers<[2], [1], [1], [2], [0, 0, 0, 1, 1, 2], [0], [0]>} : vector<2x16x16xf32>, vector<2x16x8xf32>, vector<2x16x8xf32> -> vector<2x16x8xf32>
    "tpu.trace_stop"() : () -> ()
    %180 = vector.shape_cast %179 : vector<2x16x8xf32> to vector<32x8xf32>
    %181 = vector.extract_strided_slice %161 {offsets = [0, 0], sizes = [8, 32], strides = [1, 1]} : vector<32x32xf32> to vector<8x32xf32>
    %cst_69 = arith.constant dense<0.000000e+00> : vector<32x32xf32>
    %182 = tpu.matmul %180, %181, %cst_69 {dimension_numbers = #tpu.dot_dimension_numbers<[1], [0], [0], [1], [0, 0, 1, 1], [], []>} : vector<32x8xf32>, vector<8x32xf32>, vector<32x32xf32> -> vector<32x32xf32>
    %183 = vector.extract_strided_slice %156 {offsets = [0, 0, 8], sizes = [2, 16, 8], strides = [1, 1, 1]} : vector<2x16x32xf32> to vector<2x16x8xf32>
    %184 = vector.extract_strided_slice %158 {offsets = [0, 0, 8], sizes = [2, 16, 8], strides = [1, 1, 1]} : vector<2x16x32xf32> to vector<2x16x8xf32>
    "tpu.trace_start"() <{level = 10 : i32, message = "bqd,bkd->bqk"}> : () -> ()
    %cst_70 = arith.constant dense<0.000000e+00> : vector<2x16x16xf32>
    %185 = tpu.matmul %183, %184, %cst_70 {dimension_numbers = #tpu.dot_dimension_numbers<[2], [2], [1], [1], [0, 0, 0, 1, 1, 1], [0], [0]>} : vector<2x16x8xf32>, vector<2x16x8xf32>, vector<2x16x16xf32> -> vector<2x16x16xf32>
    "tpu.trace_stop"() : () -> ()
    %cst_71 = arith.constant 0.353553385 : f32
    %186 = vector.broadcast %cst_71 : f32 to vector<2x16x16xf32>
    %187 = arith.mulf %185, %186 : vector<2x16x16xf32>
    %cst_72 = arith.constant dense<0xFF800000> : vector<2x16xf32>
    %188 = vector.multi_reduction <maximumf>, %187, %cst_72 [2] : vector<2x16x16xf32> to vector<2x16xf32>
    %189 = vector.shape_cast %188 : vector<2x16xf32> to vector<2x16x1xf32>
    %190 = vector.broadcast %189 : vector<2x16x1xf32> to vector<2x16x16xf32>
    %191 = arith.subf %187, %190 : vector<2x16x16xf32>
    %192 = math.exp %191 : vector<2x16x16xf32>
    %cst_73 = arith.constant dense<0.000000e+00> : vector<2x16xf32>
    %193 = vector.multi_reduction <add>, %192, %cst_73 [2] : vector<2x16x16xf32> to vector<2x16xf32>
    %194 = vector.shape_cast %193 : vector<2x16xf32> to vector<2x16x1xf32>
    %195 = tpu.reciprocal %194 {approx = true} : vector<2x16x1xf32> -> vector<2x16x1xf32>
    %196 = vector.broadcast %195 : vector<2x16x1xf32> to vector<2x16x16xf32>
    %197 = arith.mulf %192, %196 : vector<2x16x16xf32>
    %198 = vector.extract_strided_slice %160 {offsets = [0, 0, 8], sizes = [2, 16, 8], strides = [1, 1, 1]} : vector<2x16x32xf32> to vector<2x16x8xf32>
    "tpu.trace_start"() <{level = 10 : i32, message = "bqk,bkd->bqd"}> : () -> ()
    %cst_74 = arith.constant dense<0.000000e+00> : vector<2x16x8xf32>
    %199 = tpu.matmul %197, %198, %cst_74 {dimension_numbers = #tpu.dot_dimension_numbers<[2], [1], [1], [2], [0, 0, 0, 1, 1, 2], [0], [0]>} : vector<2x16x16xf32>, vector<2x16x8xf32>, vector<2x16x8xf32> -> vector<2x16x8xf32>
    "tpu.trace_stop"() : () -> ()
    %200 = vector.shape_cast %199 : vector<2x16x8xf32> to vector<32x8xf32>
    %201 = vector.extract_strided_slice %161 {offsets = [8, 0], sizes = [8, 32], strides = [1, 1]} : vector<32x32xf32> to vector<8x32xf32>
    %cst_75 = arith.constant dense<0.000000e+00> : vector<32x32xf32>
    %202 = tpu.matmul %200, %201, %cst_75 {dimension_numbers = #tpu.dot_dimension_numbers<[1], [0], [0], [1], [0, 0, 1, 1], [], []>} : vector<32x8xf32>, vector<8x32xf32>, vector<32x32xf32> -> vector<32x32xf32>
    %203 = arith.addf %182, %202 : vector<32x32xf32>
    %204 = vector.extract_strided_slice %156 {offsets = [0, 0, 16], sizes = [2, 16, 8], strides = [1, 1, 1]} : vector<2x16x32xf32> to vector<2x16x8xf32>
    %205 = vector.extract_strided_slice %158 {offsets = [0, 0, 16], sizes = [2, 16, 8], strides = [1, 1, 1]} : vector<2x16x32xf32> to vector<2x16x8xf32>
    "tpu.trace_start"() <{level = 10 : i32, message = "bqd,bkd->bqk"}> : () -> ()
    %cst_76 = arith.constant dense<0.000000e+00> : vector<2x16x16xf32>
    %206 = tpu.matmul %204, %205, %cst_76 {dimension_numbers = #tpu.dot_dimension_numbers<[2], [2], [1], [1], [0, 0, 0, 1, 1, 1], [0], [0]>} : vector<2x16x8xf32>, vector<2x16x8xf32>, vector<2x16x16xf32> -> vector<2x16x16xf32>
    "tpu.trace_stop"() : () -> ()
    %cst_77 = arith.constant 0.353553385 : f32
    %207 = vector.broadcast %cst_77 : f32 to vector<2x16x16xf32>
    %208 = arith.mulf %206, %207 : vector<2x16x16xf32>
    %cst_78 = arith.constant dense<0xFF800000> : vector<2x16xf32>
    %209 = vector.multi_reduction <maximumf>, %208, %cst_78 [2] : vector<2x16x16xf32> to vector<2x16xf32>
    %210 = vector.shape_cast %209 : vector<2x16xf32> to vector<2x16x1xf32>
    %211 = vector.broadcast %210 : vector<2x16x1xf32> to vector<2x16x16xf32>
    %212 = arith.subf %208, %211 : vector<2x16x16xf32>
    %213 = math.exp %212 : vector<2x16x16xf32>
    %cst_79 = arith.constant dense<0.000000e+00> : vector<2x16xf32>
    %214 = vector.multi_reduction <add>, %213, %cst_79 [2] : vector<2x16x16xf32> to vector<2x16xf32>
    %215 = vector.shape_cast %214 : vector<2x16xf32> to vector<2x16x1xf32>
    %216 = tpu.reciprocal %215 {approx = true} : vector<2x16x1xf32> -> vector<2x16x1xf32>
    %217 = vector.broadcast %216 : vector<2x16x1xf32> to vector<2x16x16xf32>
    %218 = arith.mulf %213, %217 : vector<2x16x16xf32>
    %219 = vector.extract_strided_slice %160 {offsets = [0, 0, 16], sizes = [2, 16, 8], strides = [1, 1, 1]} : vector<2x16x32xf32> to vector<2x16x8xf32>
    "tpu.trace_start"() <{level = 10 : i32, message = "bqk,bkd->bqd"}> : () -> ()
    %cst_80 = arith.constant dense<0.000000e+00> : vector<2x16x8xf32>
    %220 = tpu.matmul %218, %219, %cst_80 {dimension_numbers = #tpu.dot_dimension_numbers<[2], [1], [1], [2], [0, 0, 0, 1, 1, 2], [0], [0]>} : vector<2x16x16xf32>, vector<2x16x8xf32>, vector<2x16x8xf32> -> vector<2x16x8xf32>
    "tpu.trace_stop"() : () -> ()
    %221 = vector.shape_cast %220 : vector<2x16x8xf32> to vector<32x8xf32>
    %222 = vector.extract_strided_slice %161 {offsets = [16, 0], sizes = [8, 32], strides = [1, 1]} : vector<32x32xf32> to vector<8x32xf32>
    %cst_81 = arith.constant dense<0.000000e+00> : vector<32x32xf32>
    %223 = tpu.matmul %221, %222, %cst_81 {dimension_numbers = #tpu.dot_dimension_numbers<[1], [0], [0], [1], [0, 0, 1, 1], [], []>} : vector<32x8xf32>, vector<8x32xf32>, vector<32x32xf32> -> vector<32x32xf32>
    %224 = arith.addf %203, %223 : vector<32x32xf32>
    %225 = vector.extract_strided_slice %156 {offsets = [0, 0, 24], sizes = [2, 16, 8], strides = [1, 1, 1]} : vector<2x16x32xf32> to vector<2x16x8xf32>
    %226 = vector.extract_strided_slice %158 {offsets = [0, 0, 24], sizes = [2, 16, 8], strides = [1, 1, 1]} : vector<2x16x32xf32> to vector<2x16x8xf32>
    "tpu.trace_start"() <{level = 10 : i32, message = "bqd,bkd->bqk"}> : () -> ()
    %cst_82 = arith.constant dense<0.000000e+00> : vector<2x16x16xf32>
    %227 = tpu.matmul %225, %226, %cst_82 {dimension_numbers = #tpu.dot_dimension_numbers<[2], [2], [1], [1], [0, 0, 0, 1, 1, 1], [0], [0]>} : vector<2x16x8xf32>, vector<2x16x8xf32>, vector<2x16x16xf32> -> vector<2x16x16xf32>
    "tpu.trace_stop"() : () -> ()
    %cst_83 = arith.constant 0.353553385 : f32
    %228 = vector.broadcast %cst_83 : f32 to vector<2x16x16xf32>
    %229 = arith.mulf %227, %228 : vector<2x16x16xf32>
    %cst_84 = arith.constant dense<0xFF800000> : vector<2x16xf32>
    %230 = vector.multi_reduction <maximumf>, %229, %cst_84 [2] : vector<2x16x16xf32> to vector<2x16xf32>
    %231 = vector.shape_cast %230 : vector<2x16xf32> to vector<2x16x1xf32>
    %232 = vector.broadcast %231 : vector<2x16x1xf32> to vector<2x16x16xf32>
    %233 = arith.subf %229, %232 : vector<2x16x16xf32>
    %234 = math.exp %233 : vector<2x16x16xf32>
    %cst_85 = arith.constant dense<0.000000e+00> : vector<2x16xf32>
    %235 = vector.multi_reduction <add>, %234, %cst_85 [2] : vector<2x16x16xf32> to vector<2x16xf32>
    %236 = vector.shape_cast %235 : vector<2x16xf32> to vector<2x16x1xf32>
    %237 = tpu.reciprocal %236 {approx = true} : vector<2x16x1xf32> -> vector<2x16x1xf32>
    %238 = vector.broadcast %237 : vector<2x16x1xf32> to vector<2x16x16xf32>
    %239 = arith.mulf %234, %238 : vector<2x16x16xf32>
    %240 = vector.extract_strided_slice %160 {offsets = [0, 0, 24], sizes = [2, 16, 8], strides = [1, 1, 1]} : vector<2x16x32xf32> to vector<2x16x8xf32>
    "tpu.trace_start"() <{level = 10 : i32, message = "bqk,bkd->bqd"}> : () -> ()
    %cst_86 = arith.constant dense<0.000000e+00> : vector<2x16x8xf32>
    %241 = tpu.matmul %239, %240, %cst_86 {dimension_numbers = #tpu.dot_dimension_numbers<[2], [1], [1], [2], [0, 0, 0, 1, 1, 2], [0], [0]>} : vector<2x16x16xf32>, vector<2x16x8xf32>, vector<2x16x8xf32> -> vector<2x16x8xf32>
    "tpu.trace_stop"() : () -> ()
    %242 = vector.shape_cast %241 : vector<2x16x8xf32> to vector<32x8xf32>
    %243 = vector.extract_strided_slice %161 {offsets = [24, 0], sizes = [8, 32], strides = [1, 1]} : vector<32x32xf32> to vector<8x32xf32>
    %cst_87 = arith.constant dense<0.000000e+00> : vector<32x32xf32>
    %244 = tpu.matmul %242, %243, %cst_87 {dimension_numbers = #tpu.dot_dimension_numbers<[1], [0], [0], [1], [0, 0, 1, 1], [], []>} : vector<32x8xf32>, vector<8x32xf32>, vector<32x32xf32> -> vector<32x32xf32>
    %245 = arith.addf %224, %244 : vector<32x32xf32>
    %246 = vector.broadcast %162 : vector<1x32xf32> to vector<32x32xf32>
    %247 = arith.addf %245, %246 : vector<32x32xf32>
    %248 = arith.addf %145, %247 : vector<32x32xf32>
    %c0_88 = arith.constant 0 : index
    %c0_89 = arith.constant 0 : index
    %249 = vector.load %arg15[%c0_88, %c0_89] : memref<1x32xf32, #tpu.memory_space<vmem>>, vector<1x32xf32>
    %c0_90 = arith.constant 0 : index
    %c0_91 = arith.constant 0 : index
    %250 = vector.load %arg16[%c0_90, %c0_91] : memref<1x32xf32, #tpu.memory_space<vmem>>, vector<1x32xf32>
    %cst_92 = arith.constant dense<0.000000e+00> : vector<32xf32>
    %251 = vector.multi_reduction <add>, %248, %cst_92 [1] : vector<32x32xf32> to vector<32xf32>
    %252 = vector.shape_cast %251 : vector<32xf32> to vector<32x1xf32>
    %cst_93 = arith.constant 3.200000e+01 : f32
    %253 = vector.broadcast %cst_93 : f32 to vector<32x1xf32>
    %254 = arith.divf %252, %253 : vector<32x1xf32>
    %255 = vector.broadcast %254 : vector<32x1xf32> to vector<32x32xf32>
    %256 = arith.subf %248, %255 : vector<32x32xf32>
    %257 = arith.mulf %256, %256 : vector<32x32xf32>
    %cst_94 = arith.constant dense<0.000000e+00> : vector<32xf32>
    %258 = vector.multi_reduction <add>, %257, %cst_94 [1] : vector<32x32xf32> to vector<32xf32>
    %259 = vector.shape_cast %258 : vector<32xf32> to vector<32x1xf32>
    %cst_95 = arith.constant 3.200000e+01 : f32
    %260 = vector.broadcast %cst_95 : f32 to vector<32x1xf32>
    %261 = arith.divf %259, %260 : vector<32x1xf32>
    %262 = vector.broadcast %254 : vector<32x1xf32> to vector<32x32xf32>
    %263 = arith.subf %248, %262 : vector<32x32xf32>
    %cst_96 = arith.constant 9.99999974E-6 : f32
    %264 = vector.broadcast %cst_96 : f32 to vector<32x1xf32>
    %265 = arith.addf %261, %264 : vector<32x1xf32>
    %266 = math.rsqrt %265 : vector<32x1xf32>
    %267 = vector.broadcast %266 : vector<32x1xf32> to vector<32x32xf32>
    %268 = arith.mulf %263, %267 : vector<32x32xf32>
    %269 = vector.broadcast %249 : vector<1x32xf32> to vector<32x32xf32>
    %270 = arith.mulf %268, %269 : vector<32x32xf32>
    %271 = vector.broadcast %250 : vector<1x32xf32> to vector<32x32xf32>
    %272 = arith.addf %270, %271 : vector<32x32xf32>
    %c0_97 = arith.constant 0 : index
    %c0_98 = arith.constant 0 : index
    %273 = vector.load %arg19[%c0_97, %c0_98] : memref<32x64xf32, #tpu.memory_space<vmem>>, vector<32x64xf32>
    %cst_99 = arith.constant dense<0.000000e+00> : vector<32x64xf32>
    %274 = tpu.matmul %272, %273, %cst_99 {dimension_numbers = #tpu.dot_dimension_numbers<[1], [0], [0], [1], [0, 0, 1, 1], [], []>} : vector<32x32xf32>, vector<32x64xf32>, vector<32x64xf32> -> vector<32x64xf32>
    %c0_100 = arith.constant 0 : index
    %c0_101 = arith.constant 0 : index
    %275 = vector.load %arg20[%c0_100, %c0_101] : memref<1x64xf32, #tpu.memory_space<vmem>>, vector<1x64xf32>
    %276 = vector.broadcast %275 : vector<1x64xf32> to vector<32x64xf32>
    %277 = arith.addf %274, %276 : vector<32x64xf32>
    %278 = arith.mulf %277, %277 : vector<32x64xf32>
    %279 = arith.mulf %277, %278 : vector<32x64xf32>
    %cst_102 = arith.constant 4.471500e-02 : f32
    %280 = vector.broadcast %cst_102 : f32 to vector<32x64xf32>
    %281 = arith.mulf %280, %279 : vector<32x64xf32>
    %282 = arith.addf %277, %281 : vector<32x64xf32>
    %cst_103 = arith.constant 0.797884583 : f32
    %283 = vector.broadcast %cst_103 : f32 to vector<32x64xf32>
    %284 = arith.mulf %283, %282 : vector<32x64xf32>
    %285 = math.tanh %284 : vector<32x64xf32>
    %cst_104 = arith.constant 1.000000e+00 : f32
    %286 = vector.broadcast %cst_104 : f32 to vector<32x64xf32>
    %287 = arith.addf %286, %285 : vector<32x64xf32>
    %cst_105 = arith.constant 5.000000e-01 : f32
    %288 = vector.broadcast %cst_105 : f32 to vector<32x64xf32>
    %289 = arith.mulf %288, %287 : vector<32x64xf32>
    %290 = arith.mulf %277, %289 : vector<32x64xf32>
    %c0_106 = arith.constant 0 : index
    %c0_107 = arith.constant 0 : index
    %291 = vector.load %arg21[%c0_106, %c0_107] : memref<64x32xf32, #tpu.memory_space<vmem>>, vector<64x32xf32>
    %cst_108 = arith.constant dense<0.000000e+00> : vector<32x32xf32>
    %292 = tpu.matmul %290, %291, %cst_108 {dimension_numbers = #tpu.dot_dimension_numbers<[1], [0], [0], [1], [0, 0, 1, 1], [], []>} : vector<32x64xf32>, vector<64x32xf32>, vector<32x32xf32> -> vector<32x32xf32>
    %c0_109 = arith.constant 0 : index
    %c0_110 = arith.constant 0 : index
    %293 = vector.load %arg22[%c0_109, %c0_110] : memref<1x32xf32, #tpu.memory_space<vmem>>, vector<1x32xf32>
    %294 = vector.broadcast %293 : vector<1x32xf32> to vector<32x32xf32>
    %295 = arith.addf %292, %294 : vector<32x32xf32>
    %296 = arith.addf %272, %295 : vector<32x32xf32>
    %c0_111 = arith.constant 0 : index
    %c0_112 = arith.constant 0 : index
    %297 = vector.load %arg17[%c0_111, %c0_112] : memref<1x32xf32, #tpu.memory_space<vmem>>, vector<1x32xf32>
    %c0_113 = arith.constant 0 : index
    %c0_114 = arith.constant 0 : index
    %298 = vector.load %arg18[%c0_113, %c0_114] : memref<1x32xf32, #tpu.memory_space<vmem>>, vector<1x32xf32>
    %cst_115 = arith.constant dense<0.000000e+00> : vector<32xf32>
    %299 = vector.multi_reduction <add>, %296, %cst_115 [1] : vector<32x32xf32> to vector<32xf32>
    %300 = vector.shape_cast %299 : vector<32xf32> to vector<32x1xf32>
    %cst_116 = arith.constant 3.200000e+01 : f32
    %301 = vector.broadcast %cst_116 : f32 to vector<32x1xf32>
    %302 = arith.divf %300, %301 : vector<32x1xf32>
    %303 = vector.broadcast %302 : vector<32x1xf32> to vector<32x32xf32>
    %304 = arith.subf %296, %303 : vector<32x32xf32>
    %305 = arith.mulf %304, %304 : vector<32x32xf32>
    %cst_117 = arith.constant dense<0.000000e+00> : vector<32xf32>
    %306 = vector.multi_reduction <add>, %305, %cst_117 [1] : vector<32x32xf32> to vector<32xf32>
    %307 = vector.shape_cast %306 : vector<32xf32> to vector<32x1xf32>
    %cst_118 = arith.constant 3.200000e+01 : f32
    %308 = vector.broadcast %cst_118 : f32 to vector<32x1xf32>
    %309 = arith.divf %307, %308 : vector<32x1xf32>
    %310 = vector.broadcast %302 : vector<32x1xf32> to vector<32x32xf32>
    %311 = arith.subf %296, %310 : vector<32x32xf32>
    %cst_119 = arith.constant 9.99999974E-6 : f32
    %312 = vector.broadcast %cst_119 : f32 to vector<32x1xf32>
    %313 = arith.addf %309, %312 : vector<32x1xf32>
    %314 = math.rsqrt %313 : vector<32x1xf32>
    %315 = vector.broadcast %314 : vector<32x1xf32> to vector<32x32xf32>
    %316 = arith.mulf %311, %315 : vector<32x32xf32>
    %317 = vector.broadcast %297 : vector<1x32xf32> to vector<32x32xf32>
    %318 = arith.mulf %316, %317 : vector<32x32xf32>
    %319 = vector.broadcast %298 : vector<1x32xf32> to vector<32x32xf32>
    %320 = arith.addf %318, %319 : vector<32x32xf32>
    %321 = vector.shape_cast %320 : vector<32x32xf32> to vector<2x16x32xf32>
    %c0_120 = arith.constant 0 : index
    %c0_121 = arith.constant 0 : index
    %c0_122 = arith.constant 0 : index
    %322 = vector.load %arg23[%c0_120, %c0_121, %c0_122] : memref<2x16x32xf32, #tpu.memory_space<vmem>>, vector<2x16x32xf32>
    tpu.vector_store %arg23[%c0_120, %c0_121, %c0_122], %321 {strides = array<i32>} : memref<2x16x32xf32, #tpu.memory_space<vmem>>, vector<2x16x32xf32>,
    return
  }
  func.func @transform_0(%arg0: i32) -> (i32, i32, i32) {
    %c0_i32 = arith.constant 0 : i32
    %c0_i32_0 = arith.constant 0 : i32
    %c0_i32_1 = arith.constant 0 : i32
    %c0_i32_2 = arith.constant 0 : i32
    return %c0_i32, %c0_i32_0, %c0_i32_1 : i32, i32, i32
  }
  func.func @transform_1(%arg0: i32) -> (i32, i32, i32) {
    %c0_i32 = arith.constant 0 : i32
    %c0_i32_0 = arith.constant 0 : i32
    %c0_i32_1 = arith.constant 0 : i32
    %c0_i32_2 = arith.constant 0 : i32
    return %c0_i32, %c0_i32_0, %c0_i32_1 : i32, i32, i32
  }
  func.func @transform_2(%arg0: i32) -> (i32, i32) {
    %c0_i32 = arith.constant 0 : i32
    %c0_i32_0 = arith.constant 0 : i32
    %c0_i32_1 = arith.constant 0 : i32
    return %c0_i32, %c0_i32_0 : i32, i32
  }
  func.func @transform_3(%arg0: i32) -> (i32, i32) {
    %c0_i32 = arith.constant 0 : i32
    %c0_i32_0 = arith.constant 0 : i32
    %c0_i32_1 = arith.constant 0 : i32
    return %c0_i32, %c0_i32_0 : i32, i32
  }
  func.func @transform_4(%arg0: i32) -> (i32, i32) {
    %c0_i32 = arith.constant 0 : i32
    %c0_i32_0 = arith.constant 0 : i32
    %c0_i32_1 = arith.constant 0 : i32
    return %c0_i32, %c0_i32_0 : i32, i32
  }
  func.func @transform_5(%arg0: i32) -> (i32, i32) {
    %c0_i32 = arith.constant 0 : i32
    %c0_i32_0 = arith.constant 0 : i32
    %c0_i32_1 = arith.constant 0 : i32
    return %c0_i32, %c0_i32_0 : i32, i32
  }
  func.func @transform_6(%arg0: i32) -> (i32, i32) {
    %c0_i32 = arith.constant 0 : i32
    %c0_i32_0 = arith.constant 0 : i32
    %c0_i32_1 = arith.constant 0 : i32
    return %c0_i32, %c0_i32_0 : i32, i32
  }
  func.func @transform_7(%arg0: i32) -> (i32, i32) {
    %c0_i32 = arith.constant 0 : i32
    %c0_i32_0 = arith.constant 0 : i32
    %c0_i32_1 = arith.constant 0 : i32
    return %c0_i32, %c0_i32_0 : i32, i32
  }
  func.func @transform_8(%arg0: i32) -> (i32, i32) {
    %c0_i32 = arith.constant 0 : i32
    %c0_i32_0 = arith.constant 0 : i32
    %c0_i32_1 = arith.constant 0 : i32
    return %c0_i32, %c0_i32_0 : i32, i32
  }
  func.func @transform_9(%arg0: i32) -> (i32, i32) {
    %c0_i32 = arith.constant 0 : i32
    %c0_i32_0 = arith.constant 0 : i32
    %c0_i32_1 = arith.constant 0 : i32
    return %c0_i32, %c0_i32_0 : i32, i32
  }
  func.func @transform_10(%arg0: i32) -> (i32, i32) {
    %c0_i32 = arith.constant 0 : i32
    %c0_i32_0 = arith.constant 0 : i32
    %c0_i32_1 = arith.constant 0 : i32
    return %c0_i32, %c0_i32_0 : i32, i32
  }
  func.func @transform_11(%arg0: i32) -> (i32, i32) {
    %c0_i32 = arith.constant 0 : i32
    %c0_i32_0 = arith.constant 0 : i32
    %c0_i32_1 = arith.constant 0 : i32
    return %c0_i32, %c0_i32_0 : i32, i32
  }
  func.func @transform_12(%arg0: i32) -> (i32, i32) {
    %c0_i32 = arith.constant 0 : i32
    %c0_i32_0 = arith.constant 0 : i32
    %c0_i32_1 = arith.constant 0 : i32
    return %c0_i32, %c0_i32_0 : i32, i32
  }
  func.func @transform_13(%arg0: i32) -> (i32, i32) {
    %c0_i32 = arith.constant 0 : i32
    %c0_i32_0 = arith.constant 0 : i32
    %c0_i32_1 = arith.constant 0 : i32
    return %c0_i32, %c0_i32_0 : i32, i32
  }
  func.func @transform_14(%arg0: i32) -> (i32, i32) {
    %c0_i32 = arith.constant 0 : i32
    %c0_i32_0 = arith.constant 0 : i32
    %c0_i32_1 = arith.constant 0 : i32
    return %c0_i32, %c0_i32_0 : i32, i32
  }
  func.func @transform_15(%arg0: i32) -> (i32, i32) {
    %c0_i32 = arith.constant 0 : i32
    %c0_i32_0 = arith.constant 0 : i32
    %c0_i32_1 = arith.constant 0 : i32
    return %c0_i32, %c0_i32_0 : i32, i32
  }
  func.func @transform_16(%arg0: i32) -> (i32, i32) {
    %c0_i32 = arith.constant 0 : i32
    %c0_i32_0 = arith.constant 0 : i32
    %c0_i32_1 = arith.constant 0 : i32
    return %c0_i32, %c0_i32_0 : i32, i32
  }
  func.func @transform_17(%arg0: i32) -> (i32, i32) {
    %c0_i32 = arith.constant 0 : i32
    %c0_i32_0 = arith.constant 0 : i32
    %c0_i32_1 = arith.constant 0 : i32
    return %c0_i32, %c0_i32_0 : i32, i32
  }
  func.func @transform_18(%arg0: i32) -> (i32, i32) {
    %c0_i32 = arith.constant 0 : i32
    %c0_i32_0 = arith.constant 0 : i32
    %c0_i32_1 = arith.constant 0 : i32
    return %c0_i32, %c0_i32_0 : i32, i32
  }
  func.func @transform_19(%arg0: i32) -> (i32, i32) {
    %c0_i32 = arith.constant 0 : i32
    %c0_i32_0 = arith.constant 0 : i32
    %c0_i32_1 = arith.constant 0 : i32
    return %c0_i32, %c0_i32_0 : i32, i32
  }
  func.func @transform_20(%arg0: i32) -> (i32, i32) {
    %c0_i32 = arith.constant 0 : i32
    %c0_i32_0 = arith.constant 0 : i32
    %c0_i32_1 = arith.constant 0 : i32
    return %c0_i32, %c0_i32_0 : i32, i32
  }
  func.func @transform_21(%arg0: i32) -> (i32, i32) {
    %c0_i32 = arith.constant 0 : i32
    %c0_i32_0 = arith.constant 0 : i32
    %c0_i32_1 = arith.constant 0 : i32
    return %c0_i32, %c0_i32_0 : i32, i32
  }
  func.func @transform_22(%arg0: i32) -> (i32, i32, i32) {
    %c0_i32 = arith.constant 0 : i32
    %c0_i32_0 = arith.constant 0 : i32
    %c0_i32_1 = arith.constant 0 : i32
    %c0_i32_2 = arith.constant 0 : i32
    return %c0_i32, %c0_i32_0, %c0_i32_1 : i32, i32, i32
  }
}

module attributes {stable_mosaic.version = 11 : i64} {
  func.func @_final_kernel(%arg0: i32, %arg1: memref<2x16x32xf32, #tpu.memory_space<vmem>>, %arg2: memref<1x32xf32, #tpu.memory_space<vmem>>, %arg3: memref<1x32xf32, #tpu.memory_space<vmem>>, %arg4: memref<32x4xf32, #tpu.memory_space<vmem>>, %arg5: memref<1x4xf32, #tpu.memory_space<vmem>>, %arg6: memref<2x16x4xf32, #tpu.memory_space<vmem>>) attributes {dimension_semantics = [#tpu.dimension_semantics<arbitrary>], iteration_bounds = array<i64: 1>, scalar_prefetch = 0 : i64, scratch_operands = 0 : i64, tpu.core_type = #tpu.core_type<tc>, window_params = [{pipeline_mode = #tpu.pipeline_mode<synchronous>, transform_indices = @transform_0, window_bounds = array<i64: 2, 16, 32>}, {pipeline_mode = #tpu.pipeline_mode<synchronous>, transform_indices = @transform_1, window_bounds = array<i64: 1, 32>}, {pipeline_mode = #tpu.pipeline_mode<synchronous>, transform_indices = @transform_2, window_bounds = array<i64: 1, 32>}, {pipeline_mode = #tpu.pipeline_mode<synchronous>, transform_indices = @transform_3, window_bounds = array<i64: 32, 4>}, {pipeline_mode = #tpu.pipeline_mode<synchronous>, transform_indices = @transform_4, window_bounds = array<i64: 1, 4>}, {pipeline_mode = #tpu.pipeline_mode<synchronous>, transform_indices = @transform_5, window_bounds = array<i64: 2, 16, 4>}]} {
    %c0 = arith.constant 0 : index
    %c0_0 = arith.constant 0 : index
    %c0_1 = arith.constant 0 : index
    %0 = vector.load %arg1[%c0, %c0_0, %c0_1] : memref<2x16x32xf32, #tpu.memory_space<vmem>>, vector<2x16x32xf32>
    %1 = vector.shape_cast %0 : vector<2x16x32xf32> to vector<32x32xf32>
    %c0_2 = arith.constant 0 : index
    %c0_3 = arith.constant 0 : index
    %2 = vector.load %arg2[%c0_2, %c0_3] : memref<1x32xf32, #tpu.memory_space<vmem>>, vector<1x32xf32>
    %c0_4 = arith.constant 0 : index
    %c0_5 = arith.constant 0 : index
    %3 = vector.load %arg3[%c0_4, %c0_5] : memref<1x32xf32, #tpu.memory_space<vmem>>, vector<1x32xf32>
    %cst = arith.constant dense<0.000000e+00> : vector<32xf32>
    %4 = vector.multi_reduction <add>, %1, %cst [1] : vector<32x32xf32> to vector<32xf32>
    %5 = vector.shape_cast %4 : vector<32xf32> to vector<32x1xf32>
    %cst_6 = arith.constant 3.200000e+01 : f32
    %6 = vector.broadcast %cst_6 : f32 to vector<32x1xf32>
    %7 = arith.divf %5, %6 : vector<32x1xf32>
    %8 = vector.broadcast %7 : vector<32x1xf32> to vector<32x32xf32>
    %9 = arith.subf %1, %8 : vector<32x32xf32>
    %10 = arith.mulf %9, %9 : vector<32x32xf32>
    %cst_7 = arith.constant dense<0.000000e+00> : vector<32xf32>
    %11 = vector.multi_reduction <add>, %10, %cst_7 [1] : vector<32x32xf32> to vector<32xf32>
    %12 = vector.shape_cast %11 : vector<32xf32> to vector<32x1xf32>
    %cst_8 = arith.constant 3.200000e+01 : f32
    %13 = vector.broadcast %cst_8 : f32 to vector<32x1xf32>
    %14 = arith.divf %12, %13 : vector<32x1xf32>
    %15 = vector.broadcast %7 : vector<32x1xf32> to vector<32x32xf32>
    %16 = arith.subf %1, %15 : vector<32x32xf32>
    %cst_9 = arith.constant 9.99999974E-6 : f32
    %17 = vector.broadcast %cst_9 : f32 to vector<32x1xf32>
    %18 = arith.addf %14, %17 : vector<32x1xf32>
    %19 = math.rsqrt %18 : vector<32x1xf32>
    %20 = vector.broadcast %19 : vector<32x1xf32> to vector<32x32xf32>
    %21 = arith.mulf %16, %20 : vector<32x32xf32>
    %22 = vector.broadcast %2 : vector<1x32xf32> to vector<32x32xf32>
    %23 = arith.mulf %21, %22 : vector<32x32xf32>
    %24 = vector.broadcast %3 : vector<1x32xf32> to vector<32x32xf32>
    %25 = arith.addf %23, %24 : vector<32x32xf32>
    %c0_10 = arith.constant 0 : index
    %c0_11 = arith.constant 0 : index
    %26 = vector.load %arg4[%c0_10, %c0_11] : memref<32x4xf32, #tpu.memory_space<vmem>>, vector<32x4xf32>
    %cst_12 = arith.constant dense<0.000000e+00> : vector<32x4xf32>
    %27 = tpu.matmul %25, %26, %cst_12 {dimension_numbers = #tpu.dot_dimension_numbers<[1], [0], [0], [1], [0, 0, 1, 1], [], []>} : vector<32x32xf32>, vector<32x4xf32>, vector<32x4xf32> -> vector<32x4xf32>
    %c0_13 = arith.constant 0 : index
    %c0_14 = arith.constant 0 : index
    %28 = vector.load %arg5[%c0_13, %c0_14] : memref<1x4xf32, #tpu.memory_space<vmem>>, vector<1x4xf32>
    %29 = vector.broadcast %28 : vector<1x4xf32> to vector<32x4xf32>
    %30 = arith.addf %27, %29 : vector<32x4xf32>
    %31 = vector.shape_cast %30 : vector<32x4xf32> to vector<2x16x4xf32>
    %c0_15 = arith.constant 0 : index
    %c0_16 = arith.constant 0 : index
    %c0_17 = arith.constant 0 : index
    %32 = vector.load %arg6[%c0_15, %c0_16, %c0_17] : memref<2x16x4xf32, #tpu.memory_space<vmem>>, vector<2x16x4xf32>
    tpu.vector_store %arg6[%c0_15, %c0_16, %c0_17], %31 {strides = array<i32>} : memref<2x16x4xf32, #tpu.memory_space<vmem>>, vector<2x16x4xf32>,
    return
  }
  func.func @transform_0(%arg0: i32) -> (i32, i32, i32) {
    %c0_i32 = arith.constant 0 : i32
    %c0_i32_0 = arith.constant 0 : i32
    %c0_i32_1 = arith.constant 0 : i32
    %c0_i32_2 = arith.constant 0 : i32
    return %c0_i32, %c0_i32_0, %c0_i32_1 : i32, i32, i32
  }
  func.func @transform_1(%arg0: i32) -> (i32, i32) {
    %c0_i32 = arith.constant 0 : i32
    %c0_i32_0 = arith.constant 0 : i32
    %c0_i32_1 = arith.constant 0 : i32
    return %c0_i32, %c0_i32_0 : i32, i32
  }
  func.func @transform_2(%arg0: i32) -> (i32, i32) {
    %c0_i32 = arith.constant 0 : i32
    %c0_i32_0 = arith.constant 0 : i32
    %c0_i32_1 = arith.constant 0 : i32
    return %c0_i32, %c0_i32_0 : i32, i32
  }
  func.func @transform_3(%arg0: i32) -> (i32, i32) {
    %c0_i32 = arith.constant 0 : i32
    %c0_i32_0 = arith.constant 0 : i32
    %c0_i32_1 = arith.constant 0 : i32
    return %c0_i32, %c0_i32_0 : i32, i32
  }
  func.func @transform_4(%arg0: i32) -> (i32, i32) {
    %c0_i32 = arith.constant 0 : i32
    %c0_i32_0 = arith.constant 0 : i32
    %c0_i32_1 = arith.constant 0 : i32
    return %c0_i32, %c0_i32_0 : i32, i32
  }
  func.func @transform_5(%arg0: i32) -> (i32, i32, i32) {
    %c0_i32 = arith.constant 0 : i32
    %c0_i32_0 = arith.constant 0 : i32
    %c0_i32_1 = arith.constant 0 : i32
    %c0_i32_2 = arith.constant 0 : i32
    return %c0_i32, %c0_i32_0, %c0_i32_1 : i32, i32, i32
  }
}

</mosaic_0001>

<llo_original>
// kernel: _lambda_.8
$region0: #{_lambda_.8}
  #allocation0 [shape = 'u32[]', space=smem, size = 0x4, offset = 0x4, fixed_abs, tag = 'smem constant byte address 0x4 - core index']
  #allocation1 [shape = 'u32[144,128]{1,0:T(1,128)}', space=vmem, size = 0x12000, scoped, tag = 'internal scratch']
  %s0 = inlined_call_operand.vmem [shape: f32[2,16,32], index: 0, kind: input, shape index: {}]
  %s1 = inlined_call_operand.vmem [shape: f32[1,32], index: 1, kind: input, shape index: {}]
  %s2 = inlined_call_operand.vmem [shape: f32[1,32], index: 2, kind: input, shape index: {}]
  %s3 = inlined_call_operand.vmem [shape: f32[2,16,32], index: 3, kind: output, shape index: {}]
  %s4 = sld [smem:[#allocation0]]
  $region22: #{_lambda_.8} parent=0
    _
  %s6 = ssub.s32 1, %s4
  %s7 = scalar_select 0, %s6, %s4
  // Predicated region
  $region2: #{_lambda_.8} parent=0 // pred_check
    _
  $region3: #{_lambda_.8} parent=0 // pred_check_branch
    %9 = sbr.rel (0) target = $region5
  $region4: #{_lambda_.8} parent=0 // pred_region
    _
  $region5: #{_lambda_.8} parent=0 // pred_fallthru
    _
  // Predicated region
  $region6: #{_lambda_.8} parent=0 // pred_check
    _
  $region7: #{_lambda_.8} parent=0 // pred_check_branch
    %11 = sbr.rel (0) target = $region9
  $region8: #{_lambda_.8} parent=0 // pred_region
    _
  $region9: #{_lambda_.8} parent=0 // pred_fallthru
    _
  // Predicated region
  $region10: #{_lambda_.8} parent=0 // pred_check
    _
  $region11: #{_lambda_.8} parent=0 // pred_check_branch
    %13 = sbr.rel (0) target = $region13
  $region12: #{_lambda_.8} parent=0 // pred_region
    _
  $region13: #{_lambda_.8} parent=0 // pred_fallthru
    _
  %v14 = vld [vmem:[%s0] sm:$0xff]
  %v15 = vld [vmem:[%s0 + $0x8] sm:$0xff]
  %v16 = vld [vmem:[%s0 + $0x10] sm:$0xff]
  %v17 = vld [vmem:[%s0 + $0x18] sm:$0xff]
  %v18 = vld [vmem:[%s1] sm:$0x1]
  %v19 = vld [vmem:[%s2] sm:$0x1]
  %vm20 = vcmask 261120
  %v21 = vsel %vm20, %v14, 0.0
  %22 = vadd.xlane.f32.xlu0 %v21
  %v23 = vpop.xlane.xlu0 %22
  %v24 = vsel %vm20, %v15, 0.0
  %25 = vadd.xlane.f32.xlu0 %v24
  %v26 = vpop.xlane.xlu0 %25
  %v27 = vsel %vm20, %v16, 0.0
  %28 = vadd.xlane.f32.xlu0 %v27
  %v29 = vpop.xlane.xlu0 %28
  %v30 = vsel %vm20, %v17, 0.0
  %31 = vadd.xlane.f32.xlu0 %v30
  %v32 = vpop.xlane.xlu0 %31
  %v33 = vrcp.pop 32.0
  %v34 = vmul.f32 %v23, %v33
  %v35 = vmul.f32 %v26, %v33
  %v36 = vmul.f32 %v29, %v33
  %v37 = vmul.f32 %v32, %v33
  %v38 = vsub.f32 %v14, %v34
  %v39 = vsub.f32 %v15, %v35
  %v40 = vsub.f32 %v16, %v36
  %v41 = vsub.f32 %v17, %v37
  %v42 = vmul.f32 %v38, %v38
  %v43 = vmul.f32 %v39, %v39
  %v44 = vmul.f32 %v40, %v40
  %v45 = vmul.f32 %v41, %v41
  %v46 = vsel %vm20, %v42, 0.0
  %47 = vadd.xlane.f32.xlu0 %v46
  %v48 = vpop.xlane.xlu0 %47
  %v49 = vsel %vm20, %v43, 0.0
  %50 = vadd.xlane.f32.xlu0 %v49
  %v51 = vpop.xlane.xlu0 %50
  %v52 = vsel %vm20, %v44, 0.0
  %53 = vadd.xlane.f32.xlu0 %v52
  %v54 = vpop.xlane.xlu0 %53
  %v55 = vsel %vm20, %v45, 0.0
  %56 = vadd.xlane.f32.xlu0 %v55
  %v57 = vpop.xlane.xlu0 %56
  %v58 = vmul.f32 %v48, %v33
  %v59 = vmul.f32 %v51, %v33
  %v60 = vmul.f32 %v54, %v33
  %v61 = vmul.f32 %v57, %v33
  %v62 = vadd.f32 %v58, 1e-05
  %v63 = vadd.f32 %v59, 1e-05
  %v64 = vadd.f32 %v60, 1e-05
  %v65 = vadd.f32 %v61, 1e-05
  %v66 = vrsqrt.pop %v62
  %v67 = vrsqrt.pop %v63
  %v68 = vrsqrt.pop %v64
  %v69 = vrsqrt.pop %v65
  %v70 = vmul.f32 %v38, %v66
  %v71 = vmul.f32 %v39, %v67
  %v72 = vmul.f32 %v40, %v68
  %v73 = vmul.f32 %v41, %v69
  %v75 = vlaneseq
  %v76 = vshrl.u32 %v75, 7
  %v77 = vsub.s32 0, %v76
  %v78 = vrot.slane %v18, %v77
  %v80 = vmul.f32 %v70, %v78
  %v81 = vmul.f32 %v71, %v78
  %v82 = vmul.f32 %v72, %v78
  %v83 = vmul.f32 %v73, %v78
  %v85 = vlaneseq
  %v86 = vshrl.u32 %v85, 7
  %v87 = vsub.s32 0, %v86
  %v88 = vrot.slane %v19, %v87
  %v90 = vadd.f32 %v80, %v88
  %v91 = vadd.f32 %v81, %v88
  %v92 = vadd.f32 %v82, %v88
  %v93 = vadd.f32 %v83, %v88
  %94 = vst.msk [vmem:[%s3] sm:$0xff] %vm20, %v90
  %95 = vst.msk [vmem:[%s3 + $0x8] sm:$0xff] %vm20, %v91
  %96 = vst.msk [vmem:[%s3 + $0x10] sm:$0xff] %vm20, %v92
  %97 = vst.msk [vmem:[%s3 + $0x18] sm:$0xff] %vm20, %v93
  // Predicated region
  $region14: #{_lambda_.8} parent=0 // pred_check
    _
  $region15: #{_lambda_.8} parent=0 // pred_check_branch
    %99 = sbr.rel (0) target = $region17
  $region16: #{_lambda_.8} parent=0 // pred_region
    _
  $region17: #{_lambda_.8} parent=0 // pred_fallthru
    _
  // Predicated region
  $region18: #{_lambda_.8} parent=0 // pred_check
    _
  $region19: #{_lambda_.8} parent=0 // pred_check_branch
    %101 = sbr.rel (0) target = $region21
  $region20: #{_lambda_.8} parent=0 // pred_region
    _
  $region21: #{_lambda_.8} parent=0 // pred_fallthru
    _

// kernel: _lambda_.6
$region0: #{_lambda_.6}
  #allocation0 [shape = 'u32[]', space=smem, size = 0x4, offset = 0x4, fixed_abs, tag = 'smem constant byte address 0x4 - core index']
  #allocation1 [shape = 'u32[144,128]{1,0:T(1,128)}', space=vmem, size = 0x12000, scoped, tag = 'internal scratch']
  %s0 = inlined_call_operand.vmem [shape: f32[2,16,12], index: 0, kind: input, shape index: {}]
  %s1 = inlined_call_operand.vmem [shape: f32[2,16,4], index: 1, kind: input, shape index: {}]
  %s2 = inlined_call_operand.vmem [shape: f32[12,32], index: 2, kind: input, shape index: {}]
  %s3 = inlined_call_operand.vmem [shape: f32[4,32], index: 3, kind: input, shape index: {}]
  %s4 = inlined_call_operand.vmem [shape: f32[1,16,32], index: 4, kind: input, shape index: {}]
  %s5 = inlined_call_operand.vmem [shape: f32[2,16,32], index: 5, kind: output, shape index: {}]
  %s6 = sld [smem:[#allocation0]]
  $region30: #{_lambda_.6} parent=0
    _
  %s8 = ssub.s32 1, %s6
  %s9 = scalar_select 0, %s8, %s6
  // Predicated region
  $region2: #{_lambda_.6} parent=0 // pred_check
    _
  $region3: #{_lambda_.6} parent=0 // pred_check_branch
    %11 = sbr.rel (0) target = $region5
  $region4: #{_lambda_.6} parent=0 // pred_region
    _
  $region5: #{_lambda_.6} parent=0 // pred_fallthru
    _
  // Predicated region
  $region6: #{_lambda_.6} parent=0 // pred_check
    _
  $region7: #{_lambda_.6} parent=0 // pred_check_branch
    %13 = sbr.rel (0) target = $region9
  $region8: #{_lambda_.6} parent=0 // pred_region
    _
  $region9: #{_lambda_.6} parent=0 // pred_fallthru
    _
  // Predicated region
  $region10: #{_lambda_.6} parent=0 // pred_check
    _
  $region11: #{_lambda_.6} parent=0 // pred_check_branch
    %15 = sbr.rel (0) target = $region13
  $region12: #{_lambda_.6} parent=0 // pred_region
    _
  $region13: #{_lambda_.6} parent=0 // pred_fallthru
    _
  // Predicated region
  $region14: #{_lambda_.6} parent=0 // pred_check
    _
  $region15: #{_lambda_.6} parent=0 // pred_check_branch
    %17 = sbr.rel (0) target = $region17
  $region16: #{_lambda_.6} parent=0 // pred_region
    _
  $region17: #{_lambda_.6} parent=0 // pred_fallthru
    _
  // Predicated region
  $region18: #{_lambda_.6} parent=0 // pred_check
    _
  $region19: #{_lambda_.6} parent=0 // pred_check_branch
    %19 = sbr.rel (0) target = $region21
  $region20: #{_lambda_.6} parent=0 // pred_region
    _
  $region21: #{_lambda_.6} parent=0 // pred_fallthru
    _
  %v20 = vld [vmem:[%s0] sm:$0xff]
  %v21 = vld [vmem:[%s0 + $0x8] sm:$0xff]
  %v22 = vld [vmem:[%s0 + $0x10] sm:$0xff]
  %v23 = vld [vmem:[%s0 + $0x18] sm:$0xff]
  %v24 = vld [vmem:[%s1] sm:$0xff]
  %v25 = vld [vmem:[%s1 + $0x8] sm:$0xff]
  %v26 = vld [vmem:[%s1 + $0x10] sm:$0xff]
  %v27 = vld [vmem:[%s1 + $0x18] sm:$0xff]
  %v28 = vld [vmem:[%s2] sm:$0xff]
  %v29 = vld [vmem:[%s2 + $0x8] sm:$0xf]
  %v30 = vld [vmem:[%s3] sm:$0xf]
  %vm31 = vcmask 31744
  %v33 = vsel %vm31, %v24, 0
  %v36 = vsel %vm31, %v25, 0
  %v39 = vsel %vm31, %v26, 0
  %v42 = vsel %vm31, %v27, 0
  %vm44 = vcmask 1043456
  %v46 = vsel %vm44, %v30, 0
  %48 = vmatprep.subr.mxu0 0.0
  %49 = vmatpush1.msra.mxu0 %v46
  %50 = vmatprep.subr.mxu0 0.0
  %51 = vmatpush1.msra.mxu0 0.0
  %52 = vmatprep.subr.mxu0 0.0
  %53 = vmatpush1.msra.mxu0 0.0
  %54 = vmatprep.subr.mxu0 0.0
  %55 = vmatpush1.msra.mxu0 0.0
  %56 = vmatprep.subr.mxu0 0.0
  %57 = vmatpush1.msra.mxu0 0.0
  %58 = vmatprep.subr.mxu0 0.0
  %59 = vmatpush1.msra.mxu0 0.0
  %60 = vmatprep.subr.mxu0 0.0
  %61 = vmatpush1.msra.mxu0 0.0
  %62 = vmatprep.subr.mxu0 0.0
  %63 = vmatpush1.msra.mxu0 0.0
  %64 = vmatprep.subr.mxu0 0.0
  %65 = vmatpush1.msra.mxu0 0.0
  %66 = vmatprep.subr.mxu0 0.0
  %67 = vmatpush1.msra.mxu0 0.0
  %68 = vmatprep.subr.mxu0 0.0
  %69 = vmatpush1.msra.mxu0 0.0
  %70 = vmatprep.subr.mxu0 0.0
  %71 = vmatpush1.msra.mxu0 0.0
  %72 = vmatprep.subr.mxu0 0.0
  %73 = vmatpush1.msra.mxu0 0.0
  %74 = vmatprep.subr.mxu0 0.0
  %75 = vmatpush1.msra.mxu0 0.0
  %76 = vmatprep.subr.mxu0 0.0
  %77 = vmatpush1.msra.mxu0 0.0
  %78 = vmatprep.subr.mxu0 0.0
  %79 = vmatpush1.msra.mxu0 0.0
  %80 = vmatprep.subr.mxu0 0.0
  %81 = vmatpush1.msra.mxu0 0.0
  %82 = vmatprep.subr.mxu0 0.0
  %83 = vmatpush1.msra.mxu0 0.0
  %84 = vmatprep.subr.mxu0 0.0
  %85 = vmatpush1.msra.mxu0 0.0
  %86 = vmatprep.subr.mxu0 0.0
  %87 = vmatpush1.msra.mxu0 0.0
  %88 = vmatprep.subr.mxu0 0.0
  %89 = vmatpush1.msra.mxu0 0.0
  %90 = vmatprep.subr.mxu0 0.0
  %91 = vmatpush1.msra.mxu0 0.0
  %92 = vmatprep.subr.mxu0 0.0
  %93 = vmatpush1.msra.mxu0 0.0
  %94 = vmatprep.subr.mxu0 0.0
  %95 = vmatpush1.msra.mxu0 0.0
  %96 = vmatprep.subr.mxu0 0.0
  %97 = vmatpush1.msra.mxu0 0.0
  %98 = vmatprep.subr.mxu0 0.0
  %99 = vmatpush1.msra.mxu0 0.0
  %100 = vmatprep.subr.mxu0 0.0
  %101 = vmatpush1.msra.mxu0 0.0
  %102 = vmatprep.subr.mxu0 0.0
  %103 = vmatpush1.msra.mxu0 0.0
  %104 = vmatprep.subr.mxu0 0.0
  %105 = vmatpush1.msra.mxu0 0.0
  %106 = vmatprep.subr.mxu0 0.0
  %107 = vmatpush1.msra.mxu0 0.0
  %108 = vmatprep.subr.mxu0 0.0
  %109 = vmatpush1.msra.mxu0 0.0
  %110 = vmatprep.subr.mxu0 0.0
  %111 = vmatpush1.msra.mxu0 0.0
  %112 = vmatprep.mubr.f32.mxu0 0.0
  %113 = vmatmul.mubr.f32.gmra.mrb[0].mxu0 %v33
  %v114 = vpop.f32.mrb[0].mxu0
  %v115 = vadd.f32 0.0, %v114
  %v116 = vpop.f32.mrb[0].mxu0
  %117 = vmatprep.mubr.f32.mxu0 0.0
  %118 = vmatmul.mubr.f32.gmra.mrb[0].mxu0 %v36
  %v119 = vpop.f32.mrb[0].mxu0
  %v120 = vadd.f32 0.0, %v119
  %v121 = vpop.f32.mrb[0].mxu0
  %122 = vmatprep.mubr.f32.mxu0 0.0
  %123 = vmatmul.mubr.f32.gmra.mrb[0].mxu0 %v39
  %v124 = vpop.f32.mrb[0].mxu0
  %v125 = vadd.f32 0.0, %v124
  %v126 = vpop.f32.mrb[0].mxu0
  %127 = vmatprep.mubr.f32.mxu0 0.0
  %128 = vmatmul.mubr.f32.gmra.mrb[0].mxu0 %v42
  %v129 = vpop.f32.mrb[0].mxu0
  %v130 = vadd.f32 0.0, %v129
  %v131 = vpop.f32.mrb[0].mxu0
  %132 = vdwg.mxu0
  %vm133 = vcmask 97280
  %v135 = vsel %vm133, %v20, 0
  %v138 = vsel %vm133, %v21, 0
  %v141 = vsel %vm133, %v22, 0
  %v144 = vsel %vm133, %v23, 0
  %v147 = vsel %vm44, %v29, 0
  %149 = vmatprep.subr.mxu0 0.0
  %150 = vmatpush1.msra.mxu0 %v28
  %151 = vmatprep.subr.mxu0 0.0
  %152 = vmatpush1.msra.mxu0 %v147
  %153 = vmatprep.subr.mxu0 0.0
  %154 = vmatpush1.msra.mxu0 0.0
  %155 = vmatprep.subr.mxu0 0.0
  %156 = vmatpush1.msra.mxu0 0.0
  %157 = vmatprep.subr.mxu0 0.0
  %158 = vmatpush1.msra.mxu0 0.0
  %159 = vmatprep.subr.mxu0 0.0
  %160 = vmatpush1.msra.mxu0 0.0
  %161 = vmatprep.subr.mxu0 0.0
  %162 = vmatpush1.msra.mxu0 0.0
  %163 = vmatprep.subr.mxu0 0.0
  %164 = vmatpush1.msra.mxu0 0.0
  %165 = vmatprep.subr.mxu0 0.0
  %166 = vmatpush1.msra.mxu0 0.0
  %167 = vmatprep.subr.mxu0 0.0
  %168 = vmatpush1.msra.mxu0 0.0
  %169 = vmatprep.subr.mxu0 0.0
  %170 = vmatpush1.msra.mxu0 0.0
  %171 = vmatprep.subr.mxu0 0.0
  %172 = vmatpush1.msra.mxu0 0.0
  %173 = vmatprep.subr.mxu0 0.0
  %174 = vmatpush1.msra.mxu0 0.0
  %175 = vmatprep.subr.mxu0 0.0
  %176 = vmatpush1.msra.mxu0 0.0
  %177 = vmatprep.subr.mxu0 0.0
  %178 = vmatpush1.msra.mxu0 0.0
  %179 = vmatprep.subr.mxu0 0.0
  %180 = vmatpush1.msra.mxu0 0.0
  %181 = vmatprep.subr.mxu0 0.0
  %182 = vmatpush1.msra.mxu0 0.0
  %183 = vmatprep.subr.mxu0 0.0
  %184 = vmatpush1.msra.mxu0 0.0
  %185 = vmatprep.subr.mxu0 0.0
  %186 = vmatpush1.msra.mxu0 0.0
  %187 = vmatprep.subr.mxu0 0.0
  %188 = vmatpush1.msra.mxu0 0.0
  %189 = vmatprep.subr.mxu0 0.0
  %190 = vmatpush1.msra.mxu0 0.0
  %191 = vmatprep.subr.mxu0 0.0
  %192 = vmatpush1.msra.mxu0 0.0
  %193 = vmatprep.subr.mxu0 0.0
  %194 = vmatpush1.msra.mxu0 0.0
  %195 = vmatprep.subr.mxu0 0.0
  %196 = vmatpush1.msra.mxu0 0.0
  %197 = vmatprep.subr.mxu0 0.0
  %198 = vmatpush1.msra.mxu0 0.0
  %199 = vmatprep.subr.mxu0 0.0
  %200 = vmatpush1.msra.mxu0 0.0
  %201 = vmatprep.subr.mxu0 0.0
  %202 = vmatpush1.msra.mxu0 0.0
  %203 = vmatprep.subr.mxu0 0.0
  %204 = vmatpush1.msra.mxu0 0.0
  %205 = vmatprep.subr.mxu0 0.0
  %206 = vmatpush1.msra.mxu0 0.0
  %207 = vmatprep.subr.mxu0 0.0
  %208 = vmatpush1.msra.mxu0 0.0
  %209 = vmatprep.subr.mxu0 0.0
  %210 = vmatpush1.msra.mxu0 0.0
  %211 = vmatprep.subr.mxu0 0.0
  %212 = vmatpush1.msra.mxu0 0.0
  %213 = vmatprep.mubr.f32.mxu0 0.0
  %214 = vmatmul.mubr.f32.gmra.mrb[0].mxu0 %v135
  %v215 = vpop.f32.mrb[0].mxu0
  %v216 = vadd.f32 %v115, %v215
  %v217 = vpop.f32.mrb[0].mxu0
  %218 = vmatprep.mubr.f32.mxu0 0.0
  %219 = vmatmul.mubr.f32.gmra.mrb[0].mxu0 %v138
  %v220 = vpop.f32.mrb[0].mxu0
  %v221 = vadd.f32 %v120, %v220
  %v222 = vpop.f32.mrb[0].mxu0
  %223 = vmatprep.mubr.f32.mxu0 0.0
  %224 = vmatmul.mubr.f32.gmra.mrb[0].mxu0 %v141
  %v225 = vpop.f32.mrb[0].mxu0
  %v226 = vadd.f32 %v125, %v225
  %v227 = vpop.f32.mrb[0].mxu0
  %228 = vmatprep.mubr.f32.mxu0 0.0
  %229 = vmatmul.mubr.f32.gmra.mrb[0].mxu0 %v144
  %v230 = vpop.f32.mrb[0].mxu0
  %v231 = vadd.f32 %v130, %v230
  %v232 = vpop.f32.mrb[0].mxu0
  %233 = vdwg.mxu0
  %v234 = vld [vmem:[%s4] sm:$0xff]
  %v235 = vld [vmem:[%s4 + $0x8] sm:$0xff]
  %v236 = vadd.f32 %v216, %v234
  %v237 = vadd.f32 %v221, %v235
  %v238 = vadd.f32 %v226, %v234
  %v239 = vadd.f32 %v231, %v235
  %vm240 = vcmask 261120
  %241 = vst.msk [vmem:[%s5] sm:$0xff] %vm240, %v236
  %242 = vst.msk [vmem:[%s5 + $0x8] sm:$0xff] %vm240, %v237
  %243 = vst.msk [vmem:[%s5 + $0x10] sm:$0xff] %vm240, %v238
  %244 = vst.msk [vmem:[%s5 + $0x18] sm:$0xff] %vm240, %v239
  // Predicated region
  $region22: #{_lambda_.6} parent=0 // pred_check
    _
  $region23: #{_lambda_.6} parent=0 // pred_check_branch
    %246 = sbr.rel (0) target = $region25
  $region24: #{_lambda_.6} parent=0 // pred_region
    _
  $region25: #{_lambda_.6} parent=0 // pred_fallthru
    _
  // Predicated region
  $region26: #{_lambda_.6} parent=0 // pred_check
    _
  $region27: #{_lambda_.6} parent=0 // pred_check_branch
    %248 = sbr.rel (0) target = $region29
  $region28: #{_lambda_.6} parent=0 // pred_region
    _
  $region29: #{_lambda_.6} parent=0 // pred_fallthru
    _

// kernel: _lambda_.7
$region0: #{_lambda_.7}
  #allocation0 [shape = 'u32[]', space=smem, size = 0x4, offset = 0x4, fixed_abs, tag = 'smem constant byte address 0x4 - core index']
  #allocation1 [shape = 'u32[144,128]{1,0:T(1,128)}', space=vmem, size = 0x12000, scoped, tag = 'internal scratch']
  %s0 = inlined_call_operand.vmem [shape: f32[2,16,32], index: 0, kind: input, shape index: {}]
  %s1 = inlined_call_operand.vmem [shape: f32[32,96], index: 1, kind: input, shape index: {}]
  %s2 = inlined_call_operand.vmem [shape: f32[1,96], index: 2, kind: input, shape index: {}]
  %s3 = inlined_call_operand.vmem [shape: f32[32,32], index: 3, kind: input, shape index: {}]
  %s4 = inlined_call_operand.vmem [shape: f32[1,32], index: 4, kind: input, shape index: {}]
  %s5 = inlined_call_operand.vmem [shape: f32[1,32], index: 5, kind: input, shape index: {}]
  %s6 = inlined_call_operand.vmem [shape: f32[1,32], index: 6, kind: input, shape index: {}]
  %s7 = inlined_call_operand.vmem [shape: f32[32,64], index: 7, kind: input, shape index: {}]
  %s8 = inlined_call_operand.vmem [shape: f32[1,64], index: 8, kind: input, shape index: {}]
  %s9 = inlined_call_operand.vmem [shape: f32[64,32], index: 9, kind: input, shape index: {}]
  %s10 = inlined_call_operand.vmem [shape: f32[1,32], index: 10, kind: input, shape index: {}]
  %s11 = inlined_call_operand.vmem [shape: f32[1,32], index: 11, kind: input, shape index: {}]
  %s12 = inlined_call_operand.vmem [shape: f32[1,32], index: 12, kind: input, shape index: {}]
  %s13 = inlined_call_operand.vmem [shape: f32[2,16,32], index: 13, kind: output, shape index: {}]
  %s14 = sld [smem:[#allocation0]]
  $region62: #{_lambda_.7} parent=0
    _
  %s16 = ssub.s32 1, %s14
  %s17 = scalar_select 0, %s16, %s14
  // Predicated region
  $region2: #{_lambda_.7} parent=0 // pred_check
    _
  $region3: #{_lambda_.7} parent=0 // pred_check_branch
    %19 = sbr.rel (0) target = $region5
  $region4: #{_lambda_.7} parent=0 // pred_region
    _
  $region5: #{_lambda_.7} parent=0 // pred_fallthru
    _
  // Predicated region
  $region6: #{_lambda_.7} parent=0 // pred_check
    _
  $region7: #{_lambda_.7} parent=0 // pred_check_branch
    %21 = sbr.rel (0) target = $region9
  $region8: #{_lambda_.7} parent=0 // pred_region
    _
  $region9: #{_lambda_.7} parent=0 // pred_fallthru
    _
  // Predicated region
  $region10: #{_lambda_.7} parent=0 // pred_check
    _
  $region11: #{_lambda_.7} parent=0 // pred_check_branch
    %23 = sbr.rel (0) target = $region13
  $region12: #{_lambda_.7} parent=0 // pred_region
    _
  $region13: #{_lambda_.7} parent=0 // pred_fallthru
    _
  // Predicated region
  $region14: #{_lambda_.7} parent=0 // pred_check
    _
  $region15: #{_lambda_.7} parent=0 // pred_check_branch
    %25 = sbr.rel (0) target = $region17
  $region16: #{_lambda_.7} parent=0 // pred_region
    _
  $region17: #{_lambda_.7} parent=0 // pred_fallthru
    _
  // Predicated region
  $region18: #{_lambda_.7} parent=0 // pred_check
    _
  $region19: #{_lambda_.7} parent=0 // pred_check_branch
    %27 = sbr.rel (0) target = $region21
  $region20: #{_lambda_.7} parent=0 // pred_region
    _
  $region21: #{_lambda_.7} parent=0 // pred_fallthru
    _
  // Predicated region
  $region22: #{_lambda_.7} parent=0 // pred_check
    _
  $region23: #{_lambda_.7} parent=0 // pred_check_branch
    %29 = sbr.rel (0) target = $region25
  $region24: #{_lambda_.7} parent=0 // pred_region
    _
  $region25: #{_lambda_.7} parent=0 // pred_fallthru
    _
  // Predicated region
  $region26: #{_lambda_.7} parent=0 // pred_check
    _
  $region27: #{_lambda_.7} parent=0 // pred_check_branch
    %31 = sbr.rel (0) target = $region29
  $region28: #{_lambda_.7} parent=0 // pred_region
    _
  $region29: #{_lambda_.7} parent=0 // pred_fallthru
    _
  // Predicated region
  $region30: #{_lambda_.7} parent=0 // pred_check
    _
  $region31: #{_lambda_.7} parent=0 // pred_check_branch
    %33 = sbr.rel (0) target = $region33
  $region32: #{_lambda_.7} parent=0 // pred_region
    _
  $region33: #{_lambda_.7} parent=0 // pred_fallthru
    _
  // Predicated region
  $region34: #{_lambda_.7} parent=0 // pred_check
    _
  $region35: #{_lambda_.7} parent=0 // pred_check_branch
    %35 = sbr.rel (0) target = $region37
  $region36: #{_lambda_.7} parent=0 // pred_region
    _
  $region37: #{_lambda_.7} parent=0 // pred_fallthru
    _
  // Predicated region
  $region38: #{_lambda_.7} parent=0 // pred_check
    _
  $region39: #{_lambda_.7} parent=0 // pred_check_branch
    %37 = sbr.rel (0) target = $region41
  $region40: #{_lambda_.7} parent=0 // pred_region
    _
  $region41: #{_lambda_.7} parent=0 // pred_fallthru
    _
  // Predicated region
  $region42: #{_lambda_.7} parent=0 // pred_check
    _
  $region43: #{_lambda_.7} parent=0 // pred_check_branch
    %39 = sbr.rel (0) target = $region45
  $region44: #{_lambda_.7} parent=0 // pred_region
    _
  $region45: #{_lambda_.7} parent=0 // pred_fallthru
    _
  // Predicated region
  $region46: #{_lambda_.7} parent=0 // pred_check
    _
  $region47: #{_lambda_.7} parent=0 // pred_check_branch
    %41 = sbr.rel (0) target = $region49
  $region48: #{_lambda_.7} parent=0 // pred_region
    _
  $region49: #{_lambda_.7} parent=0 // pred_fallthru
    _
  // Predicated region
  $region50: #{_lambda_.7} parent=0 // pred_check
    _
  $region51: #{_lambda_.7} parent=0 // pred_check_branch
    %43 = sbr.rel (0) target = $region53
  $region52: #{_lambda_.7} parent=0 // pred_region
    _
  $region53: #{_lambda_.7} parent=0 // pred_fallthru
    _
  %v44 = vld [vmem:[%s0] sm:$0xff]
  %v45 = vld [vmem:[%s0 + $0x8] sm:$0xff]
  %v46 = vld [vmem:[%s0 + $0x10] sm:$0xff]
  %v47 = vld [vmem:[%s0 + $0x18] sm:$0xff]
  %v48 = vld [vmem:[%s1] sm:$0xff]
  %v49 = vld [vmem:[%s1 + $0x8] sm:$0xff]
  %v50 = vld [vmem:[%s1 + $0x10] sm:$0xff]
  %v51 = vld [vmem:[%s1 + $0x18] sm:$0xff]
  %v52 = vld [vmem:[%s2] sm:$0x1]
  %v54 = vlaneseq
  %v55 = vshrl.u32 %v54, 7
  %v56 = vsub.s32 0, %v55
  %v57 = vrot.slane %v52, %v56
  %vm59 = vcmask 261120
  %v61 = vsel %vm59, %v44, 0
  %v64 = vsel %vm59, %v45, 0
  %v67 = vsel %vm59, %v46, 0
  %v70 = vsel %vm59, %v47, 0
  %72 = vmatprep.subr.mxu0 0.0
  %73 = vmatpush1.msra.mxu0 %v48
  %74 = vmatprep.subr.mxu0 0.0
  %75 = vmatpush1.msra.mxu0 %v49
  %76 = vmatprep.subr.mxu0 0.0
  %77 = vmatpush1.msra.mxu0 %v50
  %78 = vmatprep.subr.mxu0 0.0
  %79 = vmatpush1.msra.mxu0 %v51
  %80 = vmatprep.subr.mxu0 0.0
  %81 = vmatpush1.msra.mxu0 0.0
  %82 = vmatprep.subr.mxu0 0.0
  %83 = vmatpush1.msra.mxu0 0.0
  %84 = vmatprep.subr.mxu0 0.0
  %85 = vmatpush1.msra.mxu0 0.0
  %86 = vmatprep.subr.mxu0 0.0
  %87 = vmatpush1.msra.mxu0 0.0
  %88 = vmatprep.subr.mxu0 0.0
  %89 = vmatpush1.msra.mxu0 0.0
  %90 = vmatprep.subr.mxu0 0.0
  %91 = vmatpush1.msra.mxu0 0.0
  %92 = vmatprep.subr.mxu0 0.0
  %93 = vmatpush1.msra.mxu0 0.0
  %94 = vmatprep.subr.mxu0 0.0
  %95 = vmatpush1.msra.mxu0 0.0
  %96 = vmatprep.subr.mxu0 0.0
  %97 = vmatpush1.msra.mxu0 0.0
  %98 = vmatprep.subr.mxu0 0.0
  %99 = vmatpush1.msra.mxu0 0.0
  %100 = vmatprep.subr.mxu0 0.0
  %101 = vmatpush1.msra.mxu0 0.0
  %102 = vmatprep.subr.mxu0 0.0
  %103 = vmatpush1.msra.mxu0 0.0
  %104 = vmatprep.subr.mxu0 0.0
  %105 = vmatpush1.msra.mxu0 0.0
  %106 = vmatprep.subr.mxu0 0.0
  %107 = vmatpush1.msra.mxu0 0.0
  %108 = vmatprep.subr.mxu0 0.0
  %109 = vmatpush1.msra.mxu0 0.0
  %110 = vmatprep.subr.mxu0 0.0
  %111 = vmatpush1.msra.mxu0 0.0
  %112 = vmatprep.subr.mxu0 0.0
  %113 = vmatpush1.msra.mxu0 0.0
  %114 = vmatprep.subr.mxu0 0.0
  %115 = vmatpush1.msra.mxu0 0.0
  %116 = vmatprep.subr.mxu0 0.0
  %117 = vmatpush1.msra.mxu0 0.0
  %118 = vmatprep.subr.mxu0 0.0
  %119 = vmatpush1.msra.mxu0 0.0
  %120 = vmatprep.subr.mxu0 0.0
  %121 = vmatpush1.msra.mxu0 0.0
  %122 = vmatprep.subr.mxu0 0.0
  %123 = vmatpush1.msra.mxu0 0.0
  %124 = vmatprep.subr.mxu0 0.0
  %125 = vmatpush1.msra.mxu0 0.0
  %126 = vmatprep.subr.mxu0 0.0
  %127 = vmatpush1.msra.mxu0 0.0
  %128 = vmatprep.subr.mxu0 0.0
  %129 = vmatpush1.msra.mxu0 0.0
  %130 = vmatprep.subr.mxu0 0.0
  %131 = vmatpush1.msra.mxu0 0.0
  %132 = vmatprep.subr.mxu0 0.0
  %133 = vmatpush1.msra.mxu0 0.0
  %134 = vmatprep.subr.mxu0 0.0
  %135 = vmatpush1.msra.mxu0 0.0
  %136 = vmatprep.mubr.f32.mxu0 0.0
  %137 = vmatmul.mubr.f32.gmra.mrb[0].mxu0 %v61
  %v138 = vpop.f32.mrb[0].mxu0
  %v139 = vadd.f32 %v57, %v138
  %v140 = vpop.f32.mrb[0].mxu0
  %141 = vmatprep.mubr.f32.mxu0 0.0
  %142 = vmatmul.mubr.f32.gmra.mrb[0].mxu0 %v64
  %v143 = vpop.f32.mrb[0].mxu0
  %v144 = vadd.f32 %v57, %v143
  %v145 = vpop.f32.mrb[0].mxu0
  %146 = vmatprep.mubr.f32.mxu0 0.0
  %147 = vmatmul.mubr.f32.gmra.mrb[0].mxu0 %v67
  %v148 = vpop.f32.mrb[0].mxu0
  %v149 = vadd.f32 %v57, %v148
  %v150 = vpop.f32.mrb[0].mxu0
  %151 = vmatprep.mubr.f32.mxu0 0.0
  %152 = vmatmul.mubr.f32.gmra.mrb[0].mxu0 %v70
  %v153 = vpop.f32.mrb[0].mxu0
  %v154 = vadd.f32 %v57, %v153
  %v155 = vpop.f32.mrb[0].mxu0
  %156 = vdwg.mxu0
  %v157 = vld [vmem:[%s3] sm:$0xff]
  %v158 = vld [vmem:[%s3 + $0x8] sm:$0xff]
  %v159 = vld [vmem:[%s3 + $0x10] sm:$0xff]
  %v160 = vld [vmem:[%s3 + $0x18] sm:$0xff]
  %v161 = vld [vmem:[%s4] sm:$0x1]
  %164 = vrot.lane.b32.xlu0 %v139, 96
  %v165 = vpop.permute.xlu0 %164
  %166 = vrot.lane.b32.xlu0 %v144, 96
  %v167 = vpop.permute.xlu0 %166
  %vm168 = vcmask 64512
  %v169 = vsel %vm168, %v139, 0
  %v171 = vsel %vm168, %v144, 0
  %v173 = vsel %vm168, %v165, 0
  %v175 = vsel %vm168, %v167, 0
  %177 = vmatprep.subr.mxu0 0.0
  %178 = vmatpush1.xpose.msra.mxu0 %v173
  %179 = vmatprep.subr.mxu0 0.0
  %180 = vmatpush1.xpose.msra.mxu0 %v175
  %181 = vmatprep.subr.mxu0 0.0
  %182 = vmatpush1.xpose.msra.mxu0 0.0
  %183 = vmatprep.subr.mxu0 0.0
  %184 = vmatpush1.xpose.msra.mxu0 0.0
  %185 = vmatprep.subr.mxu0 0.0
  %186 = vmatpush1.xpose.msra.mxu0 0.0
  %187 = vmatprep.subr.mxu0 0.0
  %188 = vmatpush1.xpose.msra.mxu0 0.0
  %189 = vmatprep.subr.mxu0 0.0
  %190 = vmatpush1.xpose.msra.mxu0 0.0
  %191 = vmatprep.subr.mxu0 0.0
  %192 = vmatpush1.xpose.msra.mxu0 0.0
  %193 = vmatprep.subr.mxu0 0.0
  %194 = vmatpush1.xpose.msra.mxu0 0.0
  %195 = vmatprep.subr.mxu0 0.0
  %196 = vmatpush1.xpose.msra.mxu0 0.0
  %197 = vmatprep.subr.mxu0 0.0
  %198 = vmatpush1.xpose.msra.mxu0 0.0
  %199 = vmatprep.subr.mxu0 0.0
  %200 = vmatpush1.xpose.msra.mxu0 0.0
  %201 = vmatprep.subr.mxu0 0.0
  %202 = vmatpush1.xpose.msra.mxu0 0.0
  %203 = vmatprep.subr.mxu0 0.0
  %204 = vmatpush1.xpose.msra.mxu0 0.0
  %205 = vmatprep.subr.mxu0 0.0
  %206 = vmatpush1.xpose.msra.mxu0 0.0
  %207 = vmatprep.subr.mxu0 0.0
  %208 = vmatpush1.xpose.msra.mxu0 0.0
  %209 = vmatprep.subr.mxu0 0.0
  %210 = vmatpush1.xpose.msra.mxu0 0.0
  %211 = vmatprep.subr.mxu0 0.0
  %212 = vmatpush1.xpose.msra.mxu0 0.0
  %213 = vmatprep.subr.mxu0 0.0
  %214 = vmatpush1.xpose.msra.mxu0 0.0
  %215 = vmatprep.subr.mxu0 0.0
  %216 = vmatpush1.xpose.msra.mxu0 0.0
  %217 = vmatprep.subr.mxu0 0.0
  %218 = vmatpush1.xpose.msra.mxu0 0.0
  %219 = vmatprep.subr.mxu0 0.0
  %220 = vmatpush1.xpose.msra.mxu0 0.0
  %221 = vmatprep.subr.mxu0 0.0
  %222 = vmatpush1.xpose.msra.mxu0 0.0
  %223 = vmatprep.subr.mxu0 0.0
  %224 = vmatpush1.xpose.msra.mxu0 0.0
  %225 = vmatprep.subr.mxu0 0.0
  %226 = vmatpush1.xpose.msra.mxu0 0.0
  %227 = vmatprep.subr.mxu0 0.0
  %228 = vmatpush1.xpose.msra.mxu0 0.0
  %229 = vmatprep.subr.mxu0 0.0
  %230 = vmatpush1.xpose.msra.mxu0 0.0
  %231 = vmatprep.subr.mxu0 0.0
  %232 = vmatpush1.xpose.msra.mxu0 0.0
  %233 = vmatprep.subr.mxu0 0.0
  %234 = vmatpush1.xpose.msra.mxu0 0.0
  %235 = vmatprep.subr.mxu0 0.0
  %236 = vmatpush1.xpose.msra.mxu0 0.0
  %237 = vmatprep.subr.mxu0 0.0
  %238 = vmatpush1.xpose.msra.mxu0 0.0
  %239 = vmatprep.subr.mxu0 0.0
  %240 = vmatpush1.xpose.msra.mxu0 0.0
  %241 = vmatprep.mubr.f32.mxu0 0.0
  %242 = vmatmul.mubr.f32.gmra.mrb[0].mxu0 %v169
  %v243 = vpop.f32.mrb[0].mxu0
  %v244 = vadd.f32 0.0, %v243
  %v245 = vpop.f32.mrb[0].mxu0
  %246 = vmatprep.mubr.f32.mxu0 0.0
  %247 = vmatmul.mubr.f32.gmra.mrb[0].mxu0 %v171
  %v248 = vpop.f32.mrb[0].mxu0
  %v249 = vadd.f32 0.0, %v248
  %v250 = vpop.f32.mrb[0].mxu0
  %251 = vdwg.mxu0
  %254 = vrot.lane.b32.xlu0 %v149, 96
  %v255 = vpop.permute.xlu0 %254
  %256 = vrot.lane.b32.xlu0 %v154, 96
  %v257 = vpop.permute.xlu0 %256
  %v258 = vsel %vm168, %v149, 0
  %v260 = vsel %vm168, %v154, 0
  %v262 = vsel %vm168, %v255, 0
  %v264 = vsel %vm168, %v257, 0
  %266 = vmatprep.subr.mxu0 0.0
  %267 = vmatpush1.xpose.msra.mxu0 %v262
  %268 = vmatprep.subr.mxu0 0.0
  %269 = vmatpush1.xpose.msra.mxu0 %v264
  %270 = vmatprep.subr.mxu0 0.0
  %271 = vmatpush1.xpose.msra.mxu0 0.0
  %272 = vmatprep.subr.mxu0 0.0
  %273 = vmatpush1.xpose.msra.mxu0 0.0
  %274 = vmatprep.subr.mxu0 0.0
  %275 = vmatpush1.xpose.msra.mxu0 0.0
  %276 = vmatprep.subr.mxu0 0.0
  %277 = vmatpush1.xpose.msra.mxu0 0.0
  %278 = vmatprep.subr.mxu0 0.0
  %279 = vmatpush1.xpose.msra.mxu0 0.0
  %280 = vmatprep.subr.mxu0 0.0
  %281 = vmatpush1.xpose.msra.mxu0 0.0
  %282 = vmatprep.subr.mxu0 0.0
  %283 = vmatpush1.xpose.msra.mxu0 0.0
  %284 = vmatprep.subr.mxu0 0.0
  %285 = vmatpush1.xpose.msra.mxu0 0.0
  %286 = vmatprep.subr.mxu0 0.0
  %287 = vmatpush1.xpose.msra.mxu0 0.0
  %288 = vmatprep.subr.mxu0 0.0
  %289 = vmatpush1.xpose.msra.mxu0 0.0
  %290 = vmatprep.subr.mxu0 0.0
  %291 = vmatpush1.xpose.msra.mxu0 0.0
  %292 = vmatprep.subr.mxu0 0.0
  %293 = vmatpush1.xpose.msra.mxu0 0.0
  %294 = vmatprep.subr.mxu0 0.0
  %295 = vmatpush1.xpose.msra.mxu0 0.0
  %296 = vmatprep.subr.mxu0 0.0
  %297 = vmatpush1.xpose.msra.mxu0 0.0
  %298 = vmatprep.subr.mxu0 0.0
  %299 = vmatpush1.xpose.msra.mxu0 0.0
  %300 = vmatprep.subr.mxu0 0.0
  %301 = vmatpush1.xpose.msra.mxu0 0.0
  %302 = vmatprep.subr.mxu0 0.0
  %303 = vmatpush1.xpose.msra.mxu0 0.0
  %304 = vmatprep.subr.mxu0 0.0
  %305 = vmatpush1.xpose.msra.mxu0 0.0
  %306 = vmatprep.subr.mxu0 0.0
  %307 = vmatpush1.xpose.msra.mxu0 0.0
  %308 = vmatprep.subr.mxu0 0.0
  %309 = vmatpush1.xpose.msra.mxu0 0.0
  %310 = vmatprep.subr.mxu0 0.0
  %311 = vmatpush1.xpose.msra.mxu0 0.0
  %312 = vmatprep.subr.mxu0 0.0
  %313 = vmatpush1.xpose.msra.mxu0 0.0
  %314 = vmatprep.subr.mxu0 0.0
  %315 = vmatpush1.xpose.msra.mxu0 0.0
  %316 = vmatprep.subr.mxu0 0.0
  %317 = vmatpush1.xpose.msra.mxu0 0.0
  %318 = vmatprep.subr.mxu0 0.0
  %319 = vmatpush1.xpose.msra.mxu0 0.0
  %320 = vmatprep.subr.mxu0 0.0
  %321 = vmatpush1.xpose.msra.mxu0 0.0
  %322 = vmatprep.subr.mxu0 0.0
  %323 = vmatpush1.xpose.msra.mxu0 0.0
  %324 = vmatprep.subr.mxu0 0.0
  %325 = vmatpush1.xpose.msra.mxu0 0.0
  %326 = vmatprep.subr.mxu0 0.0
  %327 = vmatpush1.xpose.msra.mxu0 0.0
  %328 = vmatprep.subr.mxu0 0.0
  %329 = vmatpush1.xpose.msra.mxu0 0.0
  %330 = vmatprep.mubr.f32.mxu0 0.0
  %331 = vmatmul.mubr.f32.gmra.mrb[0].mxu0 %v258
  %v332 = vpop.f32.mrb[0].mxu0
  %v333 = vadd.f32 0.0, %v332
  %v334 = vpop.f32.mrb[0].mxu0
  %335 = vmatprep.mubr.f32.mxu0 0.0
  %336 = vmatmul.mubr.f32.gmra.mrb[0].mxu0 %v260
  %v337 = vpop.f32.mrb[0].mxu0
  %v338 = vadd.f32 0.0, %v337
  %v339 = vpop.f32.mrb[0].mxu0
  %340 = vdwg.mxu0
  %v341 = vmul.f32 %v244, 0.35355338
  %v342 = vmul.f32 %v249, 0.35355338
  %v343 = vmul.f32 %v333, 0.35355338
  %v344 = vmul.f32 %v338, 0.35355338
  %vm345 = vcmask 130048
  %v346 = vsel %vm345, %v341, -inf
  %347 = vmax.xlane.f32.xlu0 %v346
  %v348 = vpop.xlane.xlu0 %347
  %v349 = vsel %vm345, %v342, -inf
  %350 = vmax.xlane.f32.xlu0 %v349
  %v351 = vpop.xlane.xlu0 %350
  %v352 = vsel %vm345, %v343, -inf
  %353 = vmax.xlane.f32.xlu0 %v352
  %v354 = vpop.xlane.xlu0 %353
  %v355 = vsel %vm345, %v344, -inf
  %356 = vmax.xlane.f32.xlu0 %v355
  %v357 = vpop.xlane.xlu0 %356
  %v358 = vsub.f32 %v341, %v348
  %v359 = vsub.f32 %v342, %v351
  %v360 = vsub.f32 %v343, %v354
  %v361 = vsub.f32 %v344, %v357
  %v362 = vmul.f32 %v358, 1.442695
  %v363 = vpow.pop %v362
  %v364 = vmul.f32 %v359, 1.442695
  %v365 = vpow.pop %v364
  %v366 = vmul.f32 %v360, 1.442695
  %v367 = vpow.pop %v366
  %v368 = vmul.f32 %v361, 1.442695
  %v369 = vpow.pop %v368
  %v370 = vsel %vm345, %v363, 0.0
  %371 = vadd.xlane.f32.xlu0 %v370
  %v372 = vpop.xlane.xlu0 %371
  %v373 = vsel %vm345, %v365, 0.0
  %374 = vadd.xlane.f32.xlu0 %v373
  %v375 = vpop.xlane.xlu0 %374
  %v376 = vsel %vm345, %v367, 0.0
  %377 = vadd.xlane.f32.xlu0 %v376
  %v378 = vpop.xlane.xlu0 %377
  %v379 = vsel %vm345, %v369, 0.0
  %380 = vadd.xlane.f32.xlu0 %v379
  %v381 = vpop.xlane.xlu0 %380
  %v382 = vrcp.pop %v372
  %v383 = vrcp.pop %v375
  %v384 = vrcp.pop %v378
  %v385 = vrcp.pop %v381
  %v386 = vmul.f32 %v363, %v382
  %v387 = vmul.f32 %v365, %v383
  %v388 = vmul.f32 %v367, %v384
  %v389 = vmul.f32 %v369, %v385
  %390 = vrot.lane.b32.xlu0 %v139, 64
  %v391 = vpop.permute.xlu0 %390
  %392 = vrot.lane.b32.xlu0 %v144, 64
  %v393 = vpop.permute.xlu0 %392
  %v397 = vsel %vm345, %v386, 0
  %v400 = vsel %vm345, %v387, 0
  %402 = vmatprep.subr.mxu0 0.0
  %403 = vmatpush1.msra.mxu0 %v391
  %404 = vmatprep.subr.mxu0 0.0
  %405 = vmatpush1.msra.mxu0 %v393
  %406 = vmatprep.subr.mxu0 0.0
  %407 = vmatpush1.msra.mxu0 0.0
  %408 = vmatprep.subr.mxu0 0.0
  %409 = vmatpush1.msra.mxu0 0.0
  %410 = vmatprep.subr.mxu0 0.0
  %411 = vmatpush1.msra.mxu0 0.0
  %412 = vmatprep.subr.mxu0 0.0
  %413 = vmatpush1.msra.mxu0 0.0
  %414 = vmatprep.subr.mxu0 0.0
  %415 = vmatpush1.msra.mxu0 0.0
  %416 = vmatprep.subr.mxu0 0.0
  %417 = vmatpush1.msra.mxu0 0.0
  %418 = vmatprep.subr.mxu0 0.0
  %419 = vmatpush1.msra.mxu0 0.0
  %420 = vmatprep.subr.mxu0 0.0
  %421 = vmatpush1.msra.mxu0 0.0
  %422 = vmatprep.subr.mxu0 0.0
  %423 = vmatpush1.msra.mxu0 0.0
  %424 = vmatprep.subr.mxu0 0.0
  %425 = vmatpush1.msra.mxu0 0.0
  %426 = vmatprep.subr.mxu0 0.0
  %427 = vmatpush1.msra.mxu0 0.0
  %428 = vmatprep.subr.mxu0 0.0
  %429 = vmatpush1.msra.mxu0 0.0
  %430 = vmatprep.subr.mxu0 0.0
  %431 = vmatpush1.msra.mxu0 0.0
  %432 = vmatprep.subr.mxu0 0.0
  %433 = vmatpush1.msra.mxu0 0.0
  %434 = vmatprep.subr.mxu0 0.0
  %435 = vmatpush1.msra.mxu0 0.0
  %436 = vmatprep.subr.mxu0 0.0
  %437 = vmatpush1.msra.mxu0 0.0
  %438 = vmatprep.subr.mxu0 0.0
  %439 = vmatpush1.msra.mxu0 0.0
  %440 = vmatprep.subr.mxu0 0.0
  %441 = vmatpush1.msra.mxu0 0.0
  %442 = vmatprep.subr.mxu0 0.0
  %443 = vmatpush1.msra.mxu0 0.0
  %444 = vmatprep.subr.mxu0 0.0
  %445 = vmatpush1.msra.mxu0 0.0
  %446 = vmatprep.subr.mxu0 0.0
  %447 = vmatpush1.msra.mxu0 0.0
  %448 = vmatprep.subr.mxu0 0.0
  %449 = vmatpush1.msra.mxu0 0.0
  %450 = vmatprep.subr.mxu0 0.0
  %451 = vmatpush1.msra.mxu0 0.0
  %452 = vmatprep.subr.mxu0 0.0
  %453 = vmatpush1.msra.mxu0 0.0
  %454 = vmatprep.subr.mxu0 0.0
  %455 = vmatpush1.msra.mxu0 0.0
  %456 = vmatprep.subr.mxu0 0.0
  %457 = vmatpush1.msra.mxu0 0.0
  %458 = vmatprep.subr.mxu0 0.0
  %459 = vmatpush1.msra.mxu0 0.0
  %460 = vmatprep.subr.mxu0 0.0
  %461 = vmatpush1.msra.mxu0 0.0
  %462 = vmatprep.subr.mxu0 0.0
  %463 = vmatpush1.msra.mxu0 0.0
  %464 = vmatprep.subr.mxu0 0.0
  %465 = vmatpush1.msra.mxu0 0.0
  %466 = vmatprep.mubr.f32.mxu0 0.0
  %467 = vmatmul.mubr.f32.gmra.mrb[0].mxu0 %v397
  %v468 = vpop.f32.mrb[0].mxu0
  %v469 = vadd.f32 0.0, %v468
  %v470 = vpop.f32.mrb[0].mxu0
  %471 = vmatprep.mubr.f32.mxu0 0.0
  %472 = vmatmul.mubr.f32.gmra.mrb[0].mxu0 %v400
  %v473 = vpop.f32.mrb[0].mxu0
  %v474 = vadd.f32 0.0, %v473
  %v475 = vpop.f32.mrb[0].mxu0
  %476 = vdwg.mxu0
  %477 = vrot.lane.b32.xlu0 %v149, 64
  %v478 = vpop.permute.xlu0 %477
  %479 = vrot.lane.b32.xlu0 %v154, 64
  %v480 = vpop.permute.xlu0 %479
  %v484 = vsel %vm345, %v388, 0
  %v487 = vsel %vm345, %v389, 0
  %489 = vmatprep.subr.mxu0 0.0
  %490 = vmatpush1.msra.mxu0 %v478
  %491 = vmatprep.subr.mxu0 0.0
  %492 = vmatpush1.msra.mxu0 %v480
  %493 = vmatprep.subr.mxu0 0.0
  %494 = vmatpush1.msra.mxu0 0.0
  %495 = vmatprep.subr.mxu0 0.0
  %496 = vmatpush1.msra.mxu0 0.0
  %497 = vmatprep.subr.mxu0 0.0
  %498 = vmatpush1.msra.mxu0 0.0
  %499 = vmatprep.subr.mxu0 0.0
  %500 = vmatpush1.msra.mxu0 0.0
  %501 = vmatprep.subr.mxu0 0.0
  %502 = vmatpush1.msra.mxu0 0.0
  %503 = vmatprep.subr.mxu0 0.0
  %504 = vmatpush1.msra.mxu0 0.0
  %505 = vmatprep.subr.mxu0 0.0
  %506 = vmatpush1.msra.mxu0 0.0
  %507 = vmatprep.subr.mxu0 0.0
  %508 = vmatpush1.msra.mxu0 0.0
  %509 = vmatprep.subr.mxu0 0.0
  %510 = vmatpush1.msra.mxu0 0.0
  %511 = vmatprep.subr.mxu0 0.0
  %512 = vmatpush1.msra.mxu0 0.0
  %513 = vmatprep.subr.mxu0 0.0
  %514 = vmatpush1.msra.mxu0 0.0
  %515 = vmatprep.subr.mxu0 0.0
  %516 = vmatpush1.msra.mxu0 0.0
  %517 = vmatprep.subr.mxu0 0.0
  %518 = vmatpush1.msra.mxu0 0.0
  %519 = vmatprep.subr.mxu0 0.0
  %520 = vmatpush1.msra.mxu0 0.0
  %521 = vmatprep.subr.mxu0 0.0
  %522 = vmatpush1.msra.mxu0 0.0
  %523 = vmatprep.subr.mxu0 0.0
  %524 = vmatpush1.msra.mxu0 0.0
  %525 = vmatprep.subr.mxu0 0.0
  %526 = vmatpush1.msra.mxu0 0.0
  %527 = vmatprep.subr.mxu0 0.0
  %528 = vmatpush1.msra.mxu0 0.0
  %529 = vmatprep.subr.mxu0 0.0
  %530 = vmatpush1.msra.mxu0 0.0
  %531 = vmatprep.subr.mxu0 0.0
  %532 = vmatpush1.msra.mxu0 0.0
  %533 = vmatprep.subr.mxu0 0.0
  %534 = vmatpush1.msra.mxu0 0.0
  %535 = vmatprep.subr.mxu0 0.0
  %536 = vmatpush1.msra.mxu0 0.0
  %537 = vmatprep.subr.mxu0 0.0
  %538 = vmatpush1.msra.mxu0 0.0
  %539 = vmatprep.subr.mxu0 0.0
  %540 = vmatpush1.msra.mxu0 0.0
  %541 = vmatprep.subr.mxu0 0.0
  %542 = vmatpush1.msra.mxu0 0.0
  %543 = vmatprep.subr.mxu0 0.0
  %544 = vmatpush1.msra.mxu0 0.0
  %545 = vmatprep.subr.mxu0 0.0
  %546 = vmatpush1.msra.mxu0 0.0
  %547 = vmatprep.subr.mxu0 0.0
  %548 = vmatpush1.msra.mxu0 0.0
  %549 = vmatprep.subr.mxu0 0.0
  %550 = vmatpush1.msra.mxu0 0.0
  %551 = vmatprep.subr.mxu0 0.0
  %552 = vmatpush1.msra.mxu0 0.0
  %553 = vmatprep.mubr.f32.mxu0 0.0
  %554 = vmatmul.mubr.f32.gmra.mrb[0].mxu0 %v484
  %v555 = vpop.f32.mrb[0].mxu0
  %v556 = vadd.f32 0.0, %v555
  %v557 = vpop.f32.mrb[0].mxu0
  %558 = vmatprep.mubr.f32.mxu0 0.0
  %559 = vmatmul.mubr.f32.gmra.mrb[0].mxu0 %v487
  %v560 = vpop.f32.mrb[0].mxu0
  %v561 = vadd.f32 0.0, %v560
  %v562 = vpop.f32.mrb[0].mxu0
  %563 = vdwg.mxu0
  %564 = vrot.lane.b32.xlu0 %v139, 120
  %v565 = vpop.permute.xlu0 %564
  %566 = vrot.lane.b32.xlu0 %v144, 120
  %v567 = vpop.permute.xlu0 %566
  %568 = vrot.lane.b32.xlu0 %v139, 88
  %v569 = vpop.permute.xlu0 %568
  %570 = vrot.lane.b32.xlu0 %v144, 88
  %v571 = vpop.permute.xlu0 %570
  %v572 = vsel %vm168, %v565, 0
  %v574 = vsel %vm168, %v567, 0
  %v576 = vsel %vm168, %v569, 0
  %v578 = vsel %vm168, %v571, 0
  %580 = vmatprep.subr.mxu0 0.0
  %581 = vmatpush1.xpose.msra.mxu0 %v576
  %582 = vmatprep.subr.mxu0 0.0
  %583 = vmatpush1.xpose.msra.mxu0 %v578
  %584 = vmatprep.subr.mxu0 0.0
  %585 = vmatpush1.xpose.msra.mxu0 0.0
  %586 = vmatprep.subr.mxu0 0.0
  %587 = vmatpush1.xpose.msra.mxu0 0.0
  %588 = vmatprep.subr.mxu0 0.0
  %589 = vmatpush1.xpose.msra.mxu0 0.0
  %590 = vmatprep.subr.mxu0 0.0
  %591 = vmatpush1.xpose.msra.mxu0 0.0
  %592 = vmatprep.subr.mxu0 0.0
  %593 = vmatpush1.xpose.msra.mxu0 0.0
  %594 = vmatprep.subr.mxu0 0.0
  %595 = vmatpush1.xpose.msra.mxu0 0.0
  %596 = vmatprep.subr.mxu0 0.0
  %597 = vmatpush1.xpose.msra.mxu0 0.0
  %598 = vmatprep.subr.mxu0 0.0
  %599 = vmatpush1.xpose.msra.mxu0 0.0
  %600 = vmatprep.subr.mxu0 0.0
  %601 = vmatpush1.xpose.msra.mxu0 0.0
  %602 = vmatprep.subr.mxu0 0.0
  %603 = vmatpush1.xpose.msra.mxu0 0.0
  %604 = vmatprep.subr.mxu0 0.0
  %605 = vmatpush1.xpose.msra.mxu0 0.0
  %606 = vmatprep.subr.mxu0 0.0
  %607 = vmatpush1.xpose.msra.mxu0 0.0
  %608 = vmatprep.subr.mxu0 0.0
  %609 = vmatpush1.xpose.msra.mxu0 0.0
  %610 = vmatprep.subr.mxu0 0.0
  %611 = vmatpush1.xpose.msra.mxu0 0.0
  %612 = vmatprep.subr.mxu0 0.0
  %613 = vmatpush1.xpose.msra.mxu0 0.0
  %614 = vmatprep.subr.mxu0 0.0
  %615 = vmatpush1.xpose.msra.mxu0 0.0
  %616 = vmatprep.subr.mxu0 0.0
  %617 = vmatpush1.xpose.msra.mxu0 0.0
  %618 = vmatprep.subr.mxu0 0.0
  %619 = vmatpush1.xpose.msra.mxu0 0.0
  %620 = vmatprep.subr.mxu0 0.0
  %621 = vmatpush1.xpose.msra.mxu0 0.0
  %622 = vmatprep.subr.mxu0 0.0
  %623 = vmatpush1.xpose.msra.mxu0 0.0
  %624 = vmatprep.subr.mxu0 0.0
  %625 = vmatpush1.xpose.msra.mxu0 0.0
  %626 = vmatprep.subr.mxu0 0.0
  %627 = vmatpush1.xpose.msra.mxu0 0.0
  %628 = vmatprep.subr.mxu0 0.0
  %629 = vmatpush1.xpose.msra.mxu0 0.0
  %630 = vmatprep.subr.mxu0 0.0
  %631 = vmatpush1.xpose.msra.mxu0 0.0
  %632 = vmatprep.subr.mxu0 0.0
  %633 = vmatpush1.xpose.msra.mxu0 0.0
  %634 = vmatprep.subr.mxu0 0.0
  %635 = vmatpush1.xpose.msra.mxu0 0.0
  %636 = vmatprep.subr.mxu0 0.0
  %637 = vmatpush1.xpose.msra.mxu0 0.0
  %638 = vmatprep.subr.mxu0 0.0
  %639 = vmatpush1.xpose.msra.mxu0 0.0
  %640 = vmatprep.subr.mxu0 0.0
  %641 = vmatpush1.xpose.msra.mxu0 0.0
  %642 = vmatprep.subr.mxu0 0.0
  %643 = vmatpush1.xpose.msra.mxu0 0.0
  %644 = vmatprep.mubr.f32.mxu0 0.0
  %645 = vmatmul.mubr.f32.gmra.mrb[0].mxu0 %v572
  %v646 = vpop.f32.mrb[0].mxu0
  %v647 = vadd.f32 0.0, %v646
  %v648 = vpop.f32.mrb[0].mxu0
  %649 = vmatprep.mubr.f32.mxu0 0.0
  %650 = vmatmul.mubr.f32.gmra.mrb[0].mxu0 %v574
  %v651 = vpop.f32.mrb[0].mxu0
  %v652 = vadd.f32 0.0, %v651
  %v653 = vpop.f32.mrb[0].mxu0
  %654 = vdwg.mxu0
  %655 = vrot.lane.b32.xlu0 %v149, 120
  %v656 = vpop.permute.xlu0 %655
  %657 = vrot.lane.b32.xlu0 %v154, 120
  %v658 = vpop.permute.xlu0 %657
  %659 = vrot.lane.b32.xlu0 %v149, 88
  %v660 = vpop.permute.xlu0 %659
  %661 = vrot.lane.b32.xlu0 %v154, 88
  %v662 = vpop.permute.xlu0 %661
  %v663 = vsel %vm168, %v656, 0
  %v665 = vsel %vm168, %v658, 0
  %v667 = vsel %vm168, %v660, 0
  %v669 = vsel %vm168, %v662, 0
  %671 = vmatprep.subr.mxu0 0.0
  %672 = vmatpush1.xpose.msra.mxu0 %v667
  %673 = vmatprep.subr.mxu0 0.0
  %674 = vmatpush1.xpose.msra.mxu0 %v669
  %675 = vmatprep.subr.mxu0 0.0
  %676 = vmatpush1.xpose.msra.mxu0 0.0
  %677 = vmatprep.subr.mxu0 0.0
  %678 = vmatpush1.xpose.msra.mxu0 0.0
  %679 = vmatprep.subr.mxu0 0.0
  %680 = vmatpush1.xpose.msra.mxu0 0.0
  %681 = vmatprep.subr.mxu0 0.0
  %682 = vmatpush1.xpose.msra.mxu0 0.0
  %683 = vmatprep.subr.mxu0 0.0
  %684 = vmatpush1.xpose.msra.mxu0 0.0
  %685 = vmatprep.subr.mxu0 0.0
  %686 = vmatpush1.xpose.msra.mxu0 0.0
  %687 = vmatprep.subr.mxu0 0.0
  %688 = vmatpush1.xpose.msra.mxu0 0.0
  %689 = vmatprep.subr.mxu0 0.0
  %690 = vmatpush1.xpose.msra.mxu0 0.0
  %691 = vmatprep.subr.mxu0 0.0
  %692 = vmatpush1.xpose.msra.mxu0 0.0
  %693 = vmatprep.subr.mxu0 0.0
  %694 = vmatpush1.xpose.msra.mxu0 0.0
  %695 = vmatprep.subr.mxu0 0.0
  %696 = vmatpush1.xpose.msra.mxu0 0.0
  %697 = vmatprep.subr.mxu0 0.0
  %698 = vmatpush1.xpose.msra.mxu0 0.0
  %699 = vmatprep.subr.mxu0 0.0
  %700 = vmatpush1.xpose.msra.mxu0 0.0
  %701 = vmatprep.subr.mxu0 0.0
  %702 = vmatpush1.xpose.msra.mxu0 0.0
  %703 = vmatprep.subr.mxu0 0.0
  %704 = vmatpush1.xpose.msra.mxu0 0.0
  %705 = vmatprep.subr.mxu0 0.0
  %706 = vmatpush1.xpose.msra.mxu0 0.0
  %707 = vmatprep.subr.mxu0 0.0
  %708 = vmatpush1.xpose.msra.mxu0 0.0
  %709 = vmatprep.subr.mxu0 0.0
  %710 = vmatpush1.xpose.msra.mxu0 0.0
  %711 = vmatprep.subr.mxu0 0.0
  %712 = vmatpush1.xpose.msra.mxu0 0.0
  %713 = vmatprep.subr.mxu0 0.0
  %714 = vmatpush1.xpose.msra.mxu0 0.0
  %715 = vmatprep.subr.mxu0 0.0
  %716 = vmatpush1.xpose.msra.mxu0 0.0
  %717 = vmatprep.subr.mxu0 0.0
  %718 = vmatpush1.xpose.msra.mxu0 0.0
  %719 = vmatprep.subr.mxu0 0.0
  %720 = vmatpush1.xpose.msra.mxu0 0.0
  %721 = vmatprep.subr.mxu0 0.0
  %722 = vmatpush1.xpose.msra.mxu0 0.0
  %723 = vmatprep.subr.mxu0 0.0
  %724 = vmatpush1.xpose.msra.mxu0 0.0
  %725 = vmatprep.subr.mxu0 0.0
  %726 = vmatpush1.xpose.msra.mxu0 0.0
  %727 = vmatprep.subr.mxu0 0.0
  %728 = vmatpush1.xpose.msra.mxu0 0.0
  %729 = vmatprep.subr.mxu0 0.0
  %730 = vmatpush1.xpose.msra.mxu0 0.0
  %731 = vmatprep.subr.mxu0 0.0
  %732 = vmatpush1.xpose.msra.mxu0 0.0
  %733 = vmatprep.subr.mxu0 0.0
  %734 = vmatpush1.xpose.msra.mxu0 0.0
  %735 = vmatprep.mubr.f32.mxu0 0.0
  %736 = vmatmul.mubr.f32.gmra.mrb[0].mxu0 %v663
  %v737 = vpop.f32.mrb[0].mxu0
  %v738 = vadd.f32 0.0, %v737
  %v739 = vpop.f32.mrb[0].mxu0
  %740 = vmatprep.mubr.f32.mxu0 0.0
  %741 = vmatmul.mubr.f32.gmra.mrb[0].mxu0 %v665
  %v742 = vpop.f32.mrb[0].mxu0
  %v743 = vadd.f32 0.0, %v742
  %v744 = vpop.f32.mrb[0].mxu0
  %745 = vdwg.mxu0
  %v746 = vmul.f32 %v647, 0.35355338
  %v747 = vmul.f32 %v652, 0.35355338
  %v748 = vmul.f32 %v738, 0.35355338
  %v749 = vmul.f32 %v743, 0.35355338
  %v750 = vsel %vm345, %v746, -inf
  %751 = vmax.xlane.f32.xlu0 %v750
  %v752 = vpop.xlane.xlu0 %751
  %v753 = vsel %vm345, %v747, -inf
  %754 = vmax.xlane.f32.xlu0 %v753
  %v755 = vpop.xlane.xlu0 %754
  %v756 = vsel %vm345, %v748, -inf
  %757 = vmax.xlane.f32.xlu0 %v756
  %v758 = vpop.xlane.xlu0 %757
  %v759 = vsel %vm345, %v749, -inf
  %760 = vmax.xlane.f32.xlu0 %v759
  %v761 = vpop.xlane.xlu0 %760
  %v762 = vsub.f32 %v746, %v752
  %v763 = vsub.f32 %v747, %v755
  %v764 = vsub.f32 %v748, %v758
  %v765 = vsub.f32 %v749, %v761
  %v766 = vmul.f32 %v762, 1.442695
  %v767 = vpow.pop %v766
  %v768 = vmul.f32 %v763, 1.442695
  %v769 = vpow.pop %v768
  %v770 = vmul.f32 %v764, 1.442695
  %v771 = vpow.pop %v770
  %v772 = vmul.f32 %v765, 1.442695
  %v773 = vpow.pop %v772
  %v774 = vsel %vm345, %v767, 0.0
  %775 = vadd.xlane.f32.xlu0 %v774
  %v776 = vpop.xlane.xlu0 %775
  %v777 = vsel %vm345, %v769, 0.0
  %778 = vadd.xlane.f32.xlu0 %v777
  %v779 = vpop.xlane.xlu0 %778
  %v780 = vsel %vm345, %v771, 0.0
  %781 = vadd.xlane.f32.xlu0 %v780
  %v782 = vpop.xlane.xlu0 %781
  %v783 = vsel %vm345, %v773, 0.0
  %784 = vadd.xlane.f32.xlu0 %v783
  %v785 = vpop.xlane.xlu0 %784
  %v786 = vrcp.pop %v776
  %v787 = vrcp.pop %v779
  %v788 = vrcp.pop %v782
  %v789 = vrcp.pop %v785
  %v790 = vmul.f32 %v767, %v786
  %v791 = vmul.f32 %v769, %v787
  %v792 = vmul.f32 %v771, %v788
  %v793 = vmul.f32 %v773, %v789
  %794 = vrot.lane.b32.xlu0 %v139, 56
  %v795 = vpop.permute.xlu0 %794
  %796 = vrot.lane.b32.xlu0 %v144, 56
  %v797 = vpop.permute.xlu0 %796
  %v801 = vsel %vm345, %v790, 0
  %v804 = vsel %vm345, %v791, 0
  %806 = vmatprep.subr.mxu0 0.0
  %807 = vmatpush1.msra.mxu0 %v795
  %808 = vmatprep.subr.mxu0 0.0
  %809 = vmatpush1.msra.mxu0 %v797
  %810 = vmatprep.subr.mxu0 0.0
  %811 = vmatpush1.msra.mxu0 0.0
  %812 = vmatprep.subr.mxu0 0.0
  %813 = vmatpush1.msra.mxu0 0.0
  %814 = vmatprep.subr.mxu0 0.0
  %815 = vmatpush1.msra.mxu0 0.0
  %816 = vmatprep.subr.mxu0 0.0
  %817 = vmatpush1.msra.mxu0 0.0
  %818 = vmatprep.subr.mxu0 0.0
  %819 = vmatpush1.msra.mxu0 0.0
  %820 = vmatprep.subr.mxu0 0.0
  %821 = vmatpush1.msra.mxu0 0.0
  %822 = vmatprep.subr.mxu0 0.0
  %823 = vmatpush1.msra.mxu0 0.0
  %824 = vmatprep.subr.mxu0 0.0
  %825 = vmatpush1.msra.mxu0 0.0
  %826 = vmatprep.subr.mxu0 0.0
  %827 = vmatpush1.msra.mxu0 0.0
  %828 = vmatprep.subr.mxu0 0.0
  %829 = vmatpush1.msra.mxu0 0.0
  %830 = vmatprep.subr.mxu0 0.0
  %831 = vmatpush1.msra.mxu0 0.0
  %832 = vmatprep.subr.mxu0 0.0
  %833 = vmatpush1.msra.mxu0 0.0
  %834 = vmatprep.subr.mxu0 0.0
  %835 = vmatpush1.msra.mxu0 0.0
  %836 = vmatprep.subr.mxu0 0.0
  %837 = vmatpush1.msra.mxu0 0.0
  %838 = vmatprep.subr.mxu0 0.0
  %839 = vmatpush1.msra.mxu0 0.0
  %840 = vmatprep.subr.mxu0 0.0
  %841 = vmatpush1.msra.mxu0 0.0
  %842 = vmatprep.subr.mxu0 0.0
  %843 = vmatpush1.msra.mxu0 0.0
  %844 = vmatprep.subr.mxu0 0.0
  %845 = vmatpush1.msra.mxu0 0.0
  %846 = vmatprep.subr.mxu0 0.0
  %847 = vmatpush1.msra.mxu0 0.0
  %848 = vmatprep.subr.mxu0 0.0
  %849 = vmatpush1.msra.mxu0 0.0
  %850 = vmatprep.subr.mxu0 0.0
  %851 = vmatpush1.msra.mxu0 0.0
  %852 = vmatprep.subr.mxu0 0.0
  %853 = vmatpush1.msra.mxu0 0.0
  %854 = vmatprep.subr.mxu0 0.0
  %855 = vmatpush1.msra.mxu0 0.0
  %856 = vmatprep.subr.mxu0 0.0
  %857 = vmatpush1.msra.mxu0 0.0
  %858 = vmatprep.subr.mxu0 0.0
  %859 = vmatpush1.msra.mxu0 0.0
  %860 = vmatprep.subr.mxu0 0.0
  %861 = vmatpush1.msra.mxu0 0.0
  %862 = vmatprep.subr.mxu0 0.0
  %863 = vmatpush1.msra.mxu0 0.0
  %864 = vmatprep.subr.mxu0 0.0
  %865 = vmatpush1.msra.mxu0 0.0
  %866 = vmatprep.subr.mxu0 0.0
  %867 = vmatpush1.msra.mxu0 0.0
  %868 = vmatprep.subr.mxu0 0.0
  %869 = vmatpush1.msra.mxu0 0.0
  %870 = vmatprep.mubr.f32.mxu0 0.0
  %871 = vmatmul.mubr.f32.gmra.mrb[0].mxu0 %v801
  %v872 = vpop.f32.mrb[0].mxu0
  %v873 = vadd.f32 0.0, %v872
  %v874 = vpop.f32.mrb[0].mxu0
  %875 = vmatprep.mubr.f32.mxu0 0.0
  %876 = vmatmul.mubr.f32.gmra.mrb[0].mxu0 %v804
  %v877 = vpop.f32.mrb[0].mxu0
  %v878 = vadd.f32 0.0, %v877
  %v879 = vpop.f32.mrb[0].mxu0
  %880 = vdwg.mxu0
  %881 = vrot.lane.b32.xlu0 %v149, 56
  %v882 = vpop.permute.xlu0 %881
  %883 = vrot.lane.b32.xlu0 %v154, 56
  %v884 = vpop.permute.xlu0 %883
  %v888 = vsel %vm345, %v792, 0
  %v891 = vsel %vm345, %v793, 0
  %893 = vmatprep.subr.mxu0 0.0
  %894 = vmatpush1.msra.mxu0 %v882
  %895 = vmatprep.subr.mxu0 0.0
  %896 = vmatpush1.msra.mxu0 %v884
  %897 = vmatprep.subr.mxu0 0.0
  %898 = vmatpush1.msra.mxu0 0.0
  %899 = vmatprep.subr.mxu0 0.0
  %900 = vmatpush1.msra.mxu0 0.0
  %901 = vmatprep.subr.mxu0 0.0
  %902 = vmatpush1.msra.mxu0 0.0
  %903 = vmatprep.subr.mxu0 0.0
  %904 = vmatpush1.msra.mxu0 0.0
  %905 = vmatprep.subr.mxu0 0.0
  %906 = vmatpush1.msra.mxu0 0.0
  %907 = vmatprep.subr.mxu0 0.0
  %908 = vmatpush1.msra.mxu0 0.0
  %909 = vmatprep.subr.mxu0 0.0
  %910 = vmatpush1.msra.mxu0 0.0
  %911 = vmatprep.subr.mxu0 0.0
  %912 = vmatpush1.msra.mxu0 0.0
  %913 = vmatprep.subr.mxu0 0.0
  %914 = vmatpush1.msra.mxu0 0.0
  %915 = vmatprep.subr.mxu0 0.0
  %916 = vmatpush1.msra.mxu0 0.0
  %917 = vmatprep.subr.mxu0 0.0
  %918 = vmatpush1.msra.mxu0 0.0
  %919 = vmatprep.subr.mxu0 0.0
  %920 = vmatpush1.msra.mxu0 0.0
  %921 = vmatprep.subr.mxu0 0.0
  %922 = vmatpush1.msra.mxu0 0.0
  %923 = vmatprep.subr.mxu0 0.0
  %924 = vmatpush1.msra.mxu0 0.0
  %925 = vmatprep.subr.mxu0 0.0
  %926 = vmatpush1.msra.mxu0 0.0
  %927 = vmatprep.subr.mxu0 0.0
  %928 = vmatpush1.msra.mxu0 0.0
  %929 = vmatprep.subr.mxu0 0.0
  %930 = vmatpush1.msra.mxu0 0.0
  %931 = vmatprep.subr.mxu0 0.0
  %932 = vmatpush1.msra.mxu0 0.0
  %933 = vmatprep.subr.mxu0 0.0
  %934 = vmatpush1.msra.mxu0 0.0
  %935 = vmatprep.subr.mxu0 0.0
  %936 = vmatpush1.msra.mxu0 0.0
  %937 = vmatprep.subr.mxu0 0.0
  %938 = vmatpush1.msra.mxu0 0.0
  %939 = vmatprep.subr.mxu0 0.0
  %940 = vmatpush1.msra.mxu0 0.0
  %941 = vmatprep.subr.mxu0 0.0
  %942 = vmatpush1.msra.mxu0 0.0
  %943 = vmatprep.subr.mxu0 0.0
  %944 = vmatpush1.msra.mxu0 0.0
  %945 = vmatprep.subr.mxu0 0.0
  %946 = vmatpush1.msra.mxu0 0.0
  %947 = vmatprep.subr.mxu0 0.0
  %948 = vmatpush1.msra.mxu0 0.0
  %949 = vmatprep.subr.mxu0 0.0
  %950 = vmatpush1.msra.mxu0 0.0
  %951 = vmatprep.subr.mxu0 0.0
  %952 = vmatpush1.msra.mxu0 0.0
  %953 = vmatprep.subr.mxu0 0.0
  %954 = vmatpush1.msra.mxu0 0.0
  %955 = vmatprep.subr.mxu0 0.0
  %956 = vmatpush1.msra.mxu0 0.0
  %957 = vmatprep.mubr.f32.mxu0 0.0
  %958 = vmatmul.mubr.f32.gmra.mrb[0].mxu0 %v888
  %v959 = vpop.f32.mrb[0].mxu0
  %v960 = vadd.f32 0.0, %v959
  %v961 = vpop.f32.mrb[0].mxu0
  %962 = vmatprep.mubr.f32.mxu0 0.0
  %963 = vmatmul.mubr.f32.gmra.mrb[0].mxu0 %v891
  %v964 = vpop.f32.mrb[0].mxu0
  %v965 = vadd.f32 0.0, %v964
  %v966 = vpop.f32.mrb[0].mxu0
  %967 = vdwg.mxu0
  %v969 = vsel %vm168, %v873, 0
  %v972 = vsel %vm168, %v878, 0
  %v975 = vsel %vm168, %v960, 0
  %v978 = vsel %vm168, %v965, 0
  %980 = vmatprep.subr.mxu0 0.0
  %981 = vmatpush1.msra.mxu0 %v158
  %982 = vmatprep.subr.mxu0 0.0
  %983 = vmatpush1.msra.mxu0 0.0
  %984 = vmatprep.subr.mxu0 0.0
  %985 = vmatpush1.msra.mxu0 0.0
  %986 = vmatprep.subr.mxu0 0.0
  %987 = vmatpush1.msra.mxu0 0.0
  %988 = vmatprep.subr.mxu0 0.0
  %989 = vmatpush1.msra.mxu0 0.0
  %990 = vmatprep.subr.mxu0 0.0
  %991 = vmatpush1.msra.mxu0 0.0
  %992 = vmatprep.subr.mxu0 0.0
  %993 = vmatpush1.msra.mxu0 0.0
  %994 = vmatprep.subr.mxu0 0.0
  %995 = vmatpush1.msra.mxu0 0.0
  %996 = vmatprep.subr.mxu0 0.0
  %997 = vmatpush1.msra.mxu0 0.0
  %998 = vmatprep.subr.mxu0 0.0
  %999 = vmatpush1.msra.mxu0 0.0
  %1000 = vmatprep.subr.mxu0 0.0
  %1001 = vmatpush1.msra.mxu0 0.0
  %1002 = vmatprep.subr.mxu0 0.0
  %1003 = vmatpush1.msra.mxu0 0.0
  %1004 = vmatprep.subr.mxu0 0.0
  %1005 = vmatpush1.msra.mxu0 0.0
  %1006 = vmatprep.subr.mxu0 0.0
  %1007 = vmatpush1.msra.mxu0 0.0
  %1008 = vmatprep.subr.mxu0 0.0
  %1009 = vmatpush1.msra.mxu0 0.0
  %1010 = vmatprep.subr.mxu0 0.0
  %1011 = vmatpush1.msra.mxu0 0.0
  %1012 = vmatprep.subr.mxu0 0.0
  %1013 = vmatpush1.msra.mxu0 0.0
  %1014 = vmatprep.subr.mxu0 0.0
  %1015 = vmatpush1.msra.mxu0 0.0
  %1016 = vmatprep.subr.mxu0 0.0
  %1017 = vmatpush1.msra.mxu0 0.0
  %1018 = vmatprep.subr.mxu0 0.0
  %1019 = vmatpush1.msra.mxu0 0.0
  %1020 = vmatprep.subr.mxu0 0.0
  %1021 = vmatpush1.msra.mxu0 0.0
  %1022 = vmatprep.subr.mxu0 0.0
  %1023 = vmatpush1.msra.mxu0 0.0
  %1024 = vmatprep.subr.mxu0 0.0
  %1025 = vmatpush1.msra.mxu0 0.0
  %1026 = vmatprep.subr.mxu0 0.0
  %1027 = vmatpush1.msra.mxu0 0.0
  %1028 = vmatprep.subr.mxu0 0.0
  %1029 = vmatpush1.msra.mxu0 0.0
  %1030 = vmatprep.subr.mxu0 0.0
  %1031 = vmatpush1.msra.mxu0 0.0
  %1032 = vmatprep.subr.mxu0 0.0
  %1033 = vmatpush1.msra.mxu0 0.0
  %1034 = vmatprep.subr.mxu0 0.0
  %1035 = vmatpush1.msra.mxu0 0.0
  %1036 = vmatprep.subr.mxu0 0.0
  %1037 = vmatpush1.msra.mxu0 0.0
  %1038 = vmatprep.subr.mxu0 0.0
  %1039 = vmatpush1.msra.mxu0 0.0
  %1040 = vmatprep.subr.mxu0 0.0
  %1041 = vmatpush1.msra.mxu0 0.0
  %1042 = vmatprep.subr.mxu0 0.0
  %1043 = vmatpush1.msra.mxu0 0.0
  %1044 = vmatprep.mubr.f32.mxu0 0.0
  %1045 = vmatmul.mubr.f32.gmra.mrb[0].mxu0 %v969
  %v1046 = vpop.f32.mrb[0].mxu0
  %v1047 = vadd.f32 0.0, %v1046
  %v1048 = vpop.f32.mrb[0].mxu0
  %1049 = vmatprep.mubr.f32.mxu0 0.0
  %1050 = vmatmul.mubr.f32.gmra.mrb[0].mxu0 %v972
  %v1051 = vpop.f32.mrb[0].mxu0
  %v1052 = vadd.f32 0.0, %v1051
  %v1053 = vpop.f32.mrb[0].mxu0
  %1054 = vmatprep.mubr.f32.mxu0 0.0
  %1055 = vmatmul.mubr.f32.gmra.mrb[0].mxu0 %v975
  %v1056 = vpop.f32.mrb[0].mxu0
  %v1057 = vadd.f32 0.0, %v1056
  %v1058 = vpop.f32.mrb[0].mxu0
  %1059 = vmatprep.mubr.f32.mxu0 0.0
  %1060 = vmatmul.mubr.f32.gmra.mrb[0].mxu0 %v978
  %v1061 = vpop.f32.mrb[0].mxu0
  %v1062 = vadd.f32 0.0, %v1061
  %v1063 = vpop.f32.mrb[0].mxu0
  %1064 = vdwg.mxu0
  %v1066 = vsel %vm168, %v469, 0
  %v1069 = vsel %vm168, %v474, 0
  %v1072 = vsel %vm168, %v556, 0
  %v1075 = vsel %vm168, %v561, 0
  %1077 = vmatprep.subr.mxu0 0.0
  %1078 = vmatpush1.msra.mxu0 %v157
  %1079 = vmatprep.subr.mxu0 0.0
  %1080 = vmatpush1.msra.mxu0 0.0
  %1081 = vmatprep.subr.mxu0 0.0
  %1082 = vmatpush1.msra.mxu0 0.0
  %1083 = vmatprep.subr.mxu0 0.0
  %1084 = vmatpush1.msra.mxu0 0.0
  %1085 = vmatprep.subr.mxu0 0.0
  %1086 = vmatpush1.msra.mxu0 0.0
  %1087 = vmatprep.subr.mxu0 0.0
  %1088 = vmatpush1.msra.mxu0 0.0
  %1089 = vmatprep.subr.mxu0 0.0
  %1090 = vmatpush1.msra.mxu0 0.0
  %1091 = vmatprep.subr.mxu0 0.0
  %1092 = vmatpush1.msra.mxu0 0.0
  %1093 = vmatprep.subr.mxu0 0.0
  %1094 = vmatpush1.msra.mxu0 0.0
  %1095 = vmatprep.subr.mxu0 0.0
  %1096 = vmatpush1.msra.mxu0 0.0
  %1097 = vmatprep.subr.mxu0 0.0
  %1098 = vmatpush1.msra.mxu0 0.0
  %1099 = vmatprep.subr.mxu0 0.0
  %1100 = vmatpush1.msra.mxu0 0.0
  %1101 = vmatprep.subr.mxu0 0.0
  %1102 = vmatpush1.msra.mxu0 0.0
  %1103 = vmatprep.subr.mxu0 0.0
  %1104 = vmatpush1.msra.mxu0 0.0
  %1105 = vmatprep.subr.mxu0 0.0
  %1106 = vmatpush1.msra.mxu0 0.0
  %1107 = vmatprep.subr.mxu0 0.0
  %1108 = vmatpush1.msra.mxu0 0.0
  %1109 = vmatprep.subr.mxu0 0.0
  %1110 = vmatpush1.msra.mxu0 0.0
  %1111 = vmatprep.subr.mxu0 0.0
  %1112 = vmatpush1.msra.mxu0 0.0
  %1113 = vmatprep.subr.mxu0 0.0
  %1114 = vmatpush1.msra.mxu0 0.0
  %1115 = vmatprep.subr.mxu0 0.0
  %1116 = vmatpush1.msra.mxu0 0.0
  %1117 = vmatprep.subr.mxu0 0.0
  %1118 = vmatpush1.msra.mxu0 0.0
  %1119 = vmatprep.subr.mxu0 0.0
  %1120 = vmatpush1.msra.mxu0 0.0
  %1121 = vmatprep.subr.mxu0 0.0
  %1122 = vmatpush1.msra.mxu0 0.0
  %1123 = vmatprep.subr.mxu0 0.0
  %1124 = vmatpush1.msra.mxu0 0.0
  %1125 = vmatprep.subr.mxu0 0.0
  %1126 = vmatpush1.msra.mxu0 0.0
  %1127 = vmatprep.subr.mxu0 0.0
  %1128 = vmatpush1.msra.mxu0 0.0
  %1129 = vmatprep.subr.mxu0 0.0
  %1130 = vmatpush1.msra.mxu0 0.0
  %1131 = vmatprep.subr.mxu0 0.0
  %1132 = vmatpush1.msra.mxu0 0.0
  %1133 = vmatprep.subr.mxu0 0.0
  %1134 = vmatpush1.msra.mxu0 0.0
  %1135 = vmatprep.subr.mxu0 0.0
  %1136 = vmatpush1.msra.mxu0 0.0
  %1137 = vmatprep.subr.mxu0 0.0
  %1138 = vmatpush1.msra.mxu0 0.0
  %1139 = vmatprep.subr.mxu0 0.0
  %1140 = vmatpush1.msra.mxu0 0.0
  %1141 = vmatprep.mubr.f32.mxu0 0.0
  %1142 = vmatmul.mubr.f32.gmra.mrb[0].mxu0 %v1066
  %v1143 = vpop.f32.mrb[0].mxu0
  %v1144 = vadd.f32 %v1047, %v1143
  %v1145 = vpop.f32.mrb[0].mxu0
  %1146 = vmatprep.mubr.f32.mxu0 0.0
  %1147 = vmatmul.mubr.f32.gmra.mrb[0].mxu0 %v1069
  %v1148 = vpop.f32.mrb[0].mxu0
  %v1149 = vadd.f32 %v1052, %v1148
  %v1150 = vpop.f32.mrb[0].mxu0
  %1151 = vmatprep.mubr.f32.mxu0 0.0
  %1152 = vmatmul.mubr.f32.gmra.mrb[0].mxu0 %v1072
  %v1153 = vpop.f32.mrb[0].mxu0
  %v1154 = vadd.f32 %v1057, %v1153
  %v1155 = vpop.f32.mrb[0].mxu0
  %1156 = vmatprep.mubr.f32.mxu0 0.0
  %1157 = vmatmul.mubr.f32.gmra.mrb[0].mxu0 %v1075
  %v1158 = vpop.f32.mrb[0].mxu0
  %v1159 = vadd.f32 %v1062, %v1158
  %v1160 = vpop.f32.mrb[0].mxu0
  %1161 = vdwg.mxu0
  %1162 = vrot.lane.b32.xlu0 %v139, 112
  %v1163 = vpop.permute.xlu0 %1162
  %1164 = vrot.lane.b32.xlu0 %v144, 112
  %v1165 = vpop.permute.xlu0 %1164
  %1166 = vrot.lane.b32.xlu0 %v139, 80
  %v1167 = vpop.permute.xlu0 %1166
  %1168 = vrot.lane.b32.xlu0 %v144, 80
  %v1169 = vpop.permute.xlu0 %1168
  %v1170 = vsel %vm168, %v1163, 0
  %v1172 = vsel %vm168, %v1165, 0
  %v1174 = vsel %vm168, %v1167, 0
  %v1176 = vsel %vm168, %v1169, 0
  %1178 = vmatprep.subr.mxu0 0.0
  %1179 = vmatpush1.xpose.msra.mxu0 %v1174
  %1180 = vmatprep.subr.mxu0 0.0
  %1181 = vmatpush1.xpose.msra.mxu0 %v1176
  %1182 = vmatprep.subr.mxu0 0.0
  %1183 = vmatpush1.xpose.msra.mxu0 0.0
  %1184 = vmatprep.subr.mxu0 0.0
  %1185 = vmatpush1.xpose.msra.mxu0 0.0
  %1186 = vmatprep.subr.mxu0 0.0
  %1187 = vmatpush1.xpose.msra.mxu0 0.0
  %1188 = vmatprep.subr.mxu0 0.0
  %1189 = vmatpush1.xpose.msra.mxu0 0.0
  %1190 = vmatprep.subr.mxu0 0.0
  %1191 = vmatpush1.xpose.msra.mxu0 0.0
  %1192 = vmatprep.subr.mxu0 0.0
  %1193 = vmatpush1.xpose.msra.mxu0 0.0
  %1194 = vmatprep.subr.mxu0 0.0
  %1195 = vmatpush1.xpose.msra.mxu0 0.0
  %1196 = vmatprep.subr.mxu0 0.0
  %1197 = vmatpush1.xpose.msra.mxu0 0.0
  %1198 = vmatprep.subr.mxu0 0.0
  %1199 = vmatpush1.xpose.msra.mxu0 0.0
  %1200 = vmatprep.subr.mxu0 0.0
  %1201 = vmatpush1.xpose.msra.mxu0 0.0
  %1202 = vmatprep.subr.mxu0 0.0
  %1203 = vmatpush1.xpose.msra.mxu0 0.0
  %1204 = vmatprep.subr.mxu0 0.0
  %1205 = vmatpush1.xpose.msra.mxu0 0.0
  %1206 = vmatprep.subr.mxu0 0.0
  %1207 = vmatpush1.xpose.msra.mxu0 0.0
  %1208 = vmatprep.subr.mxu0 0.0
  %1209 = vmatpush1.xpose.msra.mxu0 0.0
  %1210 = vmatprep.subr.mxu0 0.0
  %1211 = vmatpush1.xpose.msra.mxu0 0.0
  %1212 = vmatprep.subr.mxu0 0.0
  %1213 = vmatpush1.xpose.msra.mxu0 0.0
  %1214 = vmatprep.subr.mxu0 0.0
  %1215 = vmatpush1.xpose.msra.mxu0 0.0
  %1216 = vmatprep.subr.mxu0 0.0
  %1217 = vmatpush1.xpose.msra.mxu0 0.0
  %1218 = vmatprep.subr.mxu0 0.0
  %1219 = vmatpush1.xpose.msra.mxu0 0.0
  %1220 = vmatprep.subr.mxu0 0.0
  %1221 = vmatpush1.xpose.msra.mxu0 0.0
  %1222 = vmatprep.subr.mxu0 0.0
  %1223 = vmatpush1.xpose.msra.mxu0 0.0
  %1224 = vmatprep.subr.mxu0 0.0
  %1225 = vmatpush1.xpose.msra.mxu0 0.0
  %1226 = vmatprep.subr.mxu0 0.0
  %1227 = vmatpush1.xpose.msra.mxu0 0.0
  %1228 = vmatprep.subr.mxu0 0.0
  %1229 = vmatpush1.xpose.msra.mxu0 0.0
  %1230 = vmatprep.subr.mxu0 0.0
  %1231 = vmatpush1.xpose.msra.mxu0 0.0
  %1232 = vmatprep.subr.mxu0 0.0
  %1233 = vmatpush1.xpose.msra.mxu0 0.0
  %1234 = vmatprep.subr.mxu0 0.0
  %1235 = vmatpush1.xpose.msra.mxu0 0.0
  %1236 = vmatprep.subr.mxu0 0.0
  %1237 = vmatpush1.xpose.msra.mxu0 0.0
  %1238 = vmatprep.subr.mxu0 0.0
  %1239 = vmatpush1.xpose.msra.mxu0 0.0
  %1240 = vmatprep.subr.mxu0 0.0
  %1241 = vmatpush1.xpose.msra.mxu0 0.0
  %1242 = vmatprep.mubr.f32.mxu0 0.0
  %1243 = vmatmul.mubr.f32.gmra.mrb[0].mxu0 %v1170
  %v1244 = vpop.f32.mrb[0].mxu0
  %v1245 = vadd.f32 0.0, %v1244
  %v1246 = vpop.f32.mrb[0].mxu0
  %1247 = vmatprep.mubr.f32.mxu0 0.0
  %1248 = vmatmul.mubr.f32.gmra.mrb[0].mxu0 %v1172
  %v1249 = vpop.f32.mrb[0].mxu0
  %v1250 = vadd.f32 0.0, %v1249
  %v1251 = vpop.f32.mrb[0].mxu0
  %1252 = vdwg.mxu0
  %1253 = vrot.lane.b32.xlu0 %v149, 112
  %v1254 = vpop.permute.xlu0 %1253
  %1255 = vrot.lane.b32.xlu0 %v154, 112
  %v1256 = vpop.permute.xlu0 %1255
  %1257 = vrot.lane.b32.xlu0 %v149, 80
  %v1258 = vpop.permute.xlu0 %1257
  %1259 = vrot.lane.b32.xlu0 %v154, 80
  %v1260 = vpop.permute.xlu0 %1259
  %v1261 = vsel %vm168, %v1254, 0
  %v1263 = vsel %vm168, %v1256, 0
  %v1265 = vsel %vm168, %v1258, 0
  %v1267 = vsel %vm168, %v1260, 0
  %1269 = vmatprep.subr.mxu0 0.0
  %1270 = vmatpush1.xpose.msra.mxu0 %v1265
  %1271 = vmatprep.subr.mxu0 0.0
  %1272 = vmatpush1.xpose.msra.mxu0 %v1267
  %1273 = vmatprep.subr.mxu0 0.0
  %1274 = vmatpush1.xpose.msra.mxu0 0.0
  %1275 = vmatprep.subr.mxu0 0.0
  %1276 = vmatpush1.xpose.msra.mxu0 0.0
  %1277 = vmatprep.subr.mxu0 0.0
  %1278 = vmatpush1.xpose.msra.mxu0 0.0
  %1279 = vmatprep.subr.mxu0 0.0
  %1280 = vmatpush1.xpose.msra.mxu0 0.0
  %1281 = vmatprep.subr.mxu0 0.0
  %1282 = vmatpush1.xpose.msra.mxu0 0.0
  %1283 = vmatprep.subr.mxu0 0.0
  %1284 = vmatpush1.xpose.msra.mxu0 0.0
  %1285 = vmatprep.subr.mxu0 0.0
  %1286 = vmatpush1.xpose.msra.mxu0 0.0
  %1287 = vmatprep.subr.mxu0 0.0
  %1288 = vmatpush1.xpose.msra.mxu0 0.0
  %1289 = vmatprep.subr.mxu0 0.0
  %1290 = vmatpush1.xpose.msra.mxu0 0.0
  %1291 = vmatprep.subr.mxu0 0.0
  %1292 = vmatpush1.xpose.msra.mxu0 0.0
  %1293 = vmatprep.subr.mxu0 0.0
  %1294 = vmatpush1.xpose.msra.mxu0 0.0
  %1295 = vmatprep.subr.mxu0 0.0
  %1296 = vmatpush1.xpose.msra.mxu0 0.0
  %1297 = vmatprep.subr.mxu0 0.0
  %1298 = vmatpush1.xpose.msra.mxu0 0.0
  %1299 = vmatprep.subr.mxu0 0.0
  %1300 = vmatpush1.xpose.msra.mxu0 0.0
  %1301 = vmatprep.subr.mxu0 0.0
  %1302 = vmatpush1.xpose.msra.mxu0 0.0
  %1303 = vmatprep.subr.mxu0 0.0
  %1304 = vmatpush1.xpose.msra.mxu0 0.0
  %1305 = vmatprep.subr.mxu0 0.0
  %1306 = vmatpush1.xpose.msra.mxu0 0.0
  %1307 = vmatprep.subr.mxu0 0.0
  %1308 = vmatpush1.xpose.msra.mxu0 0.0
  %1309 = vmatprep.subr.mxu0 0.0
  %1310 = vmatpush1.xpose.msra.mxu0 0.0
  %1311 = vmatprep.subr.mxu0 0.0
  %1312 = vmatpush1.xpose.msra.mxu0 0.0
  %1313 = vmatprep.subr.mxu0 0.0
  %1314 = vmatpush1.xpose.msra.mxu0 0.0
  %1315 = vmatprep.subr.mxu0 0.0
  %1316 = vmatpush1.xpose.msra.mxu0 0.0
  %1317 = vmatprep.subr.mxu0 0.0
  %1318 = vmatpush1.xpose.msra.mxu0 0.0
  %1319 = vmatprep.subr.mxu0 0.0
  %1320 = vmatpush1.xpose.msra.mxu0 0.0
  %1321 = vmatprep.subr.mxu0 0.0
  %1322 = vmatpush1.xpose.msra.mxu0 0.0
  %1323 = vmatprep.subr.mxu0 0.0
  %1324 = vmatpush1.xpose.msra.mxu0 0.0
  %1325 = vmatprep.subr.mxu0 0.0
  %1326 = vmatpush1.xpose.msra.mxu0 0.0
  %1327 = vmatprep.subr.mxu0 0.0
  %1328 = vmatpush1.xpose.msra.mxu0 0.0
  %1329 = vmatprep.subr.mxu0 0.0
  %1330 = vmatpush1.xpose.msra.mxu0 0.0
  %1331 = vmatprep.subr.mxu0 0.0
  %1332 = vmatpush1.xpose.msra.mxu0 0.0
  %1333 = vmatprep.mubr.f32.mxu0 0.0
  %1334 = vmatmul.mubr.f32.gmra.mrb[0].mxu0 %v1261
  %v1335 = vpop.f32.mrb[0].mxu0
  %v1336 = vadd.f32 0.0, %v1335
  %v1337 = vpop.f32.mrb[0].mxu0
  %1338 = vmatprep.mubr.f32.mxu0 0.0
  %1339 = vmatmul.mubr.f32.gmra.mrb[0].mxu0 %v1263
  %v1340 = vpop.f32.mrb[0].mxu0
  %v1341 = vadd.f32 0.0, %v1340
  %v1342 = vpop.f32.mrb[0].mxu0
  %1343 = vdwg.mxu0
  %v1344 = vmul.f32 %v1245, 0.35355338
  %v1345 = vmul.f32 %v1250, 0.35355338
  %v1346 = vmul.f32 %v1336, 0.35355338
  %v1347 = vmul.f32 %v1341, 0.35355338
  %v1348 = vsel %vm345, %v1344, -inf
  %1349 = vmax.xlane.f32.xlu0 %v1348
  %v1350 = vpop.xlane.xlu0 %1349
  %v1351 = vsel %vm345, %v1345, -inf
  %1352 = vmax.xlane.f32.xlu0 %v1351
  %v1353 = vpop.xlane.xlu0 %1352
  %v1354 = vsel %vm345, %v1346, -inf
  %1355 = vmax.xlane.f32.xlu0 %v1354
  %v1356 = vpop.xlane.xlu0 %1355
  %v1357 = vsel %vm345, %v1347, -inf
  %1358 = vmax.xlane.f32.xlu0 %v1357
  %v1359 = vpop.xlane.xlu0 %1358
  %v1360 = vsub.f32 %v1344, %v1350
  %v1361 = vsub.f32 %v1345, %v1353
  %v1362 = vsub.f32 %v1346, %v1356
  %v1363 = vsub.f32 %v1347, %v1359
  %v1364 = vmul.f32 %v1360, 1.442695
  %v1365 = vpow.pop %v1364
  %v1366 = vmul.f32 %v1361, 1.442695
  %v1367 = vpow.pop %v1366
  %v1368 = vmul.f32 %v1362, 1.442695
  %v1369 = vpow.pop %v1368
  %v1370 = vmul.f32 %v1363, 1.442695
  %v1371 = vpow.pop %v1370
  %v1372 = vsel %vm345, %v1365, 0.0
  %1373 = vadd.xlane.f32.xlu0 %v1372
  %v1374 = vpop.xlane.xlu0 %1373
  %v1375 = vsel %vm345, %v1367, 0.0
  %1376 = vadd.xlane.f32.xlu0 %v1375
  %v1377 = vpop.xlane.xlu0 %1376
  %v1378 = vsel %vm345, %v1369, 0.0
  %1379 = vadd.xlane.f32.xlu0 %v1378
  %v1380 = vpop.xlane.xlu0 %1379
  %v1381 = vsel %vm345, %v1371, 0.0
  %1382 = vadd.xlane.f32.xlu0 %v1381
  %v1383 = vpop.xlane.xlu0 %1382
  %v1384 = vrcp.pop %v1374
  %v1385 = vrcp.pop %v1377
  %v1386 = vrcp.pop %v1380
  %v1387 = vrcp.pop %v1383
  %v1388 = vmul.f32 %v1365, %v1384
  %v1389 = vmul.f32 %v1367, %v1385
  %v1390 = vmul.f32 %v1369, %v1386
  %v1391 = vmul.f32 %v1371, %v1387
  %1392 = vrot.lane.b32.xlu0 %v139, 48
  %v1393 = vpop.permute.xlu0 %1392
  %1394 = vrot.lane.b32.xlu0 %v144, 48
  %v1395 = vpop.permute.xlu0 %1394
  %v1399 = vsel %vm345, %v1388, 0
  %v1402 = vsel %vm345, %v1389, 0
  %1404 = vmatprep.subr.mxu0 0.0
  %1405 = vmatpush1.msra.mxu0 %v1393
  %1406 = vmatprep.subr.mxu0 0.0
  %1407 = vmatpush1.msra.mxu0 %v1395
  %1408 = vmatprep.subr.mxu0 0.0
  %1409 = vmatpush1.msra.mxu0 0.0
  %1410 = vmatprep.subr.mxu0 0.0
  %1411 = vmatpush1.msra.mxu0 0.0
  %1412 = vmatprep.subr.mxu0 0.0
  %1413 = vmatpush1.msra.mxu0 0.0
  %1414 = vmatprep.subr.mxu0 0.0
  %1415 = vmatpush1.msra.mxu0 0.0
  %1416 = vmatprep.subr.mxu0 0.0
  %1417 = vmatpush1.msra.mxu0 0.0
  %1418 = vmatprep.subr.mxu0 0.0
  %1419 = vmatpush1.msra.mxu0 0.0
  %1420 = vmatprep.subr.mxu0 0.0
  %1421 = vmatpush1.msra.mxu0 0.0
  %1422 = vmatprep.subr.mxu0 0.0
  %1423 = vmatpush1.msra.mxu0 0.0
  %1424 = vmatprep.subr.mxu0 0.0
  %1425 = vmatpush1.msra.mxu0 0.0
  %1426 = vmatprep.subr.mxu0 0.0
  %1427 = vmatpush1.msra.mxu0 0.0
  %1428 = vmatprep.subr.mxu0 0.0
  %1429 = vmatpush1.msra.mxu0 0.0
  %1430 = vmatprep.subr.mxu0 0.0
  %1431 = vmatpush1.msra.mxu0 0.0
  %1432 = vmatprep.subr.mxu0 0.0
  %1433 = vmatpush1.msra.mxu0 0.0
  %1434 = vmatprep.subr.mxu0 0.0
  %1435 = vmatpush1.msra.mxu0 0.0
  %1436 = vmatprep.subr.mxu0 0.0
  %1437 = vmatpush1.msra.mxu0 0.0
  %1438 = vmatprep.subr.mxu0 0.0
  %1439 = vmatpush1.msra.mxu0 0.0
  %1440 = vmatprep.subr.mxu0 0.0
  %1441 = vmatpush1.msra.mxu0 0.0
  %1442 = vmatprep.subr.mxu0 0.0
  %1443 = vmatpush1.msra.mxu0 0.0
  %1444 = vmatprep.subr.mxu0 0.0
  %1445 = vmatpush1.msra.mxu0 0.0
  %1446 = vmatprep.subr.mxu0 0.0
  %1447 = vmatpush1.msra.mxu0 0.0
  %1448 = vmatprep.subr.mxu0 0.0
  %1449 = vmatpush1.msra.mxu0 0.0
  %1450 = vmatprep.subr.mxu0 0.0
  %1451 = vmatpush1.msra.mxu0 0.0
  %1452 = vmatprep.subr.mxu0 0.0
  %1453 = vmatpush1.msra.mxu0 0.0
  %1454 = vmatprep.subr.mxu0 0.0
  %1455 = vmatpush1.msra.mxu0 0.0
  %1456 = vmatprep.subr.mxu0 0.0
  %1457 = vmatpush1.msra.mxu0 0.0
  %1458 = vmatprep.subr.mxu0 0.0
  %1459 = vmatpush1.msra.mxu0 0.0
  %1460 = vmatprep.subr.mxu0 0.0
  %1461 = vmatpush1.msra.mxu0 0.0
  %1462 = vmatprep.subr.mxu0 0.0
  %1463 = vmatpush1.msra.mxu0 0.0
  %1464 = vmatprep.subr.mxu0 0.0
  %1465 = vmatpush1.msra.mxu0 0.0
  %1466 = vmatprep.subr.mxu0 0.0
  %1467 = vmatpush1.msra.mxu0 0.0
  %1468 = vmatprep.mubr.f32.mxu0 0.0
  %1469 = vmatmul.mubr.f32.gmra.mrb[0].mxu0 %v1399
  %v1470 = vpop.f32.mrb[0].mxu0
  %v1471 = vadd.f32 0.0, %v1470
  %v1472 = vpop.f32.mrb[0].mxu0
  %1473 = vmatprep.mubr.f32.mxu0 0.0
  %1474 = vmatmul.mubr.f32.gmra.mrb[0].mxu0 %v1402
  %v1475 = vpop.f32.mrb[0].mxu0
  %v1476 = vadd.f32 0.0, %v1475
  %v1477 = vpop.f32.mrb[0].mxu0
  %1478 = vdwg.mxu0
  %1479 = vrot.lane.b32.xlu0 %v149, 48
  %v1480 = vpop.permute.xlu0 %1479
  %1481 = vrot.lane.b32.xlu0 %v154, 48
  %v1482 = vpop.permute.xlu0 %1481
  %v1486 = vsel %vm345, %v1390, 0
  %v1489 = vsel %vm345, %v1391, 0
  %1491 = vmatprep.subr.mxu0 0.0
  %1492 = vmatpush1.msra.mxu0 %v1480
  %1493 = vmatprep.subr.mxu0 0.0
  %1494 = vmatpush1.msra.mxu0 %v1482
  %1495 = vmatprep.subr.mxu0 0.0
  %1496 = vmatpush1.msra.mxu0 0.0
  %1497 = vmatprep.subr.mxu0 0.0
  %1498 = vmatpush1.msra.mxu0 0.0
  %1499 = vmatprep.subr.mxu0 0.0
  %1500 = vmatpush1.msra.mxu0 0.0
  %1501 = vmatprep.subr.mxu0 0.0
  %1502 = vmatpush1.msra.mxu0 0.0
  %1503 = vmatprep.subr.mxu0 0.0
  %1504 = vmatpush1.msra.mxu0 0.0
  %1505 = vmatprep.subr.mxu0 0.0
  %1506 = vmatpush1.msra.mxu0 0.0
  %1507 = vmatprep.subr.mxu0 0.0
  %1508 = vmatpush1.msra.mxu0 0.0
  %1509 = vmatprep.subr.mxu0 0.0
  %1510 = vmatpush1.msra.mxu0 0.0
  %1511 = vmatprep.subr.mxu0 0.0
  %1512 = vmatpush1.msra.mxu0 0.0
  %1513 = vmatprep.subr.mxu0 0.0
  %1514 = vmatpush1.msra.mxu0 0.0
  %1515 = vmatprep.subr.mxu0 0.0
  %1516 = vmatpush1.msra.mxu0 0.0
  %1517 = vmatprep.subr.mxu0 0.0
  %1518 = vmatpush1.msra.mxu0 0.0
  %1519 = vmatprep.subr.mxu0 0.0
  %1520 = vmatpush1.msra.mxu0 0.0
  %1521 = vmatprep.subr.mxu0 0.0
  %1522 = vmatpush1.msra.mxu0 0.0
  %1523 = vmatprep.subr.mxu0 0.0
  %1524 = vmatpush1.msra.mxu0 0.0
  %1525 = vmatprep.subr.mxu0 0.0
  %1526 = vmatpush1.msra.mxu0 0.0
  %1527 = vmatprep.subr.mxu0 0.0
  %1528 = vmatpush1.msra.mxu0 0.0
  %1529 = vmatprep.subr.mxu0 0.0
  %1530 = vmatpush1.msra.mxu0 0.0
  %1531 = vmatprep.subr.mxu0 0.0
  %1532 = vmatpush1.msra.mxu0 0.0
  %1533 = vmatprep.subr.mxu0 0.0
  %1534 = vmatpush1.msra.mxu0 0.0
  %1535 = vmatprep.subr.mxu0 0.0
  %1536 = vmatpush1.msra.mxu0 0.0
  %1537 = vmatprep.subr.mxu0 0.0
  %1538 = vmatpush1.msra.mxu0 0.0
  %1539 = vmatprep.subr.mxu0 0.0
  %1540 = vmatpush1.msra.mxu0 0.0
  %1541 = vmatprep.subr.mxu0 0.0
  %1542 = vmatpush1.msra.mxu0 0.0
  %1543 = vmatprep.subr.mxu0 0.0
  %1544 = vmatpush1.msra.mxu0 0.0
  %1545 = vmatprep.subr.mxu0 0.0
  %1546 = vmatpush1.msra.mxu0 0.0
  %1547 = vmatprep.subr.mxu0 0.0
  %1548 = vmatpush1.msra.mxu0 0.0
  %1549 = vmatprep.subr.mxu0 0.0
  %1550 = vmatpush1.msra.mxu0 0.0
  %1551 = vmatprep.subr.mxu0 0.0
  %1552 = vmatpush1.msra.mxu0 0.0
  %1553 = vmatprep.subr.mxu0 0.0
  %1554 = vmatpush1.msra.mxu0 0.0
  %1555 = vmatprep.mubr.f32.mxu0 0.0
  %1556 = vmatmul.mubr.f32.gmra.mrb[0].mxu0 %v1486
  %v1557 = vpop.f32.mrb[0].mxu0
  %v1558 = vadd.f32 0.0, %v1557
  %v1559 = vpop.f32.mrb[0].mxu0
  %1560 = vmatprep.mubr.f32.mxu0 0.0
  %1561 = vmatmul.mubr.f32.gmra.mrb[0].mxu0 %v1489
  %v1562 = vpop.f32.mrb[0].mxu0
  %v1563 = vadd.f32 0.0, %v1562
  %v1564 = vpop.f32.mrb[0].mxu0
  %1565 = vdwg.mxu0
  %v1567 = vsel %vm168, %v1471, 0
  %v1570 = vsel %vm168, %v1476, 0
  %v1573 = vsel %vm168, %v1558, 0
  %v1576 = vsel %vm168, %v1563, 0
  %1578 = vmatprep.subr.mxu0 0.0
  %1579 = vmatpush1.msra.mxu0 %v159
  %1580 = vmatprep.subr.mxu0 0.0
  %1581 = vmatpush1.msra.mxu0 0.0
  %1582 = vmatprep.subr.mxu0 0.0
  %1583 = vmatpush1.msra.mxu0 0.0
  %1584 = vmatprep.subr.mxu0 0.0
  %1585 = vmatpush1.msra.mxu0 0.0
  %1586 = vmatprep.subr.mxu0 0.0
  %1587 = vmatpush1.msra.mxu0 0.0
  %1588 = vmatprep.subr.mxu0 0.0
  %1589 = vmatpush1.msra.mxu0 0.0
  %1590 = vmatprep.subr.mxu0 0.0
  %1591 = vmatpush1.msra.mxu0 0.0
  %1592 = vmatprep.subr.mxu0 0.0
  %1593 = vmatpush1.msra.mxu0 0.0
  %1594 = vmatprep.subr.mxu0 0.0
  %1595 = vmatpush1.msra.mxu0 0.0
  %1596 = vmatprep.subr.mxu0 0.0
  %1597 = vmatpush1.msra.mxu0 0.0
  %1598 = vmatprep.subr.mxu0 0.0
  %1599 = vmatpush1.msra.mxu0 0.0
  %1600 = vmatprep.subr.mxu0 0.0
  %1601 = vmatpush1.msra.mxu0 0.0
  %1602 = vmatprep.subr.mxu0 0.0
  %1603 = vmatpush1.msra.mxu0 0.0
  %1604 = vmatprep.subr.mxu0 0.0
  %1605 = vmatpush1.msra.mxu0 0.0
  %1606 = vmatprep.subr.mxu0 0.0
  %1607 = vmatpush1.msra.mxu0 0.0
  %1608 = vmatprep.subr.mxu0 0.0
  %1609 = vmatpush1.msra.mxu0 0.0
  %1610 = vmatprep.subr.mxu0 0.0
  %1611 = vmatpush1.msra.mxu0 0.0
  %1612 = vmatprep.subr.mxu0 0.0
  %1613 = vmatpush1.msra.mxu0 0.0
  %1614 = vmatprep.subr.mxu0 0.0
  %1615 = vmatpush1.msra.mxu0 0.0
  %1616 = vmatprep.subr.mxu0 0.0
  %1617 = vmatpush1.msra.mxu0 0.0
  %1618 = vmatprep.subr.mxu0 0.0
  %1619 = vmatpush1.msra.mxu0 0.0
  %1620 = vmatprep.subr.mxu0 0.0
  %1621 = vmatpush1.msra.mxu0 0.0
  %1622 = vmatprep.subr.mxu0 0.0
  %1623 = vmatpush1.msra.mxu0 0.0
  %1624 = vmatprep.subr.mxu0 0.0
  %1625 = vmatpush1.msra.mxu0 0.0
  %1626 = vmatprep.subr.mxu0 0.0
  %1627 = vmatpush1.msra.mxu0 0.0
  %1628 = vmatprep.subr.mxu0 0.0
  %1629 = vmatpush1.msra.mxu0 0.0
  %1630 = vmatprep.subr.mxu0 0.0
  %1631 = vmatpush1.msra.mxu0 0.0
  %1632 = vmatprep.subr.mxu0 0.0
  %1633 = vmatpush1.msra.mxu0 0.0
  %1634 = vmatprep.subr.mxu0 0.0
  %1635 = vmatpush1.msra.mxu0 0.0
  %1636 = vmatprep.subr.mxu0 0.0
  %1637 = vmatpush1.msra.mxu0 0.0
  %1638 = vmatprep.subr.mxu0 0.0
  %1639 = vmatpush1.msra.mxu0 0.0
  %1640 = vmatprep.subr.mxu0 0.0
  %1641 = vmatpush1.msra.mxu0 0.0
  %1642 = vmatprep.mubr.f32.mxu0 0.0
  %1643 = vmatmul.mubr.f32.gmra.mrb[0].mxu0 %v1567
  %v1644 = vpop.f32.mrb[0].mxu0
  %v1645 = vadd.f32 0.0, %v1644
  %v1646 = vpop.f32.mrb[0].mxu0
  %1647 = vmatprep.mubr.f32.mxu0 0.0
  %1648 = vmatmul.mubr.f32.gmra.mrb[0].mxu0 %v1570
  %v1649 = vpop.f32.mrb[0].mxu0
  %v1650 = vadd.f32 0.0, %v1649
  %v1651 = vpop.f32.mrb[0].mxu0
  %1652 = vmatprep.mubr.f32.mxu0 0.0
  %1653 = vmatmul.mubr.f32.gmra.mrb[0].mxu0 %v1573
  %v1654 = vpop.f32.mrb[0].mxu0
  %v1655 = vadd.f32 0.0, %v1654
  %v1656 = vpop.f32.mrb[0].mxu0
  %1657 = vmatprep.mubr.f32.mxu0 0.0
  %1658 = vmatmul.mubr.f32.gmra.mrb[0].mxu0 %v1576
  %v1659 = vpop.f32.mrb[0].mxu0
  %v1660 = vadd.f32 0.0, %v1659
  %v1661 = vpop.f32.mrb[0].mxu0
  %1662 = vdwg.mxu0
  %v1663 = vadd.f32 %v1144, %v1645
  %v1664 = vadd.f32 %v1149, %v1650
  %v1665 = vadd.f32 %v1154, %v1655
  %v1666 = vadd.f32 %v1159, %v1660
  %1667 = vrot.lane.b32.xlu0 %v139, 104
  %v1668 = vpop.permute.xlu0 %1667
  %1669 = vrot.lane.b32.xlu0 %v144, 104
  %v1670 = vpop.permute.xlu0 %1669
  %1671 = vrot.lane.b32.xlu0 %v139, 72
  %v1672 = vpop.permute.xlu0 %1671
  %1673 = vrot.lane.b32.xlu0 %v144, 72
  %v1674 = vpop.permute.xlu0 %1673
  %v1675 = vsel %vm168, %v1668, 0
  %v1677 = vsel %vm168, %v1670, 0
  %v1679 = vsel %vm168, %v1672, 0
  %v1681 = vsel %vm168, %v1674, 0
  %1683 = vmatprep.subr.mxu0 0.0
  %1684 = vmatpush1.xpose.msra.mxu0 %v1679
  %1685 = vmatprep.subr.mxu0 0.0
  %1686 = vmatpush1.xpose.msra.mxu0 %v1681
  %1687 = vmatprep.subr.mxu0 0.0
  %1688 = vmatpush1.xpose.msra.mxu0 0.0
  %1689 = vmatprep.subr.mxu0 0.0
  %1690 = vmatpush1.xpose.msra.mxu0 0.0
  %1691 = vmatprep.subr.mxu0 0.0
  %1692 = vmatpush1.xpose.msra.mxu0 0.0
  %1693 = vmatprep.subr.mxu0 0.0
  %1694 = vmatpush1.xpose.msra.mxu0 0.0
  %1695 = vmatprep.subr.mxu0 0.0
  %1696 = vmatpush1.xpose.msra.mxu0 0.0
  %1697 = vmatprep.subr.mxu0 0.0
  %1698 = vmatpush1.xpose.msra.mxu0 0.0
  %1699 = vmatprep.subr.mxu0 0.0
  %1700 = vmatpush1.xpose.msra.mxu0 0.0
  %1701 = vmatprep.subr.mxu0 0.0
  %1702 = vmatpush1.xpose.msra.mxu0 0.0
  %1703 = vmatprep.subr.mxu0 0.0
  %1704 = vmatpush1.xpose.msra.mxu0 0.0
  %1705 = vmatprep.subr.mxu0 0.0
  %1706 = vmatpush1.xpose.msra.mxu0 0.0
  %1707 = vmatprep.subr.mxu0 0.0
  %1708 = vmatpush1.xpose.msra.mxu0 0.0
  %1709 = vmatprep.subr.mxu0 0.0
  %1710 = vmatpush1.xpose.msra.mxu0 0.0
  %1711 = vmatprep.subr.mxu0 0.0
  %1712 = vmatpush1.xpose.msra.mxu0 0.0
  %1713 = vmatprep.subr.mxu0 0.0
  %1714 = vmatpush1.xpose.msra.mxu0 0.0
  %1715 = vmatprep.subr.mxu0 0.0
  %1716 = vmatpush1.xpose.msra.mxu0 0.0
  %1717 = vmatprep.subr.mxu0 0.0
  %1718 = vmatpush1.xpose.msra.mxu0 0.0
  %1719 = vmatprep.subr.mxu0 0.0
  %1720 = vmatpush1.xpose.msra.mxu0 0.0
  %1721 = vmatprep.subr.mxu0 0.0
  %1722 = vmatpush1.xpose.msra.mxu0 0.0
  %1723 = vmatprep.subr.mxu0 0.0
  %1724 = vmatpush1.xpose.msra.mxu0 0.0
  %1725 = vmatprep.subr.mxu0 0.0
  %1726 = vmatpush1.xpose.msra.mxu0 0.0
  %1727 = vmatprep.subr.mxu0 0.0
  %1728 = vmatpush1.xpose.msra.mxu0 0.0
  %1729 = vmatprep.subr.mxu0 0.0
  %1730 = vmatpush1.xpose.msra.mxu0 0.0
  %1731 = vmatprep.subr.mxu0 0.0
  %1732 = vmatpush1.xpose.msra.mxu0 0.0
  %1733 = vmatprep.subr.mxu0 0.0
  %1734 = vmatpush1.xpose.msra.mxu0 0.0
  %1735 = vmatprep.subr.mxu0 0.0
  %1736 = vmatpush1.xpose.msra.mxu0 0.0
  %1737 = vmatprep.subr.mxu0 0.0
  %1738 = vmatpush1.xpose.msra.mxu0 0.0
  %1739 = vmatprep.subr.mxu0 0.0
  %1740 = vmatpush1.xpose.msra.mxu0 0.0
  %1741 = vmatprep.subr.mxu0 0.0
  %1742 = vmatpush1.xpose.msra.mxu0 0.0
  %1743 = vmatprep.subr.mxu0 0.0
  %1744 = vmatpush1.xpose.msra.mxu0 0.0
  %1745 = vmatprep.subr.mxu0 0.0
  %1746 = vmatpush1.xpose.msra.mxu0 0.0
  %1747 = vmatprep.mubr.f32.mxu0 0.0
  %1748 = vmatmul.mubr.f32.gmra.mrb[0].mxu0 %v1675
  %v1749 = vpop.f32.mrb[0].mxu0
  %v1750 = vadd.f32 0.0, %v1749
  %v1751 = vpop.f32.mrb[0].mxu0
  %1752 = vmatprep.mubr.f32.mxu0 0.0
  %1753 = vmatmul.mubr.f32.gmra.mrb[0].mxu0 %v1677
  %v1754 = vpop.f32.mrb[0].mxu0
  %v1755 = vadd.f32 0.0, %v1754
  %v1756 = vpop.f32.mrb[0].mxu0
  %1757 = vdwg.mxu0
  %1758 = vrot.lane.b32.xlu0 %v149, 104
  %v1759 = vpop.permute.xlu0 %1758
  %1760 = vrot.lane.b32.xlu0 %v154, 104
  %v1761 = vpop.permute.xlu0 %1760
  %1762 = vrot.lane.b32.xlu0 %v149, 72
  %v1763 = vpop.permute.xlu0 %1762
  %1764 = vrot.lane.b32.xlu0 %v154, 72
  %v1765 = vpop.permute.xlu0 %1764
  %v1766 = vsel %vm168, %v1759, 0
  %v1768 = vsel %vm168, %v1761, 0
  %v1770 = vsel %vm168, %v1763, 0
  %v1772 = vsel %vm168, %v1765, 0
  %1774 = vmatprep.subr.mxu0 0.0
  %1775 = vmatpush1.xpose.msra.mxu0 %v1770
  %1776 = vmatprep.subr.mxu0 0.0
  %1777 = vmatpush1.xpose.msra.mxu0 %v1772
  %1778 = vmatprep.subr.mxu0 0.0
  %1779 = vmatpush1.xpose.msra.mxu0 0.0
  %1780 = vmatprep.subr.mxu0 0.0
  %1781 = vmatpush1.xpose.msra.mxu0 0.0
  %1782 = vmatprep.subr.mxu0 0.0
  %1783 = vmatpush1.xpose.msra.mxu0 0.0
  %1784 = vmatprep.subr.mxu0 0.0
  %1785 = vmatpush1.xpose.msra.mxu0 0.0
  %1786 = vmatprep.subr.mxu0 0.0
  %1787 = vmatpush1.xpose.msra.mxu0 0.0
  %1788 = vmatprep.subr.mxu0 0.0
  %1789 = vmatpush1.xpose.msra.mxu0 0.0
  %1790 = vmatprep.subr.mxu0 0.0
  %1791 = vmatpush1.xpose.msra.mxu0 0.0
  %1792 = vmatprep.subr.mxu0 0.0
  %1793 = vmatpush1.xpose.msra.mxu0 0.0
  %1794 = vmatprep.subr.mxu0 0.0
  %1795 = vmatpush1.xpose.msra.mxu0 0.0
  %1796 = vmatprep.subr.mxu0 0.0
  %1797 = vmatpush1.xpose.msra.mxu0 0.0
  %1798 = vmatprep.subr.mxu0 0.0
  %1799 = vmatpush1.xpose.msra.mxu0 0.0
  %1800 = vmatprep.subr.mxu0 0.0
  %1801 = vmatpush1.xpose.msra.mxu0 0.0
  %1802 = vmatprep.subr.mxu0 0.0
  %1803 = vmatpush1.xpose.msra.mxu0 0.0
  %1804 = vmatprep.subr.mxu0 0.0
  %1805 = vmatpush1.xpose.msra.mxu0 0.0
  %1806 = vmatprep.subr.mxu0 0.0
  %1807 = vmatpush1.xpose.msra.mxu0 0.0
  %1808 = vmatprep.subr.mxu0 0.0
  %1809 = vmatpush1.xpose.msra.mxu0 0.0
  %1810 = vmatprep.subr.mxu0 0.0
  %1811 = vmatpush1.xpose.msra.mxu0 0.0
  %1812 = vmatprep.subr.mxu0 0.0
  %1813 = vmatpush1.xpose.msra.mxu0 0.0
  %1814 = vmatprep.subr.mxu0 0.0
  %1815 = vmatpush1.xpose.msra.mxu0 0.0
  %1816 = vmatprep.subr.mxu0 0.0
  %1817 = vmatpush1.xpose.msra.mxu0 0.0
  %1818 = vmatprep.subr.mxu0 0.0
  %1819 = vmatpush1.xpose.msra.mxu0 0.0
  %1820 = vmatprep.subr.mxu0 0.0
  %1821 = vmatpush1.xpose.msra.mxu0 0.0
  %1822 = vmatprep.subr.mxu0 0.0
  %1823 = vmatpush1.xpose.msra.mxu0 0.0
  %1824 = vmatprep.subr.mxu0 0.0
  %1825 = vmatpush1.xpose.msra.mxu0 0.0
  %1826 = vmatprep.subr.mxu0 0.0
  %1827 = vmatpush1.xpose.msra.mxu0 0.0
  %1828 = vmatprep.subr.mxu0 0.0
  %1829 = vmatpush1.xpose.msra.mxu0 0.0
  %1830 = vmatprep.subr.mxu0 0.0
  %1831 = vmatpush1.xpose.msra.mxu0 0.0
  %1832 = vmatprep.subr.mxu0 0.0
  %1833 = vmatpush1.xpose.msra.mxu0 0.0
  %1834 = vmatprep.subr.mxu0 0.0
  %1835 = vmatpush1.xpose.msra.mxu0 0.0
  %1836 = vmatprep.subr.mxu0 0.0
  %1837 = vmatpush1.xpose.msra.mxu0 0.0
  %1838 = vmatprep.mubr.f32.mxu0 0.0
  %1839 = vmatmul.mubr.f32.gmra.mrb[0].mxu0 %v1766
  %v1840 = vpop.f32.mrb[0].mxu0
  %v1841 = vadd.f32 0.0, %v1840
  %v1842 = vpop.f32.mrb[0].mxu0
  %1843 = vmatprep.mubr.f32.mxu0 0.0
  %1844 = vmatmul.mubr.f32.gmra.mrb[0].mxu0 %v1768
  %v1845 = vpop.f32.mrb[0].mxu0
  %v1846 = vadd.f32 0.0, %v1845
  %v1847 = vpop.f32.mrb[0].mxu0
  %1848 = vdwg.mxu0
  %v1849 = vmul.f32 %v1750, 0.35355338
  %v1850 = vmul.f32 %v1755, 0.35355338
  %v1851 = vmul.f32 %v1841, 0.35355338
  %v1852 = vmul.f32 %v1846, 0.35355338
  %v1853 = vsel %vm345, %v1849, -inf
  %1854 = vmax.xlane.f32.xlu0 %v1853
  %v1855 = vpop.xlane.xlu0 %1854
  %v1856 = vsel %vm345, %v1850, -inf
  %1857 = vmax.xlane.f32.xlu0 %v1856
  %v1858 = vpop.xlane.xlu0 %1857
  %v1859 = vsel %vm345, %v1851, -inf
  %1860 = vmax.xlane.f32.xlu0 %v1859
  %v1861 = vpop.xlane.xlu0 %1860
  %v1862 = vsel %vm345, %v1852, -inf
  %1863 = vmax.xlane.f32.xlu0 %v1862
  %v1864 = vpop.xlane.xlu0 %1863
  %v1865 = vsub.f32 %v1849, %v1855
  %v1866 = vsub.f32 %v1850, %v1858
  %v1867 = vsub.f32 %v1851, %v1861
  %v1868 = vsub.f32 %v1852, %v1864
  %v1869 = vmul.f32 %v1865, 1.442695
  %v1870 = vpow.pop %v1869
  %v1871 = vmul.f32 %v1866, 1.442695
  %v1872 = vpow.pop %v1871
  %v1873 = vmul.f32 %v1867, 1.442695
  %v1874 = vpow.pop %v1873
  %v1875 = vmul.f32 %v1868, 1.442695
  %v1876 = vpow.pop %v1875
  %v1877 = vsel %vm345, %v1870, 0.0
  %1878 = vadd.xlane.f32.xlu0 %v1877
  %v1879 = vpop.xlane.xlu0 %1878
  %v1880 = vsel %vm345, %v1872, 0.0
  %1881 = vadd.xlane.f32.xlu0 %v1880
  %v1882 = vpop.xlane.xlu0 %1881
  %v1883 = vsel %vm345, %v1874, 0.0
  %1884 = vadd.xlane.f32.xlu0 %v1883
  %v1885 = vpop.xlane.xlu0 %1884
  %v1886 = vsel %vm345, %v1876, 0.0
  %1887 = vadd.xlane.f32.xlu0 %v1886
  %v1888 = vpop.xlane.xlu0 %1887
  %v1889 = vrcp.pop %v1879
  %v1890 = vrcp.pop %v1882
  %v1891 = vrcp.pop %v1885
  %v1892 = vrcp.pop %v1888
  %v1893 = vmul.f32 %v1870, %v1889
  %v1894 = vmul.f32 %v1872, %v1890
  %v1895 = vmul.f32 %v1874, %v1891
  %v1896 = vmul.f32 %v1876, %v1892
  %1897 = vrot.lane.b32.xlu0 %v139, 40
  %v1898 = vpop.permute.xlu0 %1897
  %1899 = vrot.lane.b32.xlu0 %v144, 40
  %v1900 = vpop.permute.xlu0 %1899
  %v1904 = vsel %vm345, %v1893, 0
  %v1907 = vsel %vm345, %v1894, 0
  %1909 = vmatprep.subr.mxu0 0.0
  %1910 = vmatpush1.msra.mxu0 %v1898
  %1911 = vmatprep.subr.mxu0 0.0
  %1912 = vmatpush1.msra.mxu0 %v1900
  %1913 = vmatprep.subr.mxu0 0.0
  %1914 = vmatpush1.msra.mxu0 0.0
  %1915 = vmatprep.subr.mxu0 0.0
  %1916 = vmatpush1.msra.mxu0 0.0
  %1917 = vmatprep.subr.mxu0 0.0
  %1918 = vmatpush1.msra.mxu0 0.0
  %1919 = vmatprep.subr.mxu0 0.0
  %1920 = vmatpush1.msra.mxu0 0.0
  %1921 = vmatprep.subr.mxu0 0.0
  %1922 = vmatpush1.msra.mxu0 0.0
  %1923 = vmatprep.subr.mxu0 0.0
  %1924 = vmatpush1.msra.mxu0 0.0
  %1925 = vmatprep.subr.mxu0 0.0
  %1926 = vmatpush1.msra.mxu0 0.0
  %1927 = vmatprep.subr.mxu0 0.0
  %1928 = vmatpush1.msra.mxu0 0.0
  %1929 = vmatprep.subr.mxu0 0.0
  %1930 = vmatpush1.msra.mxu0 0.0
  %1931 = vmatprep.subr.mxu0 0.0
  %1932 = vmatpush1.msra.mxu0 0.0
  %1933 = vmatprep.subr.mxu0 0.0
  %1934 = vmatpush1.msra.mxu0 0.0
  %1935 = vmatprep.subr.mxu0 0.0
  %1936 = vmatpush1.msra.mxu0 0.0
  %1937 = vmatprep.subr.mxu0 0.0
  %1938 = vmatpush1.msra.mxu0 0.0
  %1939 = vmatprep.subr.mxu0 0.0
  %1940 = vmatpush1.msra.mxu0 0.0
  %1941 = vmatprep.subr.mxu0 0.0
  %1942 = vmatpush1.msra.mxu0 0.0
  %1943 = vmatprep.subr.mxu0 0.0
  %1944 = vmatpush1.msra.mxu0 0.0
  %1945 = vmatprep.subr.mxu0 0.0
  %1946 = vmatpush1.msra.mxu0 0.0
  %1947 = vmatprep.subr.mxu0 0.0
  %1948 = vmatpush1.msra.mxu0 0.0
  %1949 = vmatprep.subr.mxu0 0.0
  %1950 = vmatpush1.msra.mxu0 0.0
  %1951 = vmatprep.subr.mxu0 0.0
  %1952 = vmatpush1.msra.mxu0 0.0
  %1953 = vmatprep.subr.mxu0 0.0
  %1954 = vmatpush1.msra.mxu0 0.0
  %1955 = vmatprep.subr.mxu0 0.0
  %1956 = vmatpush1.msra.mxu0 0.0
  %1957 = vmatprep.subr.mxu0 0.0
  %1958 = vmatpush1.msra.mxu0 0.0
  %1959 = vmatprep.subr.mxu0 0.0
  %1960 = vmatpush1.msra.mxu0 0.0
  %1961 = vmatprep.subr.mxu0 0.0
  %1962 = vmatpush1.msra.mxu0 0.0
  %1963 = vmatprep.subr.mxu0 0.0
  %1964 = vmatpush1.msra.mxu0 0.0
  %1965 = vmatprep.subr.mxu0 0.0
  %1966 = vmatpush1.msra.mxu0 0.0
  %1967 = vmatprep.subr.mxu0 0.0
  %1968 = vmatpush1.msra.mxu0 0.0
  %1969 = vmatprep.subr.mxu0 0.0
  %1970 = vmatpush1.msra.mxu0 0.0
  %1971 = vmatprep.subr.mxu0 0.0
  %1972 = vmatpush1.msra.mxu0 0.0
  %1973 = vmatprep.mubr.f32.mxu0 0.0
  %1974 = vmatmul.mubr.f32.gmra.mrb[0].mxu0 %v1904
  %v1975 = vpop.f32.mrb[0].mxu0
  %v1976 = vadd.f32 0.0, %v1975
  %v1977 = vpop.f32.mrb[0].mxu0
  %1978 = vmatprep.mubr.f32.mxu0 0.0
  %1979 = vmatmul.mubr.f32.gmra.mrb[0].mxu0 %v1907
  %v1980 = vpop.f32.mrb[0].mxu0
  %v1981 = vadd.f32 0.0, %v1980
  %v1982 = vpop.f32.mrb[0].mxu0
  %1983 = vdwg.mxu0
  %1984 = vrot.lane.b32.xlu0 %v149, 40
  %v1985 = vpop.permute.xlu0 %1984
  %1986 = vrot.lane.b32.xlu0 %v154, 40
  %v1987 = vpop.permute.xlu0 %1986
  %v1991 = vsel %vm345, %v1895, 0
  %v1994 = vsel %vm345, %v1896, 0
  %1996 = vmatprep.subr.mxu0 0.0
  %1997 = vmatpush1.msra.mxu0 %v1985
  %1998 = vmatprep.subr.mxu0 0.0
  %1999 = vmatpush1.msra.mxu0 %v1987
  %2000 = vmatprep.subr.mxu0 0.0
  %2001 = vmatpush1.msra.mxu0 0.0
  %2002 = vmatprep.subr.mxu0 0.0
  %2003 = vmatpush1.msra.mxu0 0.0
  %2004 = vmatprep.subr.mxu0 0.0
  %2005 = vmatpush1.msra.mxu0 0.0
  %2006 = vmatprep.subr.mxu0 0.0
  %2007 = vmatpush1.msra.mxu0 0.0
  %2008 = vmatprep.subr.mxu0 0.0
  %2009 = vmatpush1.msra.mxu0 0.0
  %2010 = vmatprep.subr.mxu0 0.0
  %2011 = vmatpush1.msra.mxu0 0.0
  %2012 = vmatprep.subr.mxu0 0.0
  %2013 = vmatpush1.msra.mxu0 0.0
  %2014 = vmatprep.subr.mxu0 0.0
  %2015 = vmatpush1.msra.mxu0 0.0
  %2016 = vmatprep.subr.mxu0 0.0
  %2017 = vmatpush1.msra.mxu0 0.0
  %2018 = vmatprep.subr.mxu0 0.0
  %2019 = vmatpush1.msra.mxu0 0.0
  %2020 = vmatprep.subr.mxu0 0.0
  %2021 = vmatpush1.msra.mxu0 0.0
  %2022 = vmatprep.subr.mxu0 0.0
  %2023 = vmatpush1.msra.mxu0 0.0
  %2024 = vmatprep.subr.mxu0 0.0
  %2025 = vmatpush1.msra.mxu0 0.0
  %2026 = vmatprep.subr.mxu0 0.0
  %2027 = vmatpush1.msra.mxu0 0.0
  %2028 = vmatprep.subr.mxu0 0.0
  %2029 = vmatpush1.msra.mxu0 0.0
  %2030 = vmatprep.subr.mxu0 0.0
  %2031 = vmatpush1.msra.mxu0 0.0
  %2032 = vmatprep.subr.mxu0 0.0
  %2033 = vmatpush1.msra.mxu0 0.0
  %2034 = vmatprep.subr.mxu0 0.0
  %2035 = vmatpush1.msra.mxu0 0.0
  %2036 = vmatprep.subr.mxu0 0.0
  %2037 = vmatpush1.msra.mxu0 0.0
  %2038 = vmatprep.subr.mxu0 0.0
  %2039 = vmatpush1.msra.mxu0 0.0
  %2040 = vmatprep.subr.mxu0 0.0
  %2041 = vmatpush1.msra.mxu0 0.0
  %2042 = vmatprep.subr.mxu0 0.0
  %2043 = vmatpush1.msra.mxu0 0.0
  %2044 = vmatprep.subr.mxu0 0.0
  %2045 = vmatpush1.msra.mxu0 0.0
  %2046 = vmatprep.subr.mxu0 0.0
  %2047 = vmatpush1.msra.mxu0 0.0
  %2048 = vmatprep.subr.mxu0 0.0
  %2049 = vmatpush1.msra.mxu0 0.0
  %2050 = vmatprep.subr.mxu0 0.0
  %2051 = vmatpush1.msra.mxu0 0.0
  %2052 = vmatprep.subr.mxu0 0.0
  %2053 = vmatpush1.msra.mxu0 0.0
  %2054 = vmatprep.subr.mxu0 0.0
  %2055 = vmatpush1.msra.mxu0 0.0
  %2056 = vmatprep.subr.mxu0 0.0
  %2057 = vmatpush1.msra.mxu0 0.0
  %2058 = vmatprep.subr.mxu0 0.0
  %2059 = vmatpush1.msra.mxu0 0.0
  %2060 = vmatprep.mubr.f32.mxu0 0.0
  %2061 = vmatmul.mubr.f32.gmra.mrb[0].mxu0 %v1991
  %v2062 = vpop.f32.mrb[0].mxu0
  %v2063 = vadd.f32 0.0, %v2062
  %v2064 = vpop.f32.mrb[0].mxu0
  %2065 = vmatprep.mubr.f32.mxu0 0.0
  %2066 = vmatmul.mubr.f32.gmra.mrb[0].mxu0 %v1994
  %v2067 = vpop.f32.mrb[0].mxu0
  %v2068 = vadd.f32 0.0, %v2067
  %v2069 = vpop.f32.mrb[0].mxu0
  %2070 = vdwg.mxu0
  %v2072 = vsel %vm168, %v1976, 0
  %v2075 = vsel %vm168, %v1981, 0
  %v2078 = vsel %vm168, %v2063, 0
  %v2081 = vsel %vm168, %v2068, 0
  %2083 = vmatprep.subr.mxu0 0.0
  %2084 = vmatpush1.msra.mxu0 %v160
  %2085 = vmatprep.subr.mxu0 0.0
  %2086 = vmatpush1.msra.mxu0 0.0
  %2087 = vmatprep.subr.mxu0 0.0
  %2088 = vmatpush1.msra.mxu0 0.0
  %2089 = vmatprep.subr.mxu0 0.0
  %2090 = vmatpush1.msra.mxu0 0.0
  %2091 = vmatprep.subr.mxu0 0.0
  %2092 = vmatpush1.msra.mxu0 0.0
  %2093 = vmatprep.subr.mxu0 0.0
  %2094 = vmatpush1.msra.mxu0 0.0
  %2095 = vmatprep.subr.mxu0 0.0
  %2096 = vmatpush1.msra.mxu0 0.0
  %2097 = vmatprep.subr.mxu0 0.0
  %2098 = vmatpush1.msra.mxu0 0.0
  %2099 = vmatprep.subr.mxu0 0.0
  %2100 = vmatpush1.msra.mxu0 0.0
  %2101 = vmatprep.subr.mxu0 0.0
  %2102 = vmatpush1.msra.mxu0 0.0
  %2103 = vmatprep.subr.mxu0 0.0
  %2104 = vmatpush1.msra.mxu0 0.0
  %2105 = vmatprep.subr.mxu0 0.0
  %2106 = vmatpush1.msra.mxu0 0.0
  %2107 = vmatprep.subr.mxu0 0.0
  %2108 = vmatpush1.msra.mxu0 0.0
  %2109 = vmatprep.subr.mxu0 0.0
  %2110 = vmatpush1.msra.mxu0 0.0
  %2111 = vmatprep.subr.mxu0 0.0
  %2112 = vmatpush1.msra.mxu0 0.0
  %2113 = vmatprep.subr.mxu0 0.0
  %2114 = vmatpush1.msra.mxu0 0.0
  %2115 = vmatprep.subr.mxu0 0.0
  %2116 = vmatpush1.msra.mxu0 0.0
  %2117 = vmatprep.subr.mxu0 0.0
  %2118 = vmatpush1.msra.mxu0 0.0
  %2119 = vmatprep.subr.mxu0 0.0
  %2120 = vmatpush1.msra.mxu0 0.0
  %2121 = vmatprep.subr.mxu0 0.0
  %2122 = vmatpush1.msra.mxu0 0.0
  %2123 = vmatprep.subr.mxu0 0.0
  %2124 = vmatpush1.msra.mxu0 0.0
  %2125 = vmatprep.subr.mxu0 0.0
  %2126 = vmatpush1.msra.mxu0 0.0
  %2127 = vmatprep.subr.mxu0 0.0
  %2128 = vmatpush1.msra.mxu0 0.0
  %2129 = vmatprep.subr.mxu0 0.0
  %2130 = vmatpush1.msra.mxu0 0.0
  %2131 = vmatprep.subr.mxu0 0.0
  %2132 = vmatpush1.msra.mxu0 0.0
  %2133 = vmatprep.subr.mxu0 0.0
  %2134 = vmatpush1.msra.mxu0 0.0
  %2135 = vmatprep.subr.mxu0 0.0
  %2136 = vmatpush1.msra.mxu0 0.0
  %2137 = vmatprep.subr.mxu0 0.0
  %2138 = vmatpush1.msra.mxu0 0.0
  %2139 = vmatprep.subr.mxu0 0.0
  %2140 = vmatpush1.msra.mxu0 0.0
  %2141 = vmatprep.subr.mxu0 0.0
  %2142 = vmatpush1.msra.mxu0 0.0
  %2143 = vmatprep.subr.mxu0 0.0
  %2144 = vmatpush1.msra.mxu0 0.0
  %2145 = vmatprep.subr.mxu0 0.0
  %2146 = vmatpush1.msra.mxu0 0.0
  %2147 = vmatprep.mubr.f32.mxu0 0.0
  %2148 = vmatmul.mubr.f32.gmra.mrb[0].mxu0 %v2072
  %v2149 = vpop.f32.mrb[0].mxu0
  %v2150 = vadd.f32 0.0, %v2149
  %v2151 = vpop.f32.mrb[0].mxu0
  %2152 = vmatprep.mubr.f32.mxu0 0.0
  %2153 = vmatmul.mubr.f32.gmra.mrb[0].mxu0 %v2075
  %v2154 = vpop.f32.mrb[0].mxu0
  %v2155 = vadd.f32 0.0, %v2154
  %v2156 = vpop.f32.mrb[0].mxu0
  %2157 = vmatprep.mubr.f32.mxu0 0.0
  %2158 = vmatmul.mubr.f32.gmra.mrb[0].mxu0 %v2078
  %v2159 = vpop.f32.mrb[0].mxu0
  %v2160 = vadd.f32 0.0, %v2159
  %v2161 = vpop.f32.mrb[0].mxu0
  %2162 = vmatprep.mubr.f32.mxu0 0.0
  %2163 = vmatmul.mubr.f32.gmra.mrb[0].mxu0 %v2081
  %v2164 = vpop.f32.mrb[0].mxu0
  %v2165 = vadd.f32 0.0, %v2164
  %v2166 = vpop.f32.mrb[0].mxu0
  %2167 = vdwg.mxu0
  %v2168 = vadd.f32 %v1663, %v2150
  %v2169 = vadd.f32 %v1664, %v2155
  %v2170 = vadd.f32 %v1665, %v2160
  %v2171 = vadd.f32 %v1666, %v2165
  %v2173 = vlaneseq
  %v2174 = vshrl.u32 %v2173, 7
  %v2175 = vsub.s32 0, %v2174
  %v2176 = vrot.slane %v161, %v2175
  %v2178 = vadd.f32 %v2168, %v2176
  %v2179 = vadd.f32 %v2169, %v2176
  %v2180 = vadd.f32 %v2170, %v2176
  %v2181 = vadd.f32 %v2171, %v2176
  %v2182 = vadd.f32 %v44, %v2178
  %v2183 = vadd.f32 %v45, %v2179
  %v2184 = vadd.f32 %v46, %v2180
  %v2185 = vadd.f32 %v47, %v2181
  %v2186 = vld [vmem:[%s5] sm:$0x1]
  %v2187 = vld [vmem:[%s6] sm:$0x1]
  %v2188 = vsel %vm59, %v2182, 0.0
  %2189 = vadd.xlane.f32.xlu0 %v2188
  %v2190 = vpop.xlane.xlu0 %2189
  %v2191 = vsel %vm59, %v2183, 0.0
  %2192 = vadd.xlane.f32.xlu0 %v2191
  %v2193 = vpop.xlane.xlu0 %2192
  %v2194 = vsel %vm59, %v2184, 0.0
  %2195 = vadd.xlane.f32.xlu0 %v2194
  %v2196 = vpop.xlane.xlu0 %2195
  %v2197 = vsel %vm59, %v2185, 0.0
  %2198 = vadd.xlane.f32.xlu0 %v2197
  %v2199 = vpop.xlane.xlu0 %2198
  %v2200 = vrcp.pop 32.0
  %v2201 = vmul.f32 %v2190, %v2200
  %v2202 = vmul.f32 %v2193, %v2200
  %v2203 = vmul.f32 %v2196, %v2200
  %v2204 = vmul.f32 %v2199, %v2200
  %v2205 = vsub.f32 %v2182, %v2201
  %v2206 = vsub.f32 %v2183, %v2202
  %v2207 = vsub.f32 %v2184, %v2203
  %v2208 = vsub.f32 %v2185, %v2204
  %v2209 = vmul.f32 %v2205, %v2205
  %v2210 = vmul.f32 %v2206, %v2206
  %v2211 = vmul.f32 %v2207, %v2207
  %v2212 = vmul.f32 %v2208, %v2208
  %v2213 = vsel %vm59, %v2209, 0.0
  %2214 = vadd.xlane.f32.xlu0 %v2213
  %v2215 = vpop.xlane.xlu0 %2214
  %v2216 = vsel %vm59, %v2210, 0.0
  %2217 = vadd.xlane.f32.xlu0 %v2216
  %v2218 = vpop.xlane.xlu0 %2217
  %v2219 = vsel %vm59, %v2211, 0.0
  %2220 = vadd.xlane.f32.xlu0 %v2219
  %v2221 = vpop.xlane.xlu0 %2220
  %v2222 = vsel %vm59, %v2212, 0.0
  %2223 = vadd.xlane.f32.xlu0 %v2222
  %v2224 = vpop.xlane.xlu0 %2223
  %v2225 = vmul.f32 %v2215, %v2200
  %v2226 = vmul.f32 %v2218, %v2200
  %v2227 = vmul.f32 %v2221, %v2200
  %v2228 = vmul.f32 %v2224, %v2200
  %v2229 = vadd.f32 %v2225, 1e-05
  %v2230 = vadd.f32 %v2226, 1e-05
  %v2231 = vadd.f32 %v2227, 1e-05
  %v2232 = vadd.f32 %v2228, 1e-05
  %v2233 = vrsqrt.pop %v2229
  %v2234 = vrsqrt.pop %v2230
  %v2235 = vrsqrt.pop %v2231
  %v2236 = vrsqrt.pop %v2232
  %v2237 = vmul.f32 %v2205, %v2233
  %v2238 = vmul.f32 %v2206, %v2234
  %v2239 = vmul.f32 %v2207, %v2235
  %v2240 = vmul.f32 %v2208, %v2236
  %v2242 = vlaneseq
  %v2243 = vshrl.u32 %v2242, 7
  %v2244 = vsub.s32 0, %v2243
  %v2245 = vrot.slane %v2186, %v2244
  %v2247 = vmul.f32 %v2237, %v2245
  %v2248 = vmul.f32 %v2238, %v2245
  %v2249 = vmul.f32 %v2239, %v2245
  %v2250 = vmul.f32 %v2240, %v2245
  %v2252 = vlaneseq
  %v2253 = vshrl.u32 %v2252, 7
  %v2254 = vsub.s32 0, %v2253
  %v2255 = vrot.slane %v2187, %v2254
  %v2257 = vadd.f32 %v2247, %v2255
  %v2258 = vadd.f32 %v2248, %v2255
  %v2259 = vadd.f32 %v2249, %v2255
  %v2260 = vadd.f32 %v2250, %v2255
  %v2261 = vld [vmem:[%s7] sm:$0xff]
  %v2262 = vld [vmem:[%s7 + $0x8] sm:$0xff]
  %v2263 = vld [vmem:[%s7 + $0x10] sm:$0xff]
  %v2264 = vld [vmem:[%s7 + $0x18] sm:$0xff]
  %v2265 = vld [vmem:[%s8] sm:$0x1]
  %v2267 = vlaneseq
  %v2268 = vshrl.u32 %v2267, 7
  %v2269 = vsub.s32 0, %v2268
  %v2270 = vrot.slane %v2265, %v2269
  %v2273 = vsel %vm59, %v2257, 0
  %v2276 = vsel %vm59, %v2258, 0
  %v2279 = vsel %vm59, %v2259, 0
  %v2282 = vsel %vm59, %v2260, 0
  %2284 = vmatprep.subr.mxu0 0.0
  %2285 = vmatpush1.msra.mxu0 %v2261
  %2286 = vmatprep.subr.mxu0 0.0
  %2287 = vmatpush1.msra.mxu0 %v2262
  %2288 = vmatprep.subr.mxu0 0.0
  %2289 = vmatpush1.msra.mxu0 %v2263
  %2290 = vmatprep.subr.mxu0 0.0
  %2291 = vmatpush1.msra.mxu0 %v2264
  %2292 = vmatprep.subr.mxu0 0.0
  %2293 = vmatpush1.msra.mxu0 0.0
  %2294 = vmatprep.subr.mxu0 0.0
  %2295 = vmatpush1.msra.mxu0 0.0
  %2296 = vmatprep.subr.mxu0 0.0
  %2297 = vmatpush1.msra.mxu0 0.0
  %2298 = vmatprep.subr.mxu0 0.0
  %2299 = vmatpush1.msra.mxu0 0.0
  %2300 = vmatprep.subr.mxu0 0.0
  %2301 = vmatpush1.msra.mxu0 0.0
  %2302 = vmatprep.subr.mxu0 0.0
  %2303 = vmatpush1.msra.mxu0 0.0
  %2304 = vmatprep.subr.mxu0 0.0
  %2305 = vmatpush1.msra.mxu0 0.0
  %2306 = vmatprep.subr.mxu0 0.0
  %2307 = vmatpush1.msra.mxu0 0.0
  %2308 = vmatprep.subr.mxu0 0.0
  %2309 = vmatpush1.msra.mxu0 0.0
  %2310 = vmatprep.subr.mxu0 0.0
  %2311 = vmatpush1.msra.mxu0 0.0
  %2312 = vmatprep.subr.mxu0 0.0
  %2313 = vmatpush1.msra.mxu0 0.0
  %2314 = vmatprep.subr.mxu0 0.0
  %2315 = vmatpush1.msra.mxu0 0.0
  %2316 = vmatprep.subr.mxu0 0.0
  %2317 = vmatpush1.msra.mxu0 0.0
  %2318 = vmatprep.subr.mxu0 0.0
  %2319 = vmatpush1.msra.mxu0 0.0
  %2320 = vmatprep.subr.mxu0 0.0
  %2321 = vmatpush1.msra.mxu0 0.0
  %2322 = vmatprep.subr.mxu0 0.0
  %2323 = vmatpush1.msra.mxu0 0.0
  %2324 = vmatprep.subr.mxu0 0.0
  %2325 = vmatpush1.msra.mxu0 0.0
  %2326 = vmatprep.subr.mxu0 0.0
  %2327 = vmatpush1.msra.mxu0 0.0
  %2328 = vmatprep.subr.mxu0 0.0
  %2329 = vmatpush1.msra.mxu0 0.0
  %2330 = vmatprep.subr.mxu0 0.0
  %2331 = vmatpush1.msra.mxu0 0.0
  %2332 = vmatprep.subr.mxu0 0.0
  %2333 = vmatpush1.msra.mxu0 0.0
  %2334 = vmatprep.subr.mxu0 0.0
  %2335 = vmatpush1.msra.mxu0 0.0
  %2336 = vmatprep.subr.mxu0 0.0
  %2337 = vmatpush1.msra.mxu0 0.0
  %2338 = vmatprep.subr.mxu0 0.0
  %2339 = vmatpush1.msra.mxu0 0.0
  %2340 = vmatprep.subr.mxu0 0.0
  %2341 = vmatpush1.msra.mxu0 0.0
  %2342 = vmatprep.subr.mxu0 0.0
  %2343 = vmatpush1.msra.mxu0 0.0
  %2344 = vmatprep.subr.mxu0 0.0
  %2345 = vmatpush1.msra.mxu0 0.0
  %2346 = vmatprep.subr.mxu0 0.0
  %2347 = vmatpush1.msra.mxu0 0.0
  %2348 = vmatprep.mubr.f32.mxu0 0.0
  %2349 = vmatmul.mubr.f32.gmra.mrb[0].mxu0 %v2273
  %v2350 = vpop.f32.mrb[0].mxu0
  %v2351 = vadd.f32 %v2270, %v2350
  %v2352 = vpop.f32.mrb[0].mxu0
  %2353 = vmatprep.mubr.f32.mxu0 0.0
  %2354 = vmatmul.mubr.f32.gmra.mrb[0].mxu0 %v2276
  %v2355 = vpop.f32.mrb[0].mxu0
  %v2356 = vadd.f32 %v2270, %v2355
  %v2357 = vpop.f32.mrb[0].mxu0
  %2358 = vmatprep.mubr.f32.mxu0 0.0
  %2359 = vmatmul.mubr.f32.gmra.mrb[0].mxu0 %v2279
  %v2360 = vpop.f32.mrb[0].mxu0
  %v2361 = vadd.f32 %v2270, %v2360
  %v2362 = vpop.f32.mrb[0].mxu0
  %2363 = vmatprep.mubr.f32.mxu0 0.0
  %2364 = vmatmul.mubr.f32.gmra.mrb[0].mxu0 %v2282
  %v2365 = vpop.f32.mrb[0].mxu0
  %v2366 = vadd.f32 %v2270, %v2365
  %v2367 = vpop.f32.mrb[0].mxu0
  %2368 = vdwg.mxu0
  %v2369 = vmul.f32 %v2351, %v2351
  %v2370 = vmul.f32 %v2356, %v2356
  %v2371 = vmul.f32 %v2361, %v2361
  %v2372 = vmul.f32 %v2366, %v2366
  %v2373 = vmul.f32 %v2351, %v2369
  %v2374 = vmul.f32 %v2356, %v2370
  %v2375 = vmul.f32 %v2361, %v2371
  %v2376 = vmul.f32 %v2366, %v2372
  %v2377 = vmul.f32 %v2373, 0.044715
  %v2378 = vmul.f32 %v2374, 0.044715
  %v2379 = vmul.f32 %v2375, 0.044715
  %v2380 = vmul.f32 %v2376, 0.044715
  %v2381 = vadd.f32 %v2351, %v2377
  %v2382 = vadd.f32 %v2356, %v2378
  %v2383 = vadd.f32 %v2361, %v2379
  %v2384 = vadd.f32 %v2366, %v2380
  %v2385 = vmul.f32 %v2381, 0.7978846
  %v2386 = vmul.f32 %v2382, 0.7978846
  %v2387 = vmul.f32 %v2383, 0.7978846
  %v2388 = vmul.f32 %v2384, 0.7978846
  %v2389 = vtanh.pop %v2385
  %v2390 = vtanh.pop %v2386
  %v2391 = vtanh.pop %v2387
  %v2392 = vtanh.pop %v2388
  %v2393 = vadd.f32 %v2389, 1.0
  %v2394 = vadd.f32 %v2390, 1.0
  %v2395 = vadd.f32 %v2391, 1.0
  %v2396 = vadd.f32 %v2392, 1.0
  %v2397 = vmul.f32 %v2393, 0.5
  %v2398 = vmul.f32 %v2394, 0.5
  %v2399 = vmul.f32 %v2395, 0.5
  %v2400 = vmul.f32 %v2396, 0.5
  %v2401 = vmul.f32 %v2351, %v2397
  %v2402 = vmul.f32 %v2356, %v2398
  %v2403 = vmul.f32 %v2361, %v2399
  %v2404 = vmul.f32 %v2366, %v2400
  %v2405 = vld [vmem:[%s9] sm:$0xff]
  %v2406 = vld [vmem:[%s9 + $0x8] sm:$0xff]
  %v2407 = vld [vmem:[%s9 + $0x10] sm:$0xff]
  %v2408 = vld [vmem:[%s9 + $0x18] sm:$0xff]
  %v2409 = vld [vmem:[%s9 + $0x20] sm:$0xff]
  %v2410 = vld [vmem:[%s9 + $0x28] sm:$0xff]
  %v2411 = vld [vmem:[%s9 + $0x30] sm:$0xff]
  %v2412 = vld [vmem:[%s9 + $0x38] sm:$0xff]
  %v2413 = vld [vmem:[%s10] sm:$0x1]
  %v2415 = vlaneseq
  %v2416 = vshrl.u32 %v2415, 7
  %v2417 = vsub.s32 0, %v2416
  %v2418 = vrot.slane %v2413, %v2417
  %vm2420 = vcmask 523264
  %v2422 = vsel %vm2420, %v2401, 0
  %v2425 = vsel %vm2420, %v2402, 0
  %v2428 = vsel %vm2420, %v2403, 0
  %v2431 = vsel %vm2420, %v2404, 0
  %2433 = vmatprep.subr.mxu0 0.0
  %2434 = vmatpush1.msra.mxu0 %v2405
  %2435 = vmatprep.subr.mxu0 0.0
  %2436 = vmatpush1.msra.mxu0 %v2406
  %2437 = vmatprep.subr.mxu0 0.0
  %2438 = vmatpush1.msra.mxu0 %v2407
  %2439 = vmatprep.subr.mxu0 0.0
  %2440 = vmatpush1.msra.mxu0 %v2408
  %2441 = vmatprep.subr.mxu0 0.0
  %2442 = vmatpush1.msra.mxu0 %v2409
  %2443 = vmatprep.subr.mxu0 0.0
  %2444 = vmatpush1.msra.mxu0 %v2410
  %2445 = vmatprep.subr.mxu0 0.0
  %2446 = vmatpush1.msra.mxu0 %v2411
  %2447 = vmatprep.subr.mxu0 0.0
  %2448 = vmatpush1.msra.mxu0 %v2412
  %2449 = vmatprep.subr.mxu0 0.0
  %2450 = vmatpush1.msra.mxu0 0.0
  %2451 = vmatprep.subr.mxu0 0.0
  %2452 = vmatpush1.msra.mxu0 0.0
  %2453 = vmatprep.subr.mxu0 0.0
  %2454 = vmatpush1.msra.mxu0 0.0
  %2455 = vmatprep.subr.mxu0 0.0
  %2456 = vmatpush1.msra.mxu0 0.0
  %2457 = vmatprep.subr.mxu0 0.0
  %2458 = vmatpush1.msra.mxu0 0.0
  %2459 = vmatprep.subr.mxu0 0.0
  %2460 = vmatpush1.msra.mxu0 0.0
  %2461 = vmatprep.subr.mxu0 0.0
  %2462 = vmatpush1.msra.mxu0 0.0
  %2463 = vmatprep.subr.mxu0 0.0
  %2464 = vmatpush1.msra.mxu0 0.0
  %2465 = vmatprep.subr.mxu0 0.0
  %2466 = vmatpush1.msra.mxu0 0.0
  %2467 = vmatprep.subr.mxu0 0.0
  %2468 = vmatpush1.msra.mxu0 0.0
  %2469 = vmatprep.subr.mxu0 0.0
  %2470 = vmatpush1.msra.mxu0 0.0
  %2471 = vmatprep.subr.mxu0 0.0
  %2472 = vmatpush1.msra.mxu0 0.0
  %2473 = vmatprep.subr.mxu0 0.0
  %2474 = vmatpush1.msra.mxu0 0.0
  %2475 = vmatprep.subr.mxu0 0.0
  %2476 = vmatpush1.msra.mxu0 0.0
  %2477 = vmatprep.subr.mxu0 0.0
  %2478 = vmatpush1.msra.mxu0 0.0
  %2479 = vmatprep.subr.mxu0 0.0
  %2480 = vmatpush1.msra.mxu0 0.0
  %2481 = vmatprep.subr.mxu0 0.0
  %2482 = vmatpush1.msra.mxu0 0.0
  %2483 = vmatprep.subr.mxu0 0.0
  %2484 = vmatpush1.msra.mxu0 0.0
  %2485 = vmatprep.subr.mxu0 0.0
  %2486 = vmatpush1.msra.mxu0 0.0
  %2487 = vmatprep.subr.mxu0 0.0
  %2488 = vmatpush1.msra.mxu0 0.0
  %2489 = vmatprep.subr.mxu0 0.0
  %2490 = vmatpush1.msra.mxu0 0.0
  %2491 = vmatprep.subr.mxu0 0.0
  %2492 = vmatpush1.msra.mxu0 0.0
  %2493 = vmatprep.subr.mxu0 0.0
  %2494 = vmatpush1.msra.mxu0 0.0
  %2495 = vmatprep.subr.mxu0 0.0
  %2496 = vmatpush1.msra.mxu0 0.0
  %2497 = vmatprep.mubr.f32.mxu0 0.0
  %2498 = vmatmul.mubr.f32.gmra.mrb[0].mxu0 %v2422
  %v2499 = vpop.f32.mrb[0].mxu0
  %v2500 = vadd.f32 %v2418, %v2499
  %v2501 = vpop.f32.mrb[0].mxu0
  %2502 = vmatprep.mubr.f32.mxu0 0.0
  %2503 = vmatmul.mubr.f32.gmra.mrb[0].mxu0 %v2425
  %v2504 = vpop.f32.mrb[0].mxu0
  %v2505 = vadd.f32 %v2418, %v2504
  %v2506 = vpop.f32.mrb[0].mxu0
  %2507 = vmatprep.mubr.f32.mxu0 0.0
  %2508 = vmatmul.mubr.f32.gmra.mrb[0].mxu0 %v2428
  %v2509 = vpop.f32.mrb[0].mxu0
  %v2510 = vadd.f32 %v2418, %v2509
  %v2511 = vpop.f32.mrb[0].mxu0
  %2512 = vmatprep.mubr.f32.mxu0 0.0
  %2513 = vmatmul.mubr.f32.gmra.mrb[0].mxu0 %v2431
  %v2514 = vpop.f32.mrb[0].mxu0
  %v2515 = vadd.f32 %v2418, %v2514
  %v2516 = vpop.f32.mrb[0].mxu0
  %2517 = vdwg.mxu0
  %v2518 = vadd.f32 %v2257, %v2500
  %v2519 = vadd.f32 %v2258, %v2505
  %v2520 = vadd.f32 %v2259, %v2510
  %v2521 = vadd.f32 %v2260, %v2515
  %v2522 = vld [vmem:[%s11] sm:$0x1]
  %v2523 = vld [vmem:[%s12] sm:$0x1]
  %v2524 = vsel %vm59, %v2518, 0.0
  %2525 = vadd.xlane.f32.xlu0 %v2524
  %v2526 = vpop.xlane.xlu0 %2525
  %v2527 = vsel %vm59, %v2519, 0.0
  %2528 = vadd.xlane.f32.xlu0 %v2527
  %v2529 = vpop.xlane.xlu0 %2528
  %v2530 = vsel %vm59, %v2520, 0.0
  %2531 = vadd.xlane.f32.xlu0 %v2530
  %v2532 = vpop.xlane.xlu0 %2531
  %v2533 = vsel %vm59, %v2521, 0.0
  %2534 = vadd.xlane.f32.xlu0 %v2533
  %v2535 = vpop.xlane.xlu0 %2534
  %v2536 = vmul.f32 %v2526, %v2200
  %v2537 = vmul.f32 %v2529, %v2200
  %v2538 = vmul.f32 %v2532, %v2200
  %v2539 = vmul.f32 %v2535, %v2200
  %v2540 = vsub.f32 %v2518, %v2536
  %v2541 = vsub.f32 %v2519, %v2537
  %v2542 = vsub.f32 %v2520, %v2538
  %v2543 = vsub.f32 %v2521, %v2539
  %v2544 = vmul.f32 %v2540, %v2540
  %v2545 = vmul.f32 %v2541, %v2541
  %v2546 = vmul.f32 %v2542, %v2542
  %v2547 = vmul.f32 %v2543, %v2543
  %v2548 = vsel %vm59, %v2544, 0.0
  %2549 = vadd.xlane.f32.xlu0 %v2548
  %v2550 = vpop.xlane.xlu0 %2549
  %v2551 = vsel %vm59, %v2545, 0.0
  %2552 = vadd.xlane.f32.xlu0 %v2551
  %v2553 = vpop.xlane.xlu0 %2552
  %v2554 = vsel %vm59, %v2546, 0.0
  %2555 = vadd.xlane.f32.xlu0 %v2554
  %v2556 = vpop.xlane.xlu0 %2555
  %v2557 = vsel %vm59, %v2547, 0.0
  %2558 = vadd.xlane.f32.xlu0 %v2557
  %v2559 = vpop.xlane.xlu0 %2558
  %v2560 = vmul.f32 %v2550, %v2200
  %v2561 = vmul.f32 %v2553, %v2200
  %v2562 = vmul.f32 %v2556, %v2200
  %v2563 = vmul.f32 %v2559, %v2200
  %v2564 = vadd.f32 %v2560, 1e-05
  %v2565 = vadd.f32 %v2561, 1e-05
  %v2566 = vadd.f32 %v2562, 1e-05
  %v2567 = vadd.f32 %v2563, 1e-05
  %v2568 = vrsqrt.pop %v2564
  %v2569 = vrsqrt.pop %v2565
  %v2570 = vrsqrt.pop %v2566
  %v2571 = vrsqrt.pop %v2567
  %v2572 = vmul.f32 %v2540, %v2568
  %v2573 = vmul.f32 %v2541, %v2569
  %v2574 = vmul.f32 %v2542, %v2570
  %v2575 = vmul.f32 %v2543, %v2571
  %v2577 = vlaneseq
  %v2578 = vshrl.u32 %v2577, 7
  %v2579 = vsub.s32 0, %v2578
  %v2580 = vrot.slane %v2522, %v2579
  %v2582 = vmul.f32 %v2572, %v2580
  %v2583 = vmul.f32 %v2573, %v2580
  %v2584 = vmul.f32 %v2574, %v2580
  %v2585 = vmul.f32 %v2575, %v2580
  %v2587 = vlaneseq
  %v2588 = vshrl.u32 %v2587, 7
  %v2589 = vsub.s32 0, %v2588
  %v2590 = vrot.slane %v2523, %v2589
  %v2592 = vadd.f32 %v2582, %v2590
  %v2593 = vadd.f32 %v2583, %v2590
  %v2594 = vadd.f32 %v2584, %v2590
  %v2595 = vadd.f32 %v2585, %v2590
  %2596 = vst.msk [vmem:[%s13] sm:$0xff] %vm59, %v2592
  %2597 = vst.msk [vmem:[%s13 + $0x8] sm:$0xff] %vm59, %v2593
  %2598 = vst.msk [vmem:[%s13 + $0x10] sm:$0xff] %vm59, %v2594
  %2599 = vst.msk [vmem:[%s13 + $0x18] sm:$0xff] %vm59, %v2595
  // Predicated region
  $region54: #{_lambda_.7} parent=0 // pred_check
    _
  $region55: #{_lambda_.7} parent=0 // pred_check_branch
    %2601 = sbr.rel (0) target = $region57
  $region56: #{_lambda_.7} parent=0 // pred_region
    _
  $region57: #{_lambda_.7} parent=0 // pred_fallthru
    _
  // Predicated region
  $region58: #{_lambda_.7} parent=0 // pred_check
    _
  $region59: #{_lambda_.7} parent=0 // pred_check_branch
    %2603 = sbr.rel (0) target = $region61
  $region60: #{_lambda_.7} parent=0 // pred_region
    _
  $region61: #{_lambda_.7} parent=0 // pred_fallthru
    _

// kernel: _lambda_.11
$region0: #{_lambda_.11}
  #allocation0 [shape = 'u32[]', space=smem, size = 0x4, offset = 0x4, fixed_abs, tag = 'smem constant byte address 0x4 - core index']
  #allocation1 [shape = 'u32[144,128]{1,0:T(1,128)}', space=vmem, size = 0x12000, scoped, tag = 'internal scratch']
  %s0 = inlined_call_operand.vmem [shape: f32[2,16,32], index: 0, kind: input, shape index: {}]
  %s1 = inlined_call_operand.vmem [shape: f32[1,32], index: 1, kind: input, shape index: {}]
  %s2 = inlined_call_operand.vmem [shape: f32[1,32], index: 2, kind: input, shape index: {}]
  %s3 = inlined_call_operand.vmem [shape: f32[32,4], index: 3, kind: input, shape index: {}]
  %s4 = inlined_call_operand.vmem [shape: f32[1,4], index: 4, kind: input, shape index: {}]
  %s5 = inlined_call_operand.vmem [shape: f32[2,16,4], index: 5, kind: output, shape index: {}]
  %s6 = sld [smem:[#allocation0]]
  $region30: #{_lambda_.11} parent=0
    _
  %s8 = ssub.s32 1, %s6
  %s9 = scalar_select 0, %s8, %s6
  // Predicated region
  $region2: #{_lambda_.11} parent=0 // pred_check
    _
  $region3: #{_lambda_.11} parent=0 // pred_check_branch
    %11 = sbr.rel (0) target = $region5
  $region4: #{_lambda_.11} parent=0 // pred_region
    _
  $region5: #{_lambda_.11} parent=0 // pred_fallthru
    _
  // Predicated region
  $region6: #{_lambda_.11} parent=0 // pred_check
    _
  $region7: #{_lambda_.11} parent=0 // pred_check_branch
    %13 = sbr.rel (0) target = $region9
  $region8: #{_lambda_.11} parent=0 // pred_region
    _
  $region9: #{_lambda_.11} parent=0 // pred_fallthru
    _
  // Predicated region
  $region10: #{_lambda_.11} parent=0 // pred_check
    _
  $region11: #{_lambda_.11} parent=0 // pred_check_branch
    %15 = sbr.rel (0) target = $region13
  $region12: #{_lambda_.11} parent=0 // pred_region
    _
  $region13: #{_lambda_.11} parent=0 // pred_fallthru
    _
  // Predicated region
  $region14: #{_lambda_.11} parent=0 // pred_check
    _
  $region15: #{_lambda_.11} parent=0 // pred_check_branch
    %17 = sbr.rel (0) target = $region17
  $region16: #{_lambda_.11} parent=0 // pred_region
    _
  $region17: #{_lambda_.11} parent=0 // pred_fallthru
    _
  // Predicated region
  $region18: #{_lambda_.11} parent=0 // pred_check
    _
  $region19: #{_lambda_.11} parent=0 // pred_check_branch
    %19 = sbr.rel (0) target = $region21
  $region20: #{_lambda_.11} parent=0 // pred_region
    _
  $region21: #{_lambda_.11} parent=0 // pred_fallthru
    _
  %v20 = vld [vmem:[%s0] sm:$0xff]
  %v21 = vld [vmem:[%s0 + $0x8] sm:$0xff]
  %v22 = vld [vmem:[%s0 + $0x10] sm:$0xff]
  %v23 = vld [vmem:[%s0 + $0x18] sm:$0xff]
  %v24 = vld [vmem:[%s1] sm:$0x1]
  %v25 = vld [vmem:[%s2] sm:$0x1]
  %vm26 = vcmask 261120
  %v27 = vsel %vm26, %v20, 0.0
  %28 = vadd.xlane.f32.xlu0 %v27
  %v29 = vpop.xlane.xlu0 %28
  %v30 = vsel %vm26, %v21, 0.0
  %31 = vadd.xlane.f32.xlu0 %v30
  %v32 = vpop.xlane.xlu0 %31
  %v33 = vsel %vm26, %v22, 0.0
  %34 = vadd.xlane.f32.xlu0 %v33
  %v35 = vpop.xlane.xlu0 %34
  %v36 = vsel %vm26, %v23, 0.0
  %37 = vadd.xlane.f32.xlu0 %v36
  %v38 = vpop.xlane.xlu0 %37
  %v39 = vrcp.pop 32.0
  %v40 = vmul.f32 %v29, %v39
  %v41 = vmul.f32 %v32, %v39
  %v42 = vmul.f32 %v35, %v39
  %v43 = vmul.f32 %v38, %v39
  %v44 = vsub.f32 %v20, %v40
  %v45 = vsub.f32 %v21, %v41
  %v46 = vsub.f32 %v22, %v42
  %v47 = vsub.f32 %v23, %v43
  %v48 = vmul.f32 %v44, %v44
  %v49 = vmul.f32 %v45, %v45
  %v50 = vmul.f32 %v46, %v46
  %v51 = vmul.f32 %v47, %v47
  %v52 = vsel %vm26, %v48, 0.0
  %53 = vadd.xlane.f32.xlu0 %v52
  %v54 = vpop.xlane.xlu0 %53
  %v55 = vsel %vm26, %v49, 0.0
  %56 = vadd.xlane.f32.xlu0 %v55
  %v57 = vpop.xlane.xlu0 %56
  %v58 = vsel %vm26, %v50, 0.0
  %59 = vadd.xlane.f32.xlu0 %v58
  %v60 = vpop.xlane.xlu0 %59
  %v61 = vsel %vm26, %v51, 0.0
  %62 = vadd.xlane.f32.xlu0 %v61
  %v63 = vpop.xlane.xlu0 %62
  %v64 = vmul.f32 %v54, %v39
  %v65 = vmul.f32 %v57, %v39
  %v66 = vmul.f32 %v60, %v39
  %v67 = vmul.f32 %v63, %v39
  %v68 = vadd.f32 %v64, 1e-05
  %v69 = vadd.f32 %v65, 1e-05
  %v70 = vadd.f32 %v66, 1e-05
  %v71 = vadd.f32 %v67, 1e-05
  %v72 = vrsqrt.pop %v68
  %v73 = vrsqrt.pop %v69
  %v74 = vrsqrt.pop %v70
  %v75 = vrsqrt.pop %v71
  %v76 = vmul.f32 %v44, %v72
  %v77 = vmul.f32 %v45, %v73
  %v78 = vmul.f32 %v46, %v74
  %v79 = vmul.f32 %v47, %v75
  %v81 = vlaneseq
  %v82 = vshrl.u32 %v81, 7
  %v83 = vsub.s32 0, %v82
  %v84 = vrot.slane %v24, %v83
  %v86 = vmul.f32 %v76, %v84
  %v87 = vmul.f32 %v77, %v84
  %v88 = vmul.f32 %v78, %v84
  %v89 = vmul.f32 %v79, %v84
  %v91 = vlaneseq
  %v92 = vshrl.u32 %v91, 7
  %v93 = vsub.s32 0, %v92
  %v94 = vrot.slane %v25, %v93
  %v96 = vadd.f32 %v86, %v94
  %v97 = vadd.f32 %v87, %v94
  %v98 = vadd.f32 %v88, %v94
  %v99 = vadd.f32 %v89, %v94
  %v100 = vld [vmem:[%s3] sm:$0xff]
  %v101 = vld [vmem:[%s3 + $0x8] sm:$0xff]
  %v102 = vld [vmem:[%s3 + $0x10] sm:$0xff]
  %v103 = vld [vmem:[%s3 + $0x18] sm:$0xff]
  %v104 = vld [vmem:[%s4] sm:$0x1]
  %v106 = vlaneseq
  %v107 = vshrl.u32 %v106, 7
  %v108 = vsub.s32 0, %v107
  %v109 = vrot.slane %v104, %v108
  %v112 = vsel %vm26, %v96, 0
  %v115 = vsel %vm26, %v97, 0
  %v118 = vsel %vm26, %v98, 0
  %v121 = vsel %vm26, %v99, 0
  %123 = vmatprep.subr.mxu0 0.0
  %124 = vmatpush1.msra.mxu0 %v100
  %125 = vmatprep.subr.mxu0 0.0
  %126 = vmatpush1.msra.mxu0 %v101
  %127 = vmatprep.subr.mxu0 0.0
  %128 = vmatpush1.msra.mxu0 %v102
  %129 = vmatprep.subr.mxu0 0.0
  %130 = vmatpush1.msra.mxu0 %v103
  %131 = vmatprep.subr.mxu0 0.0
  %132 = vmatpush1.msra.mxu0 0.0
  %133 = vmatprep.subr.mxu0 0.0
  %134 = vmatpush1.msra.mxu0 0.0
  %135 = vmatprep.subr.mxu0 0.0
  %136 = vmatpush1.msra.mxu0 0.0
  %137 = vmatprep.subr.mxu0 0.0
  %138 = vmatpush1.msra.mxu0 0.0
  %139 = vmatprep.subr.mxu0 0.0
  %140 = vmatpush1.msra.mxu0 0.0
  %141 = vmatprep.subr.mxu0 0.0
  %142 = vmatpush1.msra.mxu0 0.0
  %143 = vmatprep.subr.mxu0 0.0
  %144 = vmatpush1.msra.mxu0 0.0
  %145 = vmatprep.subr.mxu0 0.0
  %146 = vmatpush1.msra.mxu0 0.0
  %147 = vmatprep.subr.mxu0 0.0
  %148 = vmatpush1.msra.mxu0 0.0
  %149 = vmatprep.subr.mxu0 0.0
  %150 = vmatpush1.msra.mxu0 0.0
  %151 = vmatprep.subr.mxu0 0.0
  %152 = vmatpush1.msra.mxu0 0.0
  %153 = vmatprep.subr.mxu0 0.0
  %154 = vmatpush1.msra.mxu0 0.0
  %155 = vmatprep.subr.mxu0 0.0
  %156 = vmatpush1.msra.mxu0 0.0
  %157 = vmatprep.subr.mxu0 0.0
  %158 = vmatpush1.msra.mxu0 0.0
  %159 = vmatprep.subr.mxu0 0.0
  %160 = vmatpush1.msra.mxu0 0.0
  %161 = vmatprep.subr.mxu0 0.0
  %162 = vmatpush1.msra.mxu0 0.0
  %163 = vmatprep.subr.mxu0 0.0
  %164 = vmatpush1.msra.mxu0 0.0
  %165 = vmatprep.subr.mxu0 0.0
  %166 = vmatpush1.msra.mxu0 0.0
  %167 = vmatprep.subr.mxu0 0.0
  %168 = vmatpush1.msra.mxu0 0.0
  %169 = vmatprep.subr.mxu0 0.0
  %170 = vmatpush1.msra.mxu0 0.0
  %171 = vmatprep.subr.mxu0 0.0
  %172 = vmatpush1.msra.mxu0 0.0
  %173 = vmatprep.subr.mxu0 0.0
  %174 = vmatpush1.msra.mxu0 0.0
  %175 = vmatprep.subr.mxu0 0.0
  %176 = vmatpush1.msra.mxu0 0.0
  %177 = vmatprep.subr.mxu0 0.0
  %178 = vmatpush1.msra.mxu0 0.0
  %179 = vmatprep.subr.mxu0 0.0
  %180 = vmatpush1.msra.mxu0 0.0
  %181 = vmatprep.subr.mxu0 0.0
  %182 = vmatpush1.msra.mxu0 0.0
  %183 = vmatprep.subr.mxu0 0.0
  %184 = vmatpush1.msra.mxu0 0.0
  %185 = vmatprep.subr.mxu0 0.0
  %186 = vmatpush1.msra.mxu0 0.0
  %187 = vmatprep.mubr.f32.mxu0 0.0
  %188 = vmatmul.mubr.f32.gmra.mrb[0].mxu0 %v112
  %v189 = vpop.f32.mrb[0].mxu0
  %v190 = vadd.f32 %v109, %v189
  %v191 = vpop.f32.mrb[0].mxu0
  %192 = vmatprep.mubr.f32.mxu0 0.0
  %193 = vmatmul.mubr.f32.gmra.mrb[0].mxu0 %v115
  %v194 = vpop.f32.mrb[0].mxu0
  %v195 = vadd.f32 %v109, %v194
  %v196 = vpop.f32.mrb[0].mxu0
  %197 = vmatprep.mubr.f32.mxu0 0.0
  %198 = vmatmul.mubr.f32.gmra.mrb[0].mxu0 %v118
  %v199 = vpop.f32.mrb[0].mxu0
  %v200 = vadd.f32 %v109, %v199
  %v201 = vpop.f32.mrb[0].mxu0
  %202 = vmatprep.mubr.f32.mxu0 0.0
  %203 = vmatmul.mubr.f32.gmra.mrb[0].mxu0 %v121
  %v204 = vpop.f32.mrb[0].mxu0
  %v205 = vadd.f32 %v109, %v204
  %v206 = vpop.f32.mrb[0].mxu0
  %207 = vdwg.mxu0
  %vm208 = vcmask 31744
  %209 = vst.msk [vmem:[%s5] sm:$0xff] %vm208, %v190
  %210 = vst.msk [vmem:[%s5 + $0x8] sm:$0xff] %vm208, %v195
  %211 = vst.msk [vmem:[%s5 + $0x10] sm:$0xff] %vm208, %v200
  %212 = vst.msk [vmem:[%s5 + $0x18] sm:$0xff] %vm208, %v205
  // Predicated region
  $region22: #{_lambda_.11} parent=0 // pred_check
    _
  $region23: #{_lambda_.11} parent=0 // pred_check_branch
    %214 = sbr.rel (0) target = $region25
  $region24: #{_lambda_.11} parent=0 // pred_region
    _
  $region25: #{_lambda_.11} parent=0 // pred_fallthru
    _
  // Predicated region
  $region26: #{_lambda_.11} parent=0 // pred_check
    _
  $region27: #{_lambda_.11} parent=0 // pred_check_branch
    %216 = sbr.rel (0) target = $region29
  $region28: #{_lambda_.11} parent=0 // pred_region
    _
  $region29: #{_lambda_.11} parent=0 // pred_fallthru
    _

// kernel: _lambda_.10
$region0: #{_lambda_.10}
  #allocation0 [shape = 'u32[]', space=smem, size = 0x4, offset = 0x4, fixed_abs, tag = 'smem constant byte address 0x4 - core index']
  #allocation1 [shape = 'u32[144,128]{1,0:T(1,128)}', space=vmem, size = 0x12000, scoped, tag = 'internal scratch']
  %s0 = inlined_call_operand.vmem [shape: f32[2,16,32], index: 0, kind: input, shape index: {}]
  %s1 = inlined_call_operand.vmem [shape: f32[2,16,32], index: 1, kind: input, shape index: {}]
  %s2 = inlined_call_operand.vmem [shape: f32[32,96], index: 2, kind: input, shape index: {}]
  %s3 = inlined_call_operand.vmem [shape: f32[1,96], index: 3, kind: input, shape index: {}]
  %s4 = inlined_call_operand.vmem [shape: f32[32,32], index: 4, kind: input, shape index: {}]
  %s5 = inlined_call_operand.vmem [shape: f32[1,32], index: 5, kind: input, shape index: {}]
  %s6 = inlined_call_operand.vmem [shape: f32[32,32], index: 6, kind: input, shape index: {}]
  %s7 = inlined_call_operand.vmem [shape: f32[1,32], index: 7, kind: input, shape index: {}]
  %s8 = inlined_call_operand.vmem [shape: f32[32,64], index: 8, kind: input, shape index: {}]
  %s9 = inlined_call_operand.vmem [shape: f32[1,64], index: 9, kind: input, shape index: {}]
  %s10 = inlined_call_operand.vmem [shape: f32[32,32], index: 10, kind: input, shape index: {}]
  %s11 = inlined_call_operand.vmem [shape: f32[1,32], index: 11, kind: input, shape index: {}]
  %s12 = inlined_call_operand.vmem [shape: f32[1,32], index: 12, kind: input, shape index: {}]
  %s13 = inlined_call_operand.vmem [shape: f32[1,32], index: 13, kind: input, shape index: {}]
  %s14 = inlined_call_operand.vmem [shape: f32[1,32], index: 14, kind: input, shape index: {}]
  %s15 = inlined_call_operand.vmem [shape: f32[1,32], index: 15, kind: input, shape index: {}]
  %s16 = inlined_call_operand.vmem [shape: f32[1,32], index: 16, kind: input, shape index: {}]
  %s17 = inlined_call_operand.vmem [shape: f32[1,32], index: 17, kind: input, shape index: {}]
  %s18 = inlined_call_operand.vmem [shape: f32[32,64], index: 18, kind: input, shape index: {}]
  %s19 = inlined_call_operand.vmem [shape: f32[1,64], index: 19, kind: input, shape index: {}]
  %s20 = inlined_call_operand.vmem [shape: f32[64,32], index: 20, kind: input, shape index: {}]
  %s21 = inlined_call_operand.vmem [shape: f32[1,32], index: 21, kind: input, shape index: {}]
  %s22 = inlined_call_operand.vmem [shape: f32[2,16,32], index: 22, kind: output, shape index: {}]
  %s23 = sld [smem:[#allocation0]]
  $region98: #{_lambda_.10} parent=0
    _
  %s25 = ssub.s32 1, %s23
  %s26 = scalar_select 0, %s25, %s23
  // Predicated region
  $region2: #{_lambda_.10} parent=0 // pred_check
    _
  $region3: #{_lambda_.10} parent=0 // pred_check_branch
    %28 = sbr.rel (0) target = $region5
  $region4: #{_lambda_.10} parent=0 // pred_region
    _
  $region5: #{_lambda_.10} parent=0 // pred_fallthru
    _
  // Predicated region
  $region6: #{_lambda_.10} parent=0 // pred_check
    _
  $region7: #{_lambda_.10} parent=0 // pred_check_branch
    %30 = sbr.rel (0) target = $region9
  $region8: #{_lambda_.10} parent=0 // pred_region
    _
  $region9: #{_lambda_.10} parent=0 // pred_fallthru
    _
  // Predicated region
  $region10: #{_lambda_.10} parent=0 // pred_check
    _
  $region11: #{_lambda_.10} parent=0 // pred_check_branch
    %32 = sbr.rel (0) target = $region13
  $region12: #{_lambda_.10} parent=0 // pred_region
    _
  $region13: #{_lambda_.10} parent=0 // pred_fallthru
    _
  // Predicated region
  $region14: #{_lambda_.10} parent=0 // pred_check
    _
  $region15: #{_lambda_.10} parent=0 // pred_check_branch
    %34 = sbr.rel (0) target = $region17
  $region16: #{_lambda_.10} parent=0 // pred_region
    _
  $region17: #{_lambda_.10} parent=0 // pred_fallthru
    _
  // Predicated region
  $region18: #{_lambda_.10} parent=0 // pred_check
    _
  $region19: #{_lambda_.10} parent=0 // pred_check_branch
    %36 = sbr.rel (0) target = $region21
  $region20: #{_lambda_.10} parent=0 // pred_region
    _
  $region21: #{_lambda_.10} parent=0 // pred_fallthru
    _
  // Predicated region
  $region22: #{_lambda_.10} parent=0 // pred_check
    _
  $region23: #{_lambda_.10} parent=0 // pred_check_branch
    %38 = sbr.rel (0) target = $region25
  $region24: #{_lambda_.10} parent=0 // pred_region
    _
  $region25: #{_lambda_.10} parent=0 // pred_fallthru
    _
  // Predicated region
  $region26: #{_lambda_.10} parent=0 // pred_check
    _
  $region27: #{_lambda_.10} parent=0 // pred_check_branch
    %40 = sbr.rel (0) target = $region29
  $region28: #{_lambda_.10} parent=0 // pred_region
    _
  $region29: #{_lambda_.10} parent=0 // pred_fallthru
    _
  // Predicated region
  $region30: #{_lambda_.10} parent=0 // pred_check
    _
  $region31: #{_lambda_.10} parent=0 // pred_check_branch
    %42 = sbr.rel (0) target = $region33
  $region32: #{_lambda_.10} parent=0 // pred_region
    _
  $region33: #{_lambda_.10} parent=0 // pred_fallthru
    _
  // Predicated region
  $region34: #{_lambda_.10} parent=0 // pred_check
    _
  $region35: #{_lambda_.10} parent=0 // pred_check_branch
    %44 = sbr.rel (0) target = $region37
  $region36: #{_lambda_.10} parent=0 // pred_region
    _
  $region37: #{_lambda_.10} parent=0 // pred_fallthru
    _
  // Predicated region
  $region38: #{_lambda_.10} parent=0 // pred_check
    _
  $region39: #{_lambda_.10} parent=0 // pred_check_branch
    %46 = sbr.rel (0) target = $region41
  $region40: #{_lambda_.10} parent=0 // pred_region
    _
  $region41: #{_lambda_.10} parent=0 // pred_fallthru
    _
  // Predicated region
  $region42: #{_lambda_.10} parent=0 // pred_check
    _
  $region43: #{_lambda_.10} parent=0 // pred_check_branch
    %48 = sbr.rel (0) target = $region45
  $region44: #{_lambda_.10} parent=0 // pred_region
    _
  $region45: #{_lambda_.10} parent=0 // pred_fallthru
    _
  // Predicated region
  $region46: #{_lambda_.10} parent=0 // pred_check
    _
  $region47: #{_lambda_.10} parent=0 // pred_check_branch
    %50 = sbr.rel (0) target = $region49
  $region48: #{_lambda_.10} parent=0 // pred_region
    _
  $region49: #{_lambda_.10} parent=0 // pred_fallthru
    _
  // Predicated region
  $region50: #{_lambda_.10} parent=0 // pred_check
    _
  $region51: #{_lambda_.10} parent=0 // pred_check_branch
    %52 = sbr.rel (0) target = $region53
  $region52: #{_lambda_.10} parent=0 // pred_region
    _
  $region53: #{_lambda_.10} parent=0 // pred_fallthru
    _
  // Predicated region
  $region54: #{_lambda_.10} parent=0 // pred_check
    _
  $region55: #{_lambda_.10} parent=0 // pred_check_branch
    %54 = sbr.rel (0) target = $region57
  $region56: #{_lambda_.10} parent=0 // pred_region
    _
  $region57: #{_lambda_.10} parent=0 // pred_fallthru
    _
  // Predicated region
  $region58: #{_lambda_.10} parent=0 // pred_check
    _
  $region59: #{_lambda_.10} parent=0 // pred_check_branch
    %56 = sbr.rel (0) target = $region61
  $region60: #{_lambda_.10} parent=0 // pred_region
    _
  $region61: #{_lambda_.10} parent=0 // pred_fallthru
    _
  // Predicated region
  $region62: #{_lambda_.10} parent=0 // pred_check
    _
  $region63: #{_lambda_.10} parent=0 // pred_check_branch
    %58 = sbr.rel (0) target = $region65
  $region64: #{_lambda_.10} parent=0 // pred_region
    _
  $region65: #{_lambda_.10} parent=0 // pred_fallthru
    _
  // Predicated region
  $region66: #{_lambda_.10} parent=0 // pred_check
    _
  $region67: #{_lambda_.10} parent=0 // pred_check_branch
    %60 = sbr.rel (0) target = $region69
  $region68: #{_lambda_.10} parent=0 // pred_region
    _
  $region69: #{_lambda_.10} parent=0 // pred_fallthru
    _
  // Predicated region
  $region70: #{_lambda_.10} parent=0 // pred_check
    _
  $region71: #{_lambda_.10} parent=0 // pred_check_branch
    %62 = sbr.rel (0) target = $region73
  $region72: #{_lambda_.10} parent=0 // pred_region
    _
  $region73: #{_lambda_.10} parent=0 // pred_fallthru
    _
  // Predicated region
  $region74: #{_lambda_.10} parent=0 // pred_check
    _
  $region75: #{_lambda_.10} parent=0 // pred_check_branch
    %64 = sbr.rel (0) target = $region77
  $region76: #{_lambda_.10} parent=0 // pred_region
    _
  $region77: #{_lambda_.10} parent=0 // pred_fallthru
    _
  // Predicated region
  $region78: #{_lambda_.10} parent=0 // pred_check
    _
  $region79: #{_lambda_.10} parent=0 // pred_check_branch
    %66 = sbr.rel (0) target = $region81
  $region80: #{_lambda_.10} parent=0 // pred_region
    _
  $region81: #{_lambda_.10} parent=0 // pred_fallthru
    _
  // Predicated region
  $region82: #{_lambda_.10} parent=0 // pred_check
    _
  $region83: #{_lambda_.10} parent=0 // pred_check_branch
    %68 = sbr.rel (0) target = $region85
  $region84: #{_lambda_.10} parent=0 // pred_region
    _
  $region85: #{_lambda_.10} parent=0 // pred_fallthru
    _
  // Predicated region
  $region86: #{_lambda_.10} parent=0 // pred_check
    _
  $region87: #{_lambda_.10} parent=0 // pred_check_branch
    %70 = sbr.rel (0) target = $region89
  $region88: #{_lambda_.10} parent=0 // pred_region
    _
  $region89: #{_lambda_.10} parent=0 // pred_fallthru
    _
  %v71 = vld [vmem:[%s0] sm:$0xff]
  %v72 = vld [vmem:[%s0 + $0x8] sm:$0xff]
  %v73 = vld [vmem:[%s0 + $0x10] sm:$0xff]
  %v74 = vld [vmem:[%s0 + $0x18] sm:$0xff]
  %v75 = vld [vmem:[%s1] sm:$0xff]
  %v76 = vld [vmem:[%s1 + $0x8] sm:$0xff]
  %v77 = vld [vmem:[%s1 + $0x10] sm:$0xff]
  %v78 = vld [vmem:[%s1 + $0x18] sm:$0xff]
  %v79 = vld [vmem:[%s2] sm:$0xff]
  %v80 = vld [vmem:[%s2 + $0x8] sm:$0xff]
  %v81 = vld [vmem:[%s2 + $0x10] sm:$0xff]
  %v82 = vld [vmem:[%s2 + $0x18] sm:$0xff]
  %v83 = vld [vmem:[%s3] sm:$0x1]
  %v85 = vlaneseq
  %v86 = vshrl.u32 %v85, 7
  %v87 = vsub.s32 0, %v86
  %v88 = vrot.slane %v83, %v87
  %vm90 = vcmask 261120
  %v92 = vsel %vm90, %v71, 0
  %v95 = vsel %vm90, %v72, 0
  %v98 = vsel %vm90, %v73, 0
  %v101 = vsel %vm90, %v74, 0
  %103 = vmatprep.subr.mxu0 0.0
  %104 = vmatpush1.msra.mxu0 %v79
  %105 = vmatprep.subr.mxu0 0.0
  %106 = vmatpush1.msra.mxu0 %v80
  %107 = vmatprep.subr.mxu0 0.0
  %108 = vmatpush1.msra.mxu0 %v81
  %109 = vmatprep.subr.mxu0 0.0
  %110 = vmatpush1.msra.mxu0 %v82
  %111 = vmatprep.subr.mxu0 0.0
  %112 = vmatpush1.msra.mxu0 0.0
  %113 = vmatprep.subr.mxu0 0.0
  %114 = vmatpush1.msra.mxu0 0.0
  %115 = vmatprep.subr.mxu0 0.0
  %116 = vmatpush1.msra.mxu0 0.0
  %117 = vmatprep.subr.mxu0 0.0
  %118 = vmatpush1.msra.mxu0 0.0
  %119 = vmatprep.subr.mxu0 0.0
  %120 = vmatpush1.msra.mxu0 0.0
  %121 = vmatprep.subr.mxu0 0.0
  %122 = vmatpush1.msra.mxu0 0.0
  %123 = vmatprep.subr.mxu0 0.0
  %124 = vmatpush1.msra.mxu0 0.0
  %125 = vmatprep.subr.mxu0 0.0
  %126 = vmatpush1.msra.mxu0 0.0
  %127 = vmatprep.subr.mxu0 0.0
  %128 = vmatpush1.msra.mxu0 0.0
  %129 = vmatprep.subr.mxu0 0.0
  %130 = vmatpush1.msra.mxu0 0.0
  %131 = vmatprep.subr.mxu0 0.0
  %132 = vmatpush1.msra.mxu0 0.0
  %133 = vmatprep.subr.mxu0 0.0
  %134 = vmatpush1.msra.mxu0 0.0
  %135 = vmatprep.subr.mxu0 0.0
  %136 = vmatpush1.msra.mxu0 0.0
  %137 = vmatprep.subr.mxu0 0.0
  %138 = vmatpush1.msra.mxu0 0.0
  %139 = vmatprep.subr.mxu0 0.0
  %140 = vmatpush1.msra.mxu0 0.0
  %141 = vmatprep.subr.mxu0 0.0
  %142 = vmatpush1.msra.mxu0 0.0
  %143 = vmatprep.subr.mxu0 0.0
  %144 = vmatpush1.msra.mxu0 0.0
  %145 = vmatprep.subr.mxu0 0.0
  %146 = vmatpush1.msra.mxu0 0.0
  %147 = vmatprep.subr.mxu0 0.0
  %148 = vmatpush1.msra.mxu0 0.0
  %149 = vmatprep.subr.mxu0 0.0
  %150 = vmatpush1.msra.mxu0 0.0
  %151 = vmatprep.subr.mxu0 0.0
  %152 = vmatpush1.msra.mxu0 0.0
  %153 = vmatprep.subr.mxu0 0.0
  %154 = vmatpush1.msra.mxu0 0.0
  %155 = vmatprep.subr.mxu0 0.0
  %156 = vmatpush1.msra.mxu0 0.0
  %157 = vmatprep.subr.mxu0 0.0
  %158 = vmatpush1.msra.mxu0 0.0
  %159 = vmatprep.subr.mxu0 0.0
  %160 = vmatpush1.msra.mxu0 0.0
  %161 = vmatprep.subr.mxu0 0.0
  %162 = vmatpush1.msra.mxu0 0.0
  %163 = vmatprep.subr.mxu0 0.0
  %164 = vmatpush1.msra.mxu0 0.0
  %165 = vmatprep.subr.mxu0 0.0
  %166 = vmatpush1.msra.mxu0 0.0
  %167 = vmatprep.mubr.f32.mxu0 0.0
  %168 = vmatmul.mubr.f32.gmra.mrb[0].mxu0 %v92
  %v169 = vpop.f32.mrb[0].mxu0
  %v170 = vadd.f32 %v88, %v169
  %v171 = vpop.f32.mrb[0].mxu0
  %172 = vmatprep.mubr.f32.mxu0 0.0
  %173 = vmatmul.mubr.f32.gmra.mrb[0].mxu0 %v95
  %v174 = vpop.f32.mrb[0].mxu0
  %v175 = vadd.f32 %v88, %v174
  %v176 = vpop.f32.mrb[0].mxu0
  %177 = vmatprep.mubr.f32.mxu0 0.0
  %178 = vmatmul.mubr.f32.gmra.mrb[0].mxu0 %v98
  %v179 = vpop.f32.mrb[0].mxu0
  %v180 = vadd.f32 %v88, %v179
  %v181 = vpop.f32.mrb[0].mxu0
  %182 = vmatprep.mubr.f32.mxu0 0.0
  %183 = vmatmul.mubr.f32.gmra.mrb[0].mxu0 %v101
  %v184 = vpop.f32.mrb[0].mxu0
  %v185 = vadd.f32 %v88, %v184
  %v186 = vpop.f32.mrb[0].mxu0
  %187 = vdwg.mxu0
  %v188 = vld [vmem:[%s4] sm:$0xff]
  %v189 = vld [vmem:[%s4 + $0x8] sm:$0xff]
  %v190 = vld [vmem:[%s4 + $0x10] sm:$0xff]
  %v191 = vld [vmem:[%s4 + $0x18] sm:$0xff]
  %v192 = vld [vmem:[%s5] sm:$0x1]
  %v193 = vlaneseq
  %v194 = vshrl.u32 %v193, 7
  %v195 = vadd.s32 %v194, 8
  %v196 = vlaneseq
  %v197 = vand.u32 %v196, 127
  %vm198 = vcmp.le.s32.totalorder %v197, %v194
  %vm199 = vcmp.le.s32.totalorder %v197, %v195
  %202 = vrot.lane.b32.xlu0 %v170, 96
  %v203 = vpop.permute.xlu0 %202
  %204 = vrot.lane.b32.xlu0 %v175, 96
  %v205 = vpop.permute.xlu0 %204
  %vm206 = vcmask 64512
  %v207 = vsel %vm206, %v170, 0
  %v209 = vsel %vm206, %v175, 0
  %v211 = vsel %vm206, %v203, 0
  %v213 = vsel %vm206, %v205, 0
  %215 = vmatprep.subr.mxu0 0.0
  %216 = vmatpush1.xpose.msra.mxu0 %v211
  %217 = vmatprep.subr.mxu0 0.0
  %218 = vmatpush1.xpose.msra.mxu0 %v213
  %219 = vmatprep.subr.mxu0 0.0
  %220 = vmatpush1.xpose.msra.mxu0 0.0
  %221 = vmatprep.subr.mxu0 0.0
  %222 = vmatpush1.xpose.msra.mxu0 0.0
  %223 = vmatprep.subr.mxu0 0.0
  %224 = vmatpush1.xpose.msra.mxu0 0.0
  %225 = vmatprep.subr.mxu0 0.0
  %226 = vmatpush1.xpose.msra.mxu0 0.0
  %227 = vmatprep.subr.mxu0 0.0
  %228 = vmatpush1.xpose.msra.mxu0 0.0
  %229 = vmatprep.subr.mxu0 0.0
  %230 = vmatpush1.xpose.msra.mxu0 0.0
  %231 = vmatprep.subr.mxu0 0.0
  %232 = vmatpush1.xpose.msra.mxu0 0.0
  %233 = vmatprep.subr.mxu0 0.0
  %234 = vmatpush1.xpose.msra.mxu0 0.0
  %235 = vmatprep.subr.mxu0 0.0
  %236 = vmatpush1.xpose.msra.mxu0 0.0
  %237 = vmatprep.subr.mxu0 0.0
  %238 = vmatpush1.xpose.msra.mxu0 0.0
  %239 = vmatprep.subr.mxu0 0.0
  %240 = vmatpush1.xpose.msra.mxu0 0.0
  %241 = vmatprep.subr.mxu0 0.0
  %242 = vmatpush1.xpose.msra.mxu0 0.0
  %243 = vmatprep.subr.mxu0 0.0
  %244 = vmatpush1.xpose.msra.mxu0 0.0
  %245 = vmatprep.subr.mxu0 0.0
  %246 = vmatpush1.xpose.msra.mxu0 0.0
  %247 = vmatprep.subr.mxu0 0.0
  %248 = vmatpush1.xpose.msra.mxu0 0.0
  %249 = vmatprep.subr.mxu0 0.0
  %250 = vmatpush1.xpose.msra.mxu0 0.0
  %251 = vmatprep.subr.mxu0 0.0
  %252 = vmatpush1.xpose.msra.mxu0 0.0
  %253 = vmatprep.subr.mxu0 0.0
  %254 = vmatpush1.xpose.msra.mxu0 0.0
  %255 = vmatprep.subr.mxu0 0.0
  %256 = vmatpush1.xpose.msra.mxu0 0.0
  %257 = vmatprep.subr.mxu0 0.0
  %258 = vmatpush1.xpose.msra.mxu0 0.0
  %259 = vmatprep.subr.mxu0 0.0
  %260 = vmatpush1.xpose.msra.mxu0 0.0
  %261 = vmatprep.subr.mxu0 0.0
  %262 = vmatpush1.xpose.msra.mxu0 0.0
  %263 = vmatprep.subr.mxu0 0.0
  %264 = vmatpush1.xpose.msra.mxu0 0.0
  %265 = vmatprep.subr.mxu0 0.0
  %266 = vmatpush1.xpose.msra.mxu0 0.0
  %267 = vmatprep.subr.mxu0 0.0
  %268 = vmatpush1.xpose.msra.mxu0 0.0
  %269 = vmatprep.subr.mxu0 0.0
  %270 = vmatpush1.xpose.msra.mxu0 0.0
  %271 = vmatprep.subr.mxu0 0.0
  %272 = vmatpush1.xpose.msra.mxu0 0.0
  %273 = vmatprep.subr.mxu0 0.0
  %274 = vmatpush1.xpose.msra.mxu0 0.0
  %275 = vmatprep.subr.mxu0 0.0
  %276 = vmatpush1.xpose.msra.mxu0 0.0
  %277 = vmatprep.subr.mxu0 0.0
  %278 = vmatpush1.xpose.msra.mxu0 0.0
  %279 = vmatprep.mubr.f32.mxu0 0.0
  %280 = vmatmul.mubr.f32.gmra.mrb[0].mxu0 %v207
  %v281 = vpop.f32.mrb[0].mxu0
  %v282 = vadd.f32 0.0, %v281
  %v283 = vpop.f32.mrb[0].mxu0
  %284 = vmatprep.mubr.f32.mxu0 0.0
  %285 = vmatmul.mubr.f32.gmra.mrb[0].mxu0 %v209
  %v286 = vpop.f32.mrb[0].mxu0
  %v287 = vadd.f32 0.0, %v286
  %v288 = vpop.f32.mrb[0].mxu0
  %289 = vdwg.mxu0
  %292 = vrot.lane.b32.xlu0 %v180, 96
  %v293 = vpop.permute.xlu0 %292
  %294 = vrot.lane.b32.xlu0 %v185, 96
  %v295 = vpop.permute.xlu0 %294
  %v296 = vsel %vm206, %v180, 0
  %v298 = vsel %vm206, %v185, 0
  %v300 = vsel %vm206, %v293, 0
  %v302 = vsel %vm206, %v295, 0
  %304 = vmatprep.subr.mxu0 0.0
  %305 = vmatpush1.xpose.msra.mxu0 %v300
  %306 = vmatprep.subr.mxu0 0.0
  %307 = vmatpush1.xpose.msra.mxu0 %v302
  %308 = vmatprep.subr.mxu0 0.0
  %309 = vmatpush1.xpose.msra.mxu0 0.0
  %310 = vmatprep.subr.mxu0 0.0
  %311 = vmatpush1.xpose.msra.mxu0 0.0
  %312 = vmatprep.subr.mxu0 0.0
  %313 = vmatpush1.xpose.msra.mxu0 0.0
  %314 = vmatprep.subr.mxu0 0.0
  %315 = vmatpush1.xpose.msra.mxu0 0.0
  %316 = vmatprep.subr.mxu0 0.0
  %317 = vmatpush1.xpose.msra.mxu0 0.0
  %318 = vmatprep.subr.mxu0 0.0
  %319 = vmatpush1.xpose.msra.mxu0 0.0
  %320 = vmatprep.subr.mxu0 0.0
  %321 = vmatpush1.xpose.msra.mxu0 0.0
  %322 = vmatprep.subr.mxu0 0.0
  %323 = vmatpush1.xpose.msra.mxu0 0.0
  %324 = vmatprep.subr.mxu0 0.0
  %325 = vmatpush1.xpose.msra.mxu0 0.0
  %326 = vmatprep.subr.mxu0 0.0
  %327 = vmatpush1.xpose.msra.mxu0 0.0
  %328 = vmatprep.subr.mxu0 0.0
  %329 = vmatpush1.xpose.msra.mxu0 0.0
  %330 = vmatprep.subr.mxu0 0.0
  %331 = vmatpush1.xpose.msra.mxu0 0.0
  %332 = vmatprep.subr.mxu0 0.0
  %333 = vmatpush1.xpose.msra.mxu0 0.0
  %334 = vmatprep.subr.mxu0 0.0
  %335 = vmatpush1.xpose.msra.mxu0 0.0
  %336 = vmatprep.subr.mxu0 0.0
  %337 = vmatpush1.xpose.msra.mxu0 0.0
  %338 = vmatprep.subr.mxu0 0.0
  %339 = vmatpush1.xpose.msra.mxu0 0.0
  %340 = vmatprep.subr.mxu0 0.0
  %341 = vmatpush1.xpose.msra.mxu0 0.0
  %342 = vmatprep.subr.mxu0 0.0
  %343 = vmatpush1.xpose.msra.mxu0 0.0
  %344 = vmatprep.subr.mxu0 0.0
  %345 = vmatpush1.xpose.msra.mxu0 0.0
  %346 = vmatprep.subr.mxu0 0.0
  %347 = vmatpush1.xpose.msra.mxu0 0.0
  %348 = vmatprep.subr.mxu0 0.0
  %349 = vmatpush1.xpose.msra.mxu0 0.0
  %350 = vmatprep.subr.mxu0 0.0
  %351 = vmatpush1.xpose.msra.mxu0 0.0
  %352 = vmatprep.subr.mxu0 0.0
  %353 = vmatpush1.xpose.msra.mxu0 0.0
  %354 = vmatprep.subr.mxu0 0.0
  %355 = vmatpush1.xpose.msra.mxu0 0.0
  %356 = vmatprep.subr.mxu0 0.0
  %357 = vmatpush1.xpose.msra.mxu0 0.0
  %358 = vmatprep.subr.mxu0 0.0
  %359 = vmatpush1.xpose.msra.mxu0 0.0
  %360 = vmatprep.subr.mxu0 0.0
  %361 = vmatpush1.xpose.msra.mxu0 0.0
  %362 = vmatprep.subr.mxu0 0.0
  %363 = vmatpush1.xpose.msra.mxu0 0.0
  %364 = vmatprep.subr.mxu0 0.0
  %365 = vmatpush1.xpose.msra.mxu0 0.0
  %366 = vmatprep.subr.mxu0 0.0
  %367 = vmatpush1.xpose.msra.mxu0 0.0
  %368 = vmatprep.mubr.f32.mxu0 0.0
  %369 = vmatmul.mubr.f32.gmra.mrb[0].mxu0 %v296
  %v370 = vpop.f32.mrb[0].mxu0
  %v371 = vadd.f32 0.0, %v370
  %v372 = vpop.f32.mrb[0].mxu0
  %373 = vmatprep.mubr.f32.mxu0 0.0
  %374 = vmatmul.mubr.f32.gmra.mrb[0].mxu0 %v298
  %v375 = vpop.f32.mrb[0].mxu0
  %v376 = vadd.f32 0.0, %v375
  %v377 = vpop.f32.mrb[0].mxu0
  %378 = vdwg.mxu0
  %v379 = vmul.f32 %v282, 0.35355338
  %v380 = vmul.f32 %v287, 0.35355338
  %v381 = vmul.f32 %v371, 0.35355338
  %v382 = vmul.f32 %v376, 0.35355338
  %v383 = vsel %vm198, 1, 0
  %v384 = vsel %vm199, 1, 0
  %vm385 = vcmp.eq.s32.totalorder %v383, 1
  %vm386 = vcmp.eq.s32.totalorder %v384, 1
  %v387 = vsel %vm385, %v379, -1e+30
  %v388 = vsel %vm386, %v380, -1e+30
  %v389 = vsel %vm385, %v381, -1e+30
  %v390 = vsel %vm386, %v382, -1e+30
  %vm391 = vcmask 130048
  %v392 = vsel %vm391, %v387, -inf
  %393 = vmax.xlane.f32.xlu0 %v392
  %v394 = vpop.xlane.xlu0 %393
  %v395 = vsel %vm391, %v388, -inf
  %396 = vmax.xlane.f32.xlu0 %v395
  %v397 = vpop.xlane.xlu0 %396
  %v398 = vsel %vm391, %v389, -inf
  %399 = vmax.xlane.f32.xlu0 %v398
  %v400 = vpop.xlane.xlu0 %399
  %v401 = vsel %vm391, %v390, -inf
  %402 = vmax.xlane.f32.xlu0 %v401
  %v403 = vpop.xlane.xlu0 %402
  %v404 = vsub.f32 %v387, %v394
  %v405 = vsub.f32 %v388, %v397
  %v406 = vsub.f32 %v389, %v400
  %v407 = vsub.f32 %v390, %v403
  %v408 = vmul.f32 %v404, 1.442695
  %v409 = vpow.pop %v408
  %v410 = vmul.f32 %v405, 1.442695
  %v411 = vpow.pop %v410
  %v412 = vmul.f32 %v406, 1.442695
  %v413 = vpow.pop %v412
  %v414 = vmul.f32 %v407, 1.442695
  %v415 = vpow.pop %v414
  %v416 = vsel %vm391, %v409, 0.0
  %417 = vadd.xlane.f32.xlu0 %v416
  %v418 = vpop.xlane.xlu0 %417
  %v419 = vsel %vm391, %v411, 0.0
  %420 = vadd.xlane.f32.xlu0 %v419
  %v421 = vpop.xlane.xlu0 %420
  %v422 = vsel %vm391, %v413, 0.0
  %423 = vadd.xlane.f32.xlu0 %v422
  %v424 = vpop.xlane.xlu0 %423
  %v425 = vsel %vm391, %v415, 0.0
  %426 = vadd.xlane.f32.xlu0 %v425
  %v427 = vpop.xlane.xlu0 %426
  %v428 = vrcp.pop %v418
  %v429 = vrcp.pop %v421
  %v430 = vrcp.pop %v424
  %v431 = vrcp.pop %v427
  %v432 = vmul.f32 %v409, %v428
  %v433 = vmul.f32 %v411, %v429
  %v434 = vmul.f32 %v413, %v430
  %v435 = vmul.f32 %v415, %v431
  %436 = vrot.lane.b32.xlu0 %v170, 64
  %v437 = vpop.permute.xlu0 %436
  %438 = vrot.lane.b32.xlu0 %v175, 64
  %v439 = vpop.permute.xlu0 %438
  %v443 = vsel %vm391, %v432, 0
  %v446 = vsel %vm391, %v433, 0
  %448 = vmatprep.subr.mxu0 0.0
  %449 = vmatpush1.msra.mxu0 %v437
  %450 = vmatprep.subr.mxu0 0.0
  %451 = vmatpush1.msra.mxu0 %v439
  %452 = vmatprep.subr.mxu0 0.0
  %453 = vmatpush1.msra.mxu0 0.0
  %454 = vmatprep.subr.mxu0 0.0
  %455 = vmatpush1.msra.mxu0 0.0
  %456 = vmatprep.subr.mxu0 0.0
  %457 = vmatpush1.msra.mxu0 0.0
  %458 = vmatprep.subr.mxu0 0.0
  %459 = vmatpush1.msra.mxu0 0.0
  %460 = vmatprep.subr.mxu0 0.0
  %461 = vmatpush1.msra.mxu0 0.0
  %462 = vmatprep.subr.mxu0 0.0
  %463 = vmatpush1.msra.mxu0 0.0
  %464 = vmatprep.subr.mxu0 0.0
  %465 = vmatpush1.msra.mxu0 0.0
  %466 = vmatprep.subr.mxu0 0.0
  %467 = vmatpush1.msra.mxu0 0.0
  %468 = vmatprep.subr.mxu0 0.0
  %469 = vmatpush1.msra.mxu0 0.0
  %470 = vmatprep.subr.mxu0 0.0
  %471 = vmatpush1.msra.mxu0 0.0
  %472 = vmatprep.subr.mxu0 0.0
  %473 = vmatpush1.msra.mxu0 0.0
  %474 = vmatprep.subr.mxu0 0.0
  %475 = vmatpush1.msra.mxu0 0.0
  %476 = vmatprep.subr.mxu0 0.0
  %477 = vmatpush1.msra.mxu0 0.0
  %478 = vmatprep.subr.mxu0 0.0
  %479 = vmatpush1.msra.mxu0 0.0
  %480 = vmatprep.subr.mxu0 0.0
  %481 = vmatpush1.msra.mxu0 0.0
  %482 = vmatprep.subr.mxu0 0.0
  %483 = vmatpush1.msra.mxu0 0.0
  %484 = vmatprep.subr.mxu0 0.0
  %485 = vmatpush1.msra.mxu0 0.0
  %486 = vmatprep.subr.mxu0 0.0
  %487 = vmatpush1.msra.mxu0 0.0
  %488 = vmatprep.subr.mxu0 0.0
  %489 = vmatpush1.msra.mxu0 0.0
  %490 = vmatprep.subr.mxu0 0.0
  %491 = vmatpush1.msra.mxu0 0.0
  %492 = vmatprep.subr.mxu0 0.0
  %493 = vmatpush1.msra.mxu0 0.0
  %494 = vmatprep.subr.mxu0 0.0
  %495 = vmatpush1.msra.mxu0 0.0
  %496 = vmatprep.subr.mxu0 0.0
  %497 = vmatpush1.msra.mxu0 0.0
  %498 = vmatprep.subr.mxu0 0.0
  %499 = vmatpush1.msra.mxu0 0.0
  %500 = vmatprep.subr.mxu0 0.0
  %501 = vmatpush1.msra.mxu0 0.0
  %502 = vmatprep.subr.mxu0 0.0
  %503 = vmatpush1.msra.mxu0 0.0
  %504 = vmatprep.subr.mxu0 0.0
  %505 = vmatpush1.msra.mxu0 0.0
  %506 = vmatprep.subr.mxu0 0.0
  %507 = vmatpush1.msra.mxu0 0.0
  %508 = vmatprep.subr.mxu0 0.0
  %509 = vmatpush1.msra.mxu0 0.0
  %510 = vmatprep.subr.mxu0 0.0
  %511 = vmatpush1.msra.mxu0 0.0
  %512 = vmatprep.mubr.f32.mxu0 0.0
  %513 = vmatmul.mubr.f32.gmra.mrb[0].mxu0 %v443
  %v514 = vpop.f32.mrb[0].mxu0
  %v515 = vadd.f32 0.0, %v514
  %v516 = vpop.f32.mrb[0].mxu0
  %517 = vmatprep.mubr.f32.mxu0 0.0
  %518 = vmatmul.mubr.f32.gmra.mrb[0].mxu0 %v446
  %v519 = vpop.f32.mrb[0].mxu0
  %v520 = vadd.f32 0.0, %v519
  %v521 = vpop.f32.mrb[0].mxu0
  %522 = vdwg.mxu0
  %523 = vrot.lane.b32.xlu0 %v180, 64
  %v524 = vpop.permute.xlu0 %523
  %525 = vrot.lane.b32.xlu0 %v185, 64
  %v526 = vpop.permute.xlu0 %525
  %v530 = vsel %vm391, %v434, 0
  %v533 = vsel %vm391, %v435, 0
  %535 = vmatprep.subr.mxu0 0.0
  %536 = vmatpush1.msra.mxu0 %v524
  %537 = vmatprep.subr.mxu0 0.0
  %538 = vmatpush1.msra.mxu0 %v526
  %539 = vmatprep.subr.mxu0 0.0
  %540 = vmatpush1.msra.mxu0 0.0
  %541 = vmatprep.subr.mxu0 0.0
  %542 = vmatpush1.msra.mxu0 0.0
  %543 = vmatprep.subr.mxu0 0.0
  %544 = vmatpush1.msra.mxu0 0.0
  %545 = vmatprep.subr.mxu0 0.0
  %546 = vmatpush1.msra.mxu0 0.0
  %547 = vmatprep.subr.mxu0 0.0
  %548 = vmatpush1.msra.mxu0 0.0
  %549 = vmatprep.subr.mxu0 0.0
  %550 = vmatpush1.msra.mxu0 0.0
  %551 = vmatprep.subr.mxu0 0.0
  %552 = vmatpush1.msra.mxu0 0.0
  %553 = vmatprep.subr.mxu0 0.0
  %554 = vmatpush1.msra.mxu0 0.0
  %555 = vmatprep.subr.mxu0 0.0
  %556 = vmatpush1.msra.mxu0 0.0
  %557 = vmatprep.subr.mxu0 0.0
  %558 = vmatpush1.msra.mxu0 0.0
  %559 = vmatprep.subr.mxu0 0.0
  %560 = vmatpush1.msra.mxu0 0.0
  %561 = vmatprep.subr.mxu0 0.0
  %562 = vmatpush1.msra.mxu0 0.0
  %563 = vmatprep.subr.mxu0 0.0
  %564 = vmatpush1.msra.mxu0 0.0
  %565 = vmatprep.subr.mxu0 0.0
  %566 = vmatpush1.msra.mxu0 0.0
  %567 = vmatprep.subr.mxu0 0.0
  %568 = vmatpush1.msra.mxu0 0.0
  %569 = vmatprep.subr.mxu0 0.0
  %570 = vmatpush1.msra.mxu0 0.0
  %571 = vmatprep.subr.mxu0 0.0
  %572 = vmatpush1.msra.mxu0 0.0
  %573 = vmatprep.subr.mxu0 0.0
  %574 = vmatpush1.msra.mxu0 0.0
  %575 = vmatprep.subr.mxu0 0.0
  %576 = vmatpush1.msra.mxu0 0.0
  %577 = vmatprep.subr.mxu0 0.0
  %578 = vmatpush1.msra.mxu0 0.0
  %579 = vmatprep.subr.mxu0 0.0
  %580 = vmatpush1.msra.mxu0 0.0
  %581 = vmatprep.subr.mxu0 0.0
  %582 = vmatpush1.msra.mxu0 0.0
  %583 = vmatprep.subr.mxu0 0.0
  %584 = vmatpush1.msra.mxu0 0.0
  %585 = vmatprep.subr.mxu0 0.0
  %586 = vmatpush1.msra.mxu0 0.0
  %587 = vmatprep.subr.mxu0 0.0
  %588 = vmatpush1.msra.mxu0 0.0
  %589 = vmatprep.subr.mxu0 0.0
  %590 = vmatpush1.msra.mxu0 0.0
  %591 = vmatprep.subr.mxu0 0.0
  %592 = vmatpush1.msra.mxu0 0.0
  %593 = vmatprep.subr.mxu0 0.0
  %594 = vmatpush1.msra.mxu0 0.0
  %595 = vmatprep.subr.mxu0 0.0
  %596 = vmatpush1.msra.mxu0 0.0
  %597 = vmatprep.subr.mxu0 0.0
  %598 = vmatpush1.msra.mxu0 0.0
  %599 = vmatprep.mubr.f32.mxu0 0.0
  %600 = vmatmul.mubr.f32.gmra.mrb[0].mxu0 %v530
  %v601 = vpop.f32.mrb[0].mxu0
  %v602 = vadd.f32 0.0, %v601
  %v603 = vpop.f32.mrb[0].mxu0
  %604 = vmatprep.mubr.f32.mxu0 0.0
  %605 = vmatmul.mubr.f32.gmra.mrb[0].mxu0 %v533
  %v606 = vpop.f32.mrb[0].mxu0
  %v607 = vadd.f32 0.0, %v606
  %v608 = vpop.f32.mrb[0].mxu0
  %609 = vdwg.mxu0
  %610 = vrot.lane.b32.xlu0 %v170, 120
  %v611 = vpop.permute.xlu0 %610
  %612 = vrot.lane.b32.xlu0 %v175, 120
  %v613 = vpop.permute.xlu0 %612
  %614 = vrot.lane.b32.xlu0 %v170, 88
  %v615 = vpop.permute.xlu0 %614
  %616 = vrot.lane.b32.xlu0 %v175, 88
  %v617 = vpop.permute.xlu0 %616
  %v618 = vsel %vm206, %v611, 0
  %v620 = vsel %vm206, %v613, 0
  %v622 = vsel %vm206, %v615, 0
  %v624 = vsel %vm206, %v617, 0
  %626 = vmatprep.subr.mxu0 0.0
  %627 = vmatpush1.xpose.msra.mxu0 %v622
  %628 = vmatprep.subr.mxu0 0.0
  %629 = vmatpush1.xpose.msra.mxu0 %v624
  %630 = vmatprep.subr.mxu0 0.0
  %631 = vmatpush1.xpose.msra.mxu0 0.0
  %632 = vmatprep.subr.mxu0 0.0
  %633 = vmatpush1.xpose.msra.mxu0 0.0
  %634 = vmatprep.subr.mxu0 0.0
  %635 = vmatpush1.xpose.msra.mxu0 0.0
  %636 = vmatprep.subr.mxu0 0.0
  %637 = vmatpush1.xpose.msra.mxu0 0.0
  %638 = vmatprep.subr.mxu0 0.0
  %639 = vmatpush1.xpose.msra.mxu0 0.0
  %640 = vmatprep.subr.mxu0 0.0
  %641 = vmatpush1.xpose.msra.mxu0 0.0
  %642 = vmatprep.subr.mxu0 0.0
  %643 = vmatpush1.xpose.msra.mxu0 0.0
  %644 = vmatprep.subr.mxu0 0.0
  %645 = vmatpush1.xpose.msra.mxu0 0.0
  %646 = vmatprep.subr.mxu0 0.0
  %647 = vmatpush1.xpose.msra.mxu0 0.0
  %648 = vmatprep.subr.mxu0 0.0
  %649 = vmatpush1.xpose.msra.mxu0 0.0
  %650 = vmatprep.subr.mxu0 0.0
  %651 = vmatpush1.xpose.msra.mxu0 0.0
  %652 = vmatprep.subr.mxu0 0.0
  %653 = vmatpush1.xpose.msra.mxu0 0.0
  %654 = vmatprep.subr.mxu0 0.0
  %655 = vmatpush1.xpose.msra.mxu0 0.0
  %656 = vmatprep.subr.mxu0 0.0
  %657 = vmatpush1.xpose.msra.mxu0 0.0
  %658 = vmatprep.subr.mxu0 0.0
  %659 = vmatpush1.xpose.msra.mxu0 0.0
  %660 = vmatprep.subr.mxu0 0.0
  %661 = vmatpush1.xpose.msra.mxu0 0.0
  %662 = vmatprep.subr.mxu0 0.0
  %663 = vmatpush1.xpose.msra.mxu0 0.0
  %664 = vmatprep.subr.mxu0 0.0
  %665 = vmatpush1.xpose.msra.mxu0 0.0
  %666 = vmatprep.subr.mxu0 0.0
  %667 = vmatpush1.xpose.msra.mxu0 0.0
  %668 = vmatprep.subr.mxu0 0.0
  %669 = vmatpush1.xpose.msra.mxu0 0.0
  %670 = vmatprep.subr.mxu0 0.0
  %671 = vmatpush1.xpose.msra.mxu0 0.0
  %672 = vmatprep.subr.mxu0 0.0
  %673 = vmatpush1.xpose.msra.mxu0 0.0
  %674 = vmatprep.subr.mxu0 0.0
  %675 = vmatpush1.xpose.msra.mxu0 0.0
  %676 = vmatprep.subr.mxu0 0.0
  %677 = vmatpush1.xpose.msra.mxu0 0.0
  %678 = vmatprep.subr.mxu0 0.0
  %679 = vmatpush1.xpose.msra.mxu0 0.0
  %680 = vmatprep.subr.mxu0 0.0
  %681 = vmatpush1.xpose.msra.mxu0 0.0
  %682 = vmatprep.subr.mxu0 0.0
  %683 = vmatpush1.xpose.msra.mxu0 0.0
  %684 = vmatprep.subr.mxu0 0.0
  %685 = vmatpush1.xpose.msra.mxu0 0.0
  %686 = vmatprep.subr.mxu0 0.0
  %687 = vmatpush1.xpose.msra.mxu0 0.0
  %688 = vmatprep.subr.mxu0 0.0
  %689 = vmatpush1.xpose.msra.mxu0 0.0
  %690 = vmatprep.mubr.f32.mxu0 0.0
  %691 = vmatmul.mubr.f32.gmra.mrb[0].mxu0 %v618
  %v692 = vpop.f32.mrb[0].mxu0
  %v693 = vadd.f32 0.0, %v692
  %v694 = vpop.f32.mrb[0].mxu0
  %695 = vmatprep.mubr.f32.mxu0 0.0
  %696 = vmatmul.mubr.f32.gmra.mrb[0].mxu0 %v620
  %v697 = vpop.f32.mrb[0].mxu0
  %v698 = vadd.f32 0.0, %v697
  %v699 = vpop.f32.mrb[0].mxu0
  %700 = vdwg.mxu0
  %701 = vrot.lane.b32.xlu0 %v180, 120
  %v702 = vpop.permute.xlu0 %701
  %703 = vrot.lane.b32.xlu0 %v185, 120
  %v704 = vpop.permute.xlu0 %703
  %705 = vrot.lane.b32.xlu0 %v180, 88
  %v706 = vpop.permute.xlu0 %705
  %707 = vrot.lane.b32.xlu0 %v185, 88
  %v708 = vpop.permute.xlu0 %707
  %v709 = vsel %vm206, %v702, 0
  %v711 = vsel %vm206, %v704, 0
  %v713 = vsel %vm206, %v706, 0
  %v715 = vsel %vm206, %v708, 0
  %717 = vmatprep.subr.mxu0 0.0
  %718 = vmatpush1.xpose.msra.mxu0 %v713
  %719 = vmatprep.subr.mxu0 0.0
  %720 = vmatpush1.xpose.msra.mxu0 %v715
  %721 = vmatprep.subr.mxu0 0.0
  %722 = vmatpush1.xpose.msra.mxu0 0.0
  %723 = vmatprep.subr.mxu0 0.0
  %724 = vmatpush1.xpose.msra.mxu0 0.0
  %725 = vmatprep.subr.mxu0 0.0
  %726 = vmatpush1.xpose.msra.mxu0 0.0
  %727 = vmatprep.subr.mxu0 0.0
  %728 = vmatpush1.xpose.msra.mxu0 0.0
  %729 = vmatprep.subr.mxu0 0.0
  %730 = vmatpush1.xpose.msra.mxu0 0.0
  %731 = vmatprep.subr.mxu0 0.0
  %732 = vmatpush1.xpose.msra.mxu0 0.0
  %733 = vmatprep.subr.mxu0 0.0
  %734 = vmatpush1.xpose.msra.mxu0 0.0
  %735 = vmatprep.subr.mxu0 0.0
  %736 = vmatpush1.xpose.msra.mxu0 0.0
  %737 = vmatprep.subr.mxu0 0.0
  %738 = vmatpush1.xpose.msra.mxu0 0.0
  %739 = vmatprep.subr.mxu0 0.0
  %740 = vmatpush1.xpose.msra.mxu0 0.0
  %741 = vmatprep.subr.mxu0 0.0
  %742 = vmatpush1.xpose.msra.mxu0 0.0
  %743 = vmatprep.subr.mxu0 0.0
  %744 = vmatpush1.xpose.msra.mxu0 0.0
  %745 = vmatprep.subr.mxu0 0.0
  %746 = vmatpush1.xpose.msra.mxu0 0.0
  %747 = vmatprep.subr.mxu0 0.0
  %748 = vmatpush1.xpose.msra.mxu0 0.0
  %749 = vmatprep.subr.mxu0 0.0
  %750 = vmatpush1.xpose.msra.mxu0 0.0
  %751 = vmatprep.subr.mxu0 0.0
  %752 = vmatpush1.xpose.msra.mxu0 0.0
  %753 = vmatprep.subr.mxu0 0.0
  %754 = vmatpush1.xpose.msra.mxu0 0.0
  %755 = vmatprep.subr.mxu0 0.0
  %756 = vmatpush1.xpose.msra.mxu0 0.0
  %757 = vmatprep.subr.mxu0 0.0
  %758 = vmatpush1.xpose.msra.mxu0 0.0
  %759 = vmatprep.subr.mxu0 0.0
  %760 = vmatpush1.xpose.msra.mxu0 0.0
  %761 = vmatprep.subr.mxu0 0.0
  %762 = vmatpush1.xpose.msra.mxu0 0.0
  %763 = vmatprep.subr.mxu0 0.0
  %764 = vmatpush1.xpose.msra.mxu0 0.0
  %765 = vmatprep.subr.mxu0 0.0
  %766 = vmatpush1.xpose.msra.mxu0 0.0
  %767 = vmatprep.subr.mxu0 0.0
  %768 = vmatpush1.xpose.msra.mxu0 0.0
  %769 = vmatprep.subr.mxu0 0.0
  %770 = vmatpush1.xpose.msra.mxu0 0.0
  %771 = vmatprep.subr.mxu0 0.0
  %772 = vmatpush1.xpose.msra.mxu0 0.0
  %773 = vmatprep.subr.mxu0 0.0
  %774 = vmatpush1.xpose.msra.mxu0 0.0
  %775 = vmatprep.subr.mxu0 0.0
  %776 = vmatpush1.xpose.msra.mxu0 0.0
  %777 = vmatprep.subr.mxu0 0.0
  %778 = vmatpush1.xpose.msra.mxu0 0.0
  %779 = vmatprep.subr.mxu0 0.0
  %780 = vmatpush1.xpose.msra.mxu0 0.0
  %781 = vmatprep.mubr.f32.mxu0 0.0
  %782 = vmatmul.mubr.f32.gmra.mrb[0].mxu0 %v709
  %v783 = vpop.f32.mrb[0].mxu0
  %v784 = vadd.f32 0.0, %v783
  %v785 = vpop.f32.mrb[0].mxu0
  %786 = vmatprep.mubr.f32.mxu0 0.0
  %787 = vmatmul.mubr.f32.gmra.mrb[0].mxu0 %v711
  %v788 = vpop.f32.mrb[0].mxu0
  %v789 = vadd.f32 0.0, %v788
  %v790 = vpop.f32.mrb[0].mxu0
  %791 = vdwg.mxu0
  %v792 = vmul.f32 %v693, 0.35355338
  %v793 = vmul.f32 %v698, 0.35355338
  %v794 = vmul.f32 %v784, 0.35355338
  %v795 = vmul.f32 %v789, 0.35355338
  %v796 = vsel %vm385, %v792, -1e+30
  %v797 = vsel %vm386, %v793, -1e+30
  %v798 = vsel %vm385, %v794, -1e+30
  %v799 = vsel %vm386, %v795, -1e+30
  %v800 = vsel %vm391, %v796, -inf
  %801 = vmax.xlane.f32.xlu0 %v800
  %v802 = vpop.xlane.xlu0 %801
  %v803 = vsel %vm391, %v797, -inf
  %804 = vmax.xlane.f32.xlu0 %v803
  %v805 = vpop.xlane.xlu0 %804
  %v806 = vsel %vm391, %v798, -inf
  %807 = vmax.xlane.f32.xlu0 %v806
  %v808 = vpop.xlane.xlu0 %807
  %v809 = vsel %vm391, %v799, -inf
  %810 = vmax.xlane.f32.xlu0 %v809
  %v811 = vpop.xlane.xlu0 %810
  %v812 = vsub.f32 %v796, %v802
  %v813 = vsub.f32 %v797, %v805
  %v814 = vsub.f32 %v798, %v808
  %v815 = vsub.f32 %v799, %v811
  %v816 = vmul.f32 %v812, 1.442695
  %v817 = vpow.pop %v816
  %v818 = vmul.f32 %v813, 1.442695
  %v819 = vpow.pop %v818
  %v820 = vmul.f32 %v814, 1.442695
  %v821 = vpow.pop %v820
  %v822 = vmul.f32 %v815, 1.442695
  %v823 = vpow.pop %v822
  %v824 = vsel %vm391, %v817, 0.0
  %825 = vadd.xlane.f32.xlu0 %v824
  %v826 = vpop.xlane.xlu0 %825
  %v827 = vsel %vm391, %v819, 0.0
  %828 = vadd.xlane.f32.xlu0 %v827
  %v829 = vpop.xlane.xlu0 %828
  %v830 = vsel %vm391, %v821, 0.0
  %831 = vadd.xlane.f32.xlu0 %v830
  %v832 = vpop.xlane.xlu0 %831
  %v833 = vsel %vm391, %v823, 0.0
  %834 = vadd.xlane.f32.xlu0 %v833
  %v835 = vpop.xlane.xlu0 %834
  %v836 = vrcp.pop %v826
  %v837 = vrcp.pop %v829
  %v838 = vrcp.pop %v832
  %v839 = vrcp.pop %v835
  %v840 = vmul.f32 %v817, %v836
  %v841 = vmul.f32 %v819, %v837
  %v842 = vmul.f32 %v821, %v838
  %v843 = vmul.f32 %v823, %v839
  %844 = vrot.lane.b32.xlu0 %v170, 56
  %v845 = vpop.permute.xlu0 %844
  %846 = vrot.lane.b32.xlu0 %v175, 56
  %v847 = vpop.permute.xlu0 %846
  %v851 = vsel %vm391, %v840, 0
  %v854 = vsel %vm391, %v841, 0
  %856 = vmatprep.subr.mxu0 0.0
  %857 = vmatpush1.msra.mxu0 %v845
  %858 = vmatprep.subr.mxu0 0.0
  %859 = vmatpush1.msra.mxu0 %v847
  %860 = vmatprep.subr.mxu0 0.0
  %861 = vmatpush1.msra.mxu0 0.0
  %862 = vmatprep.subr.mxu0 0.0
  %863 = vmatpush1.msra.mxu0 0.0
  %864 = vmatprep.subr.mxu0 0.0
  %865 = vmatpush1.msra.mxu0 0.0
  %866 = vmatprep.subr.mxu0 0.0
  %867 = vmatpush1.msra.mxu0 0.0
  %868 = vmatprep.subr.mxu0 0.0
  %869 = vmatpush1.msra.mxu0 0.0
  %870 = vmatprep.subr.mxu0 0.0
  %871 = vmatpush1.msra.mxu0 0.0
  %872 = vmatprep.subr.mxu0 0.0
  %873 = vmatpush1.msra.mxu0 0.0
  %874 = vmatprep.subr.mxu0 0.0
  %875 = vmatpush1.msra.mxu0 0.0
  %876 = vmatprep.subr.mxu0 0.0
  %877 = vmatpush1.msra.mxu0 0.0
  %878 = vmatprep.subr.mxu0 0.0
  %879 = vmatpush1.msra.mxu0 0.0
  %880 = vmatprep.subr.mxu0 0.0
  %881 = vmatpush1.msra.mxu0 0.0
  %882 = vmatprep.subr.mxu0 0.0
  %883 = vmatpush1.msra.mxu0 0.0
  %884 = vmatprep.subr.mxu0 0.0
  %885 = vmatpush1.msra.mxu0 0.0
  %886 = vmatprep.subr.mxu0 0.0
  %887 = vmatpush1.msra.mxu0 0.0
  %888 = vmatprep.subr.mxu0 0.0
  %889 = vmatpush1.msra.mxu0 0.0
  %890 = vmatprep.subr.mxu0 0.0
  %891 = vmatpush1.msra.mxu0 0.0
  %892 = vmatprep.subr.mxu0 0.0
  %893 = vmatpush1.msra.mxu0 0.0
  %894 = vmatprep.subr.mxu0 0.0
  %895 = vmatpush1.msra.mxu0 0.0
  %896 = vmatprep.subr.mxu0 0.0
  %897 = vmatpush1.msra.mxu0 0.0
  %898 = vmatprep.subr.mxu0 0.0
  %899 = vmatpush1.msra.mxu0 0.0
  %900 = vmatprep.subr.mxu0 0.0
  %901 = vmatpush1.msra.mxu0 0.0
  %902 = vmatprep.subr.mxu0 0.0
  %903 = vmatpush1.msra.mxu0 0.0
  %904 = vmatprep.subr.mxu0 0.0
  %905 = vmatpush1.msra.mxu0 0.0
  %906 = vmatprep.subr.mxu0 0.0
  %907 = vmatpush1.msra.mxu0 0.0
  %908 = vmatprep.subr.mxu0 0.0
  %909 = vmatpush1.msra.mxu0 0.0
  %910 = vmatprep.subr.mxu0 0.0
  %911 = vmatpush1.msra.mxu0 0.0
  %912 = vmatprep.subr.mxu0 0.0
  %913 = vmatpush1.msra.mxu0 0.0
  %914 = vmatprep.subr.mxu0 0.0
  %915 = vmatpush1.msra.mxu0 0.0
  %916 = vmatprep.subr.mxu0 0.0
  %917 = vmatpush1.msra.mxu0 0.0
  %918 = vmatprep.subr.mxu0 0.0
  %919 = vmatpush1.msra.mxu0 0.0
  %920 = vmatprep.mubr.f32.mxu0 0.0
  %921 = vmatmul.mubr.f32.gmra.mrb[0].mxu0 %v851
  %v922 = vpop.f32.mrb[0].mxu0
  %v923 = vadd.f32 0.0, %v922
  %v924 = vpop.f32.mrb[0].mxu0
  %925 = vmatprep.mubr.f32.mxu0 0.0
  %926 = vmatmul.mubr.f32.gmra.mrb[0].mxu0 %v854
  %v927 = vpop.f32.mrb[0].mxu0
  %v928 = vadd.f32 0.0, %v927
  %v929 = vpop.f32.mrb[0].mxu0
  %930 = vdwg.mxu0
  %931 = vrot.lane.b32.xlu0 %v180, 56
  %v932 = vpop.permute.xlu0 %931
  %933 = vrot.lane.b32.xlu0 %v185, 56
  %v934 = vpop.permute.xlu0 %933
  %v938 = vsel %vm391, %v842, 0
  %v941 = vsel %vm391, %v843, 0
  %943 = vmatprep.subr.mxu0 0.0
  %944 = vmatpush1.msra.mxu0 %v932
  %945 = vmatprep.subr.mxu0 0.0
  %946 = vmatpush1.msra.mxu0 %v934
  %947 = vmatprep.subr.mxu0 0.0
  %948 = vmatpush1.msra.mxu0 0.0
  %949 = vmatprep.subr.mxu0 0.0
  %950 = vmatpush1.msra.mxu0 0.0
  %951 = vmatprep.subr.mxu0 0.0
  %952 = vmatpush1.msra.mxu0 0.0
  %953 = vmatprep.subr.mxu0 0.0
  %954 = vmatpush1.msra.mxu0 0.0
  %955 = vmatprep.subr.mxu0 0.0
  %956 = vmatpush1.msra.mxu0 0.0
  %957 = vmatprep.subr.mxu0 0.0
  %958 = vmatpush1.msra.mxu0 0.0
  %959 = vmatprep.subr.mxu0 0.0
  %960 = vmatpush1.msra.mxu0 0.0
  %961 = vmatprep.subr.mxu0 0.0
  %962 = vmatpush1.msra.mxu0 0.0
  %963 = vmatprep.subr.mxu0 0.0
  %964 = vmatpush1.msra.mxu0 0.0
  %965 = vmatprep.subr.mxu0 0.0
  %966 = vmatpush1.msra.mxu0 0.0
  %967 = vmatprep.subr.mxu0 0.0
  %968 = vmatpush1.msra.mxu0 0.0
  %969 = vmatprep.subr.mxu0 0.0
  %970 = vmatpush1.msra.mxu0 0.0
  %971 = vmatprep.subr.mxu0 0.0
  %972 = vmatpush1.msra.mxu0 0.0
  %973 = vmatprep.subr.mxu0 0.0
  %974 = vmatpush1.msra.mxu0 0.0
  %975 = vmatprep.subr.mxu0 0.0
  %976 = vmatpush1.msra.mxu0 0.0
  %977 = vmatprep.subr.mxu0 0.0
  %978 = vmatpush1.msra.mxu0 0.0
  %979 = vmatprep.subr.mxu0 0.0
  %980 = vmatpush1.msra.mxu0 0.0
  %981 = vmatprep.subr.mxu0 0.0
  %982 = vmatpush1.msra.mxu0 0.0
  %983 = vmatprep.subr.mxu0 0.0
  %984 = vmatpush1.msra.mxu0 0.0
  %985 = vmatprep.subr.mxu0 0.0
  %986 = vmatpush1.msra.mxu0 0.0
  %987 = vmatprep.subr.mxu0 0.0
  %988 = vmatpush1.msra.mxu0 0.0
  %989 = vmatprep.subr.mxu0 0.0
  %990 = vmatpush1.msra.mxu0 0.0
  %991 = vmatprep.subr.mxu0 0.0
  %992 = vmatpush1.msra.mxu0 0.0
  %993 = vmatprep.subr.mxu0 0.0
  %994 = vmatpush1.msra.mxu0 0.0
  %995 = vmatprep.subr.mxu0 0.0
  %996 = vmatpush1.msra.mxu0 0.0
  %997 = vmatprep.subr.mxu0 0.0
  %998 = vmatpush1.msra.mxu0 0.0
  %999 = vmatprep.subr.mxu0 0.0
  %1000 = vmatpush1.msra.mxu0 0.0
  %1001 = vmatprep.subr.mxu0 0.0
  %1002 = vmatpush1.msra.mxu0 0.0
  %1003 = vmatprep.subr.mxu0 0.0
  %1004 = vmatpush1.msra.mxu0 0.0
  %1005 = vmatprep.subr.mxu0 0.0
  %1006 = vmatpush1.msra.mxu0 0.0
  %1007 = vmatprep.mubr.f32.mxu0 0.0
  %1008 = vmatmul.mubr.f32.gmra.mrb[0].mxu0 %v938
  %v1009 = vpop.f32.mrb[0].mxu0
  %v1010 = vadd.f32 0.0, %v1009
  %v1011 = vpop.f32.mrb[0].mxu0
  %1012 = vmatprep.mubr.f32.mxu0 0.0
  %1013 = vmatmul.mubr.f32.gmra.mrb[0].mxu0 %v941
  %v1014 = vpop.f32.mrb[0].mxu0
  %v1015 = vadd.f32 0.0, %v1014
  %v1016 = vpop.f32.mrb[0].mxu0
  %1017 = vdwg.mxu0
  %v1019 = vsel %vm206, %v923, 0
  %v1022 = vsel %vm206, %v928, 0
  %v1025 = vsel %vm206, %v1010, 0
  %v1028 = vsel %vm206, %v1015, 0
  %1030 = vmatprep.subr.mxu0 0.0
  %1031 = vmatpush1.msra.mxu0 %v189
  %1032 = vmatprep.subr.mxu0 0.0
  %1033 = vmatpush1.msra.mxu0 0.0
  %1034 = vmatprep.subr.mxu0 0.0
  %1035 = vmatpush1.msra.mxu0 0.0
  %1036 = vmatprep.subr.mxu0 0.0
  %1037 = vmatpush1.msra.mxu0 0.0
  %1038 = vmatprep.subr.mxu0 0.0
  %1039 = vmatpush1.msra.mxu0 0.0
  %1040 = vmatprep.subr.mxu0 0.0
  %1041 = vmatpush1.msra.mxu0 0.0
  %1042 = vmatprep.subr.mxu0 0.0
  %1043 = vmatpush1.msra.mxu0 0.0
  %1044 = vmatprep.subr.mxu0 0.0
  %1045 = vmatpush1.msra.mxu0 0.0
  %1046 = vmatprep.subr.mxu0 0.0
  %1047 = vmatpush1.msra.mxu0 0.0
  %1048 = vmatprep.subr.mxu0 0.0
  %1049 = vmatpush1.msra.mxu0 0.0
  %1050 = vmatprep.subr.mxu0 0.0
  %1051 = vmatpush1.msra.mxu0 0.0
  %1052 = vmatprep.subr.mxu0 0.0
  %1053 = vmatpush1.msra.mxu0 0.0
  %1054 = vmatprep.subr.mxu0 0.0
  %1055 = vmatpush1.msra.mxu0 0.0
  %1056 = vmatprep.subr.mxu0 0.0
  %1057 = vmatpush1.msra.mxu0 0.0
  %1058 = vmatprep.subr.mxu0 0.0
  %1059 = vmatpush1.msra.mxu0 0.0
  %1060 = vmatprep.subr.mxu0 0.0
  %1061 = vmatpush1.msra.mxu0 0.0
  %1062 = vmatprep.subr.mxu0 0.0
  %1063 = vmatpush1.msra.mxu0 0.0
  %1064 = vmatprep.subr.mxu0 0.0
  %1065 = vmatpush1.msra.mxu0 0.0
  %1066 = vmatprep.subr.mxu0 0.0
  %1067 = vmatpush1.msra.mxu0 0.0
  %1068 = vmatprep.subr.mxu0 0.0
  %1069 = vmatpush1.msra.mxu0 0.0
  %1070 = vmatprep.subr.mxu0 0.0
  %1071 = vmatpush1.msra.mxu0 0.0
  %1072 = vmatprep.subr.mxu0 0.0
  %1073 = vmatpush1.msra.mxu0 0.0
  %1074 = vmatprep.subr.mxu0 0.0
  %1075 = vmatpush1.msra.mxu0 0.0
  %1076 = vmatprep.subr.mxu0 0.0
  %1077 = vmatpush1.msra.mxu0 0.0
  %1078 = vmatprep.subr.mxu0 0.0
  %1079 = vmatpush1.msra.mxu0 0.0
  %1080 = vmatprep.subr.mxu0 0.0
  %1081 = vmatpush1.msra.mxu0 0.0
  %1082 = vmatprep.subr.mxu0 0.0
  %1083 = vmatpush1.msra.mxu0 0.0
  %1084 = vmatprep.subr.mxu0 0.0
  %1085 = vmatpush1.msra.mxu0 0.0
  %1086 = vmatprep.subr.mxu0 0.0
  %1087 = vmatpush1.msra.mxu0 0.0
  %1088 = vmatprep.subr.mxu0 0.0
  %1089 = vmatpush1.msra.mxu0 0.0
  %1090 = vmatprep.subr.mxu0 0.0
  %1091 = vmatpush1.msra.mxu0 0.0
  %1092 = vmatprep.subr.mxu0 0.0
  %1093 = vmatpush1.msra.mxu0 0.0
  %1094 = vmatprep.mubr.f32.mxu0 0.0
  %1095 = vmatmul.mubr.f32.gmra.mrb[0].mxu0 %v1019
  %v1096 = vpop.f32.mrb[0].mxu0
  %v1097 = vadd.f32 0.0, %v1096
  %v1098 = vpop.f32.mrb[0].mxu0
  %1099 = vmatprep.mubr.f32.mxu0 0.0
  %1100 = vmatmul.mubr.f32.gmra.mrb[0].mxu0 %v1022
  %v1101 = vpop.f32.mrb[0].mxu0
  %v1102 = vadd.f32 0.0, %v1101
  %v1103 = vpop.f32.mrb[0].mxu0
  %1104 = vmatprep.mubr.f32.mxu0 0.0
  %1105 = vmatmul.mubr.f32.gmra.mrb[0].mxu0 %v1025
  %v1106 = vpop.f32.mrb[0].mxu0
  %v1107 = vadd.f32 0.0, %v1106
  %v1108 = vpop.f32.mrb[0].mxu0
  %1109 = vmatprep.mubr.f32.mxu0 0.0
  %1110 = vmatmul.mubr.f32.gmra.mrb[0].mxu0 %v1028
  %v1111 = vpop.f32.mrb[0].mxu0
  %v1112 = vadd.f32 0.0, %v1111
  %v1113 = vpop.f32.mrb[0].mxu0
  %1114 = vdwg.mxu0
  %v1116 = vsel %vm206, %v515, 0
  %v1119 = vsel %vm206, %v520, 0
  %v1122 = vsel %vm206, %v602, 0
  %v1125 = vsel %vm206, %v607, 0
  %1127 = vmatprep.subr.mxu0 0.0
  %1128 = vmatpush1.msra.mxu0 %v188
  %1129 = vmatprep.subr.mxu0 0.0
  %1130 = vmatpush1.msra.mxu0 0.0
  %1131 = vmatprep.subr.mxu0 0.0
  %1132 = vmatpush1.msra.mxu0 0.0
  %1133 = vmatprep.subr.mxu0 0.0
  %1134 = vmatpush1.msra.mxu0 0.0
  %1135 = vmatprep.subr.mxu0 0.0
  %1136 = vmatpush1.msra.mxu0 0.0
  %1137 = vmatprep.subr.mxu0 0.0
  %1138 = vmatpush1.msra.mxu0 0.0
  %1139 = vmatprep.subr.mxu0 0.0
  %1140 = vmatpush1.msra.mxu0 0.0
  %1141 = vmatprep.subr.mxu0 0.0
  %1142 = vmatpush1.msra.mxu0 0.0
  %1143 = vmatprep.subr.mxu0 0.0
  %1144 = vmatpush1.msra.mxu0 0.0
  %1145 = vmatprep.subr.mxu0 0.0
  %1146 = vmatpush1.msra.mxu0 0.0
  %1147 = vmatprep.subr.mxu0 0.0
  %1148 = vmatpush1.msra.mxu0 0.0
  %1149 = vmatprep.subr.mxu0 0.0
  %1150 = vmatpush1.msra.mxu0 0.0
  %1151 = vmatprep.subr.mxu0 0.0
  %1152 = vmatpush1.msra.mxu0 0.0
  %1153 = vmatprep.subr.mxu0 0.0
  %1154 = vmatpush1.msra.mxu0 0.0
  %1155 = vmatprep.subr.mxu0 0.0
  %1156 = vmatpush1.msra.mxu0 0.0
  %1157 = vmatprep.subr.mxu0 0.0
  %1158 = vmatpush1.msra.mxu0 0.0
  %1159 = vmatprep.subr.mxu0 0.0
  %1160 = vmatpush1.msra.mxu0 0.0
  %1161 = vmatprep.subr.mxu0 0.0
  %1162 = vmatpush1.msra.mxu0 0.0
  %1163 = vmatprep.subr.mxu0 0.0
  %1164 = vmatpush1.msra.mxu0 0.0
  %1165 = vmatprep.subr.mxu0 0.0
  %1166 = vmatpush1.msra.mxu0 0.0
  %1167 = vmatprep.subr.mxu0 0.0
  %1168 = vmatpush1.msra.mxu0 0.0
  %1169 = vmatprep.subr.mxu0 0.0
  %1170 = vmatpush1.msra.mxu0 0.0
  %1171 = vmatprep.subr.mxu0 0.0
  %1172 = vmatpush1.msra.mxu0 0.0
  %1173 = vmatprep.subr.mxu0 0.0
  %1174 = vmatpush1.msra.mxu0 0.0
  %1175 = vmatprep.subr.mxu0 0.0
  %1176 = vmatpush1.msra.mxu0 0.0
  %1177 = vmatprep.subr.mxu0 0.0
  %1178 = vmatpush1.msra.mxu0 0.0
  %1179 = vmatprep.subr.mxu0 0.0
  %1180 = vmatpush1.msra.mxu0 0.0
  %1181 = vmatprep.subr.mxu0 0.0
  %1182 = vmatpush1.msra.mxu0 0.0
  %1183 = vmatprep.subr.mxu0 0.0
  %1184 = vmatpush1.msra.mxu0 0.0
  %1185 = vmatprep.subr.mxu0 0.0
  %1186 = vmatpush1.msra.mxu0 0.0
  %1187 = vmatprep.subr.mxu0 0.0
  %1188 = vmatpush1.msra.mxu0 0.0
  %1189 = vmatprep.subr.mxu0 0.0
  %1190 = vmatpush1.msra.mxu0 0.0
  %1191 = vmatprep.mubr.f32.mxu0 0.0
  %1192 = vmatmul.mubr.f32.gmra.mrb[0].mxu0 %v1116
  %v1193 = vpop.f32.mrb[0].mxu0
  %v1194 = vadd.f32 %v1097, %v1193
  %v1195 = vpop.f32.mrb[0].mxu0
  %1196 = vmatprep.mubr.f32.mxu0 0.0
  %1197 = vmatmul.mubr.f32.gmra.mrb[0].mxu0 %v1119
  %v1198 = vpop.f32.mrb[0].mxu0
  %v1199 = vadd.f32 %v1102, %v1198
  %v1200 = vpop.f32.mrb[0].mxu0
  %1201 = vmatprep.mubr.f32.mxu0 0.0
  %1202 = vmatmul.mubr.f32.gmra.mrb[0].mxu0 %v1122
  %v1203 = vpop.f32.mrb[0].mxu0
  %v1204 = vadd.f32 %v1107, %v1203
  %v1205 = vpop.f32.mrb[0].mxu0
  %1206 = vmatprep.mubr.f32.mxu0 0.0
  %1207 = vmatmul.mubr.f32.gmra.mrb[0].mxu0 %v1125
  %v1208 = vpop.f32.mrb[0].mxu0
  %v1209 = vadd.f32 %v1112, %v1208
  %v1210 = vpop.f32.mrb[0].mxu0
  %1211 = vdwg.mxu0
  %1212 = vrot.lane.b32.xlu0 %v170, 112
  %v1213 = vpop.permute.xlu0 %1212
  %1214 = vrot.lane.b32.xlu0 %v175, 112
  %v1215 = vpop.permute.xlu0 %1214
  %1216 = vrot.lane.b32.xlu0 %v170, 80
  %v1217 = vpop.permute.xlu0 %1216
  %1218 = vrot.lane.b32.xlu0 %v175, 80
  %v1219 = vpop.permute.xlu0 %1218
  %v1220 = vsel %vm206, %v1213, 0
  %v1222 = vsel %vm206, %v1215, 0
  %v1224 = vsel %vm206, %v1217, 0
  %v1226 = vsel %vm206, %v1219, 0
  %1228 = vmatprep.subr.mxu0 0.0
  %1229 = vmatpush1.xpose.msra.mxu0 %v1224
  %1230 = vmatprep.subr.mxu0 0.0
  %1231 = vmatpush1.xpose.msra.mxu0 %v1226
  %1232 = vmatprep.subr.mxu0 0.0
  %1233 = vmatpush1.xpose.msra.mxu0 0.0
  %1234 = vmatprep.subr.mxu0 0.0
  %1235 = vmatpush1.xpose.msra.mxu0 0.0
  %1236 = vmatprep.subr.mxu0 0.0
  %1237 = vmatpush1.xpose.msra.mxu0 0.0
  %1238 = vmatprep.subr.mxu0 0.0
  %1239 = vmatpush1.xpose.msra.mxu0 0.0
  %1240 = vmatprep.subr.mxu0 0.0
  %1241 = vmatpush1.xpose.msra.mxu0 0.0
  %1242 = vmatprep.subr.mxu0 0.0
  %1243 = vmatpush1.xpose.msra.mxu0 0.0
  %1244 = vmatprep.subr.mxu0 0.0
  %1245 = vmatpush1.xpose.msra.mxu0 0.0
  %1246 = vmatprep.subr.mxu0 0.0
  %1247 = vmatpush1.xpose.msra.mxu0 0.0
  %1248 = vmatprep.subr.mxu0 0.0
  %1249 = vmatpush1.xpose.msra.mxu0 0.0
  %1250 = vmatprep.subr.mxu0 0.0
  %1251 = vmatpush1.xpose.msra.mxu0 0.0
  %1252 = vmatprep.subr.mxu0 0.0
  %1253 = vmatpush1.xpose.msra.mxu0 0.0
  %1254 = vmatprep.subr.mxu0 0.0
  %1255 = vmatpush1.xpose.msra.mxu0 0.0
  %1256 = vmatprep.subr.mxu0 0.0
  %1257 = vmatpush1.xpose.msra.mxu0 0.0
  %1258 = vmatprep.subr.mxu0 0.0
  %1259 = vmatpush1.xpose.msra.mxu0 0.0
  %1260 = vmatprep.subr.mxu0 0.0
  %1261 = vmatpush1.xpose.msra.mxu0 0.0
  %1262 = vmatprep.subr.mxu0 0.0
  %1263 = vmatpush1.xpose.msra.mxu0 0.0
  %1264 = vmatprep.subr.mxu0 0.0
  %1265 = vmatpush1.xpose.msra.mxu0 0.0
  %1266 = vmatprep.subr.mxu0 0.0
  %1267 = vmatpush1.xpose.msra.mxu0 0.0
  %1268 = vmatprep.subr.mxu0 0.0
  %1269 = vmatpush1.xpose.msra.mxu0 0.0
  %1270 = vmatprep.subr.mxu0 0.0
  %1271 = vmatpush1.xpose.msra.mxu0 0.0
  %1272 = vmatprep.subr.mxu0 0.0
  %1273 = vmatpush1.xpose.msra.mxu0 0.0
  %1274 = vmatprep.subr.mxu0 0.0
  %1275 = vmatpush1.xpose.msra.mxu0 0.0
  %1276 = vmatprep.subr.mxu0 0.0
  %1277 = vmatpush1.xpose.msra.mxu0 0.0
  %1278 = vmatprep.subr.mxu0 0.0
  %1279 = vmatpush1.xpose.msra.mxu0 0.0
  %1280 = vmatprep.subr.mxu0 0.0
  %1281 = vmatpush1.xpose.msra.mxu0 0.0
  %1282 = vmatprep.subr.mxu0 0.0
  %1283 = vmatpush1.xpose.msra.mxu0 0.0
  %1284 = vmatprep.subr.mxu0 0.0
  %1285 = vmatpush1.xpose.msra.mxu0 0.0
  %1286 = vmatprep.subr.mxu0 0.0
  %1287 = vmatpush1.xpose.msra.mxu0 0.0
  %1288 = vmatprep.subr.mxu0 0.0
  %1289 = vmatpush1.xpose.msra.mxu0 0.0
  %1290 = vmatprep.subr.mxu0 0.0
  %1291 = vmatpush1.xpose.msra.mxu0 0.0
  %1292 = vmatprep.mubr.f32.mxu0 0.0
  %1293 = vmatmul.mubr.f32.gmra.mrb[0].mxu0 %v1220
  %v1294 = vpop.f32.mrb[0].mxu0
  %v1295 = vadd.f32 0.0, %v1294
  %v1296 = vpop.f32.mrb[0].mxu0
  %1297 = vmatprep.mubr.f32.mxu0 0.0
  %1298 = vmatmul.mubr.f32.gmra.mrb[0].mxu0 %v1222
  %v1299 = vpop.f32.mrb[0].mxu0
  %v1300 = vadd.f32 0.0, %v1299
  %v1301 = vpop.f32.mrb[0].mxu0
  %1302 = vdwg.mxu0
  %1303 = vrot.lane.b32.xlu0 %v180, 112
  %v1304 = vpop.permute.xlu0 %1303
  %1305 = vrot.lane.b32.xlu0 %v185, 112
  %v1306 = vpop.permute.xlu0 %1305
  %1307 = vrot.lane.b32.xlu0 %v180, 80
  %v1308 = vpop.permute.xlu0 %1307
  %1309 = vrot.lane.b32.xlu0 %v185, 80
  %v1310 = vpop.permute.xlu0 %1309
  %v1311 = vsel %vm206, %v1304, 0
  %v1313 = vsel %vm206, %v1306, 0
  %v1315 = vsel %vm206, %v1308, 0
  %v1317 = vsel %vm206, %v1310, 0
  %1319 = vmatprep.subr.mxu0 0.0
  %1320 = vmatpush1.xpose.msra.mxu0 %v1315
  %1321 = vmatprep.subr.mxu0 0.0
  %1322 = vmatpush1.xpose.msra.mxu0 %v1317
  %1323 = vmatprep.subr.mxu0 0.0
  %1324 = vmatpush1.xpose.msra.mxu0 0.0
  %1325 = vmatprep.subr.mxu0 0.0
  %1326 = vmatpush1.xpose.msra.mxu0 0.0
  %1327 = vmatprep.subr.mxu0 0.0
  %1328 = vmatpush1.xpose.msra.mxu0 0.0
  %1329 = vmatprep.subr.mxu0 0.0
  %1330 = vmatpush1.xpose.msra.mxu0 0.0
  %1331 = vmatprep.subr.mxu0 0.0
  %1332 = vmatpush1.xpose.msra.mxu0 0.0
  %1333 = vmatprep.subr.mxu0 0.0
  %1334 = vmatpush1.xpose.msra.mxu0 0.0
  %1335 = vmatprep.subr.mxu0 0.0
  %1336 = vmatpush1.xpose.msra.mxu0 0.0
  %1337 = vmatprep.subr.mxu0 0.0
  %1338 = vmatpush1.xpose.msra.mxu0 0.0
  %1339 = vmatprep.subr.mxu0 0.0
  %1340 = vmatpush1.xpose.msra.mxu0 0.0
  %1341 = vmatprep.subr.mxu0 0.0
  %1342 = vmatpush1.xpose.msra.mxu0 0.0
  %1343 = vmatprep.subr.mxu0 0.0
  %1344 = vmatpush1.xpose.msra.mxu0 0.0
  %1345 = vmatprep.subr.mxu0 0.0
  %1346 = vmatpush1.xpose.msra.mxu0 0.0
  %1347 = vmatprep.subr.mxu0 0.0
  %1348 = vmatpush1.xpose.msra.mxu0 0.0
  %1349 = vmatprep.subr.mxu0 0.0
  %1350 = vmatpush1.xpose.msra.mxu0 0.0
  %1351 = vmatprep.subr.mxu0 0.0
  %1352 = vmatpush1.xpose.msra.mxu0 0.0
  %1353 = vmatprep.subr.mxu0 0.0
  %1354 = vmatpush1.xpose.msra.mxu0 0.0
  %1355 = vmatprep.subr.mxu0 0.0
  %1356 = vmatpush1.xpose.msra.mxu0 0.0
  %1357 = vmatprep.subr.mxu0 0.0
  %1358 = vmatpush1.xpose.msra.mxu0 0.0
  %1359 = vmatprep.subr.mxu0 0.0
  %1360 = vmatpush1.xpose.msra.mxu0 0.0
  %1361 = vmatprep.subr.mxu0 0.0
  %1362 = vmatpush1.xpose.msra.mxu0 0.0
  %1363 = vmatprep.subr.mxu0 0.0
  %1364 = vmatpush1.xpose.msra.mxu0 0.0
  %1365 = vmatprep.subr.mxu0 0.0
  %1366 = vmatpush1.xpose.msra.mxu0 0.0
  %1367 = vmatprep.subr.mxu0 0.0
  %1368 = vmatpush1.xpose.msra.mxu0 0.0
  %1369 = vmatprep.subr.mxu0 0.0
  %1370 = vmatpush1.xpose.msra.mxu0 0.0
  %1371 = vmatprep.subr.mxu0 0.0
  %1372 = vmatpush1.xpose.msra.mxu0 0.0
  %1373 = vmatprep.subr.mxu0 0.0
  %1374 = vmatpush1.xpose.msra.mxu0 0.0
  %1375 = vmatprep.subr.mxu0 0.0
  %1376 = vmatpush1.xpose.msra.mxu0 0.0
  %1377 = vmatprep.subr.mxu0 0.0
  %1378 = vmatpush1.xpose.msra.mxu0 0.0
  %1379 = vmatprep.subr.mxu0 0.0
  %1380 = vmatpush1.xpose.msra.mxu0 0.0
  %1381 = vmatprep.subr.mxu0 0.0
  %1382 = vmatpush1.xpose.msra.mxu0 0.0
  %1383 = vmatprep.mubr.f32.mxu0 0.0
  %1384 = vmatmul.mubr.f32.gmra.mrb[0].mxu0 %v1311
  %v1385 = vpop.f32.mrb[0].mxu0
  %v1386 = vadd.f32 0.0, %v1385
  %v1387 = vpop.f32.mrb[0].mxu0
  %1388 = vmatprep.mubr.f32.mxu0 0.0
  %1389 = vmatmul.mubr.f32.gmra.mrb[0].mxu0 %v1313
  %v1390 = vpop.f32.mrb[0].mxu0
  %v1391 = vadd.f32 0.0, %v1390
  %v1392 = vpop.f32.mrb[0].mxu0
  %1393 = vdwg.mxu0
  %v1394 = vmul.f32 %v1295, 0.35355338
  %v1395 = vmul.f32 %v1300, 0.35355338
  %v1396 = vmul.f32 %v1386, 0.35355338
  %v1397 = vmul.f32 %v1391, 0.35355338
  %v1398 = vsel %vm385, %v1394, -1e+30
  %v1399 = vsel %vm386, %v1395, -1e+30
  %v1400 = vsel %vm385, %v1396, -1e+30
  %v1401 = vsel %vm386, %v1397, -1e+30
  %v1402 = vsel %vm391, %v1398, -inf
  %1403 = vmax.xlane.f32.xlu0 %v1402
  %v1404 = vpop.xlane.xlu0 %1403
  %v1405 = vsel %vm391, %v1399, -inf
  %1406 = vmax.xlane.f32.xlu0 %v1405
  %v1407 = vpop.xlane.xlu0 %1406
  %v1408 = vsel %vm391, %v1400, -inf
  %1409 = vmax.xlane.f32.xlu0 %v1408
  %v1410 = vpop.xlane.xlu0 %1409
  %v1411 = vsel %vm391, %v1401, -inf
  %1412 = vmax.xlane.f32.xlu0 %v1411
  %v1413 = vpop.xlane.xlu0 %1412
  %v1414 = vsub.f32 %v1398, %v1404
  %v1415 = vsub.f32 %v1399, %v1407
  %v1416 = vsub.f32 %v1400, %v1410
  %v1417 = vsub.f32 %v1401, %v1413
  %v1418 = vmul.f32 %v1414, 1.442695
  %v1419 = vpow.pop %v1418
  %v1420 = vmul.f32 %v1415, 1.442695
  %v1421 = vpow.pop %v1420
  %v1422 = vmul.f32 %v1416, 1.442695
  %v1423 = vpow.pop %v1422
  %v1424 = vmul.f32 %v1417, 1.442695
  %v1425 = vpow.pop %v1424
  %v1426 = vsel %vm391, %v1419, 0.0
  %1427 = vadd.xlane.f32.xlu0 %v1426
  %v1428 = vpop.xlane.xlu0 %1427
  %v1429 = vsel %vm391, %v1421, 0.0
  %1430 = vadd.xlane.f32.xlu0 %v1429
  %v1431 = vpop.xlane.xlu0 %1430
  %v1432 = vsel %vm391, %v1423, 0.0
  %1433 = vadd.xlane.f32.xlu0 %v1432
  %v1434 = vpop.xlane.xlu0 %1433
  %v1435 = vsel %vm391, %v1425, 0.0
  %1436 = vadd.xlane.f32.xlu0 %v1435
  %v1437 = vpop.xlane.xlu0 %1436
  %v1438 = vrcp.pop %v1428
  %v1439 = vrcp.pop %v1431
  %v1440 = vrcp.pop %v1434
  %v1441 = vrcp.pop %v1437
  %v1442 = vmul.f32 %v1419, %v1438
  %v1443 = vmul.f32 %v1421, %v1439
  %v1444 = vmul.f32 %v1423, %v1440
  %v1445 = vmul.f32 %v1425, %v1441
  %1446 = vrot.lane.b32.xlu0 %v170, 48
  %v1447 = vpop.permute.xlu0 %1446
  %1448 = vrot.lane.b32.xlu0 %v175, 48
  %v1449 = vpop.permute.xlu0 %1448
  %v1453 = vsel %vm391, %v1442, 0
  %v1456 = vsel %vm391, %v1443, 0
  %1458 = vmatprep.subr.mxu0 0.0
  %1459 = vmatpush1.msra.mxu0 %v1447
  %1460 = vmatprep.subr.mxu0 0.0
  %1461 = vmatpush1.msra.mxu0 %v1449
  %1462 = vmatprep.subr.mxu0 0.0
  %1463 = vmatpush1.msra.mxu0 0.0
  %1464 = vmatprep.subr.mxu0 0.0
  %1465 = vmatpush1.msra.mxu0 0.0
  %1466 = vmatprep.subr.mxu0 0.0
  %1467 = vmatpush1.msra.mxu0 0.0
  %1468 = vmatprep.subr.mxu0 0.0
  %1469 = vmatpush1.msra.mxu0 0.0
  %1470 = vmatprep.subr.mxu0 0.0
  %1471 = vmatpush1.msra.mxu0 0.0
  %1472 = vmatprep.subr.mxu0 0.0
  %1473 = vmatpush1.msra.mxu0 0.0
  %1474 = vmatprep.subr.mxu0 0.0
  %1475 = vmatpush1.msra.mxu0 0.0
  %1476 = vmatprep.subr.mxu0 0.0
  %1477 = vmatpush1.msra.mxu0 0.0
  %1478 = vmatprep.subr.mxu0 0.0
  %1479 = vmatpush1.msra.mxu0 0.0
  %1480 = vmatprep.subr.mxu0 0.0
  %1481 = vmatpush1.msra.mxu0 0.0
  %1482 = vmatprep.subr.mxu0 0.0
  %1483 = vmatpush1.msra.mxu0 0.0
  %1484 = vmatprep.subr.mxu0 0.0
  %1485 = vmatpush1.msra.mxu0 0.0
  %1486 = vmatprep.subr.mxu0 0.0
  %1487 = vmatpush1.msra.mxu0 0.0
  %1488 = vmatprep.subr.mxu0 0.0
  %1489 = vmatpush1.msra.mxu0 0.0
  %1490 = vmatprep.subr.mxu0 0.0
  %1491 = vmatpush1.msra.mxu0 0.0
  %1492 = vmatprep.subr.mxu0 0.0
  %1493 = vmatpush1.msra.mxu0 0.0
  %1494 = vmatprep.subr.mxu0 0.0
  %1495 = vmatpush1.msra.mxu0 0.0
  %1496 = vmatprep.subr.mxu0 0.0
  %1497 = vmatpush1.msra.mxu0 0.0
  %1498 = vmatprep.subr.mxu0 0.0
  %1499 = vmatpush1.msra.mxu0 0.0
  %1500 = vmatprep.subr.mxu0 0.0
  %1501 = vmatpush1.msra.mxu0 0.0
  %1502 = vmatprep.subr.mxu0 0.0
  %1503 = vmatpush1.msra.mxu0 0.0
  %1504 = vmatprep.subr.mxu0 0.0
  %1505 = vmatpush1.msra.mxu0 0.0
  %1506 = vmatprep.subr.mxu0 0.0
  %1507 = vmatpush1.msra.mxu0 0.0
  %1508 = vmatprep.subr.mxu0 0.0
  %1509 = vmatpush1.msra.mxu0 0.0
  %1510 = vmatprep.subr.mxu0 0.0
  %1511 = vmatpush1.msra.mxu0 0.0
  %1512 = vmatprep.subr.mxu0 0.0
  %1513 = vmatpush1.msra.mxu0 0.0
  %1514 = vmatprep.subr.mxu0 0.0
  %1515 = vmatpush1.msra.mxu0 0.0
  %1516 = vmatprep.subr.mxu0 0.0
  %1517 = vmatpush1.msra.mxu0 0.0
  %1518 = vmatprep.subr.mxu0 0.0
  %1519 = vmatpush1.msra.mxu0 0.0
  %1520 = vmatprep.subr.mxu0 0.0
  %1521 = vmatpush1.msra.mxu0 0.0
  %1522 = vmatprep.mubr.f32.mxu0 0.0
  %1523 = vmatmul.mubr.f32.gmra.mrb[0].mxu0 %v1453
  %v1524 = vpop.f32.mrb[0].mxu0
  %v1525 = vadd.f32 0.0, %v1524
  %v1526 = vpop.f32.mrb[0].mxu0
  %1527 = vmatprep.mubr.f32.mxu0 0.0
  %1528 = vmatmul.mubr.f32.gmra.mrb[0].mxu0 %v1456
  %v1529 = vpop.f32.mrb[0].mxu0
  %v1530 = vadd.f32 0.0, %v1529
  %v1531 = vpop.f32.mrb[0].mxu0
  %1532 = vdwg.mxu0
  %1533 = vrot.lane.b32.xlu0 %v180, 48
  %v1534 = vpop.permute.xlu0 %1533
  %1535 = vrot.lane.b32.xlu0 %v185, 48
  %v1536 = vpop.permute.xlu0 %1535
  %v1540 = vsel %vm391, %v1444, 0
  %v1543 = vsel %vm391, %v1445, 0
  %1545 = vmatprep.subr.mxu0 0.0
  %1546 = vmatpush1.msra.mxu0 %v1534
  %1547 = vmatprep.subr.mxu0 0.0
  %1548 = vmatpush1.msra.mxu0 %v1536
  %1549 = vmatprep.subr.mxu0 0.0
  %1550 = vmatpush1.msra.mxu0 0.0
  %1551 = vmatprep.subr.mxu0 0.0
  %1552 = vmatpush1.msra.mxu0 0.0
  %1553 = vmatprep.subr.mxu0 0.0
  %1554 = vmatpush1.msra.mxu0 0.0
  %1555 = vmatprep.subr.mxu0 0.0
  %1556 = vmatpush1.msra.mxu0 0.0
  %1557 = vmatprep.subr.mxu0 0.0
  %1558 = vmatpush1.msra.mxu0 0.0
  %1559 = vmatprep.subr.mxu0 0.0
  %1560 = vmatpush1.msra.mxu0 0.0
  %1561 = vmatprep.subr.mxu0 0.0
  %1562 = vmatpush1.msra.mxu0 0.0
  %1563 = vmatprep.subr.mxu0 0.0
  %1564 = vmatpush1.msra.mxu0 0.0
  %1565 = vmatprep.subr.mxu0 0.0
  %1566 = vmatpush1.msra.mxu0 0.0
  %1567 = vmatprep.subr.mxu0 0.0
  %1568 = vmatpush1.msra.mxu0 0.0
  %1569 = vmatprep.subr.mxu0 0.0
  %1570 = vmatpush1.msra.mxu0 0.0
  %1571 = vmatprep.subr.mxu0 0.0
  %1572 = vmatpush1.msra.mxu0 0.0
  %1573 = vmatprep.subr.mxu0 0.0
  %1574 = vmatpush1.msra.mxu0 0.0
  %1575 = vmatprep.subr.mxu0 0.0
  %1576 = vmatpush1.msra.mxu0 0.0
  %1577 = vmatprep.subr.mxu0 0.0
  %1578 = vmatpush1.msra.mxu0 0.0
  %1579 = vmatprep.subr.mxu0 0.0
  %1580 = vmatpush1.msra.mxu0 0.0
  %1581 = vmatprep.subr.mxu0 0.0
  %1582 = vmatpush1.msra.mxu0 0.0
  %1583 = vmatprep.subr.mxu0 0.0
  %1584 = vmatpush1.msra.mxu0 0.0
  %1585 = vmatprep.subr.mxu0 0.0
  %1586 = vmatpush1.msra.mxu0 0.0
  %1587 = vmatprep.subr.mxu0 0.0
  %1588 = vmatpush1.msra.mxu0 0.0
  %1589 = vmatprep.subr.mxu0 0.0
  %1590 = vmatpush1.msra.mxu0 0.0
  %1591 = vmatprep.subr.mxu0 0.0
  %1592 = vmatpush1.msra.mxu0 0.0
  %1593 = vmatprep.subr.mxu0 0.0
  %1594 = vmatpush1.msra.mxu0 0.0
  %1595 = vmatprep.subr.mxu0 0.0
  %1596 = vmatpush1.msra.mxu0 0.0
  %1597 = vmatprep.subr.mxu0 0.0
  %1598 = vmatpush1.msra.mxu0 0.0
  %1599 = vmatprep.subr.mxu0 0.0
  %1600 = vmatpush1.msra.mxu0 0.0
  %1601 = vmatprep.subr.mxu0 0.0
  %1602 = vmatpush1.msra.mxu0 0.0
  %1603 = vmatprep.subr.mxu0 0.0
  %1604 = vmatpush1.msra.mxu0 0.0
  %1605 = vmatprep.subr.mxu0 0.0
  %1606 = vmatpush1.msra.mxu0 0.0
  %1607 = vmatprep.subr.mxu0 0.0
  %1608 = vmatpush1.msra.mxu0 0.0
  %1609 = vmatprep.mubr.f32.mxu0 0.0
  %1610 = vmatmul.mubr.f32.gmra.mrb[0].mxu0 %v1540
  %v1611 = vpop.f32.mrb[0].mxu0
  %v1612 = vadd.f32 0.0, %v1611
  %v1613 = vpop.f32.mrb[0].mxu0
  %1614 = vmatprep.mubr.f32.mxu0 0.0
  %1615 = vmatmul.mubr.f32.gmra.mrb[0].mxu0 %v1543
  %v1616 = vpop.f32.mrb[0].mxu0
  %v1617 = vadd.f32 0.0, %v1616
  %v1618 = vpop.f32.mrb[0].mxu0
  %1619 = vdwg.mxu0
  %v1621 = vsel %vm206, %v1525, 0
  %v1624 = vsel %vm206, %v1530, 0
  %v1627 = vsel %vm206, %v1612, 0
  %v1630 = vsel %vm206, %v1617, 0
  %1632 = vmatprep.subr.mxu0 0.0
  %1633 = vmatpush1.msra.mxu0 %v190
  %1634 = vmatprep.subr.mxu0 0.0
  %1635 = vmatpush1.msra.mxu0 0.0
  %1636 = vmatprep.subr.mxu0 0.0
  %1637 = vmatpush1.msra.mxu0 0.0
  %1638 = vmatprep.subr.mxu0 0.0
  %1639 = vmatpush1.msra.mxu0 0.0
  %1640 = vmatprep.subr.mxu0 0.0
  %1641 = vmatpush1.msra.mxu0 0.0
  %1642 = vmatprep.subr.mxu0 0.0
  %1643 = vmatpush1.msra.mxu0 0.0
  %1644 = vmatprep.subr.mxu0 0.0
  %1645 = vmatpush1.msra.mxu0 0.0
  %1646 = vmatprep.subr.mxu0 0.0
  %1647 = vmatpush1.msra.mxu0 0.0
  %1648 = vmatprep.subr.mxu0 0.0
  %1649 = vmatpush1.msra.mxu0 0.0
  %1650 = vmatprep.subr.mxu0 0.0
  %1651 = vmatpush1.msra.mxu0 0.0
  %1652 = vmatprep.subr.mxu0 0.0
  %1653 = vmatpush1.msra.mxu0 0.0
  %1654 = vmatprep.subr.mxu0 0.0
  %1655 = vmatpush1.msra.mxu0 0.0
  %1656 = vmatprep.subr.mxu0 0.0
  %1657 = vmatpush1.msra.mxu0 0.0
  %1658 = vmatprep.subr.mxu0 0.0
  %1659 = vmatpush1.msra.mxu0 0.0
  %1660 = vmatprep.subr.mxu0 0.0
  %1661 = vmatpush1.msra.mxu0 0.0
  %1662 = vmatprep.subr.mxu0 0.0
  %1663 = vmatpush1.msra.mxu0 0.0
  %1664 = vmatprep.subr.mxu0 0.0
  %1665 = vmatpush1.msra.mxu0 0.0
  %1666 = vmatprep.subr.mxu0 0.0
  %1667 = vmatpush1.msra.mxu0 0.0
  %1668 = vmatprep.subr.mxu0 0.0
  %1669 = vmatpush1.msra.mxu0 0.0
  %1670 = vmatprep.subr.mxu0 0.0
  %1671 = vmatpush1.msra.mxu0 0.0
  %1672 = vmatprep.subr.mxu0 0.0
  %1673 = vmatpush1.msra.mxu0 0.0
  %1674 = vmatprep.subr.mxu0 0.0
  %1675 = vmatpush1.msra.mxu0 0.0
  %1676 = vmatprep.subr.mxu0 0.0
  %1677 = vmatpush1.msra.mxu0 0.0
  %1678 = vmatprep.subr.mxu0 0.0
  %1679 = vmatpush1.msra.mxu0 0.0
  %1680 = vmatprep.subr.mxu0 0.0
  %1681 = vmatpush1.msra.mxu0 0.0
  %1682 = vmatprep.subr.mxu0 0.0
  %1683 = vmatpush1.msra.mxu0 0.0
  %1684 = vmatprep.subr.mxu0 0.0
  %1685 = vmatpush1.msra.mxu0 0.0
  %1686 = vmatprep.subr.mxu0 0.0
  %1687 = vmatpush1.msra.mxu0 0.0
  %1688 = vmatprep.subr.mxu0 0.0
  %1689 = vmatpush1.msra.mxu0 0.0
  %1690 = vmatprep.subr.mxu0 0.0
  %1691 = vmatpush1.msra.mxu0 0.0
  %1692 = vmatprep.subr.mxu0 0.0
  %1693 = vmatpush1.msra.mxu0 0.0
  %1694 = vmatprep.subr.mxu0 0.0
  %1695 = vmatpush1.msra.mxu0 0.0
  %1696 = vmatprep.mubr.f32.mxu0 0.0
  %1697 = vmatmul.mubr.f32.gmra.mrb[0].mxu0 %v1621
  %v1698 = vpop.f32.mrb[0].mxu0
  %v1699 = vadd.f32 0.0, %v1698
  %v1700 = vpop.f32.mrb[0].mxu0
  %1701 = vmatprep.mubr.f32.mxu0 0.0
  %1702 = vmatmul.mubr.f32.gmra.mrb[0].mxu0 %v1624
  %v1703 = vpop.f32.mrb[0].mxu0
  %v1704 = vadd.f32 0.0, %v1703
  %v1705 = vpop.f32.mrb[0].mxu0
  %1706 = vmatprep.mubr.f32.mxu0 0.0
  %1707 = vmatmul.mubr.f32.gmra.mrb[0].mxu0 %v1627
  %v1708 = vpop.f32.mrb[0].mxu0
  %v1709 = vadd.f32 0.0, %v1708
  %v1710 = vpop.f32.mrb[0].mxu0
  %1711 = vmatprep.mubr.f32.mxu0 0.0
  %1712 = vmatmul.mubr.f32.gmra.mrb[0].mxu0 %v1630
  %v1713 = vpop.f32.mrb[0].mxu0
  %v1714 = vadd.f32 0.0, %v1713
  %v1715 = vpop.f32.mrb[0].mxu0
  %1716 = vdwg.mxu0
  %v1717 = vadd.f32 %v1194, %v1699
  %v1718 = vadd.f32 %v1199, %v1704
  %v1719 = vadd.f32 %v1204, %v1709
  %v1720 = vadd.f32 %v1209, %v1714
  %1721 = vrot.lane.b32.xlu0 %v170, 104
  %v1722 = vpop.permute.xlu0 %1721
  %1723 = vrot.lane.b32.xlu0 %v175, 104
  %v1724 = vpop.permute.xlu0 %1723
  %1725 = vrot.lane.b32.xlu0 %v170, 72
  %v1726 = vpop.permute.xlu0 %1725
  %1727 = vrot.lane.b32.xlu0 %v175, 72
  %v1728 = vpop.permute.xlu0 %1727
  %v1729 = vsel %vm206, %v1722, 0
  %v1731 = vsel %vm206, %v1724, 0
  %v1733 = vsel %vm206, %v1726, 0
  %v1735 = vsel %vm206, %v1728, 0
  %1737 = vmatprep.subr.mxu0 0.0
  %1738 = vmatpush1.xpose.msra.mxu0 %v1733
  %1739 = vmatprep.subr.mxu0 0.0
  %1740 = vmatpush1.xpose.msra.mxu0 %v1735
  %1741 = vmatprep.subr.mxu0 0.0
  %1742 = vmatpush1.xpose.msra.mxu0 0.0
  %1743 = vmatprep.subr.mxu0 0.0
  %1744 = vmatpush1.xpose.msra.mxu0 0.0
  %1745 = vmatprep.subr.mxu0 0.0
  %1746 = vmatpush1.xpose.msra.mxu0 0.0
  %1747 = vmatprep.subr.mxu0 0.0
  %1748 = vmatpush1.xpose.msra.mxu0 0.0
  %1749 = vmatprep.subr.mxu0 0.0
  %1750 = vmatpush1.xpose.msra.mxu0 0.0
  %1751 = vmatprep.subr.mxu0 0.0
  %1752 = vmatpush1.xpose.msra.mxu0 0.0
  %1753 = vmatprep.subr.mxu0 0.0
  %1754 = vmatpush1.xpose.msra.mxu0 0.0
  %1755 = vmatprep.subr.mxu0 0.0
  %1756 = vmatpush1.xpose.msra.mxu0 0.0
  %1757 = vmatprep.subr.mxu0 0.0
  %1758 = vmatpush1.xpose.msra.mxu0 0.0
  %1759 = vmatprep.subr.mxu0 0.0
  %1760 = vmatpush1.xpose.msra.mxu0 0.0
  %1761 = vmatprep.subr.mxu0 0.0
  %1762 = vmatpush1.xpose.msra.mxu0 0.0
  %1763 = vmatprep.subr.mxu0 0.0
  %1764 = vmatpush1.xpose.msra.mxu0 0.0
  %1765 = vmatprep.subr.mxu0 0.0
  %1766 = vmatpush1.xpose.msra.mxu0 0.0
  %1767 = vmatprep.subr.mxu0 0.0
  %1768 = vmatpush1.xpose.msra.mxu0 0.0
  %1769 = vmatprep.subr.mxu0 0.0
  %1770 = vmatpush1.xpose.msra.mxu0 0.0
  %1771 = vmatprep.subr.mxu0 0.0
  %1772 = vmatpush1.xpose.msra.mxu0 0.0
  %1773 = vmatprep.subr.mxu0 0.0
  %1774 = vmatpush1.xpose.msra.mxu0 0.0
  %1775 = vmatprep.subr.mxu0 0.0
  %1776 = vmatpush1.xpose.msra.mxu0 0.0
  %1777 = vmatprep.subr.mxu0 0.0
  %1778 = vmatpush1.xpose.msra.mxu0 0.0
  %1779 = vmatprep.subr.mxu0 0.0
  %1780 = vmatpush1.xpose.msra.mxu0 0.0
  %1781 = vmatprep.subr.mxu0 0.0
  %1782 = vmatpush1.xpose.msra.mxu0 0.0
  %1783 = vmatprep.subr.mxu0 0.0
  %1784 = vmatpush1.xpose.msra.mxu0 0.0
  %1785 = vmatprep.subr.mxu0 0.0
  %1786 = vmatpush1.xpose.msra.mxu0 0.0
  %1787 = vmatprep.subr.mxu0 0.0
  %1788 = vmatpush1.xpose.msra.mxu0 0.0
  %1789 = vmatprep.subr.mxu0 0.0
  %1790 = vmatpush1.xpose.msra.mxu0 0.0
  %1791 = vmatprep.subr.mxu0 0.0
  %1792 = vmatpush1.xpose.msra.mxu0 0.0
  %1793 = vmatprep.subr.mxu0 0.0
  %1794 = vmatpush1.xpose.msra.mxu0 0.0
  %1795 = vmatprep.subr.mxu0 0.0
  %1796 = vmatpush1.xpose.msra.mxu0 0.0
  %1797 = vmatprep.subr.mxu0 0.0
  %1798 = vmatpush1.xpose.msra.mxu0 0.0
  %1799 = vmatprep.subr.mxu0 0.0
  %1800 = vmatpush1.xpose.msra.mxu0 0.0
  %1801 = vmatprep.mubr.f32.mxu0 0.0
  %1802 = vmatmul.mubr.f32.gmra.mrb[0].mxu0 %v1729
  %v1803 = vpop.f32.mrb[0].mxu0
  %v1804 = vadd.f32 0.0, %v1803
  %v1805 = vpop.f32.mrb[0].mxu0
  %1806 = vmatprep.mubr.f32.mxu0 0.0
  %1807 = vmatmul.mubr.f32.gmra.mrb[0].mxu0 %v1731
  %v1808 = vpop.f32.mrb[0].mxu0
  %v1809 = vadd.f32 0.0, %v1808
  %v1810 = vpop.f32.mrb[0].mxu0
  %1811 = vdwg.mxu0
  %1812 = vrot.lane.b32.xlu0 %v180, 104
  %v1813 = vpop.permute.xlu0 %1812
  %1814 = vrot.lane.b32.xlu0 %v185, 104
  %v1815 = vpop.permute.xlu0 %1814
  %1816 = vrot.lane.b32.xlu0 %v180, 72
  %v1817 = vpop.permute.xlu0 %1816
  %1818 = vrot.lane.b32.xlu0 %v185, 72
  %v1819 = vpop.permute.xlu0 %1818
  %v1820 = vsel %vm206, %v1813, 0
  %v1822 = vsel %vm206, %v1815, 0
  %v1824 = vsel %vm206, %v1817, 0
  %v1826 = vsel %vm206, %v1819, 0
  %1828 = vmatprep.subr.mxu0 0.0
  %1829 = vmatpush1.xpose.msra.mxu0 %v1824
  %1830 = vmatprep.subr.mxu0 0.0
  %1831 = vmatpush1.xpose.msra.mxu0 %v1826
  %1832 = vmatprep.subr.mxu0 0.0
  %1833 = vmatpush1.xpose.msra.mxu0 0.0
  %1834 = vmatprep.subr.mxu0 0.0
  %1835 = vmatpush1.xpose.msra.mxu0 0.0
  %1836 = vmatprep.subr.mxu0 0.0
  %1837 = vmatpush1.xpose.msra.mxu0 0.0
  %1838 = vmatprep.subr.mxu0 0.0
  %1839 = vmatpush1.xpose.msra.mxu0 0.0
  %1840 = vmatprep.subr.mxu0 0.0
  %1841 = vmatpush1.xpose.msra.mxu0 0.0
  %1842 = vmatprep.subr.mxu0 0.0
  %1843 = vmatpush1.xpose.msra.mxu0 0.0
  %1844 = vmatprep.subr.mxu0 0.0
  %1845 = vmatpush1.xpose.msra.mxu0 0.0
  %1846 = vmatprep.subr.mxu0 0.0
  %1847 = vmatpush1.xpose.msra.mxu0 0.0
  %1848 = vmatprep.subr.mxu0 0.0
  %1849 = vmatpush1.xpose.msra.mxu0 0.0
  %1850 = vmatprep.subr.mxu0 0.0
  %1851 = vmatpush1.xpose.msra.mxu0 0.0
  %1852 = vmatprep.subr.mxu0 0.0
  %1853 = vmatpush1.xpose.msra.mxu0 0.0
  %1854 = vmatprep.subr.mxu0 0.0
  %1855 = vmatpush1.xpose.msra.mxu0 0.0
  %1856 = vmatprep.subr.mxu0 0.0
  %1857 = vmatpush1.xpose.msra.mxu0 0.0
  %1858 = vmatprep.subr.mxu0 0.0
  %1859 = vmatpush1.xpose.msra.mxu0 0.0
  %1860 = vmatprep.subr.mxu0 0.0
  %1861 = vmatpush1.xpose.msra.mxu0 0.0
  %1862 = vmatprep.subr.mxu0 0.0
  %1863 = vmatpush1.xpose.msra.mxu0 0.0
  %1864 = vmatprep.subr.mxu0 0.0
  %1865 = vmatpush1.xpose.msra.mxu0 0.0
  %1866 = vmatprep.subr.mxu0 0.0
  %1867 = vmatpush1.xpose.msra.mxu0 0.0
  %1868 = vmatprep.subr.mxu0 0.0
  %1869 = vmatpush1.xpose.msra.mxu0 0.0
  %1870 = vmatprep.subr.mxu0 0.0
  %1871 = vmatpush1.xpose.msra.mxu0 0.0
  %1872 = vmatprep.subr.mxu0 0.0
  %1873 = vmatpush1.xpose.msra.mxu0 0.0
  %1874 = vmatprep.subr.mxu0 0.0
  %1875 = vmatpush1.xpose.msra.mxu0 0.0
  %1876 = vmatprep.subr.mxu0 0.0
  %1877 = vmatpush1.xpose.msra.mxu0 0.0
  %1878 = vmatprep.subr.mxu0 0.0
  %1879 = vmatpush1.xpose.msra.mxu0 0.0
  %1880 = vmatprep.subr.mxu0 0.0
  %1881 = vmatpush1.xpose.msra.mxu0 0.0
  %1882 = vmatprep.subr.mxu0 0.0
  %1883 = vmatpush1.xpose.msra.mxu0 0.0
  %1884 = vmatprep.subr.mxu0 0.0
  %1885 = vmatpush1.xpose.msra.mxu0 0.0
  %1886 = vmatprep.subr.mxu0 0.0
  %1887 = vmatpush1.xpose.msra.mxu0 0.0
  %1888 = vmatprep.subr.mxu0 0.0
  %1889 = vmatpush1.xpose.msra.mxu0 0.0
  %1890 = vmatprep.subr.mxu0 0.0
  %1891 = vmatpush1.xpose.msra.mxu0 0.0
  %1892 = vmatprep.mubr.f32.mxu0 0.0
  %1893 = vmatmul.mubr.f32.gmra.mrb[0].mxu0 %v1820
  %v1894 = vpop.f32.mrb[0].mxu0
  %v1895 = vadd.f32 0.0, %v1894
  %v1896 = vpop.f32.mrb[0].mxu0
  %1897 = vmatprep.mubr.f32.mxu0 0.0
  %1898 = vmatmul.mubr.f32.gmra.mrb[0].mxu0 %v1822
  %v1899 = vpop.f32.mrb[0].mxu0
  %v1900 = vadd.f32 0.0, %v1899
  %v1901 = vpop.f32.mrb[0].mxu0
  %1902 = vdwg.mxu0
  %v1903 = vmul.f32 %v1804, 0.35355338
  %v1904 = vmul.f32 %v1809, 0.35355338
  %v1905 = vmul.f32 %v1895, 0.35355338
  %v1906 = vmul.f32 %v1900, 0.35355338
  %v1907 = vsel %vm385, %v1903, -1e+30
  %v1908 = vsel %vm386, %v1904, -1e+30
  %v1909 = vsel %vm385, %v1905, -1e+30
  %v1910 = vsel %vm386, %v1906, -1e+30
  %v1911 = vsel %vm391, %v1907, -inf
  %1912 = vmax.xlane.f32.xlu0 %v1911
  %v1913 = vpop.xlane.xlu0 %1912
  %v1914 = vsel %vm391, %v1908, -inf
  %1915 = vmax.xlane.f32.xlu0 %v1914
  %v1916 = vpop.xlane.xlu0 %1915
  %v1917 = vsel %vm391, %v1909, -inf
  %1918 = vmax.xlane.f32.xlu0 %v1917
  %v1919 = vpop.xlane.xlu0 %1918
  %v1920 = vsel %vm391, %v1910, -inf
  %1921 = vmax.xlane.f32.xlu0 %v1920
  %v1922 = vpop.xlane.xlu0 %1921
  %v1923 = vsub.f32 %v1907, %v1913
  %v1924 = vsub.f32 %v1908, %v1916
  %v1925 = vsub.f32 %v1909, %v1919
  %v1926 = vsub.f32 %v1910, %v1922
  %v1927 = vmul.f32 %v1923, 1.442695
  %v1928 = vpow.pop %v1927
  %v1929 = vmul.f32 %v1924, 1.442695
  %v1930 = vpow.pop %v1929
  %v1931 = vmul.f32 %v1925, 1.442695
  %v1932 = vpow.pop %v1931
  %v1933 = vmul.f32 %v1926, 1.442695
  %v1934 = vpow.pop %v1933
  %v1935 = vsel %vm391, %v1928, 0.0
  %1936 = vadd.xlane.f32.xlu0 %v1935
  %v1937 = vpop.xlane.xlu0 %1936
  %v1938 = vsel %vm391, %v1930, 0.0
  %1939 = vadd.xlane.f32.xlu0 %v1938
  %v1940 = vpop.xlane.xlu0 %1939
  %v1941 = vsel %vm391, %v1932, 0.0
  %1942 = vadd.xlane.f32.xlu0 %v1941
  %v1943 = vpop.xlane.xlu0 %1942
  %v1944 = vsel %vm391, %v1934, 0.0
  %1945 = vadd.xlane.f32.xlu0 %v1944
  %v1946 = vpop.xlane.xlu0 %1945
  %v1947 = vrcp.pop %v1937
  %v1948 = vrcp.pop %v1940
  %v1949 = vrcp.pop %v1943
  %v1950 = vrcp.pop %v1946
  %v1951 = vmul.f32 %v1928, %v1947
  %v1952 = vmul.f32 %v1930, %v1948
  %v1953 = vmul.f32 %v1932, %v1949
  %v1954 = vmul.f32 %v1934, %v1950
  %1955 = vrot.lane.b32.xlu0 %v170, 40
  %v1956 = vpop.permute.xlu0 %1955
  %1957 = vrot.lane.b32.xlu0 %v175, 40
  %v1958 = vpop.permute.xlu0 %1957
  %v1962 = vsel %vm391, %v1951, 0
  %v1965 = vsel %vm391, %v1952, 0
  %1967 = vmatprep.subr.mxu0 0.0
  %1968 = vmatpush1.msra.mxu0 %v1956
  %1969 = vmatprep.subr.mxu0 0.0
  %1970 = vmatpush1.msra.mxu0 %v1958
  %1971 = vmatprep.subr.mxu0 0.0
  %1972 = vmatpush1.msra.mxu0 0.0
  %1973 = vmatprep.subr.mxu0 0.0
  %1974 = vmatpush1.msra.mxu0 0.0
  %1975 = vmatprep.subr.mxu0 0.0
  %1976 = vmatpush1.msra.mxu0 0.0
  %1977 = vmatprep.subr.mxu0 0.0
  %1978 = vmatpush1.msra.mxu0 0.0
  %1979 = vmatprep.subr.mxu0 0.0
  %1980 = vmatpush1.msra.mxu0 0.0
  %1981 = vmatprep.subr.mxu0 0.0
  %1982 = vmatpush1.msra.mxu0 0.0
  %1983 = vmatprep.subr.mxu0 0.0
  %1984 = vmatpush1.msra.mxu0 0.0
  %1985 = vmatprep.subr.mxu0 0.0
  %1986 = vmatpush1.msra.mxu0 0.0
  %1987 = vmatprep.subr.mxu0 0.0
  %1988 = vmatpush1.msra.mxu0 0.0
  %1989 = vmatprep.subr.mxu0 0.0
  %1990 = vmatpush1.msra.mxu0 0.0
  %1991 = vmatprep.subr.mxu0 0.0
  %1992 = vmatpush1.msra.mxu0 0.0
  %1993 = vmatprep.subr.mxu0 0.0
  %1994 = vmatpush1.msra.mxu0 0.0
  %1995 = vmatprep.subr.mxu0 0.0
  %1996 = vmatpush1.msra.mxu0 0.0
  %1997 = vmatprep.subr.mxu0 0.0
  %1998 = vmatpush1.msra.mxu0 0.0
  %1999 = vmatprep.subr.mxu0 0.0
  %2000 = vmatpush1.msra.mxu0 0.0
  %2001 = vmatprep.subr.mxu0 0.0
  %2002 = vmatpush1.msra.mxu0 0.0
  %2003 = vmatprep.subr.mxu0 0.0
  %2004 = vmatpush1.msra.mxu0 0.0
  %2005 = vmatprep.subr.mxu0 0.0
  %2006 = vmatpush1.msra.mxu0 0.0
  %2007 = vmatprep.subr.mxu0 0.0
  %2008 = vmatpush1.msra.mxu0 0.0
  %2009 = vmatprep.subr.mxu0 0.0
  %2010 = vmatpush1.msra.mxu0 0.0
  %2011 = vmatprep.subr.mxu0 0.0
  %2012 = vmatpush1.msra.mxu0 0.0
  %2013 = vmatprep.subr.mxu0 0.0
  %2014 = vmatpush1.msra.mxu0 0.0
  %2015 = vmatprep.subr.mxu0 0.0
  %2016 = vmatpush1.msra.mxu0 0.0
  %2017 = vmatprep.subr.mxu0 0.0
  %2018 = vmatpush1.msra.mxu0 0.0
  %2019 = vmatprep.subr.mxu0 0.0
  %2020 = vmatpush1.msra.mxu0 0.0
  %2021 = vmatprep.subr.mxu0 0.0
  %2022 = vmatpush1.msra.mxu0 0.0
  %2023 = vmatprep.subr.mxu0 0.0
  %2024 = vmatpush1.msra.mxu0 0.0
  %2025 = vmatprep.subr.mxu0 0.0
  %2026 = vmatpush1.msra.mxu0 0.0
  %2027 = vmatprep.subr.mxu0 0.0
  %2028 = vmatpush1.msra.mxu0 0.0
  %2029 = vmatprep.subr.mxu0 0.0
  %2030 = vmatpush1.msra.mxu0 0.0
  %2031 = vmatprep.mubr.f32.mxu0 0.0
  %2032 = vmatmul.mubr.f32.gmra.mrb[0].mxu0 %v1962
  %v2033 = vpop.f32.mrb[0].mxu0
  %v2034 = vadd.f32 0.0, %v2033
  %v2035 = vpop.f32.mrb[0].mxu0
  %2036 = vmatprep.mubr.f32.mxu0 0.0
  %2037 = vmatmul.mubr.f32.gmra.mrb[0].mxu0 %v1965
  %v2038 = vpop.f32.mrb[0].mxu0
  %v2039 = vadd.f32 0.0, %v2038
  %v2040 = vpop.f32.mrb[0].mxu0
  %2041 = vdwg.mxu0
  %2042 = vrot.lane.b32.xlu0 %v180, 40
  %v2043 = vpop.permute.xlu0 %2042
  %2044 = vrot.lane.b32.xlu0 %v185, 40
  %v2045 = vpop.permute.xlu0 %2044
  %v2049 = vsel %vm391, %v1953, 0
  %v2052 = vsel %vm391, %v1954, 0
  %2054 = vmatprep.subr.mxu0 0.0
  %2055 = vmatpush1.msra.mxu0 %v2043
  %2056 = vmatprep.subr.mxu0 0.0
  %2057 = vmatpush1.msra.mxu0 %v2045
  %2058 = vmatprep.subr.mxu0 0.0
  %2059 = vmatpush1.msra.mxu0 0.0
  %2060 = vmatprep.subr.mxu0 0.0
  %2061 = vmatpush1.msra.mxu0 0.0
  %2062 = vmatprep.subr.mxu0 0.0
  %2063 = vmatpush1.msra.mxu0 0.0
  %2064 = vmatprep.subr.mxu0 0.0
  %2065 = vmatpush1.msra.mxu0 0.0
  %2066 = vmatprep.subr.mxu0 0.0
  %2067 = vmatpush1.msra.mxu0 0.0
  %2068 = vmatprep.subr.mxu0 0.0
  %2069 = vmatpush1.msra.mxu0 0.0
  %2070 = vmatprep.subr.mxu0 0.0
  %2071 = vmatpush1.msra.mxu0 0.0
  %2072 = vmatprep.subr.mxu0 0.0
  %2073 = vmatpush1.msra.mxu0 0.0
  %2074 = vmatprep.subr.mxu0 0.0
  %2075 = vmatpush1.msra.mxu0 0.0
  %2076 = vmatprep.subr.mxu0 0.0
  %2077 = vmatpush1.msra.mxu0 0.0
  %2078 = vmatprep.subr.mxu0 0.0
  %2079 = vmatpush1.msra.mxu0 0.0
  %2080 = vmatprep.subr.mxu0 0.0
  %2081 = vmatpush1.msra.mxu0 0.0
  %2082 = vmatprep.subr.mxu0 0.0
  %2083 = vmatpush1.msra.mxu0 0.0
  %2084 = vmatprep.subr.mxu0 0.0
  %2085 = vmatpush1.msra.mxu0 0.0
  %2086 = vmatprep.subr.mxu0 0.0
  %2087 = vmatpush1.msra.mxu0 0.0
  %2088 = vmatprep.subr.mxu0 0.0
  %2089 = vmatpush1.msra.mxu0 0.0
  %2090 = vmatprep.subr.mxu0 0.0
  %2091 = vmatpush1.msra.mxu0 0.0
  %2092 = vmatprep.subr.mxu0 0.0
  %2093 = vmatpush1.msra.mxu0 0.0
  %2094 = vmatprep.subr.mxu0 0.0
  %2095 = vmatpush1.msra.mxu0 0.0
  %2096 = vmatprep.subr.mxu0 0.0
  %2097 = vmatpush1.msra.mxu0 0.0
  %2098 = vmatprep.subr.mxu0 0.0
  %2099 = vmatpush1.msra.mxu0 0.0
  %2100 = vmatprep.subr.mxu0 0.0
  %2101 = vmatpush1.msra.mxu0 0.0
  %2102 = vmatprep.subr.mxu0 0.0
  %2103 = vmatpush1.msra.mxu0 0.0
  %2104 = vmatprep.subr.mxu0 0.0
  %2105 = vmatpush1.msra.mxu0 0.0
  %2106 = vmatprep.subr.mxu0 0.0
  %2107 = vmatpush1.msra.mxu0 0.0
  %2108 = vmatprep.subr.mxu0 0.0
  %2109 = vmatpush1.msra.mxu0 0.0
  %2110 = vmatprep.subr.mxu0 0.0
  %2111 = vmatpush1.msra.mxu0 0.0
  %2112 = vmatprep.subr.mxu0 0.0
  %2113 = vmatpush1.msra.mxu0 0.0
  %2114 = vmatprep.subr.mxu0 0.0
  %2115 = vmatpush1.msra.mxu0 0.0
  %2116 = vmatprep.subr.mxu0 0.0
  %2117 = vmatpush1.msra.mxu0 0.0
  %2118 = vmatprep.mubr.f32.mxu0 0.0
  %2119 = vmatmul.mubr.f32.gmra.mrb[0].mxu0 %v2049
  %v2120 = vpop.f32.mrb[0].mxu0
  %v2121 = vadd.f32 0.0, %v2120
  %v2122 = vpop.f32.mrb[0].mxu0
  %2123 = vmatprep.mubr.f32.mxu0 0.0
  %2124 = vmatmul.mubr.f32.gmra.mrb[0].mxu0 %v2052
  %v2125 = vpop.f32.mrb[0].mxu0
  %v2126 = vadd.f32 0.0, %v2125
  %v2127 = vpop.f32.mrb[0].mxu0
  %2128 = vdwg.mxu0
  %v2130 = vsel %vm206, %v2034, 0
  %v2133 = vsel %vm206, %v2039, 0
  %v2136 = vsel %vm206, %v2121, 0
  %v2139 = vsel %vm206, %v2126, 0
  %2141 = vmatprep.subr.mxu0 0.0
  %2142 = vmatpush1.msra.mxu0 %v191
  %2143 = vmatprep.subr.mxu0 0.0
  %2144 = vmatpush1.msra.mxu0 0.0
  %2145 = vmatprep.subr.mxu0 0.0
  %2146 = vmatpush1.msra.mxu0 0.0
  %2147 = vmatprep.subr.mxu0 0.0
  %2148 = vmatpush1.msra.mxu0 0.0
  %2149 = vmatprep.subr.mxu0 0.0
  %2150 = vmatpush1.msra.mxu0 0.0
  %2151 = vmatprep.subr.mxu0 0.0
  %2152 = vmatpush1.msra.mxu0 0.0
  %2153 = vmatprep.subr.mxu0 0.0
  %2154 = vmatpush1.msra.mxu0 0.0
  %2155 = vmatprep.subr.mxu0 0.0
  %2156 = vmatpush1.msra.mxu0 0.0
  %2157 = vmatprep.subr.mxu0 0.0
  %2158 = vmatpush1.msra.mxu0 0.0
  %2159 = vmatprep.subr.mxu0 0.0
  %2160 = vmatpush1.msra.mxu0 0.0
  %2161 = vmatprep.subr.mxu0 0.0
  %2162 = vmatpush1.msra.mxu0 0.0
  %2163 = vmatprep.subr.mxu0 0.0
  %2164 = vmatpush1.msra.mxu0 0.0
  %2165 = vmatprep.subr.mxu0 0.0
  %2166 = vmatpush1.msra.mxu0 0.0
  %2167 = vmatprep.subr.mxu0 0.0
  %2168 = vmatpush1.msra.mxu0 0.0
  %2169 = vmatprep.subr.mxu0 0.0
  %2170 = vmatpush1.msra.mxu0 0.0
  %2171 = vmatprep.subr.mxu0 0.0
  %2172 = vmatpush1.msra.mxu0 0.0
  %2173 = vmatprep.subr.mxu0 0.0
  %2174 = vmatpush1.msra.mxu0 0.0
  %2175 = vmatprep.subr.mxu0 0.0
  %2176 = vmatpush1.msra.mxu0 0.0
  %2177 = vmatprep.subr.mxu0 0.0
  %2178 = vmatpush1.msra.mxu0 0.0
  %2179 = vmatprep.subr.mxu0 0.0
  %2180 = vmatpush1.msra.mxu0 0.0
  %2181 = vmatprep.subr.mxu0 0.0
  %2182 = vmatpush1.msra.mxu0 0.0
  %2183 = vmatprep.subr.mxu0 0.0
  %2184 = vmatpush1.msra.mxu0 0.0
  %2185 = vmatprep.subr.mxu0 0.0
  %2186 = vmatpush1.msra.mxu0 0.0
  %2187 = vmatprep.subr.mxu0 0.0
  %2188 = vmatpush1.msra.mxu0 0.0
  %2189 = vmatprep.subr.mxu0 0.0
  %2190 = vmatpush1.msra.mxu0 0.0
  %2191 = vmatprep.subr.mxu0 0.0
  %2192 = vmatpush1.msra.mxu0 0.0
  %2193 = vmatprep.subr.mxu0 0.0
  %2194 = vmatpush1.msra.mxu0 0.0
  %2195 = vmatprep.subr.mxu0 0.0
  %2196 = vmatpush1.msra.mxu0 0.0
  %2197 = vmatprep.subr.mxu0 0.0
  %2198 = vmatpush1.msra.mxu0 0.0
  %2199 = vmatprep.subr.mxu0 0.0
  %2200 = vmatpush1.msra.mxu0 0.0
  %2201 = vmatprep.subr.mxu0 0.0
  %2202 = vmatpush1.msra.mxu0 0.0
  %2203 = vmatprep.subr.mxu0 0.0
  %2204 = vmatpush1.msra.mxu0 0.0
  %2205 = vmatprep.mubr.f32.mxu0 0.0
  %2206 = vmatmul.mubr.f32.gmra.mrb[0].mxu0 %v2130
  %v2207 = vpop.f32.mrb[0].mxu0
  %v2208 = vadd.f32 0.0, %v2207
  %v2209 = vpop.f32.mrb[0].mxu0
  %2210 = vmatprep.mubr.f32.mxu0 0.0
  %2211 = vmatmul.mubr.f32.gmra.mrb[0].mxu0 %v2133
  %v2212 = vpop.f32.mrb[0].mxu0
  %v2213 = vadd.f32 0.0, %v2212
  %v2214 = vpop.f32.mrb[0].mxu0
  %2215 = vmatprep.mubr.f32.mxu0 0.0
  %2216 = vmatmul.mubr.f32.gmra.mrb[0].mxu0 %v2136
  %v2217 = vpop.f32.mrb[0].mxu0
  %v2218 = vadd.f32 0.0, %v2217
  %v2219 = vpop.f32.mrb[0].mxu0
  %2220 = vmatprep.mubr.f32.mxu0 0.0
  %2221 = vmatmul.mubr.f32.gmra.mrb[0].mxu0 %v2139
  %v2222 = vpop.f32.mrb[0].mxu0
  %v2223 = vadd.f32 0.0, %v2222
  %v2224 = vpop.f32.mrb[0].mxu0
  %2225 = vdwg.mxu0
  %v2226 = vadd.f32 %v1717, %v2208
  %v2227 = vadd.f32 %v1718, %v2213
  %v2228 = vadd.f32 %v1719, %v2218
  %v2229 = vadd.f32 %v1720, %v2223
  %v2231 = vlaneseq
  %v2232 = vshrl.u32 %v2231, 7
  %v2233 = vsub.s32 0, %v2232
  %v2234 = vrot.slane %v192, %v2233
  %v2236 = vadd.f32 %v2226, %v2234
  %v2237 = vadd.f32 %v2227, %v2234
  %v2238 = vadd.f32 %v2228, %v2234
  %v2239 = vadd.f32 %v2229, %v2234
  %v2240 = vadd.f32 %v71, %v2236
  %v2241 = vadd.f32 %v72, %v2237
  %v2242 = vadd.f32 %v73, %v2238
  %v2243 = vadd.f32 %v74, %v2239
  %v2244 = vld [vmem:[%s12] sm:$0x1]
  %v2245 = vld [vmem:[%s13] sm:$0x1]
  %v2246 = vsel %vm90, %v2240, 0.0
  %2247 = vadd.xlane.f32.xlu0 %v2246
  %v2248 = vpop.xlane.xlu0 %2247
  %v2249 = vsel %vm90, %v2241, 0.0
  %2250 = vadd.xlane.f32.xlu0 %v2249
  %v2251 = vpop.xlane.xlu0 %2250
  %v2252 = vsel %vm90, %v2242, 0.0
  %2253 = vadd.xlane.f32.xlu0 %v2252
  %v2254 = vpop.xlane.xlu0 %2253
  %v2255 = vsel %vm90, %v2243, 0.0
  %2256 = vadd.xlane.f32.xlu0 %v2255
  %v2257 = vpop.xlane.xlu0 %2256
  %v2258 = vrcp.pop 32.0
  %v2259 = vmul.f32 %v2248, %v2258
  %v2260 = vmul.f32 %v2251, %v2258
  %v2261 = vmul.f32 %v2254, %v2258
  %v2262 = vmul.f32 %v2257, %v2258
  %v2263 = vsub.f32 %v2240, %v2259
  %v2264 = vsub.f32 %v2241, %v2260
  %v2265 = vsub.f32 %v2242, %v2261
  %v2266 = vsub.f32 %v2243, %v2262
  %v2267 = vmul.f32 %v2263, %v2263
  %v2268 = vmul.f32 %v2264, %v2264
  %v2269 = vmul.f32 %v2265, %v2265
  %v2270 = vmul.f32 %v2266, %v2266
  %v2271 = vsel %vm90, %v2267, 0.0
  %2272 = vadd.xlane.f32.xlu0 %v2271
  %v2273 = vpop.xlane.xlu0 %2272
  %v2274 = vsel %vm90, %v2268, 0.0
  %2275 = vadd.xlane.f32.xlu0 %v2274
  %v2276 = vpop.xlane.xlu0 %2275
  %v2277 = vsel %vm90, %v2269, 0.0
  %2278 = vadd.xlane.f32.xlu0 %v2277
  %v2279 = vpop.xlane.xlu0 %2278
  %v2280 = vsel %vm90, %v2270, 0.0
  %2281 = vadd.xlane.f32.xlu0 %v2280
  %v2282 = vpop.xlane.xlu0 %2281
  %v2283 = vmul.f32 %v2273, %v2258
  %v2284 = vmul.f32 %v2276, %v2258
  %v2285 = vmul.f32 %v2279, %v2258
  %v2286 = vmul.f32 %v2282, %v2258
  %v2287 = vadd.f32 %v2283, 1e-05
  %v2288 = vadd.f32 %v2284, 1e-05
  %v2289 = vadd.f32 %v2285, 1e-05
  %v2290 = vadd.f32 %v2286, 1e-05
  %v2291 = vrsqrt.pop %v2287
  %v2292 = vrsqrt.pop %v2288
  %v2293 = vrsqrt.pop %v2289
  %v2294 = vrsqrt.pop %v2290
  %v2295 = vmul.f32 %v2263, %v2291
  %v2296 = vmul.f32 %v2264, %v2292
  %v2297 = vmul.f32 %v2265, %v2293
  %v2298 = vmul.f32 %v2266, %v2294
  %v2300 = vlaneseq
  %v2301 = vshrl.u32 %v2300, 7
  %v2302 = vsub.s32 0, %v2301
  %v2303 = vrot.slane %v2244, %v2302
  %v2305 = vmul.f32 %v2295, %v2303
  %v2306 = vmul.f32 %v2296, %v2303
  %v2307 = vmul.f32 %v2297, %v2303
  %v2308 = vmul.f32 %v2298, %v2303
  %v2310 = vlaneseq
  %v2311 = vshrl.u32 %v2310, 7
  %v2312 = vsub.s32 0, %v2311
  %v2313 = vrot.slane %v2245, %v2312
  %v2315 = vadd.f32 %v2305, %v2313
  %v2316 = vadd.f32 %v2306, %v2313
  %v2317 = vadd.f32 %v2307, %v2313
  %v2318 = vadd.f32 %v2308, %v2313
  %v2319 = vld [vmem:[%s6] sm:$0xff]
  %v2320 = vld [vmem:[%s6 + $0x8] sm:$0xff]
  %v2321 = vld [vmem:[%s6 + $0x10] sm:$0xff]
  %v2322 = vld [vmem:[%s6 + $0x18] sm:$0xff]
  %v2323 = vld [vmem:[%s7] sm:$0x1]
  %v2325 = vlaneseq
  %v2326 = vshrl.u32 %v2325, 7
  %v2327 = vsub.s32 0, %v2326
  %v2328 = vrot.slane %v2323, %v2327
  %v2331 = vsel %vm90, %v2315, 0
  %v2334 = vsel %vm90, %v2316, 0
  %v2337 = vsel %vm90, %v2317, 0
  %v2340 = vsel %vm90, %v2318, 0
  %2342 = vmatprep.subr.mxu0 0.0
  %2343 = vmatpush1.msra.mxu0 %v2319
  %2344 = vmatprep.subr.mxu0 0.0
  %2345 = vmatpush1.msra.mxu0 %v2320
  %2346 = vmatprep.subr.mxu0 0.0
  %2347 = vmatpush1.msra.mxu0 %v2321
  %2348 = vmatprep.subr.mxu0 0.0
  %2349 = vmatpush1.msra.mxu0 %v2322
  %2350 = vmatprep.subr.mxu0 0.0
  %2351 = vmatpush1.msra.mxu0 0.0
  %2352 = vmatprep.subr.mxu0 0.0
  %2353 = vmatpush1.msra.mxu0 0.0
  %2354 = vmatprep.subr.mxu0 0.0
  %2355 = vmatpush1.msra.mxu0 0.0
  %2356 = vmatprep.subr.mxu0 0.0
  %2357 = vmatpush1.msra.mxu0 0.0
  %2358 = vmatprep.subr.mxu0 0.0
  %2359 = vmatpush1.msra.mxu0 0.0
  %2360 = vmatprep.subr.mxu0 0.0
  %2361 = vmatpush1.msra.mxu0 0.0
  %2362 = vmatprep.subr.mxu0 0.0
  %2363 = vmatpush1.msra.mxu0 0.0
  %2364 = vmatprep.subr.mxu0 0.0
  %2365 = vmatpush1.msra.mxu0 0.0
  %2366 = vmatprep.subr.mxu0 0.0
  %2367 = vmatpush1.msra.mxu0 0.0
  %2368 = vmatprep.subr.mxu0 0.0
  %2369 = vmatpush1.msra.mxu0 0.0
  %2370 = vmatprep.subr.mxu0 0.0
  %2371 = vmatpush1.msra.mxu0 0.0
  %2372 = vmatprep.subr.mxu0 0.0
  %2373 = vmatpush1.msra.mxu0 0.0
  %2374 = vmatprep.subr.mxu0 0.0
  %2375 = vmatpush1.msra.mxu0 0.0
  %2376 = vmatprep.subr.mxu0 0.0
  %2377 = vmatpush1.msra.mxu0 0.0
  %2378 = vmatprep.subr.mxu0 0.0
  %2379 = vmatpush1.msra.mxu0 0.0
  %2380 = vmatprep.subr.mxu0 0.0
  %2381 = vmatpush1.msra.mxu0 0.0
  %2382 = vmatprep.subr.mxu0 0.0
  %2383 = vmatpush1.msra.mxu0 0.0
  %2384 = vmatprep.subr.mxu0 0.0
  %2385 = vmatpush1.msra.mxu0 0.0
  %2386 = vmatprep.subr.mxu0 0.0
  %2387 = vmatpush1.msra.mxu0 0.0
  %2388 = vmatprep.subr.mxu0 0.0
  %2389 = vmatpush1.msra.mxu0 0.0
  %2390 = vmatprep.subr.mxu0 0.0
  %2391 = vmatpush1.msra.mxu0 0.0
  %2392 = vmatprep.subr.mxu0 0.0
  %2393 = vmatpush1.msra.mxu0 0.0
  %2394 = vmatprep.subr.mxu0 0.0
  %2395 = vmatpush1.msra.mxu0 0.0
  %2396 = vmatprep.subr.mxu0 0.0
  %2397 = vmatpush1.msra.mxu0 0.0
  %2398 = vmatprep.subr.mxu0 0.0
  %2399 = vmatpush1.msra.mxu0 0.0
  %2400 = vmatprep.subr.mxu0 0.0
  %2401 = vmatpush1.msra.mxu0 0.0
  %2402 = vmatprep.subr.mxu0 0.0
  %2403 = vmatpush1.msra.mxu0 0.0
  %2404 = vmatprep.subr.mxu0 0.0
  %2405 = vmatpush1.msra.mxu0 0.0
  %2406 = vmatprep.mubr.f32.mxu0 0.0
  %2407 = vmatmul.mubr.f32.gmra.mrb[0].mxu0 %v2331
  %v2408 = vpop.f32.mrb[0].mxu0
  %v2409 = vadd.f32 %v2328, %v2408
  %v2410 = vpop.f32.mrb[0].mxu0
  %2411 = vmatprep.mubr.f32.mxu0 0.0
  %2412 = vmatmul.mubr.f32.gmra.mrb[0].mxu0 %v2334
  %v2413 = vpop.f32.mrb[0].mxu0
  %v2414 = vadd.f32 %v2328, %v2413
  %v2415 = vpop.f32.mrb[0].mxu0
  %2416 = vmatprep.mubr.f32.mxu0 0.0
  %2417 = vmatmul.mubr.f32.gmra.mrb[0].mxu0 %v2337
  %v2418 = vpop.f32.mrb[0].mxu0
  %v2419 = vadd.f32 %v2328, %v2418
  %v2420 = vpop.f32.mrb[0].mxu0
  %2421 = vmatprep.mubr.f32.mxu0 0.0
  %2422 = vmatmul.mubr.f32.gmra.mrb[0].mxu0 %v2340
  %v2423 = vpop.f32.mrb[0].mxu0
  %v2424 = vadd.f32 %v2328, %v2423
  %v2425 = vpop.f32.mrb[0].mxu0
  %2426 = vdwg.mxu0
  %v2427 = vld [vmem:[%s8] sm:$0xff]
  %v2428 = vld [vmem:[%s8 + $0x8] sm:$0xff]
  %v2429 = vld [vmem:[%s8 + $0x10] sm:$0xff]
  %v2430 = vld [vmem:[%s8 + $0x18] sm:$0xff]
  %v2431 = vld [vmem:[%s9] sm:$0x1]
  %v2433 = vlaneseq
  %v2434 = vshrl.u32 %v2433, 7
  %v2435 = vsub.s32 0, %v2434
  %v2436 = vrot.slane %v2431, %v2435
  %v2439 = vsel %vm90, %v75, 0
  %v2442 = vsel %vm90, %v76, 0
  %v2445 = vsel %vm90, %v77, 0
  %v2448 = vsel %vm90, %v78, 0
  %2450 = vmatprep.subr.mxu0 0.0
  %2451 = vmatpush1.msra.mxu0 %v2427
  %2452 = vmatprep.subr.mxu0 0.0
  %2453 = vmatpush1.msra.mxu0 %v2428
  %2454 = vmatprep.subr.mxu0 0.0
  %2455 = vmatpush1.msra.mxu0 %v2429
  %2456 = vmatprep.subr.mxu0 0.0
  %2457 = vmatpush1.msra.mxu0 %v2430
  %2458 = vmatprep.subr.mxu0 0.0
  %2459 = vmatpush1.msra.mxu0 0.0
  %2460 = vmatprep.subr.mxu0 0.0
  %2461 = vmatpush1.msra.mxu0 0.0
  %2462 = vmatprep.subr.mxu0 0.0
  %2463 = vmatpush1.msra.mxu0 0.0
  %2464 = vmatprep.subr.mxu0 0.0
  %2465 = vmatpush1.msra.mxu0 0.0
  %2466 = vmatprep.subr.mxu0 0.0
  %2467 = vmatpush1.msra.mxu0 0.0
  %2468 = vmatprep.subr.mxu0 0.0
  %2469 = vmatpush1.msra.mxu0 0.0
  %2470 = vmatprep.subr.mxu0 0.0
  %2471 = vmatpush1.msra.mxu0 0.0
  %2472 = vmatprep.subr.mxu0 0.0
  %2473 = vmatpush1.msra.mxu0 0.0
  %2474 = vmatprep.subr.mxu0 0.0
  %2475 = vmatpush1.msra.mxu0 0.0
  %2476 = vmatprep.subr.mxu0 0.0
  %2477 = vmatpush1.msra.mxu0 0.0
  %2478 = vmatprep.subr.mxu0 0.0
  %2479 = vmatpush1.msra.mxu0 0.0
  %2480 = vmatprep.subr.mxu0 0.0
  %2481 = vmatpush1.msra.mxu0 0.0
  %2482 = vmatprep.subr.mxu0 0.0
  %2483 = vmatpush1.msra.mxu0 0.0
  %2484 = vmatprep.subr.mxu0 0.0
  %2485 = vmatpush1.msra.mxu0 0.0
  %2486 = vmatprep.subr.mxu0 0.0
  %2487 = vmatpush1.msra.mxu0 0.0
  %2488 = vmatprep.subr.mxu0 0.0
  %2489 = vmatpush1.msra.mxu0 0.0
  %2490 = vmatprep.subr.mxu0 0.0
  %2491 = vmatpush1.msra.mxu0 0.0
  %2492 = vmatprep.subr.mxu0 0.0
  %2493 = vmatpush1.msra.mxu0 0.0
  %2494 = vmatprep.subr.mxu0 0.0
  %2495 = vmatpush1.msra.mxu0 0.0
  %2496 = vmatprep.subr.mxu0 0.0
  %2497 = vmatpush1.msra.mxu0 0.0
  %2498 = vmatprep.subr.mxu0 0.0
  %2499 = vmatpush1.msra.mxu0 0.0
  %2500 = vmatprep.subr.mxu0 0.0
  %2501 = vmatpush1.msra.mxu0 0.0
  %2502 = vmatprep.subr.mxu0 0.0
  %2503 = vmatpush1.msra.mxu0 0.0
  %2504 = vmatprep.subr.mxu0 0.0
  %2505 = vmatpush1.msra.mxu0 0.0
  %2506 = vmatprep.subr.mxu0 0.0
  %2507 = vmatpush1.msra.mxu0 0.0
  %2508 = vmatprep.subr.mxu0 0.0
  %2509 = vmatpush1.msra.mxu0 0.0
  %2510 = vmatprep.subr.mxu0 0.0
  %2511 = vmatpush1.msra.mxu0 0.0
  %2512 = vmatprep.subr.mxu0 0.0
  %2513 = vmatpush1.msra.mxu0 0.0
  %2514 = vmatprep.mubr.f32.mxu0 0.0
  %2515 = vmatmul.mubr.f32.gmra.mrb[0].mxu0 %v2439
  %v2516 = vpop.f32.mrb[0].mxu0
  %v2517 = vadd.f32 %v2436, %v2516
  %v2518 = vpop.f32.mrb[0].mxu0
  %2519 = vmatprep.mubr.f32.mxu0 0.0
  %2520 = vmatmul.mubr.f32.gmra.mrb[0].mxu0 %v2442
  %v2521 = vpop.f32.mrb[0].mxu0
  %v2522 = vadd.f32 %v2436, %v2521
  %v2523 = vpop.f32.mrb[0].mxu0
  %2524 = vmatprep.mubr.f32.mxu0 0.0
  %2525 = vmatmul.mubr.f32.gmra.mrb[0].mxu0 %v2445
  %v2526 = vpop.f32.mrb[0].mxu0
  %v2527 = vadd.f32 %v2436, %v2526
  %v2528 = vpop.f32.mrb[0].mxu0
  %2529 = vmatprep.mubr.f32.mxu0 0.0
  %2530 = vmatmul.mubr.f32.gmra.mrb[0].mxu0 %v2448
  %v2531 = vpop.f32.mrb[0].mxu0
  %v2532 = vadd.f32 %v2436, %v2531
  %v2533 = vpop.f32.mrb[0].mxu0
  %2534 = vdwg.mxu0
  %v2535 = vld [vmem:[%s10] sm:$0xff]
  %v2536 = vld [vmem:[%s10 + $0x8] sm:$0xff]
  %v2537 = vld [vmem:[%s10 + $0x10] sm:$0xff]
  %v2538 = vld [vmem:[%s10 + $0x18] sm:$0xff]
  %v2539 = vld [vmem:[%s11] sm:$0x1]
  %v2541 = vsel %vm206, %v2409, 0
  %v2544 = vsel %vm206, %v2414, 0
  %v2547 = vsel %vm206, %v2517, 0
  %v2550 = vsel %vm206, %v2522, 0
  %2552 = vmatprep.subr.mxu0 0.0
  %2553 = vmatpush1.xpose.msra.mxu0 %v2547
  %2554 = vmatprep.subr.mxu0 0.0
  %2555 = vmatpush1.xpose.msra.mxu0 %v2550
  %2556 = vmatprep.subr.mxu0 0.0
  %2557 = vmatpush1.xpose.msra.mxu0 0.0
  %2558 = vmatprep.subr.mxu0 0.0
  %2559 = vmatpush1.xpose.msra.mxu0 0.0
  %2560 = vmatprep.subr.mxu0 0.0
  %2561 = vmatpush1.xpose.msra.mxu0 0.0
  %2562 = vmatprep.subr.mxu0 0.0
  %2563 = vmatpush1.xpose.msra.mxu0 0.0
  %2564 = vmatprep.subr.mxu0 0.0
  %2565 = vmatpush1.xpose.msra.mxu0 0.0
  %2566 = vmatprep.subr.mxu0 0.0
  %2567 = vmatpush1.xpose.msra.mxu0 0.0
  %2568 = vmatprep.subr.mxu0 0.0
  %2569 = vmatpush1.xpose.msra.mxu0 0.0
  %2570 = vmatprep.subr.mxu0 0.0
  %2571 = vmatpush1.xpose.msra.mxu0 0.0
  %2572 = vmatprep.subr.mxu0 0.0
  %2573 = vmatpush1.xpose.msra.mxu0 0.0
  %2574 = vmatprep.subr.mxu0 0.0
  %2575 = vmatpush1.xpose.msra.mxu0 0.0
  %2576 = vmatprep.subr.mxu0 0.0
  %2577 = vmatpush1.xpose.msra.mxu0 0.0
  %2578 = vmatprep.subr.mxu0 0.0
  %2579 = vmatpush1.xpose.msra.mxu0 0.0
  %2580 = vmatprep.subr.mxu0 0.0
  %2581 = vmatpush1.xpose.msra.mxu0 0.0
  %2582 = vmatprep.subr.mxu0 0.0
  %2583 = vmatpush1.xpose.msra.mxu0 0.0
  %2584 = vmatprep.subr.mxu0 0.0
  %2585 = vmatpush1.xpose.msra.mxu0 0.0
  %2586 = vmatprep.subr.mxu0 0.0
  %2587 = vmatpush1.xpose.msra.mxu0 0.0
  %2588 = vmatprep.subr.mxu0 0.0
  %2589 = vmatpush1.xpose.msra.mxu0 0.0
  %2590 = vmatprep.subr.mxu0 0.0
  %2591 = vmatpush1.xpose.msra.mxu0 0.0
  %2592 = vmatprep.subr.mxu0 0.0
  %2593 = vmatpush1.xpose.msra.mxu0 0.0
  %2594 = vmatprep.subr.mxu0 0.0
  %2595 = vmatpush1.xpose.msra.mxu0 0.0
  %2596 = vmatprep.subr.mxu0 0.0
  %2597 = vmatpush1.xpose.msra.mxu0 0.0
  %2598 = vmatprep.subr.mxu0 0.0
  %2599 = vmatpush1.xpose.msra.mxu0 0.0
  %2600 = vmatprep.subr.mxu0 0.0
  %2601 = vmatpush1.xpose.msra.mxu0 0.0
  %2602 = vmatprep.subr.mxu0 0.0
  %2603 = vmatpush1.xpose.msra.mxu0 0.0
  %2604 = vmatprep.subr.mxu0 0.0
  %2605 = vmatpush1.xpose.msra.mxu0 0.0
  %2606 = vmatprep.subr.mxu0 0.0
  %2607 = vmatpush1.xpose.msra.mxu0 0.0
  %2608 = vmatprep.subr.mxu0 0.0
  %2609 = vmatpush1.xpose.msra.mxu0 0.0
  %2610 = vmatprep.subr.mxu0 0.0
  %2611 = vmatpush1.xpose.msra.mxu0 0.0
  %2612 = vmatprep.subr.mxu0 0.0
  %2613 = vmatpush1.xpose.msra.mxu0 0.0
  %2614 = vmatprep.subr.mxu0 0.0
  %2615 = vmatpush1.xpose.msra.mxu0 0.0
  %2616 = vmatprep.mubr.f32.mxu0 0.0
  %2617 = vmatmul.mubr.f32.gmra.mrb[0].mxu0 %v2541
  %v2618 = vpop.f32.mrb[0].mxu0
  %v2619 = vadd.f32 0.0, %v2618
  %v2620 = vpop.f32.mrb[0].mxu0
  %2621 = vmatprep.mubr.f32.mxu0 0.0
  %2622 = vmatmul.mubr.f32.gmra.mrb[0].mxu0 %v2544
  %v2623 = vpop.f32.mrb[0].mxu0
  %v2624 = vadd.f32 0.0, %v2623
  %v2625 = vpop.f32.mrb[0].mxu0
  %2626 = vdwg.mxu0
  %v2628 = vsel %vm206, %v2419, 0
  %v2631 = vsel %vm206, %v2424, 0
  %v2634 = vsel %vm206, %v2527, 0
  %v2637 = vsel %vm206, %v2532, 0
  %2639 = vmatprep.subr.mxu0 0.0
  %2640 = vmatpush1.xpose.msra.mxu0 %v2634
  %2641 = vmatprep.subr.mxu0 0.0
  %2642 = vmatpush1.xpose.msra.mxu0 %v2637
  %2643 = vmatprep.subr.mxu0 0.0
  %2644 = vmatpush1.xpose.msra.mxu0 0.0
  %2645 = vmatprep.subr.mxu0 0.0
  %2646 = vmatpush1.xpose.msra.mxu0 0.0
  %2647 = vmatprep.subr.mxu0 0.0
  %2648 = vmatpush1.xpose.msra.mxu0 0.0
  %2649 = vmatprep.subr.mxu0 0.0
  %2650 = vmatpush1.xpose.msra.mxu0 0.0
  %2651 = vmatprep.subr.mxu0 0.0
  %2652 = vmatpush1.xpose.msra.mxu0 0.0
  %2653 = vmatprep.subr.mxu0 0.0
  %2654 = vmatpush1.xpose.msra.mxu0 0.0
  %2655 = vmatprep.subr.mxu0 0.0
  %2656 = vmatpush1.xpose.msra.mxu0 0.0
  %2657 = vmatprep.subr.mxu0 0.0
  %2658 = vmatpush1.xpose.msra.mxu0 0.0
  %2659 = vmatprep.subr.mxu0 0.0
  %2660 = vmatpush1.xpose.msra.mxu0 0.0
  %2661 = vmatprep.subr.mxu0 0.0
  %2662 = vmatpush1.xpose.msra.mxu0 0.0
  %2663 = vmatprep.subr.mxu0 0.0
  %2664 = vmatpush1.xpose.msra.mxu0 0.0
  %2665 = vmatprep.subr.mxu0 0.0
  %2666 = vmatpush1.xpose.msra.mxu0 0.0
  %2667 = vmatprep.subr.mxu0 0.0
  %2668 = vmatpush1.xpose.msra.mxu0 0.0
  %2669 = vmatprep.subr.mxu0 0.0
  %2670 = vmatpush1.xpose.msra.mxu0 0.0
  %2671 = vmatprep.subr.mxu0 0.0
  %2672 = vmatpush1.xpose.msra.mxu0 0.0
  %2673 = vmatprep.subr.mxu0 0.0
  %2674 = vmatpush1.xpose.msra.mxu0 0.0
  %2675 = vmatprep.subr.mxu0 0.0
  %2676 = vmatpush1.xpose.msra.mxu0 0.0
  %2677 = vmatprep.subr.mxu0 0.0
  %2678 = vmatpush1.xpose.msra.mxu0 0.0
  %2679 = vmatprep.subr.mxu0 0.0
  %2680 = vmatpush1.xpose.msra.mxu0 0.0
  %2681 = vmatprep.subr.mxu0 0.0
  %2682 = vmatpush1.xpose.msra.mxu0 0.0
  %2683 = vmatprep.subr.mxu0 0.0
  %2684 = vmatpush1.xpose.msra.mxu0 0.0
  %2685 = vmatprep.subr.mxu0 0.0
  %2686 = vmatpush1.xpose.msra.mxu0 0.0
  %2687 = vmatprep.subr.mxu0 0.0
  %2688 = vmatpush1.xpose.msra.mxu0 0.0
  %2689 = vmatprep.subr.mxu0 0.0
  %2690 = vmatpush1.xpose.msra.mxu0 0.0
  %2691 = vmatprep.subr.mxu0 0.0
  %2692 = vmatpush1.xpose.msra.mxu0 0.0
  %2693 = vmatprep.subr.mxu0 0.0
  %2694 = vmatpush1.xpose.msra.mxu0 0.0
  %2695 = vmatprep.subr.mxu0 0.0
  %2696 = vmatpush1.xpose.msra.mxu0 0.0
  %2697 = vmatprep.subr.mxu0 0.0
  %2698 = vmatpush1.xpose.msra.mxu0 0.0
  %2699 = vmatprep.subr.mxu0 0.0
  %2700 = vmatpush1.xpose.msra.mxu0 0.0
  %2701 = vmatprep.subr.mxu0 0.0
  %2702 = vmatpush1.xpose.msra.mxu0 0.0
  %2703 = vmatprep.mubr.f32.mxu0 0.0
  %2704 = vmatmul.mubr.f32.gmra.mrb[0].mxu0 %v2628
  %v2705 = vpop.f32.mrb[0].mxu0
  %v2706 = vadd.f32 0.0, %v2705
  %v2707 = vpop.f32.mrb[0].mxu0
  %2708 = vmatprep.mubr.f32.mxu0 0.0
  %2709 = vmatmul.mubr.f32.gmra.mrb[0].mxu0 %v2631
  %v2710 = vpop.f32.mrb[0].mxu0
  %v2711 = vadd.f32 0.0, %v2710
  %v2712 = vpop.f32.mrb[0].mxu0
  %2713 = vdwg.mxu0
  %v2714 = vmul.f32 %v2619, 0.35355338
  %v2715 = vmul.f32 %v2624, 0.35355338
  %v2716 = vmul.f32 %v2706, 0.35355338
  %v2717 = vmul.f32 %v2711, 0.35355338
  %v2718 = vsel %vm391, %v2714, -inf
  %2719 = vmax.xlane.f32.xlu0 %v2718
  %v2720 = vpop.xlane.xlu0 %2719
  %v2721 = vsel %vm391, %v2715, -inf
  %2722 = vmax.xlane.f32.xlu0 %v2721
  %v2723 = vpop.xlane.xlu0 %2722
  %v2724 = vsel %vm391, %v2716, -inf
  %2725 = vmax.xlane.f32.xlu0 %v2724
  %v2726 = vpop.xlane.xlu0 %2725
  %v2727 = vsel %vm391, %v2717, -inf
  %2728 = vmax.xlane.f32.xlu0 %v2727
  %v2729 = vpop.xlane.xlu0 %2728
  %v2730 = vsub.f32 %v2714, %v2720
  %v2731 = vsub.f32 %v2715, %v2723
  %v2732 = vsub.f32 %v2716, %v2726
  %v2733 = vsub.f32 %v2717, %v2729
  %v2734 = vmul.f32 %v2730, 1.442695
  %v2735 = vpow.pop %v2734
  %v2736 = vmul.f32 %v2731, 1.442695
  %v2737 = vpow.pop %v2736
  %v2738 = vmul.f32 %v2732, 1.442695
  %v2739 = vpow.pop %v2738
  %v2740 = vmul.f32 %v2733, 1.442695
  %v2741 = vpow.pop %v2740
  %v2742 = vsel %vm391, %v2735, 0.0
  %2743 = vadd.xlane.f32.xlu0 %v2742
  %v2744 = vpop.xlane.xlu0 %2743
  %v2745 = vsel %vm391, %v2737, 0.0
  %2746 = vadd.xlane.f32.xlu0 %v2745
  %v2747 = vpop.xlane.xlu0 %2746
  %v2748 = vsel %vm391, %v2739, 0.0
  %2749 = vadd.xlane.f32.xlu0 %v2748
  %v2750 = vpop.xlane.xlu0 %2749
  %v2751 = vsel %vm391, %v2741, 0.0
  %2752 = vadd.xlane.f32.xlu0 %v2751
  %v2753 = vpop.xlane.xlu0 %2752
  %v2754 = vrcp.pop %v2744
  %v2755 = vrcp.pop %v2747
  %v2756 = vrcp.pop %v2750
  %v2757 = vrcp.pop %v2753
  %v2758 = vmul.f32 %v2735, %v2754
  %v2759 = vmul.f32 %v2737, %v2755
  %v2760 = vmul.f32 %v2739, %v2756
  %v2761 = vmul.f32 %v2741, %v2757
  %2762 = vrot.lane.b32.xlu0 %v2517, 96
  %v2763 = vpop.permute.xlu0 %2762
  %2764 = vrot.lane.b32.xlu0 %v2522, 96
  %v2765 = vpop.permute.xlu0 %2764
  %v2769 = vsel %vm391, %v2758, 0
  %v2772 = vsel %vm391, %v2759, 0
  %2774 = vmatprep.subr.mxu0 0.0
  %2775 = vmatpush1.msra.mxu0 %v2763
  %2776 = vmatprep.subr.mxu0 0.0
  %2777 = vmatpush1.msra.mxu0 %v2765
  %2778 = vmatprep.subr.mxu0 0.0
  %2779 = vmatpush1.msra.mxu0 0.0
  %2780 = vmatprep.subr.mxu0 0.0
  %2781 = vmatpush1.msra.mxu0 0.0
  %2782 = vmatprep.subr.mxu0 0.0
  %2783 = vmatpush1.msra.mxu0 0.0
  %2784 = vmatprep.subr.mxu0 0.0
  %2785 = vmatpush1.msra.mxu0 0.0
  %2786 = vmatprep.subr.mxu0 0.0
  %2787 = vmatpush1.msra.mxu0 0.0
  %2788 = vmatprep.subr.mxu0 0.0
  %2789 = vmatpush1.msra.mxu0 0.0
  %2790 = vmatprep.subr.mxu0 0.0
  %2791 = vmatpush1.msra.mxu0 0.0
  %2792 = vmatprep.subr.mxu0 0.0
  %2793 = vmatpush1.msra.mxu0 0.0
  %2794 = vmatprep.subr.mxu0 0.0
  %2795 = vmatpush1.msra.mxu0 0.0
  %2796 = vmatprep.subr.mxu0 0.0
  %2797 = vmatpush1.msra.mxu0 0.0
  %2798 = vmatprep.subr.mxu0 0.0
  %2799 = vmatpush1.msra.mxu0 0.0
  %2800 = vmatprep.subr.mxu0 0.0
  %2801 = vmatpush1.msra.mxu0 0.0
  %2802 = vmatprep.subr.mxu0 0.0
  %2803 = vmatpush1.msra.mxu0 0.0
  %2804 = vmatprep.subr.mxu0 0.0
  %2805 = vmatpush1.msra.mxu0 0.0
  %2806 = vmatprep.subr.mxu0 0.0
  %2807 = vmatpush1.msra.mxu0 0.0
  %2808 = vmatprep.subr.mxu0 0.0
  %2809 = vmatpush1.msra.mxu0 0.0
  %2810 = vmatprep.subr.mxu0 0.0
  %2811 = vmatpush1.msra.mxu0 0.0
  %2812 = vmatprep.subr.mxu0 0.0
  %2813 = vmatpush1.msra.mxu0 0.0
  %2814 = vmatprep.subr.mxu0 0.0
  %2815 = vmatpush1.msra.mxu0 0.0
  %2816 = vmatprep.subr.mxu0 0.0
  %2817 = vmatpush1.msra.mxu0 0.0
  %2818 = vmatprep.subr.mxu0 0.0
  %2819 = vmatpush1.msra.mxu0 0.0
  %2820 = vmatprep.subr.mxu0 0.0
  %2821 = vmatpush1.msra.mxu0 0.0
  %2822 = vmatprep.subr.mxu0 0.0
  %2823 = vmatpush1.msra.mxu0 0.0
  %2824 = vmatprep.subr.mxu0 0.0
  %2825 = vmatpush1.msra.mxu0 0.0
  %2826 = vmatprep.subr.mxu0 0.0
  %2827 = vmatpush1.msra.mxu0 0.0
  %2828 = vmatprep.subr.mxu0 0.0
  %2829 = vmatpush1.msra.mxu0 0.0
  %2830 = vmatprep.subr.mxu0 0.0
  %2831 = vmatpush1.msra.mxu0 0.0
  %2832 = vmatprep.subr.mxu0 0.0
  %2833 = vmatpush1.msra.mxu0 0.0
  %2834 = vmatprep.subr.mxu0 0.0
  %2835 = vmatpush1.msra.mxu0 0.0
  %2836 = vmatprep.subr.mxu0 0.0
  %2837 = vmatpush1.msra.mxu0 0.0
  %2838 = vmatprep.mubr.f32.mxu0 0.0
  %2839 = vmatmul.mubr.f32.gmra.mrb[0].mxu0 %v2769
  %v2840 = vpop.f32.mrb[0].mxu0
  %v2841 = vadd.f32 0.0, %v2840
  %v2842 = vpop.f32.mrb[0].mxu0
  %2843 = vmatprep.mubr.f32.mxu0 0.0
  %2844 = vmatmul.mubr.f32.gmra.mrb[0].mxu0 %v2772
  %v2845 = vpop.f32.mrb[0].mxu0
  %v2846 = vadd.f32 0.0, %v2845
  %v2847 = vpop.f32.mrb[0].mxu0
  %2848 = vdwg.mxu0
  %2849 = vrot.lane.b32.xlu0 %v2527, 96
  %v2850 = vpop.permute.xlu0 %2849
  %2851 = vrot.lane.b32.xlu0 %v2532, 96
  %v2852 = vpop.permute.xlu0 %2851
  %v2856 = vsel %vm391, %v2760, 0
  %v2859 = vsel %vm391, %v2761, 0
  %2861 = vmatprep.subr.mxu0 0.0
  %2862 = vmatpush1.msra.mxu0 %v2850
  %2863 = vmatprep.subr.mxu0 0.0
  %2864 = vmatpush1.msra.mxu0 %v2852
  %2865 = vmatprep.subr.mxu0 0.0
  %2866 = vmatpush1.msra.mxu0 0.0
  %2867 = vmatprep.subr.mxu0 0.0
  %2868 = vmatpush1.msra.mxu0 0.0
  %2869 = vmatprep.subr.mxu0 0.0
  %2870 = vmatpush1.msra.mxu0 0.0
  %2871 = vmatprep.subr.mxu0 0.0
  %2872 = vmatpush1.msra.mxu0 0.0
  %2873 = vmatprep.subr.mxu0 0.0
  %2874 = vmatpush1.msra.mxu0 0.0
  %2875 = vmatprep.subr.mxu0 0.0
  %2876 = vmatpush1.msra.mxu0 0.0
  %2877 = vmatprep.subr.mxu0 0.0
  %2878 = vmatpush1.msra.mxu0 0.0
  %2879 = vmatprep.subr.mxu0 0.0
  %2880 = vmatpush1.msra.mxu0 0.0
  %2881 = vmatprep.subr.mxu0 0.0
  %2882 = vmatpush1.msra.mxu0 0.0
  %2883 = vmatprep.subr.mxu0 0.0
  %2884 = vmatpush1.msra.mxu0 0.0
  %2885 = vmatprep.subr.mxu0 0.0
  %2886 = vmatpush1.msra.mxu0 0.0
  %2887 = vmatprep.subr.mxu0 0.0
  %2888 = vmatpush1.msra.mxu0 0.0
  %2889 = vmatprep.subr.mxu0 0.0
  %2890 = vmatpush1.msra.mxu0 0.0
  %2891 = vmatprep.subr.mxu0 0.0
  %2892 = vmatpush1.msra.mxu0 0.0
  %2893 = vmatprep.subr.mxu0 0.0
  %2894 = vmatpush1.msra.mxu0 0.0
  %2895 = vmatprep.subr.mxu0 0.0
  %2896 = vmatpush1.msra.mxu0 0.0
  %2897 = vmatprep.subr.mxu0 0.0
  %2898 = vmatpush1.msra.mxu0 0.0
  %2899 = vmatprep.subr.mxu0 0.0
  %2900 = vmatpush1.msra.mxu0 0.0
  %2901 = vmatprep.subr.mxu0 0.0
  %2902 = vmatpush1.msra.mxu0 0.0
  %2903 = vmatprep.subr.mxu0 0.0
  %2904 = vmatpush1.msra.mxu0 0.0
  %2905 = vmatprep.subr.mxu0 0.0
  %2906 = vmatpush1.msra.mxu0 0.0
  %2907 = vmatprep.subr.mxu0 0.0
  %2908 = vmatpush1.msra.mxu0 0.0
  %2909 = vmatprep.subr.mxu0 0.0
  %2910 = vmatpush1.msra.mxu0 0.0
  %2911 = vmatprep.subr.mxu0 0.0
  %2912 = vmatpush1.msra.mxu0 0.0
  %2913 = vmatprep.subr.mxu0 0.0
  %2914 = vmatpush1.msra.mxu0 0.0
  %2915 = vmatprep.subr.mxu0 0.0
  %2916 = vmatpush1.msra.mxu0 0.0
  %2917 = vmatprep.subr.mxu0 0.0
  %2918 = vmatpush1.msra.mxu0 0.0
  %2919 = vmatprep.subr.mxu0 0.0
  %2920 = vmatpush1.msra.mxu0 0.0
  %2921 = vmatprep.subr.mxu0 0.0
  %2922 = vmatpush1.msra.mxu0 0.0
  %2923 = vmatprep.subr.mxu0 0.0
  %2924 = vmatpush1.msra.mxu0 0.0
  %2925 = vmatprep.mubr.f32.mxu0 0.0
  %2926 = vmatmul.mubr.f32.gmra.mrb[0].mxu0 %v2856
  %v2927 = vpop.f32.mrb[0].mxu0
  %v2928 = vadd.f32 0.0, %v2927
  %v2929 = vpop.f32.mrb[0].mxu0
  %2930 = vmatprep.mubr.f32.mxu0 0.0
  %2931 = vmatmul.mubr.f32.gmra.mrb[0].mxu0 %v2859
  %v2932 = vpop.f32.mrb[0].mxu0
  %v2933 = vadd.f32 0.0, %v2932
  %v2934 = vpop.f32.mrb[0].mxu0
  %2935 = vdwg.mxu0
  %2936 = vrot.lane.b32.xlu0 %v2409, 120
  %v2937 = vpop.permute.xlu0 %2936
  %2938 = vrot.lane.b32.xlu0 %v2414, 120
  %v2939 = vpop.permute.xlu0 %2938
  %2940 = vrot.lane.b32.xlu0 %v2517, 120
  %v2941 = vpop.permute.xlu0 %2940
  %2942 = vrot.lane.b32.xlu0 %v2522, 120
  %v2943 = vpop.permute.xlu0 %2942
  %v2944 = vsel %vm206, %v2937, 0
  %v2946 = vsel %vm206, %v2939, 0
  %v2948 = vsel %vm206, %v2941, 0
  %v2950 = vsel %vm206, %v2943, 0
  %2952 = vmatprep.subr.mxu0 0.0
  %2953 = vmatpush1.xpose.msra.mxu0 %v2948
  %2954 = vmatprep.subr.mxu0 0.0
  %2955 = vmatpush1.xpose.msra.mxu0 %v2950
  %2956 = vmatprep.subr.mxu0 0.0
  %2957 = vmatpush1.xpose.msra.mxu0 0.0
  %2958 = vmatprep.subr.mxu0 0.0
  %2959 = vmatpush1.xpose.msra.mxu0 0.0
  %2960 = vmatprep.subr.mxu0 0.0
  %2961 = vmatpush1.xpose.msra.mxu0 0.0
  %2962 = vmatprep.subr.mxu0 0.0
  %2963 = vmatpush1.xpose.msra.mxu0 0.0
  %2964 = vmatprep.subr.mxu0 0.0
  %2965 = vmatpush1.xpose.msra.mxu0 0.0
  %2966 = vmatprep.subr.mxu0 0.0
  %2967 = vmatpush1.xpose.msra.mxu0 0.0
  %2968 = vmatprep.subr.mxu0 0.0
  %2969 = vmatpush1.xpose.msra.mxu0 0.0
  %2970 = vmatprep.subr.mxu0 0.0
  %2971 = vmatpush1.xpose.msra.mxu0 0.0
  %2972 = vmatprep.subr.mxu0 0.0
  %2973 = vmatpush1.xpose.msra.mxu0 0.0
  %2974 = vmatprep.subr.mxu0 0.0
  %2975 = vmatpush1.xpose.msra.mxu0 0.0
  %2976 = vmatprep.subr.mxu0 0.0
  %2977 = vmatpush1.xpose.msra.mxu0 0.0
  %2978 = vmatprep.subr.mxu0 0.0
  %2979 = vmatpush1.xpose.msra.mxu0 0.0
  %2980 = vmatprep.subr.mxu0 0.0
  %2981 = vmatpush1.xpose.msra.mxu0 0.0
  %2982 = vmatprep.subr.mxu0 0.0
  %2983 = vmatpush1.xpose.msra.mxu0 0.0
  %2984 = vmatprep.subr.mxu0 0.0
  %2985 = vmatpush1.xpose.msra.mxu0 0.0
  %2986 = vmatprep.subr.mxu0 0.0
  %2987 = vmatpush1.xpose.msra.mxu0 0.0
  %2988 = vmatprep.subr.mxu0 0.0
  %2989 = vmatpush1.xpose.msra.mxu0 0.0
  %2990 = vmatprep.subr.mxu0 0.0
  %2991 = vmatpush1.xpose.msra.mxu0 0.0
  %2992 = vmatprep.subr.mxu0 0.0
  %2993 = vmatpush1.xpose.msra.mxu0 0.0
  %2994 = vmatprep.subr.mxu0 0.0
  %2995 = vmatpush1.xpose.msra.mxu0 0.0
  %2996 = vmatprep.subr.mxu0 0.0
  %2997 = vmatpush1.xpose.msra.mxu0 0.0
  %2998 = vmatprep.subr.mxu0 0.0
  %2999 = vmatpush1.xpose.msra.mxu0 0.0
  %3000 = vmatprep.subr.mxu0 0.0
  %3001 = vmatpush1.xpose.msra.mxu0 0.0
  %3002 = vmatprep.subr.mxu0 0.0
  %3003 = vmatpush1.xpose.msra.mxu0 0.0
  %3004 = vmatprep.subr.mxu0 0.0
  %3005 = vmatpush1.xpose.msra.mxu0 0.0
  %3006 = vmatprep.subr.mxu0 0.0
  %3007 = vmatpush1.xpose.msra.mxu0 0.0
  %3008 = vmatprep.subr.mxu0 0.0
  %3009 = vmatpush1.xpose.msra.mxu0 0.0
  %3010 = vmatprep.subr.mxu0 0.0
  %3011 = vmatpush1.xpose.msra.mxu0 0.0
  %3012 = vmatprep.subr.mxu0 0.0
  %3013 = vmatpush1.xpose.msra.mxu0 0.0
  %3014 = vmatprep.subr.mxu0 0.0
  %3015 = vmatpush1.xpose.msra.mxu0 0.0
  %3016 = vmatprep.mubr.f32.mxu0 0.0
  %3017 = vmatmul.mubr.f32.gmra.mrb[0].mxu0 %v2944
  %v3018 = vpop.f32.mrb[0].mxu0
  %v3019 = vadd.f32 0.0, %v3018
  %v3020 = vpop.f32.mrb[0].mxu0
  %3021 = vmatprep.mubr.f32.mxu0 0.0
  %3022 = vmatmul.mubr.f32.gmra.mrb[0].mxu0 %v2946
  %v3023 = vpop.f32.mrb[0].mxu0
  %v3024 = vadd.f32 0.0, %v3023
  %v3025 = vpop.f32.mrb[0].mxu0
  %3026 = vdwg.mxu0
  %3027 = vrot.lane.b32.xlu0 %v2419, 120
  %v3028 = vpop.permute.xlu0 %3027
  %3029 = vrot.lane.b32.xlu0 %v2424, 120
  %v3030 = vpop.permute.xlu0 %3029
  %3031 = vrot.lane.b32.xlu0 %v2527, 120
  %v3032 = vpop.permute.xlu0 %3031
  %3033 = vrot.lane.b32.xlu0 %v2532, 120
  %v3034 = vpop.permute.xlu0 %3033
  %v3035 = vsel %vm206, %v3028, 0
  %v3037 = vsel %vm206, %v3030, 0
  %v3039 = vsel %vm206, %v3032, 0
  %v3041 = vsel %vm206, %v3034, 0
  %3043 = vmatprep.subr.mxu0 0.0
  %3044 = vmatpush1.xpose.msra.mxu0 %v3039
  %3045 = vmatprep.subr.mxu0 0.0
  %3046 = vmatpush1.xpose.msra.mxu0 %v3041
  %3047 = vmatprep.subr.mxu0 0.0
  %3048 = vmatpush1.xpose.msra.mxu0 0.0
  %3049 = vmatprep.subr.mxu0 0.0
  %3050 = vmatpush1.xpose.msra.mxu0 0.0
  %3051 = vmatprep.subr.mxu0 0.0
  %3052 = vmatpush1.xpose.msra.mxu0 0.0
  %3053 = vmatprep.subr.mxu0 0.0
  %3054 = vmatpush1.xpose.msra.mxu0 0.0
  %3055 = vmatprep.subr.mxu0 0.0
  %3056 = vmatpush1.xpose.msra.mxu0 0.0
  %3057 = vmatprep.subr.mxu0 0.0
  %3058 = vmatpush1.xpose.msra.mxu0 0.0
  %3059 = vmatprep.subr.mxu0 0.0
  %3060 = vmatpush1.xpose.msra.mxu0 0.0
  %3061 = vmatprep.subr.mxu0 0.0
  %3062 = vmatpush1.xpose.msra.mxu0 0.0
  %3063 = vmatprep.subr.mxu0 0.0
  %3064 = vmatpush1.xpose.msra.mxu0 0.0
  %3065 = vmatprep.subr.mxu0 0.0
  %3066 = vmatpush1.xpose.msra.mxu0 0.0
  %3067 = vmatprep.subr.mxu0 0.0
  %3068 = vmatpush1.xpose.msra.mxu0 0.0
  %3069 = vmatprep.subr.mxu0 0.0
  %3070 = vmatpush1.xpose.msra.mxu0 0.0
  %3071 = vmatprep.subr.mxu0 0.0
  %3072 = vmatpush1.xpose.msra.mxu0 0.0
  %3073 = vmatprep.subr.mxu0 0.0
  %3074 = vmatpush1.xpose.msra.mxu0 0.0
  %3075 = vmatprep.subr.mxu0 0.0
  %3076 = vmatpush1.xpose.msra.mxu0 0.0
  %3077 = vmatprep.subr.mxu0 0.0
  %3078 = vmatpush1.xpose.msra.mxu0 0.0
  %3079 = vmatprep.subr.mxu0 0.0
  %3080 = vmatpush1.xpose.msra.mxu0 0.0
  %3081 = vmatprep.subr.mxu0 0.0
  %3082 = vmatpush1.xpose.msra.mxu0 0.0
  %3083 = vmatprep.subr.mxu0 0.0
  %3084 = vmatpush1.xpose.msra.mxu0 0.0
  %3085 = vmatprep.subr.mxu0 0.0
  %3086 = vmatpush1.xpose.msra.mxu0 0.0
  %3087 = vmatprep.subr.mxu0 0.0
  %3088 = vmatpush1.xpose.msra.mxu0 0.0
  %3089 = vmatprep.subr.mxu0 0.0
  %3090 = vmatpush1.xpose.msra.mxu0 0.0
  %3091 = vmatprep.subr.mxu0 0.0
  %3092 = vmatpush1.xpose.msra.mxu0 0.0
  %3093 = vmatprep.subr.mxu0 0.0
  %3094 = vmatpush1.xpose.msra.mxu0 0.0
  %3095 = vmatprep.subr.mxu0 0.0
  %3096 = vmatpush1.xpose.msra.mxu0 0.0
  %3097 = vmatprep.subr.mxu0 0.0
  %3098 = vmatpush1.xpose.msra.mxu0 0.0
  %3099 = vmatprep.subr.mxu0 0.0
  %3100 = vmatpush1.xpose.msra.mxu0 0.0
  %3101 = vmatprep.subr.mxu0 0.0
  %3102 = vmatpush1.xpose.msra.mxu0 0.0
  %3103 = vmatprep.subr.mxu0 0.0
  %3104 = vmatpush1.xpose.msra.mxu0 0.0
  %3105 = vmatprep.subr.mxu0 0.0
  %3106 = vmatpush1.xpose.msra.mxu0 0.0
  %3107 = vmatprep.mubr.f32.mxu0 0.0
  %3108 = vmatmul.mubr.f32.gmra.mrb[0].mxu0 %v3035
  %v3109 = vpop.f32.mrb[0].mxu0
  %v3110 = vadd.f32 0.0, %v3109
  %v3111 = vpop.f32.mrb[0].mxu0
  %3112 = vmatprep.mubr.f32.mxu0 0.0
  %3113 = vmatmul.mubr.f32.gmra.mrb[0].mxu0 %v3037
  %v3114 = vpop.f32.mrb[0].mxu0
  %v3115 = vadd.f32 0.0, %v3114
  %v3116 = vpop.f32.mrb[0].mxu0
  %3117 = vdwg.mxu0
  %v3118 = vmul.f32 %v3019, 0.35355338
  %v3119 = vmul.f32 %v3024, 0.35355338
  %v3120 = vmul.f32 %v3110, 0.35355338
  %v3121 = vmul.f32 %v3115, 0.35355338
  %v3122 = vsel %vm391, %v3118, -inf
  %3123 = vmax.xlane.f32.xlu0 %v3122
  %v3124 = vpop.xlane.xlu0 %3123
  %v3125 = vsel %vm391, %v3119, -inf
  %3126 = vmax.xlane.f32.xlu0 %v3125
  %v3127 = vpop.xlane.xlu0 %3126
  %v3128 = vsel %vm391, %v3120, -inf
  %3129 = vmax.xlane.f32.xlu0 %v3128
  %v3130 = vpop.xlane.xlu0 %3129
  %v3131 = vsel %vm391, %v3121, -inf
  %3132 = vmax.xlane.f32.xlu0 %v3131
  %v3133 = vpop.xlane.xlu0 %3132
  %v3134 = vsub.f32 %v3118, %v3124
  %v3135 = vsub.f32 %v3119, %v3127
  %v3136 = vsub.f32 %v3120, %v3130
  %v3137 = vsub.f32 %v3121, %v3133
  %v3138 = vmul.f32 %v3134, 1.442695
  %v3139 = vpow.pop %v3138
  %v3140 = vmul.f32 %v3135, 1.442695
  %v3141 = vpow.pop %v3140
  %v3142 = vmul.f32 %v3136, 1.442695
  %v3143 = vpow.pop %v3142
  %v3144 = vmul.f32 %v3137, 1.442695
  %v3145 = vpow.pop %v3144
  %v3146 = vsel %vm391, %v3139, 0.0
  %3147 = vadd.xlane.f32.xlu0 %v3146
  %v3148 = vpop.xlane.xlu0 %3147
  %v3149 = vsel %vm391, %v3141, 0.0
  %3150 = vadd.xlane.f32.xlu0 %v3149
  %v3151 = vpop.xlane.xlu0 %3150
  %v3152 = vsel %vm391, %v3143, 0.0
  %3153 = vadd.xlane.f32.xlu0 %v3152
  %v3154 = vpop.xlane.xlu0 %3153
  %v3155 = vsel %vm391, %v3145, 0.0
  %3156 = vadd.xlane.f32.xlu0 %v3155
  %v3157 = vpop.xlane.xlu0 %3156
  %v3158 = vrcp.pop %v3148
  %v3159 = vrcp.pop %v3151
  %v3160 = vrcp.pop %v3154
  %v3161 = vrcp.pop %v3157
  %v3162 = vmul.f32 %v3139, %v3158
  %v3163 = vmul.f32 %v3141, %v3159
  %v3164 = vmul.f32 %v3143, %v3160
  %v3165 = vmul.f32 %v3145, %v3161
  %3166 = vrot.lane.b32.xlu0 %v2517, 88
  %v3167 = vpop.permute.xlu0 %3166
  %3168 = vrot.lane.b32.xlu0 %v2522, 88
  %v3169 = vpop.permute.xlu0 %3168
  %v3173 = vsel %vm391, %v3162, 0
  %v3176 = vsel %vm391, %v3163, 0
  %3178 = vmatprep.subr.mxu0 0.0
  %3179 = vmatpush1.msra.mxu0 %v3167
  %3180 = vmatprep.subr.mxu0 0.0
  %3181 = vmatpush1.msra.mxu0 %v3169
  %3182 = vmatprep.subr.mxu0 0.0
  %3183 = vmatpush1.msra.mxu0 0.0
  %3184 = vmatprep.subr.mxu0 0.0
  %3185 = vmatpush1.msra.mxu0 0.0
  %3186 = vmatprep.subr.mxu0 0.0
  %3187 = vmatpush1.msra.mxu0 0.0
  %3188 = vmatprep.subr.mxu0 0.0
  %3189 = vmatpush1.msra.mxu0 0.0
  %3190 = vmatprep.subr.mxu0 0.0
  %3191 = vmatpush1.msra.mxu0 0.0
  %3192 = vmatprep.subr.mxu0 0.0
  %3193 = vmatpush1.msra.mxu0 0.0
  %3194 = vmatprep.subr.mxu0 0.0
  %3195 = vmatpush1.msra.mxu0 0.0
  %3196 = vmatprep.subr.mxu0 0.0
  %3197 = vmatpush1.msra.mxu0 0.0
  %3198 = vmatprep.subr.mxu0 0.0
  %3199 = vmatpush1.msra.mxu0 0.0
  %3200 = vmatprep.subr.mxu0 0.0
  %3201 = vmatpush1.msra.mxu0 0.0
  %3202 = vmatprep.subr.mxu0 0.0
  %3203 = vmatpush1.msra.mxu0 0.0
  %3204 = vmatprep.subr.mxu0 0.0
  %3205 = vmatpush1.msra.mxu0 0.0
  %3206 = vmatprep.subr.mxu0 0.0
  %3207 = vmatpush1.msra.mxu0 0.0
  %3208 = vmatprep.subr.mxu0 0.0
  %3209 = vmatpush1.msra.mxu0 0.0
  %3210 = vmatprep.subr.mxu0 0.0
  %3211 = vmatpush1.msra.mxu0 0.0
  %3212 = vmatprep.subr.mxu0 0.0
  %3213 = vmatpush1.msra.mxu0 0.0
  %3214 = vmatprep.subr.mxu0 0.0
  %3215 = vmatpush1.msra.mxu0 0.0
  %3216 = vmatprep.subr.mxu0 0.0
  %3217 = vmatpush1.msra.mxu0 0.0
  %3218 = vmatprep.subr.mxu0 0.0
  %3219 = vmatpush1.msra.mxu0 0.0
  %3220 = vmatprep.subr.mxu0 0.0
  %3221 = vmatpush1.msra.mxu0 0.0
  %3222 = vmatprep.subr.mxu0 0.0
  %3223 = vmatpush1.msra.mxu0 0.0
  %3224 = vmatprep.subr.mxu0 0.0
  %3225 = vmatpush1.msra.mxu0 0.0
  %3226 = vmatprep.subr.mxu0 0.0
  %3227 = vmatpush1.msra.mxu0 0.0
  %3228 = vmatprep.subr.mxu0 0.0
  %3229 = vmatpush1.msra.mxu0 0.0
  %3230 = vmatprep.subr.mxu0 0.0
  %3231 = vmatpush1.msra.mxu0 0.0
  %3232 = vmatprep.subr.mxu0 0.0
  %3233 = vmatpush1.msra.mxu0 0.0
  %3234 = vmatprep.subr.mxu0 0.0
  %3235 = vmatpush1.msra.mxu0 0.0
  %3236 = vmatprep.subr.mxu0 0.0
  %3237 = vmatpush1.msra.mxu0 0.0
  %3238 = vmatprep.subr.mxu0 0.0
  %3239 = vmatpush1.msra.mxu0 0.0
  %3240 = vmatprep.subr.mxu0 0.0
  %3241 = vmatpush1.msra.mxu0 0.0
  %3242 = vmatprep.mubr.f32.mxu0 0.0
  %3243 = vmatmul.mubr.f32.gmra.mrb[0].mxu0 %v3173
  %v3244 = vpop.f32.mrb[0].mxu0
  %v3245 = vadd.f32 0.0, %v3244
  %v3246 = vpop.f32.mrb[0].mxu0
  %3247 = vmatprep.mubr.f32.mxu0 0.0
  %3248 = vmatmul.mubr.f32.gmra.mrb[0].mxu0 %v3176
  %v3249 = vpop.f32.mrb[0].mxu0
  %v3250 = vadd.f32 0.0, %v3249
  %v3251 = vpop.f32.mrb[0].mxu0
  %3252 = vdwg.mxu0
  %3253 = vrot.lane.b32.xlu0 %v2527, 88
  %v3254 = vpop.permute.xlu0 %3253
  %3255 = vrot.lane.b32.xlu0 %v2532, 88
  %v3256 = vpop.permute.xlu0 %3255
  %v3260 = vsel %vm391, %v3164, 0
  %v3263 = vsel %vm391, %v3165, 0
  %3265 = vmatprep.subr.mxu0 0.0
  %3266 = vmatpush1.msra.mxu0 %v3254
  %3267 = vmatprep.subr.mxu0 0.0
  %3268 = vmatpush1.msra.mxu0 %v3256
  %3269 = vmatprep.subr.mxu0 0.0
  %3270 = vmatpush1.msra.mxu0 0.0
  %3271 = vmatprep.subr.mxu0 0.0
  %3272 = vmatpush1.msra.mxu0 0.0
  %3273 = vmatprep.subr.mxu0 0.0
  %3274 = vmatpush1.msra.mxu0 0.0
  %3275 = vmatprep.subr.mxu0 0.0
  %3276 = vmatpush1.msra.mxu0 0.0
  %3277 = vmatprep.subr.mxu0 0.0
  %3278 = vmatpush1.msra.mxu0 0.0
  %3279 = vmatprep.subr.mxu0 0.0
  %3280 = vmatpush1.msra.mxu0 0.0
  %3281 = vmatprep.subr.mxu0 0.0
  %3282 = vmatpush1.msra.mxu0 0.0
  %3283 = vmatprep.subr.mxu0 0.0
  %3284 = vmatpush1.msra.mxu0 0.0
  %3285 = vmatprep.subr.mxu0 0.0
  %3286 = vmatpush1.msra.mxu0 0.0
  %3287 = vmatprep.subr.mxu0 0.0
  %3288 = vmatpush1.msra.mxu0 0.0
  %3289 = vmatprep.subr.mxu0 0.0
  %3290 = vmatpush1.msra.mxu0 0.0
  %3291 = vmatprep.subr.mxu0 0.0
  %3292 = vmatpush1.msra.mxu0 0.0
  %3293 = vmatprep.subr.mxu0 0.0
  %3294 = vmatpush1.msra.mxu0 0.0
  %3295 = vmatprep.subr.mxu0 0.0
  %3296 = vmatpush1.msra.mxu0 0.0
  %3297 = vmatprep.subr.mxu0 0.0
  %3298 = vmatpush1.msra.mxu0 0.0
  %3299 = vmatprep.subr.mxu0 0.0
  %3300 = vmatpush1.msra.mxu0 0.0
  %3301 = vmatprep.subr.mxu0 0.0
  %3302 = vmatpush1.msra.mxu0 0.0
  %3303 = vmatprep.subr.mxu0 0.0
  %3304 = vmatpush1.msra.mxu0 0.0
  %3305 = vmatprep.subr.mxu0 0.0
  %3306 = vmatpush1.msra.mxu0 0.0
  %3307 = vmatprep.subr.mxu0 0.0
  %3308 = vmatpush1.msra.mxu0 0.0
  %3309 = vmatprep.subr.mxu0 0.0
  %3310 = vmatpush1.msra.mxu0 0.0
  %3311 = vmatprep.subr.mxu0 0.0
  %3312 = vmatpush1.msra.mxu0 0.0
  %3313 = vmatprep.subr.mxu0 0.0
  %3314 = vmatpush1.msra.mxu0 0.0
  %3315 = vmatprep.subr.mxu0 0.0
  %3316 = vmatpush1.msra.mxu0 0.0
  %3317 = vmatprep.subr.mxu0 0.0
  %3318 = vmatpush1.msra.mxu0 0.0
  %3319 = vmatprep.subr.mxu0 0.0
  %3320 = vmatpush1.msra.mxu0 0.0
  %3321 = vmatprep.subr.mxu0 0.0
  %3322 = vmatpush1.msra.mxu0 0.0
  %3323 = vmatprep.subr.mxu0 0.0
  %3324 = vmatpush1.msra.mxu0 0.0
  %3325 = vmatprep.subr.mxu0 0.0
  %3326 = vmatpush1.msra.mxu0 0.0
  %3327 = vmatprep.subr.mxu0 0.0
  %3328 = vmatpush1.msra.mxu0 0.0
  %3329 = vmatprep.mubr.f32.mxu0 0.0
  %3330 = vmatmul.mubr.f32.gmra.mrb[0].mxu0 %v3260
  %v3331 = vpop.f32.mrb[0].mxu0
  %v3332 = vadd.f32 0.0, %v3331
  %v3333 = vpop.f32.mrb[0].mxu0
  %3334 = vmatprep.mubr.f32.mxu0 0.0
  %3335 = vmatmul.mubr.f32.gmra.mrb[0].mxu0 %v3263
  %v3336 = vpop.f32.mrb[0].mxu0
  %v3337 = vadd.f32 0.0, %v3336
  %v3338 = vpop.f32.mrb[0].mxu0
  %3339 = vdwg.mxu0
  %v3341 = vsel %vm206, %v3245, 0
  %v3344 = vsel %vm206, %v3250, 0
  %v3347 = vsel %vm206, %v3332, 0
  %v3350 = vsel %vm206, %v3337, 0
  %3352 = vmatprep.subr.mxu0 0.0
  %3353 = vmatpush1.msra.mxu0 %v2536
  %3354 = vmatprep.subr.mxu0 0.0
  %3355 = vmatpush1.msra.mxu0 0.0
  %3356 = vmatprep.subr.mxu0 0.0
  %3357 = vmatpush1.msra.mxu0 0.0
  %3358 = vmatprep.subr.mxu0 0.0
  %3359 = vmatpush1.msra.mxu0 0.0
  %3360 = vmatprep.subr.mxu0 0.0
  %3361 = vmatpush1.msra.mxu0 0.0
  %3362 = vmatprep.subr.mxu0 0.0
  %3363 = vmatpush1.msra.mxu0 0.0
  %3364 = vmatprep.subr.mxu0 0.0
  %3365 = vmatpush1.msra.mxu0 0.0
  %3366 = vmatprep.subr.mxu0 0.0
  %3367 = vmatpush1.msra.mxu0 0.0
  %3368 = vmatprep.subr.mxu0 0.0
  %3369 = vmatpush1.msra.mxu0 0.0
  %3370 = vmatprep.subr.mxu0 0.0
  %3371 = vmatpush1.msra.mxu0 0.0
  %3372 = vmatprep.subr.mxu0 0.0
  %3373 = vmatpush1.msra.mxu0 0.0
  %3374 = vmatprep.subr.mxu0 0.0
  %3375 = vmatpush1.msra.mxu0 0.0
  %3376 = vmatprep.subr.mxu0 0.0
  %3377 = vmatpush1.msra.mxu0 0.0
  %3378 = vmatprep.subr.mxu0 0.0
  %3379 = vmatpush1.msra.mxu0 0.0
  %3380 = vmatprep.subr.mxu0 0.0
  %3381 = vmatpush1.msra.mxu0 0.0
  %3382 = vmatprep.subr.mxu0 0.0
  %3383 = vmatpush1.msra.mxu0 0.0
  %3384 = vmatprep.subr.mxu0 0.0
  %3385 = vmatpush1.msra.mxu0 0.0
  %3386 = vmatprep.subr.mxu0 0.0
  %3387 = vmatpush1.msra.mxu0 0.0
  %3388 = vmatprep.subr.mxu0 0.0
  %3389 = vmatpush1.msra.mxu0 0.0
  %3390 = vmatprep.subr.mxu0 0.0
  %3391 = vmatpush1.msra.mxu0 0.0
  %3392 = vmatprep.subr.mxu0 0.0
  %3393 = vmatpush1.msra.mxu0 0.0
  %3394 = vmatprep.subr.mxu0 0.0
  %3395 = vmatpush1.msra.mxu0 0.0
  %3396 = vmatprep.subr.mxu0 0.0
  %3397 = vmatpush1.msra.mxu0 0.0
  %3398 = vmatprep.subr.mxu0 0.0
  %3399 = vmatpush1.msra.mxu0 0.0
  %3400 = vmatprep.subr.mxu0 0.0
  %3401 = vmatpush1.msra.mxu0 0.0
  %3402 = vmatprep.subr.mxu0 0.0
  %3403 = vmatpush1.msra.mxu0 0.0
  %3404 = vmatprep.subr.mxu0 0.0
  %3405 = vmatpush1.msra.mxu0 0.0
  %3406 = vmatprep.subr.mxu0 0.0
  %3407 = vmatpush1.msra.mxu0 0.0
  %3408 = vmatprep.subr.mxu0 0.0
  %3409 = vmatpush1.msra.mxu0 0.0
  %3410 = vmatprep.subr.mxu0 0.0
  %3411 = vmatpush1.msra.mxu0 0.0
  %3412 = vmatprep.subr.mxu0 0.0
  %3413 = vmatpush1.msra.mxu0 0.0
  %3414 = vmatprep.subr.mxu0 0.0
  %3415 = vmatpush1.msra.mxu0 0.0
  %3416 = vmatprep.mubr.f32.mxu0 0.0
  %3417 = vmatmul.mubr.f32.gmra.mrb[0].mxu0 %v3341
  %v3418 = vpop.f32.mrb[0].mxu0
  %v3419 = vadd.f32 0.0, %v3418
  %v3420 = vpop.f32.mrb[0].mxu0
  %3421 = vmatprep.mubr.f32.mxu0 0.0
  %3422 = vmatmul.mubr.f32.gmra.mrb[0].mxu0 %v3344
  %v3423 = vpop.f32.mrb[0].mxu0
  %v3424 = vadd.f32 0.0, %v3423
  %v3425 = vpop.f32.mrb[0].mxu0
  %3426 = vmatprep.mubr.f32.mxu0 0.0
  %3427 = vmatmul.mubr.f32.gmra.mrb[0].mxu0 %v3347
  %v3428 = vpop.f32.mrb[0].mxu0
  %v3429 = vadd.f32 0.0, %v3428
  %v3430 = vpop.f32.mrb[0].mxu0
  %3431 = vmatprep.mubr.f32.mxu0 0.0
  %3432 = vmatmul.mubr.f32.gmra.mrb[0].mxu0 %v3350
  %v3433 = vpop.f32.mrb[0].mxu0
  %v3434 = vadd.f32 0.0, %v3433
  %v3435 = vpop.f32.mrb[0].mxu0
  %3436 = vdwg.mxu0
  %v3438 = vsel %vm206, %v2841, 0
  %v3441 = vsel %vm206, %v2846, 0
  %v3444 = vsel %vm206, %v2928, 0
  %v3447 = vsel %vm206, %v2933, 0
  %3449 = vmatprep.subr.mxu0 0.0
  %3450 = vmatpush1.msra.mxu0 %v2535
  %3451 = vmatprep.subr.mxu0 0.0
  %3452 = vmatpush1.msra.mxu0 0.0
  %3453 = vmatprep.subr.mxu0 0.0
  %3454 = vmatpush1.msra.mxu0 0.0
  %3455 = vmatprep.subr.mxu0 0.0
  %3456 = vmatpush1.msra.mxu0 0.0
  %3457 = vmatprep.subr.mxu0 0.0
  %3458 = vmatpush1.msra.mxu0 0.0
  %3459 = vmatprep.subr.mxu0 0.0
  %3460 = vmatpush1.msra.mxu0 0.0
  %3461 = vmatprep.subr.mxu0 0.0
  %3462 = vmatpush1.msra.mxu0 0.0
  %3463 = vmatprep.subr.mxu0 0.0
  %3464 = vmatpush1.msra.mxu0 0.0
  %3465 = vmatprep.subr.mxu0 0.0
  %3466 = vmatpush1.msra.mxu0 0.0
  %3467 = vmatprep.subr.mxu0 0.0
  %3468 = vmatpush1.msra.mxu0 0.0
  %3469 = vmatprep.subr.mxu0 0.0
  %3470 = vmatpush1.msra.mxu0 0.0
  %3471 = vmatprep.subr.mxu0 0.0
  %3472 = vmatpush1.msra.mxu0 0.0
  %3473 = vmatprep.subr.mxu0 0.0
  %3474 = vmatpush1.msra.mxu0 0.0
  %3475 = vmatprep.subr.mxu0 0.0
  %3476 = vmatpush1.msra.mxu0 0.0
  %3477 = vmatprep.subr.mxu0 0.0
  %3478 = vmatpush1.msra.mxu0 0.0
  %3479 = vmatprep.subr.mxu0 0.0
  %3480 = vmatpush1.msra.mxu0 0.0
  %3481 = vmatprep.subr.mxu0 0.0
  %3482 = vmatpush1.msra.mxu0 0.0
  %3483 = vmatprep.subr.mxu0 0.0
  %3484 = vmatpush1.msra.mxu0 0.0
  %3485 = vmatprep.subr.mxu0 0.0
  %3486 = vmatpush1.msra.mxu0 0.0
  %3487 = vmatprep.subr.mxu0 0.0
  %3488 = vmatpush1.msra.mxu0 0.0
  %3489 = vmatprep.subr.mxu0 0.0
  %3490 = vmatpush1.msra.mxu0 0.0
  %3491 = vmatprep.subr.mxu0 0.0
  %3492 = vmatpush1.msra.mxu0 0.0
  %3493 = vmatprep.subr.mxu0 0.0
  %3494 = vmatpush1.msra.mxu0 0.0
  %3495 = vmatprep.subr.mxu0 0.0
  %3496 = vmatpush1.msra.mxu0 0.0
  %3497 = vmatprep.subr.mxu0 0.0
  %3498 = vmatpush1.msra.mxu0 0.0
  %3499 = vmatprep.subr.mxu0 0.0
  %3500 = vmatpush1.msra.mxu0 0.0
  %3501 = vmatprep.subr.mxu0 0.0
  %3502 = vmatpush1.msra.mxu0 0.0
  %3503 = vmatprep.subr.mxu0 0.0
  %3504 = vmatpush1.msra.mxu0 0.0
  %3505 = vmatprep.subr.mxu0 0.0
  %3506 = vmatpush1.msra.mxu0 0.0
  %3507 = vmatprep.subr.mxu0 0.0
  %3508 = vmatpush1.msra.mxu0 0.0
  %3509 = vmatprep.subr.mxu0 0.0
  %3510 = vmatpush1.msra.mxu0 0.0
  %3511 = vmatprep.subr.mxu0 0.0
  %3512 = vmatpush1.msra.mxu0 0.0
  %3513 = vmatprep.mubr.f32.mxu0 0.0
  %3514 = vmatmul.mubr.f32.gmra.mrb[0].mxu0 %v3438
  %v3515 = vpop.f32.mrb[0].mxu0
  %v3516 = vadd.f32 %v3419, %v3515
  %v3517 = vpop.f32.mrb[0].mxu0
  %3518 = vmatprep.mubr.f32.mxu0 0.0
  %3519 = vmatmul.mubr.f32.gmra.mrb[0].mxu0 %v3441
  %v3520 = vpop.f32.mrb[0].mxu0
  %v3521 = vadd.f32 %v3424, %v3520
  %v3522 = vpop.f32.mrb[0].mxu0
  %3523 = vmatprep.mubr.f32.mxu0 0.0
  %3524 = vmatmul.mubr.f32.gmra.mrb[0].mxu0 %v3444
  %v3525 = vpop.f32.mrb[0].mxu0
  %v3526 = vadd.f32 %v3429, %v3525
  %v3527 = vpop.f32.mrb[0].mxu0
  %3528 = vmatprep.mubr.f32.mxu0 0.0
  %3529 = vmatmul.mubr.f32.gmra.mrb[0].mxu0 %v3447
  %v3530 = vpop.f32.mrb[0].mxu0
  %v3531 = vadd.f32 %v3434, %v3530
  %v3532 = vpop.f32.mrb[0].mxu0
  %3533 = vdwg.mxu0
  %3534 = vrot.lane.b32.xlu0 %v2409, 112
  %v3535 = vpop.permute.xlu0 %3534
  %3536 = vrot.lane.b32.xlu0 %v2414, 112
  %v3537 = vpop.permute.xlu0 %3536
  %3538 = vrot.lane.b32.xlu0 %v2517, 112
  %v3539 = vpop.permute.xlu0 %3538
  %3540 = vrot.lane.b32.xlu0 %v2522, 112
  %v3541 = vpop.permute.xlu0 %3540
  %v3542 = vsel %vm206, %v3535, 0
  %v3544 = vsel %vm206, %v3537, 0
  %v3546 = vsel %vm206, %v3539, 0
  %v3548 = vsel %vm206, %v3541, 0
  %3550 = vmatprep.subr.mxu0 0.0
  %3551 = vmatpush1.xpose.msra.mxu0 %v3546
  %3552 = vmatprep.subr.mxu0 0.0
  %3553 = vmatpush1.xpose.msra.mxu0 %v3548
  %3554 = vmatprep.subr.mxu0 0.0
  %3555 = vmatpush1.xpose.msra.mxu0 0.0
  %3556 = vmatprep.subr.mxu0 0.0
  %3557 = vmatpush1.xpose.msra.mxu0 0.0
  %3558 = vmatprep.subr.mxu0 0.0
  %3559 = vmatpush1.xpose.msra.mxu0 0.0
  %3560 = vmatprep.subr.mxu0 0.0
  %3561 = vmatpush1.xpose.msra.mxu0 0.0
  %3562 = vmatprep.subr.mxu0 0.0
  %3563 = vmatpush1.xpose.msra.mxu0 0.0
  %3564 = vmatprep.subr.mxu0 0.0
  %3565 = vmatpush1.xpose.msra.mxu0 0.0
  %3566 = vmatprep.subr.mxu0 0.0
  %3567 = vmatpush1.xpose.msra.mxu0 0.0
  %3568 = vmatprep.subr.mxu0 0.0
  %3569 = vmatpush1.xpose.msra.mxu0 0.0
  %3570 = vmatprep.subr.mxu0 0.0
  %3571 = vmatpush1.xpose.msra.mxu0 0.0
  %3572 = vmatprep.subr.mxu0 0.0
  %3573 = vmatpush1.xpose.msra.mxu0 0.0
  %3574 = vmatprep.subr.mxu0 0.0
  %3575 = vmatpush1.xpose.msra.mxu0 0.0
  %3576 = vmatprep.subr.mxu0 0.0
  %3577 = vmatpush1.xpose.msra.mxu0 0.0
  %3578 = vmatprep.subr.mxu0 0.0
  %3579 = vmatpush1.xpose.msra.mxu0 0.0
  %3580 = vmatprep.subr.mxu0 0.0
  %3581 = vmatpush1.xpose.msra.mxu0 0.0
  %3582 = vmatprep.subr.mxu0 0.0
  %3583 = vmatpush1.xpose.msra.mxu0 0.0
  %3584 = vmatprep.subr.mxu0 0.0
  %3585 = vmatpush1.xpose.msra.mxu0 0.0
  %3586 = vmatprep.subr.mxu0 0.0
  %3587 = vmatpush1.xpose.msra.mxu0 0.0
  %3588 = vmatprep.subr.mxu0 0.0
  %3589 = vmatpush1.xpose.msra.mxu0 0.0
  %3590 = vmatprep.subr.mxu0 0.0
  %3591 = vmatpush1.xpose.msra.mxu0 0.0
  %3592 = vmatprep.subr.mxu0 0.0
  %3593 = vmatpush1.xpose.msra.mxu0 0.0
  %3594 = vmatprep.subr.mxu0 0.0
  %3595 = vmatpush1.xpose.msra.mxu0 0.0
  %3596 = vmatprep.subr.mxu0 0.0
  %3597 = vmatpush1.xpose.msra.mxu0 0.0
  %3598 = vmatprep.subr.mxu0 0.0
  %3599 = vmatpush1.xpose.msra.mxu0 0.0
  %3600 = vmatprep.subr.mxu0 0.0
  %3601 = vmatpush1.xpose.msra.mxu0 0.0
  %3602 = vmatprep.subr.mxu0 0.0
  %3603 = vmatpush1.xpose.msra.mxu0 0.0
  %3604 = vmatprep.subr.mxu0 0.0
  %3605 = vmatpush1.xpose.msra.mxu0 0.0
  %3606 = vmatprep.subr.mxu0 0.0
  %3607 = vmatpush1.xpose.msra.mxu0 0.0
  %3608 = vmatprep.subr.mxu0 0.0
  %3609 = vmatpush1.xpose.msra.mxu0 0.0
  %3610 = vmatprep.subr.mxu0 0.0
  %3611 = vmatpush1.xpose.msra.mxu0 0.0
  %3612 = vmatprep.subr.mxu0 0.0
  %3613 = vmatpush1.xpose.msra.mxu0 0.0
  %3614 = vmatprep.mubr.f32.mxu0 0.0
  %3615 = vmatmul.mubr.f32.gmra.mrb[0].mxu0 %v3542
  %v3616 = vpop.f32.mrb[0].mxu0
  %v3617 = vadd.f32 0.0, %v3616
  %v3618 = vpop.f32.mrb[0].mxu0
  %3619 = vmatprep.mubr.f32.mxu0 0.0
  %3620 = vmatmul.mubr.f32.gmra.mrb[0].mxu0 %v3544
  %v3621 = vpop.f32.mrb[0].mxu0
  %v3622 = vadd.f32 0.0, %v3621
  %v3623 = vpop.f32.mrb[0].mxu0
  %3624 = vdwg.mxu0
  %3625 = vrot.lane.b32.xlu0 %v2419, 112
  %v3626 = vpop.permute.xlu0 %3625
  %3627 = vrot.lane.b32.xlu0 %v2424, 112
  %v3628 = vpop.permute.xlu0 %3627
  %3629 = vrot.lane.b32.xlu0 %v2527, 112
  %v3630 = vpop.permute.xlu0 %3629
  %3631 = vrot.lane.b32.xlu0 %v2532, 112
  %v3632 = vpop.permute.xlu0 %3631
  %v3633 = vsel %vm206, %v3626, 0
  %v3635 = vsel %vm206, %v3628, 0
  %v3637 = vsel %vm206, %v3630, 0
  %v3639 = vsel %vm206, %v3632, 0
  %3641 = vmatprep.subr.mxu0 0.0
  %3642 = vmatpush1.xpose.msra.mxu0 %v3637
  %3643 = vmatprep.subr.mxu0 0.0
  %3644 = vmatpush1.xpose.msra.mxu0 %v3639
  %3645 = vmatprep.subr.mxu0 0.0
  %3646 = vmatpush1.xpose.msra.mxu0 0.0
  %3647 = vmatprep.subr.mxu0 0.0
  %3648 = vmatpush1.xpose.msra.mxu0 0.0
  %3649 = vmatprep.subr.mxu0 0.0
  %3650 = vmatpush1.xpose.msra.mxu0 0.0
  %3651 = vmatprep.subr.mxu0 0.0
  %3652 = vmatpush1.xpose.msra.mxu0 0.0
  %3653 = vmatprep.subr.mxu0 0.0
  %3654 = vmatpush1.xpose.msra.mxu0 0.0
  %3655 = vmatprep.subr.mxu0 0.0
  %3656 = vmatpush1.xpose.msra.mxu0 0.0
  %3657 = vmatprep.subr.mxu0 0.0
  %3658 = vmatpush1.xpose.msra.mxu0 0.0
  %3659 = vmatprep.subr.mxu0 0.0
  %3660 = vmatpush1.xpose.msra.mxu0 0.0
  %3661 = vmatprep.subr.mxu0 0.0
  %3662 = vmatpush1.xpose.msra.mxu0 0.0
  %3663 = vmatprep.subr.mxu0 0.0
  %3664 = vmatpush1.xpose.msra.mxu0 0.0
  %3665 = vmatprep.subr.mxu0 0.0
  %3666 = vmatpush1.xpose.msra.mxu0 0.0
  %3667 = vmatprep.subr.mxu0 0.0
  %3668 = vmatpush1.xpose.msra.mxu0 0.0
  %3669 = vmatprep.subr.mxu0 0.0
  %3670 = vmatpush1.xpose.msra.mxu0 0.0
  %3671 = vmatprep.subr.mxu0 0.0
  %3672 = vmatpush1.xpose.msra.mxu0 0.0
  %3673 = vmatprep.subr.mxu0 0.0
  %3674 = vmatpush1.xpose.msra.mxu0 0.0
  %3675 = vmatprep.subr.mxu0 0.0
  %3676 = vmatpush1.xpose.msra.mxu0 0.0
  %3677 = vmatprep.subr.mxu0 0.0
  %3678 = vmatpush1.xpose.msra.mxu0 0.0
  %3679 = vmatprep.subr.mxu0 0.0
  %3680 = vmatpush1.xpose.msra.mxu0 0.0
  %3681 = vmatprep.subr.mxu0 0.0
  %3682 = vmatpush1.xpose.msra.mxu0 0.0
  %3683 = vmatprep.subr.mxu0 0.0
  %3684 = vmatpush1.xpose.msra.mxu0 0.0
  %3685 = vmatprep.subr.mxu0 0.0
  %3686 = vmatpush1.xpose.msra.mxu0 0.0
  %3687 = vmatprep.subr.mxu0 0.0
  %3688 = vmatpush1.xpose.msra.mxu0 0.0
  %3689 = vmatprep.subr.mxu0 0.0
  %3690 = vmatpush1.xpose.msra.mxu0 0.0
  %3691 = vmatprep.subr.mxu0 0.0
  %3692 = vmatpush1.xpose.msra.mxu0 0.0
  %3693 = vmatprep.subr.mxu0 0.0
  %3694 = vmatpush1.xpose.msra.mxu0 0.0
  %3695 = vmatprep.subr.mxu0 0.0
  %3696 = vmatpush1.xpose.msra.mxu0 0.0
  %3697 = vmatprep.subr.mxu0 0.0
  %3698 = vmatpush1.xpose.msra.mxu0 0.0
  %3699 = vmatprep.subr.mxu0 0.0
  %3700 = vmatpush1.xpose.msra.mxu0 0.0
  %3701 = vmatprep.subr.mxu0 0.0
  %3702 = vmatpush1.xpose.msra.mxu0 0.0
  %3703 = vmatprep.subr.mxu0 0.0
  %3704 = vmatpush1.xpose.msra.mxu0 0.0
  %3705 = vmatprep.mubr.f32.mxu0 0.0
  %3706 = vmatmul.mubr.f32.gmra.mrb[0].mxu0 %v3633
  %v3707 = vpop.f32.mrb[0].mxu0
  %v3708 = vadd.f32 0.0, %v3707
  %v3709 = vpop.f32.mrb[0].mxu0
  %3710 = vmatprep.mubr.f32.mxu0 0.0
  %3711 = vmatmul.mubr.f32.gmra.mrb[0].mxu0 %v3635
  %v3712 = vpop.f32.mrb[0].mxu0
  %v3713 = vadd.f32 0.0, %v3712
  %v3714 = vpop.f32.mrb[0].mxu0
  %3715 = vdwg.mxu0
  %v3716 = vmul.f32 %v3617, 0.35355338
  %v3717 = vmul.f32 %v3622, 0.35355338
  %v3718 = vmul.f32 %v3708, 0.35355338
  %v3719 = vmul.f32 %v3713, 0.35355338
  %v3720 = vsel %vm391, %v3716, -inf
  %3721 = vmax.xlane.f32.xlu0 %v3720
  %v3722 = vpop.xlane.xlu0 %3721
  %v3723 = vsel %vm391, %v3717, -inf
  %3724 = vmax.xlane.f32.xlu0 %v3723
  %v3725 = vpop.xlane.xlu0 %3724
  %v3726 = vsel %vm391, %v3718, -inf
  %3727 = vmax.xlane.f32.xlu0 %v3726
  %v3728 = vpop.xlane.xlu0 %3727
  %v3729 = vsel %vm391, %v3719, -inf
  %3730 = vmax.xlane.f32.xlu0 %v3729
  %v3731 = vpop.xlane.xlu0 %3730
  %v3732 = vsub.f32 %v3716, %v3722
  %v3733 = vsub.f32 %v3717, %v3725
  %v3734 = vsub.f32 %v3718, %v3728
  %v3735 = vsub.f32 %v3719, %v3731
  %v3736 = vmul.f32 %v3732, 1.442695
  %v3737 = vpow.pop %v3736
  %v3738 = vmul.f32 %v3733, 1.442695
  %v3739 = vpow.pop %v3738
  %v3740 = vmul.f32 %v3734, 1.442695
  %v3741 = vpow.pop %v3740
  %v3742 = vmul.f32 %v3735, 1.442695
  %v3743 = vpow.pop %v3742
  %v3744 = vsel %vm391, %v3737, 0.0
  %3745 = vadd.xlane.f32.xlu0 %v3744
  %v3746 = vpop.xlane.xlu0 %3745
  %v3747 = vsel %vm391, %v3739, 0.0
  %3748 = vadd.xlane.f32.xlu0 %v3747
  %v3749 = vpop.xlane.xlu0 %3748
  %v3750 = vsel %vm391, %v3741, 0.0
  %3751 = vadd.xlane.f32.xlu0 %v3750
  %v3752 = vpop.xlane.xlu0 %3751
  %v3753 = vsel %vm391, %v3743, 0.0
  %3754 = vadd.xlane.f32.xlu0 %v3753
  %v3755 = vpop.xlane.xlu0 %3754
  %v3756 = vrcp.pop %v3746
  %v3757 = vrcp.pop %v3749
  %v3758 = vrcp.pop %v3752
  %v3759 = vrcp.pop %v3755
  %v3760 = vmul.f32 %v3737, %v3756
  %v3761 = vmul.f32 %v3739, %v3757
  %v3762 = vmul.f32 %v3741, %v3758
  %v3763 = vmul.f32 %v3743, %v3759
  %3764 = vrot.lane.b32.xlu0 %v2517, 80
  %v3765 = vpop.permute.xlu0 %3764
  %3766 = vrot.lane.b32.xlu0 %v2522, 80
  %v3767 = vpop.permute.xlu0 %3766
  %v3771 = vsel %vm391, %v3760, 0
  %v3774 = vsel %vm391, %v3761, 0
  %3776 = vmatprep.subr.mxu0 0.0
  %3777 = vmatpush1.msra.mxu0 %v3765
  %3778 = vmatprep.subr.mxu0 0.0
  %3779 = vmatpush1.msra.mxu0 %v3767
  %3780 = vmatprep.subr.mxu0 0.0
  %3781 = vmatpush1.msra.mxu0 0.0
  %3782 = vmatprep.subr.mxu0 0.0
  %3783 = vmatpush1.msra.mxu0 0.0
  %3784 = vmatprep.subr.mxu0 0.0
  %3785 = vmatpush1.msra.mxu0 0.0
  %3786 = vmatprep.subr.mxu0 0.0
  %3787 = vmatpush1.msra.mxu0 0.0
  %3788 = vmatprep.subr.mxu0 0.0
  %3789 = vmatpush1.msra.mxu0 0.0
  %3790 = vmatprep.subr.mxu0 0.0
  %3791 = vmatpush1.msra.mxu0 0.0
  %3792 = vmatprep.subr.mxu0 0.0
  %3793 = vmatpush1.msra.mxu0 0.0
  %3794 = vmatprep.subr.mxu0 0.0
  %3795 = vmatpush1.msra.mxu0 0.0
  %3796 = vmatprep.subr.mxu0 0.0
  %3797 = vmatpush1.msra.mxu0 0.0
  %3798 = vmatprep.subr.mxu0 0.0
  %3799 = vmatpush1.msra.mxu0 0.0
  %3800 = vmatprep.subr.mxu0 0.0
  %3801 = vmatpush1.msra.mxu0 0.0
  %3802 = vmatprep.subr.mxu0 0.0
  %3803 = vmatpush1.msra.mxu0 0.0
  %3804 = vmatprep.subr.mxu0 0.0
  %3805 = vmatpush1.msra.mxu0 0.0
  %3806 = vmatprep.subr.mxu0 0.0
  %3807 = vmatpush1.msra.mxu0 0.0
  %3808 = vmatprep.subr.mxu0 0.0
  %3809 = vmatpush1.msra.mxu0 0.0
  %3810 = vmatprep.subr.mxu0 0.0
  %3811 = vmatpush1.msra.mxu0 0.0
  %3812 = vmatprep.subr.mxu0 0.0
  %3813 = vmatpush1.msra.mxu0 0.0
  %3814 = vmatprep.subr.mxu0 0.0
  %3815 = vmatpush1.msra.mxu0 0.0
  %3816 = vmatprep.subr.mxu0 0.0
  %3817 = vmatpush1.msra.mxu0 0.0
  %3818 = vmatprep.subr.mxu0 0.0
  %3819 = vmatpush1.msra.mxu0 0.0
  %3820 = vmatprep.subr.mxu0 0.0
  %3821 = vmatpush1.msra.mxu0 0.0
  %3822 = vmatprep.subr.mxu0 0.0
  %3823 = vmatpush1.msra.mxu0 0.0
  %3824 = vmatprep.subr.mxu0 0.0
  %3825 = vmatpush1.msra.mxu0 0.0
  %3826 = vmatprep.subr.mxu0 0.0
  %3827 = vmatpush1.msra.mxu0 0.0
  %3828 = vmatprep.subr.mxu0 0.0
  %3829 = vmatpush1.msra.mxu0 0.0
  %3830 = vmatprep.subr.mxu0 0.0
  %3831 = vmatpush1.msra.mxu0 0.0
  %3832 = vmatprep.subr.mxu0 0.0
  %3833 = vmatpush1.msra.mxu0 0.0
  %3834 = vmatprep.subr.mxu0 0.0
  %3835 = vmatpush1.msra.mxu0 0.0
  %3836 = vmatprep.subr.mxu0 0.0
  %3837 = vmatpush1.msra.mxu0 0.0
  %3838 = vmatprep.subr.mxu0 0.0
  %3839 = vmatpush1.msra.mxu0 0.0
  %3840 = vmatprep.mubr.f32.mxu0 0.0
  %3841 = vmatmul.mubr.f32.gmra.mrb[0].mxu0 %v3771
  %v3842 = vpop.f32.mrb[0].mxu0
  %v3843 = vadd.f32 0.0, %v3842
  %v3844 = vpop.f32.mrb[0].mxu0
  %3845 = vmatprep.mubr.f32.mxu0 0.0
  %3846 = vmatmul.mubr.f32.gmra.mrb[0].mxu0 %v3774
  %v3847 = vpop.f32.mrb[0].mxu0
  %v3848 = vadd.f32 0.0, %v3847
  %v3849 = vpop.f32.mrb[0].mxu0
  %3850 = vdwg.mxu0
  %3851 = vrot.lane.b32.xlu0 %v2527, 80
  %v3852 = vpop.permute.xlu0 %3851
  %3853 = vrot.lane.b32.xlu0 %v2532, 80
  %v3854 = vpop.permute.xlu0 %3853
  %v3858 = vsel %vm391, %v3762, 0
  %v3861 = vsel %vm391, %v3763, 0
  %3863 = vmatprep.subr.mxu0 0.0
  %3864 = vmatpush1.msra.mxu0 %v3852
  %3865 = vmatprep.subr.mxu0 0.0
  %3866 = vmatpush1.msra.mxu0 %v3854
  %3867 = vmatprep.subr.mxu0 0.0
  %3868 = vmatpush1.msra.mxu0 0.0
  %3869 = vmatprep.subr.mxu0 0.0
  %3870 = vmatpush1.msra.mxu0 0.0
  %3871 = vmatprep.subr.mxu0 0.0
  %3872 = vmatpush1.msra.mxu0 0.0
  %3873 = vmatprep.subr.mxu0 0.0
  %3874 = vmatpush1.msra.mxu0 0.0
  %3875 = vmatprep.subr.mxu0 0.0
  %3876 = vmatpush1.msra.mxu0 0.0
  %3877 = vmatprep.subr.mxu0 0.0
  %3878 = vmatpush1.msra.mxu0 0.0
  %3879 = vmatprep.subr.mxu0 0.0
  %3880 = vmatpush1.msra.mxu0 0.0
  %3881 = vmatprep.subr.mxu0 0.0
  %3882 = vmatpush1.msra.mxu0 0.0
  %3883 = vmatprep.subr.mxu0 0.0
  %3884 = vmatpush1.msra.mxu0 0.0
  %3885 = vmatprep.subr.mxu0 0.0
  %3886 = vmatpush1.msra.mxu0 0.0
  %3887 = vmatprep.subr.mxu0 0.0
  %3888 = vmatpush1.msra.mxu0 0.0
  %3889 = vmatprep.subr.mxu0 0.0
  %3890 = vmatpush1.msra.mxu0 0.0
  %3891 = vmatprep.subr.mxu0 0.0
  %3892 = vmatpush1.msra.mxu0 0.0
  %3893 = vmatprep.subr.mxu0 0.0
  %3894 = vmatpush1.msra.mxu0 0.0
  %3895 = vmatprep.subr.mxu0 0.0
  %3896 = vmatpush1.msra.mxu0 0.0
  %3897 = vmatprep.subr.mxu0 0.0
  %3898 = vmatpush1.msra.mxu0 0.0
  %3899 = vmatprep.subr.mxu0 0.0
  %3900 = vmatpush1.msra.mxu0 0.0
  %3901 = vmatprep.subr.mxu0 0.0
  %3902 = vmatpush1.msra.mxu0 0.0
  %3903 = vmatprep.subr.mxu0 0.0
  %3904 = vmatpush1.msra.mxu0 0.0
  %3905 = vmatprep.subr.mxu0 0.0
  %3906 = vmatpush1.msra.mxu0 0.0
  %3907 = vmatprep.subr.mxu0 0.0
  %3908 = vmatpush1.msra.mxu0 0.0
  %3909 = vmatprep.subr.mxu0 0.0
  %3910 = vmatpush1.msra.mxu0 0.0
  %3911 = vmatprep.subr.mxu0 0.0
  %3912 = vmatpush1.msra.mxu0 0.0
  %3913 = vmatprep.subr.mxu0 0.0
  %3914 = vmatpush1.msra.mxu0 0.0
  %3915 = vmatprep.subr.mxu0 0.0
  %3916 = vmatpush1.msra.mxu0 0.0
  %3917 = vmatprep.subr.mxu0 0.0
  %3918 = vmatpush1.msra.mxu0 0.0
  %3919 = vmatprep.subr.mxu0 0.0
  %3920 = vmatpush1.msra.mxu0 0.0
  %3921 = vmatprep.subr.mxu0 0.0
  %3922 = vmatpush1.msra.mxu0 0.0
  %3923 = vmatprep.subr.mxu0 0.0
  %3924 = vmatpush1.msra.mxu0 0.0
  %3925 = vmatprep.subr.mxu0 0.0
  %3926 = vmatpush1.msra.mxu0 0.0
  %3927 = vmatprep.mubr.f32.mxu0 0.0
  %3928 = vmatmul.mubr.f32.gmra.mrb[0].mxu0 %v3858
  %v3929 = vpop.f32.mrb[0].mxu0
  %v3930 = vadd.f32 0.0, %v3929
  %v3931 = vpop.f32.mrb[0].mxu0
  %3932 = vmatprep.mubr.f32.mxu0 0.0
  %3933 = vmatmul.mubr.f32.gmra.mrb[0].mxu0 %v3861
  %v3934 = vpop.f32.mrb[0].mxu0
  %v3935 = vadd.f32 0.0, %v3934
  %v3936 = vpop.f32.mrb[0].mxu0
  %3937 = vdwg.mxu0
  %v3939 = vsel %vm206, %v3843, 0
  %v3942 = vsel %vm206, %v3848, 0
  %v3945 = vsel %vm206, %v3930, 0
  %v3948 = vsel %vm206, %v3935, 0
  %3950 = vmatprep.subr.mxu0 0.0
  %3951 = vmatpush1.msra.mxu0 %v2537
  %3952 = vmatprep.subr.mxu0 0.0
  %3953 = vmatpush1.msra.mxu0 0.0
  %3954 = vmatprep.subr.mxu0 0.0
  %3955 = vmatpush1.msra.mxu0 0.0
  %3956 = vmatprep.subr.mxu0 0.0
  %3957 = vmatpush1.msra.mxu0 0.0
  %3958 = vmatprep.subr.mxu0 0.0
  %3959 = vmatpush1.msra.mxu0 0.0
  %3960 = vmatprep.subr.mxu0 0.0
  %3961 = vmatpush1.msra.mxu0 0.0
  %3962 = vmatprep.subr.mxu0 0.0
  %3963 = vmatpush1.msra.mxu0 0.0
  %3964 = vmatprep.subr.mxu0 0.0
  %3965 = vmatpush1.msra.mxu0 0.0
  %3966 = vmatprep.subr.mxu0 0.0
  %3967 = vmatpush1.msra.mxu0 0.0
  %3968 = vmatprep.subr.mxu0 0.0
  %3969 = vmatpush1.msra.mxu0 0.0
  %3970 = vmatprep.subr.mxu0 0.0
  %3971 = vmatpush1.msra.mxu0 0.0
  %3972 = vmatprep.subr.mxu0 0.0
  %3973 = vmatpush1.msra.mxu0 0.0
  %3974 = vmatprep.subr.mxu0 0.0
  %3975 = vmatpush1.msra.mxu0 0.0
  %3976 = vmatprep.subr.mxu0 0.0
  %3977 = vmatpush1.msra.mxu0 0.0
  %3978 = vmatprep.subr.mxu0 0.0
  %3979 = vmatpush1.msra.mxu0 0.0
  %3980 = vmatprep.subr.mxu0 0.0
  %3981 = vmatpush1.msra.mxu0 0.0
  %3982 = vmatprep.subr.mxu0 0.0
  %3983 = vmatpush1.msra.mxu0 0.0
  %3984 = vmatprep.subr.mxu0 0.0
  %3985 = vmatpush1.msra.mxu0 0.0
  %3986 = vmatprep.subr.mxu0 0.0
  %3987 = vmatpush1.msra.mxu0 0.0
  %3988 = vmatprep.subr.mxu0 0.0
  %3989 = vmatpush1.msra.mxu0 0.0
  %3990 = vmatprep.subr.mxu0 0.0
  %3991 = vmatpush1.msra.mxu0 0.0
  %3992 = vmatprep.subr.mxu0 0.0
  %3993 = vmatpush1.msra.mxu0 0.0
  %3994 = vmatprep.subr.mxu0 0.0
  %3995 = vmatpush1.msra.mxu0 0.0
  %3996 = vmatprep.subr.mxu0 0.0
  %3997 = vmatpush1.msra.mxu0 0.0
  %3998 = vmatprep.subr.mxu0 0.0
  %3999 = vmatpush1.msra.mxu0 0.0
  %4000 = vmatprep.subr.mxu0 0.0
  %4001 = vmatpush1.msra.mxu0 0.0
  %4002 = vmatprep.subr.mxu0 0.0
  %4003 = vmatpush1.msra.mxu0 0.0
  %4004 = vmatprep.subr.mxu0 0.0
  %4005 = vmatpush1.msra.mxu0 0.0
  %4006 = vmatprep.subr.mxu0 0.0
  %4007 = vmatpush1.msra.mxu0 0.0
  %4008 = vmatprep.subr.mxu0 0.0
  %4009 = vmatpush1.msra.mxu0 0.0
  %4010 = vmatprep.subr.mxu0 0.0
  %4011 = vmatpush1.msra.mxu0 0.0
  %4012 = vmatprep.subr.mxu0 0.0
  %4013 = vmatpush1.msra.mxu0 0.0
  %4014 = vmatprep.mubr.f32.mxu0 0.0
  %4015 = vmatmul.mubr.f32.gmra.mrb[0].mxu0 %v3939
  %v4016 = vpop.f32.mrb[0].mxu0
  %v4017 = vadd.f32 0.0, %v4016
  %v4018 = vpop.f32.mrb[0].mxu0
  %4019 = vmatprep.mubr.f32.mxu0 0.0
  %4020 = vmatmul.mubr.f32.gmra.mrb[0].mxu0 %v3942
  %v4021 = vpop.f32.mrb[0].mxu0
  %v4022 = vadd.f32 0.0, %v4021
  %v4023 = vpop.f32.mrb[0].mxu0
  %4024 = vmatprep.mubr.f32.mxu0 0.0
  %4025 = vmatmul.mubr.f32.gmra.mrb[0].mxu0 %v3945
  %v4026 = vpop.f32.mrb[0].mxu0
  %v4027 = vadd.f32 0.0, %v4026
  %v4028 = vpop.f32.mrb[0].mxu0
  %4029 = vmatprep.mubr.f32.mxu0 0.0
  %4030 = vmatmul.mubr.f32.gmra.mrb[0].mxu0 %v3948
  %v4031 = vpop.f32.mrb[0].mxu0
  %v4032 = vadd.f32 0.0, %v4031
  %v4033 = vpop.f32.mrb[0].mxu0
  %4034 = vdwg.mxu0
  %v4035 = vadd.f32 %v3516, %v4017
  %v4036 = vadd.f32 %v3521, %v4022
  %v4037 = vadd.f32 %v3526, %v4027
  %v4038 = vadd.f32 %v3531, %v4032
  %4039 = vrot.lane.b32.xlu0 %v2409, 104
  %v4040 = vpop.permute.xlu0 %4039
  %4041 = vrot.lane.b32.xlu0 %v2414, 104
  %v4042 = vpop.permute.xlu0 %4041
  %4043 = vrot.lane.b32.xlu0 %v2517, 104
  %v4044 = vpop.permute.xlu0 %4043
  %4045 = vrot.lane.b32.xlu0 %v2522, 104
  %v4046 = vpop.permute.xlu0 %4045
  %v4047 = vsel %vm206, %v4040, 0
  %v4049 = vsel %vm206, %v4042, 0
  %v4051 = vsel %vm206, %v4044, 0
  %v4053 = vsel %vm206, %v4046, 0
  %4055 = vmatprep.subr.mxu0 0.0
  %4056 = vmatpush1.xpose.msra.mxu0 %v4051
  %4057 = vmatprep.subr.mxu0 0.0
  %4058 = vmatpush1.xpose.msra.mxu0 %v4053
  %4059 = vmatprep.subr.mxu0 0.0
  %4060 = vmatpush1.xpose.msra.mxu0 0.0
  %4061 = vmatprep.subr.mxu0 0.0
  %4062 = vmatpush1.xpose.msra.mxu0 0.0
  %4063 = vmatprep.subr.mxu0 0.0
  %4064 = vmatpush1.xpose.msra.mxu0 0.0
  %4065 = vmatprep.subr.mxu0 0.0
  %4066 = vmatpush1.xpose.msra.mxu0 0.0
  %4067 = vmatprep.subr.mxu0 0.0
  %4068 = vmatpush1.xpose.msra.mxu0 0.0
  %4069 = vmatprep.subr.mxu0 0.0
  %4070 = vmatpush1.xpose.msra.mxu0 0.0
  %4071 = vmatprep.subr.mxu0 0.0
  %4072 = vmatpush1.xpose.msra.mxu0 0.0
  %4073 = vmatprep.subr.mxu0 0.0
  %4074 = vmatpush1.xpose.msra.mxu0 0.0
  %4075 = vmatprep.subr.mxu0 0.0
  %4076 = vmatpush1.xpose.msra.mxu0 0.0
  %4077 = vmatprep.subr.mxu0 0.0
  %4078 = vmatpush1.xpose.msra.mxu0 0.0
  %4079 = vmatprep.subr.mxu0 0.0
  %4080 = vmatpush1.xpose.msra.mxu0 0.0
  %4081 = vmatprep.subr.mxu0 0.0
  %4082 = vmatpush1.xpose.msra.mxu0 0.0
  %4083 = vmatprep.subr.mxu0 0.0
  %4084 = vmatpush1.xpose.msra.mxu0 0.0
  %4085 = vmatprep.subr.mxu0 0.0
  %4086 = vmatpush1.xpose.msra.mxu0 0.0
  %4087 = vmatprep.subr.mxu0 0.0
  %4088 = vmatpush1.xpose.msra.mxu0 0.0
  %4089 = vmatprep.subr.mxu0 0.0
  %4090 = vmatpush1.xpose.msra.mxu0 0.0
  %4091 = vmatprep.subr.mxu0 0.0
  %4092 = vmatpush1.xpose.msra.mxu0 0.0
  %4093 = vmatprep.subr.mxu0 0.0
  %4094 = vmatpush1.xpose.msra.mxu0 0.0
  %4095 = vmatprep.subr.mxu0 0.0
  %4096 = vmatpush1.xpose.msra.mxu0 0.0
  %4097 = vmatprep.subr.mxu0 0.0
  %4098 = vmatpush1.xpose.msra.mxu0 0.0
  %4099 = vmatprep.subr.mxu0 0.0
  %4100 = vmatpush1.xpose.msra.mxu0 0.0
  %4101 = vmatprep.subr.mxu0 0.0
  %4102 = vmatpush1.xpose.msra.mxu0 0.0
  %4103 = vmatprep.subr.mxu0 0.0
  %4104 = vmatpush1.xpose.msra.mxu0 0.0
  %4105 = vmatprep.subr.mxu0 0.0
  %4106 = vmatpush1.xpose.msra.mxu0 0.0
  %4107 = vmatprep.subr.mxu0 0.0
  %4108 = vmatpush1.xpose.msra.mxu0 0.0
  %4109 = vmatprep.subr.mxu0 0.0
  %4110 = vmatpush1.xpose.msra.mxu0 0.0
  %4111 = vmatprep.subr.mxu0 0.0
  %4112 = vmatpush1.xpose.msra.mxu0 0.0
  %4113 = vmatprep.subr.mxu0 0.0
  %4114 = vmatpush1.xpose.msra.mxu0 0.0
  %4115 = vmatprep.subr.mxu0 0.0
  %4116 = vmatpush1.xpose.msra.mxu0 0.0
  %4117 = vmatprep.subr.mxu0 0.0
  %4118 = vmatpush1.xpose.msra.mxu0 0.0
  %4119 = vmatprep.mubr.f32.mxu0 0.0
  %4120 = vmatmul.mubr.f32.gmra.mrb[0].mxu0 %v4047
  %v4121 = vpop.f32.mrb[0].mxu0
  %v4122 = vadd.f32 0.0, %v4121
  %v4123 = vpop.f32.mrb[0].mxu0
  %4124 = vmatprep.mubr.f32.mxu0 0.0
  %4125 = vmatmul.mubr.f32.gmra.mrb[0].mxu0 %v4049
  %v4126 = vpop.f32.mrb[0].mxu0
  %v4127 = vadd.f32 0.0, %v4126
  %v4128 = vpop.f32.mrb[0].mxu0
  %4129 = vdwg.mxu0
  %4130 = vrot.lane.b32.xlu0 %v2419, 104
  %v4131 = vpop.permute.xlu0 %4130
  %4132 = vrot.lane.b32.xlu0 %v2424, 104
  %v4133 = vpop.permute.xlu0 %4132
  %4134 = vrot.lane.b32.xlu0 %v2527, 104
  %v4135 = vpop.permute.xlu0 %4134
  %4136 = vrot.lane.b32.xlu0 %v2532, 104
  %v4137 = vpop.permute.xlu0 %4136
  %v4138 = vsel %vm206, %v4131, 0
  %v4140 = vsel %vm206, %v4133, 0
  %v4142 = vsel %vm206, %v4135, 0
  %v4144 = vsel %vm206, %v4137, 0
  %4146 = vmatprep.subr.mxu0 0.0
  %4147 = vmatpush1.xpose.msra.mxu0 %v4142
  %4148 = vmatprep.subr.mxu0 0.0
  %4149 = vmatpush1.xpose.msra.mxu0 %v4144
  %4150 = vmatprep.subr.mxu0 0.0
  %4151 = vmatpush1.xpose.msra.mxu0 0.0
  %4152 = vmatprep.subr.mxu0 0.0
  %4153 = vmatpush1.xpose.msra.mxu0 0.0
  %4154 = vmatprep.subr.mxu0 0.0
  %4155 = vmatpush1.xpose.msra.mxu0 0.0
  %4156 = vmatprep.subr.mxu0 0.0
  %4157 = vmatpush1.xpose.msra.mxu0 0.0
  %4158 = vmatprep.subr.mxu0 0.0
  %4159 = vmatpush1.xpose.msra.mxu0 0.0
  %4160 = vmatprep.subr.mxu0 0.0
  %4161 = vmatpush1.xpose.msra.mxu0 0.0
  %4162 = vmatprep.subr.mxu0 0.0
  %4163 = vmatpush1.xpose.msra.mxu0 0.0
  %4164 = vmatprep.subr.mxu0 0.0
  %4165 = vmatpush1.xpose.msra.mxu0 0.0
  %4166 = vmatprep.subr.mxu0 0.0
  %4167 = vmatpush1.xpose.msra.mxu0 0.0
  %4168 = vmatprep.subr.mxu0 0.0
  %4169 = vmatpush1.xpose.msra.mxu0 0.0
  %4170 = vmatprep.subr.mxu0 0.0
  %4171 = vmatpush1.xpose.msra.mxu0 0.0
  %4172 = vmatprep.subr.mxu0 0.0
  %4173 = vmatpush1.xpose.msra.mxu0 0.0
  %4174 = vmatprep.subr.mxu0 0.0
  %4175 = vmatpush1.xpose.msra.mxu0 0.0
  %4176 = vmatprep.subr.mxu0 0.0
  %4177 = vmatpush1.xpose.msra.mxu0 0.0
  %4178 = vmatprep.subr.mxu0 0.0
  %4179 = vmatpush1.xpose.msra.mxu0 0.0
  %4180 = vmatprep.subr.mxu0 0.0
  %4181 = vmatpush1.xpose.msra.mxu0 0.0
  %4182 = vmatprep.subr.mxu0 0.0
  %4183 = vmatpush1.xpose.msra.mxu0 0.0
  %4184 = vmatprep.subr.mxu0 0.0
  %4185 = vmatpush1.xpose.msra.mxu0 0.0
  %4186 = vmatprep.subr.mxu0 0.0
  %4187 = vmatpush1.xpose.msra.mxu0 0.0
  %4188 = vmatprep.subr.mxu0 0.0
  %4189 = vmatpush1.xpose.msra.mxu0 0.0
  %4190 = vmatprep.subr.mxu0 0.0
  %4191 = vmatpush1.xpose.msra.mxu0 0.0
  %4192 = vmatprep.subr.mxu0 0.0
  %4193 = vmatpush1.xpose.msra.mxu0 0.0
  %4194 = vmatprep.subr.mxu0 0.0
  %4195 = vmatpush1.xpose.msra.mxu0 0.0
  %4196 = vmatprep.subr.mxu0 0.0
  %4197 = vmatpush1.xpose.msra.mxu0 0.0
  %4198 = vmatprep.subr.mxu0 0.0
  %4199 = vmatpush1.xpose.msra.mxu0 0.0
  %4200 = vmatprep.subr.mxu0 0.0
  %4201 = vmatpush1.xpose.msra.mxu0 0.0
  %4202 = vmatprep.subr.mxu0 0.0
  %4203 = vmatpush1.xpose.msra.mxu0 0.0
  %4204 = vmatprep.subr.mxu0 0.0
  %4205 = vmatpush1.xpose.msra.mxu0 0.0
  %4206 = vmatprep.subr.mxu0 0.0
  %4207 = vmatpush1.xpose.msra.mxu0 0.0
  %4208 = vmatprep.subr.mxu0 0.0
  %4209 = vmatpush1.xpose.msra.mxu0 0.0
  %4210 = vmatprep.mubr.f32.mxu0 0.0
  %4211 = vmatmul.mubr.f32.gmra.mrb[0].mxu0 %v4138
  %v4212 = vpop.f32.mrb[0].mxu0
  %v4213 = vadd.f32 0.0, %v4212
  %v4214 = vpop.f32.mrb[0].mxu0
  %4215 = vmatprep.mubr.f32.mxu0 0.0
  %4216 = vmatmul.mubr.f32.gmra.mrb[0].mxu0 %v4140
  %v4217 = vpop.f32.mrb[0].mxu0
  %v4218 = vadd.f32 0.0, %v4217
  %v4219 = vpop.f32.mrb[0].mxu0
  %4220 = vdwg.mxu0
  %v4221 = vmul.f32 %v4122, 0.35355338
  %v4222 = vmul.f32 %v4127, 0.35355338
  %v4223 = vmul.f32 %v4213, 0.35355338
  %v4224 = vmul.f32 %v4218, 0.35355338
  %v4225 = vsel %vm391, %v4221, -inf
  %4226 = vmax.xlane.f32.xlu0 %v4225
  %v4227 = vpop.xlane.xlu0 %4226
  %v4228 = vsel %vm391, %v4222, -inf
  %4229 = vmax.xlane.f32.xlu0 %v4228
  %v4230 = vpop.xlane.xlu0 %4229
  %v4231 = vsel %vm391, %v4223, -inf
  %4232 = vmax.xlane.f32.xlu0 %v4231
  %v4233 = vpop.xlane.xlu0 %4232
  %v4234 = vsel %vm391, %v4224, -inf
  %4235 = vmax.xlane.f32.xlu0 %v4234
  %v4236 = vpop.xlane.xlu0 %4235
  %v4237 = vsub.f32 %v4221, %v4227
  %v4238 = vsub.f32 %v4222, %v4230
  %v4239 = vsub.f32 %v4223, %v4233
  %v4240 = vsub.f32 %v4224, %v4236
  %v4241 = vmul.f32 %v4237, 1.442695
  %v4242 = vpow.pop %v4241
  %v4243 = vmul.f32 %v4238, 1.442695
  %v4244 = vpow.pop %v4243
  %v4245 = vmul.f32 %v4239, 1.442695
  %v4246 = vpow.pop %v4245
  %v4247 = vmul.f32 %v4240, 1.442695
  %v4248 = vpow.pop %v4247
  %v4249 = vsel %vm391, %v4242, 0.0
  %4250 = vadd.xlane.f32.xlu0 %v4249
  %v4251 = vpop.xlane.xlu0 %4250
  %v4252 = vsel %vm391, %v4244, 0.0
  %4253 = vadd.xlane.f32.xlu0 %v4252
  %v4254 = vpop.xlane.xlu0 %4253
  %v4255 = vsel %vm391, %v4246, 0.0
  %4256 = vadd.xlane.f32.xlu0 %v4255
  %v4257 = vpop.xlane.xlu0 %4256
  %v4258 = vsel %vm391, %v4248, 0.0
  %4259 = vadd.xlane.f32.xlu0 %v4258
  %v4260 = vpop.xlane.xlu0 %4259
  %v4261 = vrcp.pop %v4251
  %v4262 = vrcp.pop %v4254
  %v4263 = vrcp.pop %v4257
  %v4264 = vrcp.pop %v4260
  %v4265 = vmul.f32 %v4242, %v4261
  %v4266 = vmul.f32 %v4244, %v4262
  %v4267 = vmul.f32 %v4246, %v4263
  %v4268 = vmul.f32 %v4248, %v4264
  %4269 = vrot.lane.b32.xlu0 %v2517, 72
  %v4270 = vpop.permute.xlu0 %4269
  %4271 = vrot.lane.b32.xlu0 %v2522, 72
  %v4272 = vpop.permute.xlu0 %4271
  %v4276 = vsel %vm391, %v4265, 0
  %v4279 = vsel %vm391, %v4266, 0
  %4281 = vmatprep.subr.mxu0 0.0
  %4282 = vmatpush1.msra.mxu0 %v4270
  %4283 = vmatprep.subr.mxu0 0.0
  %4284 = vmatpush1.msra.mxu0 %v4272
  %4285 = vmatprep.subr.mxu0 0.0
  %4286 = vmatpush1.msra.mxu0 0.0
  %4287 = vmatprep.subr.mxu0 0.0
  %4288 = vmatpush1.msra.mxu0 0.0
  %4289 = vmatprep.subr.mxu0 0.0
  %4290 = vmatpush1.msra.mxu0 0.0
  %4291 = vmatprep.subr.mxu0 0.0
  %4292 = vmatpush1.msra.mxu0 0.0
  %4293 = vmatprep.subr.mxu0 0.0
  %4294 = vmatpush1.msra.mxu0 0.0
  %4295 = vmatprep.subr.mxu0 0.0
  %4296 = vmatpush1.msra.mxu0 0.0
  %4297 = vmatprep.subr.mxu0 0.0
  %4298 = vmatpush1.msra.mxu0 0.0
  %4299 = vmatprep.subr.mxu0 0.0
  %4300 = vmatpush1.msra.mxu0 0.0
  %4301 = vmatprep.subr.mxu0 0.0
  %4302 = vmatpush1.msra.mxu0 0.0
  %4303 = vmatprep.subr.mxu0 0.0
  %4304 = vmatpush1.msra.mxu0 0.0
  %4305 = vmatprep.subr.mxu0 0.0
  %4306 = vmatpush1.msra.mxu0 0.0
  %4307 = vmatprep.subr.mxu0 0.0
  %4308 = vmatpush1.msra.mxu0 0.0
  %4309 = vmatprep.subr.mxu0 0.0
  %4310 = vmatpush1.msra.mxu0 0.0
  %4311 = vmatprep.subr.mxu0 0.0
  %4312 = vmatpush1.msra.mxu0 0.0
  %4313 = vmatprep.subr.mxu0 0.0
  %4314 = vmatpush1.msra.mxu0 0.0
  %4315 = vmatprep.subr.mxu0 0.0
  %4316 = vmatpush1.msra.mxu0 0.0
  %4317 = vmatprep.subr.mxu0 0.0
  %4318 = vmatpush1.msra.mxu0 0.0
  %4319 = vmatprep.subr.mxu0 0.0
  %4320 = vmatpush1.msra.mxu0 0.0
  %4321 = vmatprep.subr.mxu0 0.0
  %4322 = vmatpush1.msra.mxu0 0.0
  %4323 = vmatprep.subr.mxu0 0.0
  %4324 = vmatpush1.msra.mxu0 0.0
  %4325 = vmatprep.subr.mxu0 0.0
  %4326 = vmatpush1.msra.mxu0 0.0
  %4327 = vmatprep.subr.mxu0 0.0
  %4328 = vmatpush1.msra.mxu0 0.0
  %4329 = vmatprep.subr.mxu0 0.0
  %4330 = vmatpush1.msra.mxu0 0.0
  %4331 = vmatprep.subr.mxu0 0.0
  %4332 = vmatpush1.msra.mxu0 0.0
  %4333 = vmatprep.subr.mxu0 0.0
  %4334 = vmatpush1.msra.mxu0 0.0
  %4335 = vmatprep.subr.mxu0 0.0
  %4336 = vmatpush1.msra.mxu0 0.0
  %4337 = vmatprep.subr.mxu0 0.0
  %4338 = vmatpush1.msra.mxu0 0.0
  %4339 = vmatprep.subr.mxu0 0.0
  %4340 = vmatpush1.msra.mxu0 0.0
  %4341 = vmatprep.subr.mxu0 0.0
  %4342 = vmatpush1.msra.mxu0 0.0
  %4343 = vmatprep.subr.mxu0 0.0
  %4344 = vmatpush1.msra.mxu0 0.0
  %4345 = vmatprep.mubr.f32.mxu0 0.0
  %4346 = vmatmul.mubr.f32.gmra.mrb[0].mxu0 %v4276
  %v4347 = vpop.f32.mrb[0].mxu0
  %v4348 = vadd.f32 0.0, %v4347
  %v4349 = vpop.f32.mrb[0].mxu0
  %4350 = vmatprep.mubr.f32.mxu0 0.0
  %4351 = vmatmul.mubr.f32.gmra.mrb[0].mxu0 %v4279
  %v4352 = vpop.f32.mrb[0].mxu0
  %v4353 = vadd.f32 0.0, %v4352
  %v4354 = vpop.f32.mrb[0].mxu0
  %4355 = vdwg.mxu0
  %4356 = vrot.lane.b32.xlu0 %v2527, 72
  %v4357 = vpop.permute.xlu0 %4356
  %4358 = vrot.lane.b32.xlu0 %v2532, 72
  %v4359 = vpop.permute.xlu0 %4358
  %v4363 = vsel %vm391, %v4267, 0
  %v4366 = vsel %vm391, %v4268, 0
  %4368 = vmatprep.subr.mxu0 0.0
  %4369 = vmatpush1.msra.mxu0 %v4357
  %4370 = vmatprep.subr.mxu0 0.0
  %4371 = vmatpush1.msra.mxu0 %v4359
  %4372 = vmatprep.subr.mxu0 0.0
  %4373 = vmatpush1.msra.mxu0 0.0
  %4374 = vmatprep.subr.mxu0 0.0
  %4375 = vmatpush1.msra.mxu0 0.0
  %4376 = vmatprep.subr.mxu0 0.0
  %4377 = vmatpush1.msra.mxu0 0.0
  %4378 = vmatprep.subr.mxu0 0.0
  %4379 = vmatpush1.msra.mxu0 0.0
  %4380 = vmatprep.subr.mxu0 0.0
  %4381 = vmatpush1.msra.mxu0 0.0
  %4382 = vmatprep.subr.mxu0 0.0
  %4383 = vmatpush1.msra.mxu0 0.0
  %4384 = vmatprep.subr.mxu0 0.0
  %4385 = vmatpush1.msra.mxu0 0.0
  %4386 = vmatprep.subr.mxu0 0.0
  %4387 = vmatpush1.msra.mxu0 0.0
  %4388 = vmatprep.subr.mxu0 0.0
  %4389 = vmatpush1.msra.mxu0 0.0
  %4390 = vmatprep.subr.mxu0 0.0
  %4391 = vmatpush1.msra.mxu0 0.0
  %4392 = vmatprep.subr.mxu0 0.0
  %4393 = vmatpush1.msra.mxu0 0.0
  %4394 = vmatprep.subr.mxu0 0.0
  %4395 = vmatpush1.msra.mxu0 0.0
  %4396 = vmatprep.subr.mxu0 0.0
  %4397 = vmatpush1.msra.mxu0 0.0
  %4398 = vmatprep.subr.mxu0 0.0
  %4399 = vmatpush1.msra.mxu0 0.0
  %4400 = vmatprep.subr.mxu0 0.0
  %4401 = vmatpush1.msra.mxu0 0.0
  %4402 = vmatprep.subr.mxu0 0.0
  %4403 = vmatpush1.msra.mxu0 0.0
  %4404 = vmatprep.subr.mxu0 0.0
  %4405 = vmatpush1.msra.mxu0 0.0
  %4406 = vmatprep.subr.mxu0 0.0
  %4407 = vmatpush1.msra.mxu0 0.0
  %4408 = vmatprep.subr.mxu0 0.0
  %4409 = vmatpush1.msra.mxu0 0.0
  %4410 = vmatprep.subr.mxu0 0.0
  %4411 = vmatpush1.msra.mxu0 0.0
  %4412 = vmatprep.subr.mxu0 0.0
  %4413 = vmatpush1.msra.mxu0 0.0
  %4414 = vmatprep.subr.mxu0 0.0
  %4415 = vmatpush1.msra.mxu0 0.0
  %4416 = vmatprep.subr.mxu0 0.0
  %4417 = vmatpush1.msra.mxu0 0.0
  %4418 = vmatprep.subr.mxu0 0.0
  %4419 = vmatpush1.msra.mxu0 0.0
  %4420 = vmatprep.subr.mxu0 0.0
  %4421 = vmatpush1.msra.mxu0 0.0
  %4422 = vmatprep.subr.mxu0 0.0
  %4423 = vmatpush1.msra.mxu0 0.0
  %4424 = vmatprep.subr.mxu0 0.0
  %4425 = vmatpush1.msra.mxu0 0.0
  %4426 = vmatprep.subr.mxu0 0.0
  %4427 = vmatpush1.msra.mxu0 0.0
  %4428 = vmatprep.subr.mxu0 0.0
  %4429 = vmatpush1.msra.mxu0 0.0
  %4430 = vmatprep.subr.mxu0 0.0
  %4431 = vmatpush1.msra.mxu0 0.0
  %4432 = vmatprep.mubr.f32.mxu0 0.0
  %4433 = vmatmul.mubr.f32.gmra.mrb[0].mxu0 %v4363
  %v4434 = vpop.f32.mrb[0].mxu0
  %v4435 = vadd.f32 0.0, %v4434
  %v4436 = vpop.f32.mrb[0].mxu0
  %4437 = vmatprep.mubr.f32.mxu0 0.0
  %4438 = vmatmul.mubr.f32.gmra.mrb[0].mxu0 %v4366
  %v4439 = vpop.f32.mrb[0].mxu0
  %v4440 = vadd.f32 0.0, %v4439
  %v4441 = vpop.f32.mrb[0].mxu0
  %4442 = vdwg.mxu0
  %v4444 = vsel %vm206, %v4348, 0
  %v4447 = vsel %vm206, %v4353, 0
  %v4450 = vsel %vm206, %v4435, 0
  %v4453 = vsel %vm206, %v4440, 0
  %4455 = vmatprep.subr.mxu0 0.0
  %4456 = vmatpush1.msra.mxu0 %v2538
  %4457 = vmatprep.subr.mxu0 0.0
  %4458 = vmatpush1.msra.mxu0 0.0
  %4459 = vmatprep.subr.mxu0 0.0
  %4460 = vmatpush1.msra.mxu0 0.0
  %4461 = vmatprep.subr.mxu0 0.0
  %4462 = vmatpush1.msra.mxu0 0.0
  %4463 = vmatprep.subr.mxu0 0.0
  %4464 = vmatpush1.msra.mxu0 0.0
  %4465 = vmatprep.subr.mxu0 0.0
  %4466 = vmatpush1.msra.mxu0 0.0
  %4467 = vmatprep.subr.mxu0 0.0
  %4468 = vmatpush1.msra.mxu0 0.0
  %4469 = vmatprep.subr.mxu0 0.0
  %4470 = vmatpush1.msra.mxu0 0.0
  %4471 = vmatprep.subr.mxu0 0.0
  %4472 = vmatpush1.msra.mxu0 0.0
  %4473 = vmatprep.subr.mxu0 0.0
  %4474 = vmatpush1.msra.mxu0 0.0
  %4475 = vmatprep.subr.mxu0 0.0
  %4476 = vmatpush1.msra.mxu0 0.0
  %4477 = vmatprep.subr.mxu0 0.0
  %4478 = vmatpush1.msra.mxu0 0.0
  %4479 = vmatprep.subr.mxu0 0.0
  %4480 = vmatpush1.msra.mxu0 0.0
  %4481 = vmatprep.subr.mxu0 0.0
  %4482 = vmatpush1.msra.mxu0 0.0
  %4483 = vmatprep.subr.mxu0 0.0
  %4484 = vmatpush1.msra.mxu0 0.0
  %4485 = vmatprep.subr.mxu0 0.0
  %4486 = vmatpush1.msra.mxu0 0.0
  %4487 = vmatprep.subr.mxu0 0.0
  %4488 = vmatpush1.msra.mxu0 0.0
  %4489 = vmatprep.subr.mxu0 0.0
  %4490 = vmatpush1.msra.mxu0 0.0
  %4491 = vmatprep.subr.mxu0 0.0
  %4492 = vmatpush1.msra.mxu0 0.0
  %4493 = vmatprep.subr.mxu0 0.0
  %4494 = vmatpush1.msra.mxu0 0.0
  %4495 = vmatprep.subr.mxu0 0.0
  %4496 = vmatpush1.msra.mxu0 0.0
  %4497 = vmatprep.subr.mxu0 0.0
  %4498 = vmatpush1.msra.mxu0 0.0
  %4499 = vmatprep.subr.mxu0 0.0
  %4500 = vmatpush1.msra.mxu0 0.0
  %4501 = vmatprep.subr.mxu0 0.0
  %4502 = vmatpush1.msra.mxu0 0.0
  %4503 = vmatprep.subr.mxu0 0.0
  %4504 = vmatpush1.msra.mxu0 0.0
  %4505 = vmatprep.subr.mxu0 0.0
  %4506 = vmatpush1.msra.mxu0 0.0
  %4507 = vmatprep.subr.mxu0 0.0
  %4508 = vmatpush1.msra.mxu0 0.0
  %4509 = vmatprep.subr.mxu0 0.0
  %4510 = vmatpush1.msra.mxu0 0.0
  %4511 = vmatprep.subr.mxu0 0.0
  %4512 = vmatpush1.msra.mxu0 0.0
  %4513 = vmatprep.subr.mxu0 0.0
  %4514 = vmatpush1.msra.mxu0 0.0
  %4515 = vmatprep.subr.mxu0 0.0
  %4516 = vmatpush1.msra.mxu0 0.0
  %4517 = vmatprep.subr.mxu0 0.0
  %4518 = vmatpush1.msra.mxu0 0.0
  %4519 = vmatprep.mubr.f32.mxu0 0.0
  %4520 = vmatmul.mubr.f32.gmra.mrb[0].mxu0 %v4444
  %v4521 = vpop.f32.mrb[0].mxu0
  %v4522 = vadd.f32 0.0, %v4521
  %v4523 = vpop.f32.mrb[0].mxu0
  %4524 = vmatprep.mubr.f32.mxu0 0.0
  %4525 = vmatmul.mubr.f32.gmra.mrb[0].mxu0 %v4447
  %v4526 = vpop.f32.mrb[0].mxu0
  %v4527 = vadd.f32 0.0, %v4526
  %v4528 = vpop.f32.mrb[0].mxu0
  %4529 = vmatprep.mubr.f32.mxu0 0.0
  %4530 = vmatmul.mubr.f32.gmra.mrb[0].mxu0 %v4450
  %v4531 = vpop.f32.mrb[0].mxu0
  %v4532 = vadd.f32 0.0, %v4531
  %v4533 = vpop.f32.mrb[0].mxu0
  %4534 = vmatprep.mubr.f32.mxu0 0.0
  %4535 = vmatmul.mubr.f32.gmra.mrb[0].mxu0 %v4453
  %v4536 = vpop.f32.mrb[0].mxu0
  %v4537 = vadd.f32 0.0, %v4536
  %v4538 = vpop.f32.mrb[0].mxu0
  %4539 = vdwg.mxu0
  %v4540 = vadd.f32 %v4035, %v4522
  %v4541 = vadd.f32 %v4036, %v4527
  %v4542 = vadd.f32 %v4037, %v4532
  %v4543 = vadd.f32 %v4038, %v4537
  %v4545 = vlaneseq
  %v4546 = vshrl.u32 %v4545, 7
  %v4547 = vsub.s32 0, %v4546
  %v4548 = vrot.slane %v2539, %v4547
  %v4550 = vadd.f32 %v4540, %v4548
  %v4551 = vadd.f32 %v4541, %v4548
  %v4552 = vadd.f32 %v4542, %v4548
  %v4553 = vadd.f32 %v4543, %v4548
  %v4554 = vadd.f32 %v2315, %v4550
  %v4555 = vadd.f32 %v2316, %v4551
  %v4556 = vadd.f32 %v2317, %v4552
  %v4557 = vadd.f32 %v2318, %v4553
  %v4558 = vld [vmem:[%s14] sm:$0x1]
  %v4559 = vld [vmem:[%s15] sm:$0x1]
  %v4560 = vsel %vm90, %v4554, 0.0
  %4561 = vadd.xlane.f32.xlu0 %v4560
  %v4562 = vpop.xlane.xlu0 %4561
  %v4563 = vsel %vm90, %v4555, 0.0
  %4564 = vadd.xlane.f32.xlu0 %v4563
  %v4565 = vpop.xlane.xlu0 %4564
  %v4566 = vsel %vm90, %v4556, 0.0
  %4567 = vadd.xlane.f32.xlu0 %v4566
  %v4568 = vpop.xlane.xlu0 %4567
  %v4569 = vsel %vm90, %v4557, 0.0
  %4570 = vadd.xlane.f32.xlu0 %v4569
  %v4571 = vpop.xlane.xlu0 %4570
  %v4572 = vmul.f32 %v4562, %v2258
  %v4573 = vmul.f32 %v4565, %v2258
  %v4574 = vmul.f32 %v4568, %v2258
  %v4575 = vmul.f32 %v4571, %v2258
  %v4576 = vsub.f32 %v4554, %v4572
  %v4577 = vsub.f32 %v4555, %v4573
  %v4578 = vsub.f32 %v4556, %v4574
  %v4579 = vsub.f32 %v4557, %v4575
  %v4580 = vmul.f32 %v4576, %v4576
  %v4581 = vmul.f32 %v4577, %v4577
  %v4582 = vmul.f32 %v4578, %v4578
  %v4583 = vmul.f32 %v4579, %v4579
  %v4584 = vsel %vm90, %v4580, 0.0
  %4585 = vadd.xlane.f32.xlu0 %v4584
  %v4586 = vpop.xlane.xlu0 %4585
  %v4587 = vsel %vm90, %v4581, 0.0
  %4588 = vadd.xlane.f32.xlu0 %v4587
  %v4589 = vpop.xlane.xlu0 %4588
  %v4590 = vsel %vm90, %v4582, 0.0
  %4591 = vadd.xlane.f32.xlu0 %v4590
  %v4592 = vpop.xlane.xlu0 %4591
  %v4593 = vsel %vm90, %v4583, 0.0
  %4594 = vadd.xlane.f32.xlu0 %v4593
  %v4595 = vpop.xlane.xlu0 %4594
  %v4596 = vmul.f32 %v4586, %v2258
  %v4597 = vmul.f32 %v4589, %v2258
  %v4598 = vmul.f32 %v4592, %v2258
  %v4599 = vmul.f32 %v4595, %v2258
  %v4600 = vadd.f32 %v4596, 1e-05
  %v4601 = vadd.f32 %v4597, 1e-05
  %v4602 = vadd.f32 %v4598, 1e-05
  %v4603 = vadd.f32 %v4599, 1e-05
  %v4604 = vrsqrt.pop %v4600
  %v4605 = vrsqrt.pop %v4601
  %v4606 = vrsqrt.pop %v4602
  %v4607 = vrsqrt.pop %v4603
  %v4608 = vmul.f32 %v4576, %v4604
  %v4609 = vmul.f32 %v4577, %v4605
  %v4610 = vmul.f32 %v4578, %v4606
  %v4611 = vmul.f32 %v4579, %v4607
  %v4613 = vlaneseq
  %v4614 = vshrl.u32 %v4613, 7
  %v4615 = vsub.s32 0, %v4614
  %v4616 = vrot.slane %v4558, %v4615
  %v4618 = vmul.f32 %v4608, %v4616
  %v4619 = vmul.f32 %v4609, %v4616
  %v4620 = vmul.f32 %v4610, %v4616
  %v4621 = vmul.f32 %v4611, %v4616
  %v4623 = vlaneseq
  %v4624 = vshrl.u32 %v4623, 7
  %v4625 = vsub.s32 0, %v4624
  %v4626 = vrot.slane %v4559, %v4625
  %v4628 = vadd.f32 %v4618, %v4626
  %v4629 = vadd.f32 %v4619, %v4626
  %v4630 = vadd.f32 %v4620, %v4626
  %v4631 = vadd.f32 %v4621, %v4626
  %v4632 = vld [vmem:[%s18] sm:$0xff]
  %v4633 = vld [vmem:[%s18 + $0x8] sm:$0xff]
  %v4634 = vld [vmem:[%s18 + $0x10] sm:$0xff]
  %v4635 = vld [vmem:[%s18 + $0x18] sm:$0xff]
  %v4636 = vld [vmem:[%s19] sm:$0x1]
  %v4638 = vlaneseq
  %v4639 = vshrl.u32 %v4638, 7
  %v4640 = vsub.s32 0, %v4639
  %v4641 = vrot.slane %v4636, %v4640
  %v4644 = vsel %vm90, %v4628, 0
  %v4647 = vsel %vm90, %v4629, 0
  %v4650 = vsel %vm90, %v4630, 0
  %v4653 = vsel %vm90, %v4631, 0
  %4655 = vmatprep.subr.mxu0 0.0
  %4656 = vmatpush1.msra.mxu0 %v4632
  %4657 = vmatprep.subr.mxu0 0.0
  %4658 = vmatpush1.msra.mxu0 %v4633
  %4659 = vmatprep.subr.mxu0 0.0
  %4660 = vmatpush1.msra.mxu0 %v4634
  %4661 = vmatprep.subr.mxu0 0.0
  %4662 = vmatpush1.msra.mxu0 %v4635
  %4663 = vmatprep.subr.mxu0 0.0
  %4664 = vmatpush1.msra.mxu0 0.0
  %4665 = vmatprep.subr.mxu0 0.0
  %4666 = vmatpush1.msra.mxu0 0.0
  %4667 = vmatprep.subr.mxu0 0.0
  %4668 = vmatpush1.msra.mxu0 0.0
  %4669 = vmatprep.subr.mxu0 0.0
  %4670 = vmatpush1.msra.mxu0 0.0
  %4671 = vmatprep.subr.mxu0 0.0
  %4672 = vmatpush1.msra.mxu0 0.0
  %4673 = vmatprep.subr.mxu0 0.0
  %4674 = vmatpush1.msra.mxu0 0.0
  %4675 = vmatprep.subr.mxu0 0.0
  %4676 = vmatpush1.msra.mxu0 0.0
  %4677 = vmatprep.subr.mxu0 0.0
  %4678 = vmatpush1.msra.mxu0 0.0
  %4679 = vmatprep.subr.mxu0 0.0
  %4680 = vmatpush1.msra.mxu0 0.0
  %4681 = vmatprep.subr.mxu0 0.0
  %4682 = vmatpush1.msra.mxu0 0.0
  %4683 = vmatprep.subr.mxu0 0.0
  %4684 = vmatpush1.msra.mxu0 0.0
  %4685 = vmatprep.subr.mxu0 0.0
  %4686 = vmatpush1.msra.mxu0 0.0
  %4687 = vmatprep.subr.mxu0 0.0
  %4688 = vmatpush1.msra.mxu0 0.0
  %4689 = vmatprep.subr.mxu0 0.0
  %4690 = vmatpush1.msra.mxu0 0.0
  %4691 = vmatprep.subr.mxu0 0.0
  %4692 = vmatpush1.msra.mxu0 0.0
  %4693 = vmatprep.subr.mxu0 0.0
  %4694 = vmatpush1.msra.mxu0 0.0
  %4695 = vmatprep.subr.mxu0 0.0
  %4696 = vmatpush1.msra.mxu0 0.0
  %4697 = vmatprep.subr.mxu0 0.0
  %4698 = vmatpush1.msra.mxu0 0.0
  %4699 = vmatprep.subr.mxu0 0.0
  %4700 = vmatpush1.msra.mxu0 0.0
  %4701 = vmatprep.subr.mxu0 0.0
  %4702 = vmatpush1.msra.mxu0 0.0
  %4703 = vmatprep.subr.mxu0 0.0
  %4704 = vmatpush1.msra.mxu0 0.0
  %4705 = vmatprep.subr.mxu0 0.0
  %4706 = vmatpush1.msra.mxu0 0.0
  %4707 = vmatprep.subr.mxu0 0.0
  %4708 = vmatpush1.msra.mxu0 0.0
  %4709 = vmatprep.subr.mxu0 0.0
  %4710 = vmatpush1.msra.mxu0 0.0
  %4711 = vmatprep.subr.mxu0 0.0
  %4712 = vmatpush1.msra.mxu0 0.0
  %4713 = vmatprep.subr.mxu0 0.0
  %4714 = vmatpush1.msra.mxu0 0.0
  %4715 = vmatprep.subr.mxu0 0.0
  %4716 = vmatpush1.msra.mxu0 0.0
  %4717 = vmatprep.subr.mxu0 0.0
  %4718 = vmatpush1.msra.mxu0 0.0
  %4719 = vmatprep.mubr.f32.mxu0 0.0
  %4720 = vmatmul.mubr.f32.gmra.mrb[0].mxu0 %v4644
  %v4721 = vpop.f32.mrb[0].mxu0
  %v4722 = vadd.f32 %v4641, %v4721
  %v4723 = vpop.f32.mrb[0].mxu0
  %4724 = vmatprep.mubr.f32.mxu0 0.0
  %4725 = vmatmul.mubr.f32.gmra.mrb[0].mxu0 %v4647
  %v4726 = vpop.f32.mrb[0].mxu0
  %v4727 = vadd.f32 %v4641, %v4726
  %v4728 = vpop.f32.mrb[0].mxu0
  %4729 = vmatprep.mubr.f32.mxu0 0.0
  %4730 = vmatmul.mubr.f32.gmra.mrb[0].mxu0 %v4650
  %v4731 = vpop.f32.mrb[0].mxu0
  %v4732 = vadd.f32 %v4641, %v4731
  %v4733 = vpop.f32.mrb[0].mxu0
  %4734 = vmatprep.mubr.f32.mxu0 0.0
  %4735 = vmatmul.mubr.f32.gmra.mrb[0].mxu0 %v4653
  %v4736 = vpop.f32.mrb[0].mxu0
  %v4737 = vadd.f32 %v4641, %v4736
  %v4738 = vpop.f32.mrb[0].mxu0
  %4739 = vdwg.mxu0
  %v4740 = vmul.f32 %v4722, %v4722
  %v4741 = vmul.f32 %v4727, %v4727
  %v4742 = vmul.f32 %v4732, %v4732
  %v4743 = vmul.f32 %v4737, %v4737
  %v4744 = vmul.f32 %v4722, %v4740
  %v4745 = vmul.f32 %v4727, %v4741
  %v4746 = vmul.f32 %v4732, %v4742
  %v4747 = vmul.f32 %v4737, %v4743
  %v4748 = vmul.f32 %v4744, 0.044715
  %v4749 = vmul.f32 %v4745, 0.044715
  %v4750 = vmul.f32 %v4746, 0.044715
  %v4751 = vmul.f32 %v4747, 0.044715
  %v4752 = vadd.f32 %v4722, %v4748
  %v4753 = vadd.f32 %v4727, %v4749
  %v4754 = vadd.f32 %v4732, %v4750
  %v4755 = vadd.f32 %v4737, %v4751
  %v4756 = vmul.f32 %v4752, 0.7978846
  %v4757 = vmul.f32 %v4753, 0.7978846
  %v4758 = vmul.f32 %v4754, 0.7978846
  %v4759 = vmul.f32 %v4755, 0.7978846
  %v4760 = vtanh.pop %v4756
  %v4761 = vtanh.pop %v4757
  %v4762 = vtanh.pop %v4758
  %v4763 = vtanh.pop %v4759
  %v4764 = vadd.f32 %v4760, 1.0
  %v4765 = vadd.f32 %v4761, 1.0
  %v4766 = vadd.f32 %v4762, 1.0
  %v4767 = vadd.f32 %v4763, 1.0
  %v4768 = vmul.f32 %v4764, 0.5
  %v4769 = vmul.f32 %v4765, 0.5
  %v4770 = vmul.f32 %v4766, 0.5
  %v4771 = vmul.f32 %v4767, 0.5
  %v4772 = vmul.f32 %v4722, %v4768
  %v4773 = vmul.f32 %v4727, %v4769
  %v4774 = vmul.f32 %v4732, %v4770
  %v4775 = vmul.f32 %v4737, %v4771
  %v4776 = vld [vmem:[%s20] sm:$0xff]
  %v4777 = vld [vmem:[%s20 + $0x8] sm:$0xff]
  %v4778 = vld [vmem:[%s20 + $0x10] sm:$0xff]
  %v4779 = vld [vmem:[%s20 + $0x18] sm:$0xff]
  %v4780 = vld [vmem:[%s20 + $0x20] sm:$0xff]
  %v4781 = vld [vmem:[%s20 + $0x28] sm:$0xff]
  %v4782 = vld [vmem:[%s20 + $0x30] sm:$0xff]
  %v4783 = vld [vmem:[%s20 + $0x38] sm:$0xff]
  %v4784 = vld [vmem:[%s21] sm:$0x1]
  %v4786 = vlaneseq
  %v4787 = vshrl.u32 %v4786, 7
  %v4788 = vsub.s32 0, %v4787
  %v4789 = vrot.slane %v4784, %v4788
  %vm4791 = vcmask 523264
  %v4793 = vsel %vm4791, %v4772, 0
  %v4796 = vsel %vm4791, %v4773, 0
  %v4799 = vsel %vm4791, %v4774, 0
  %v4802 = vsel %vm4791, %v4775, 0
  %4804 = vmatprep.subr.mxu0 0.0
  %4805 = vmatpush1.msra.mxu0 %v4776
  %4806 = vmatprep.subr.mxu0 0.0
  %4807 = vmatpush1.msra.mxu0 %v4777
  %4808 = vmatprep.subr.mxu0 0.0
  %4809 = vmatpush1.msra.mxu0 %v4778
  %4810 = vmatprep.subr.mxu0 0.0
  %4811 = vmatpush1.msra.mxu0 %v4779
  %4812 = vmatprep.subr.mxu0 0.0
  %4813 = vmatpush1.msra.mxu0 %v4780
  %4814 = vmatprep.subr.mxu0 0.0
  %4815 = vmatpush1.msra.mxu0 %v4781
  %4816 = vmatprep.subr.mxu0 0.0
  %4817 = vmatpush1.msra.mxu0 %v4782
  %4818 = vmatprep.subr.mxu0 0.0
  %4819 = vmatpush1.msra.mxu0 %v4783
  %4820 = vmatprep.subr.mxu0 0.0
  %4821 = vmatpush1.msra.mxu0 0.0
  %4822 = vmatprep.subr.mxu0 0.0
  %4823 = vmatpush1.msra.mxu0 0.0
  %4824 = vmatprep.subr.mxu0 0.0
  %4825 = vmatpush1.msra.mxu0 0.0
  %4826 = vmatprep.subr.mxu0 0.0
  %4827 = vmatpush1.msra.mxu0 0.0
  %4828 = vmatprep.subr.mxu0 0.0
  %4829 = vmatpush1.msra.mxu0 0.0
  %4830 = vmatprep.subr.mxu0 0.0
  %4831 = vmatpush1.msra.mxu0 0.0
  %4832 = vmatprep.subr.mxu0 0.0
  %4833 = vmatpush1.msra.mxu0 0.0
  %4834 = vmatprep.subr.mxu0 0.0
  %4835 = vmatpush1.msra.mxu0 0.0
  %4836 = vmatprep.subr.mxu0 0.0
  %4837 = vmatpush1.msra.mxu0 0.0
  %4838 = vmatprep.subr.mxu0 0.0
  %4839 = vmatpush1.msra.mxu0 0.0
  %4840 = vmatprep.subr.mxu0 0.0
  %4841 = vmatpush1.msra.mxu0 0.0
  %4842 = vmatprep.subr.mxu0 0.0
  %4843 = vmatpush1.msra.mxu0 0.0
  %4844 = vmatprep.subr.mxu0 0.0
  %4845 = vmatpush1.msra.mxu0 0.0
  %4846 = vmatprep.subr.mxu0 0.0
  %4847 = vmatpush1.msra.mxu0 0.0
  %4848 = vmatprep.subr.mxu0 0.0
  %4849 = vmatpush1.msra.mxu0 0.0
  %4850 = vmatprep.subr.mxu0 0.0
  %4851 = vmatpush1.msra.mxu0 0.0
  %4852 = vmatprep.subr.mxu0 0.0
  %4853 = vmatpush1.msra.mxu0 0.0
  %4854 = vmatprep.subr.mxu0 0.0
  %4855 = vmatpush1.msra.mxu0 0.0
  %4856 = vmatprep.subr.mxu0 0.0
  %4857 = vmatpush1.msra.mxu0 0.0
  %4858 = vmatprep.subr.mxu0 0.0
  %4859 = vmatpush1.msra.mxu0 0.0
  %4860 = vmatprep.subr.mxu0 0.0
  %4861 = vmatpush1.msra.mxu0 0.0
  %4862 = vmatprep.subr.mxu0 0.0
  %4863 = vmatpush1.msra.mxu0 0.0
  %4864 = vmatprep.subr.mxu0 0.0
  %4865 = vmatpush1.msra.mxu0 0.0
  %4866 = vmatprep.subr.mxu0 0.0
  %4867 = vmatpush1.msra.mxu0 0.0
  %4868 = vmatprep.mubr.f32.mxu0 0.0
  %4869 = vmatmul.mubr.f32.gmra.mrb[0].mxu0 %v4793
  %v4870 = vpop.f32.mrb[0].mxu0
  %v4871 = vadd.f32 %v4789, %v4870
  %v4872 = vpop.f32.mrb[0].mxu0
  %4873 = vmatprep.mubr.f32.mxu0 0.0
  %4874 = vmatmul.mubr.f32.gmra.mrb[0].mxu0 %v4796
  %v4875 = vpop.f32.mrb[0].mxu0
  %v4876 = vadd.f32 %v4789, %v4875
  %v4877 = vpop.f32.mrb[0].mxu0
  %4878 = vmatprep.mubr.f32.mxu0 0.0
  %4879 = vmatmul.mubr.f32.gmra.mrb[0].mxu0 %v4799
  %v4880 = vpop.f32.mrb[0].mxu0
  %v4881 = vadd.f32 %v4789, %v4880
  %v4882 = vpop.f32.mrb[0].mxu0
  %4883 = vmatprep.mubr.f32.mxu0 0.0
  %4884 = vmatmul.mubr.f32.gmra.mrb[0].mxu0 %v4802
  %v4885 = vpop.f32.mrb[0].mxu0
  %v4886 = vadd.f32 %v4789, %v4885
  %v4887 = vpop.f32.mrb[0].mxu0
  %4888 = vdwg.mxu0
  %v4889 = vadd.f32 %v4628, %v4871
  %v4890 = vadd.f32 %v4629, %v4876
  %v4891 = vadd.f32 %v4630, %v4881
  %v4892 = vadd.f32 %v4631, %v4886
  %v4893 = vld [vmem:[%s16] sm:$0x1]
  %v4894 = vld [vmem:[%s17] sm:$0x1]
  %v4895 = vsel %vm90, %v4889, 0.0
  %4896 = vadd.xlane.f32.xlu0 %v4895
  %v4897 = vpop.xlane.xlu0 %4896
  %v4898 = vsel %vm90, %v4890, 0.0
  %4899 = vadd.xlane.f32.xlu0 %v4898
  %v4900 = vpop.xlane.xlu0 %4899
  %v4901 = vsel %vm90, %v4891, 0.0
  %4902 = vadd.xlane.f32.xlu0 %v4901
  %v4903 = vpop.xlane.xlu0 %4902
  %v4904 = vsel %vm90, %v4892, 0.0
  %4905 = vadd.xlane.f32.xlu0 %v4904
  %v4906 = vpop.xlane.xlu0 %4905
  %v4907 = vmul.f32 %v4897, %v2258
  %v4908 = vmul.f32 %v4900, %v2258
  %v4909 = vmul.f32 %v4903, %v2258
  %v4910 = vmul.f32 %v4906, %v2258
  %v4911 = vsub.f32 %v4889, %v4907
  %v4912 = vsub.f32 %v4890, %v4908
  %v4913 = vsub.f32 %v4891, %v4909
  %v4914 = vsub.f32 %v4892, %v4910
  %v4915 = vmul.f32 %v4911, %v4911
  %v4916 = vmul.f32 %v4912, %v4912
  %v4917 = vmul.f32 %v4913, %v4913
  %v4918 = vmul.f32 %v4914, %v4914
  %v4919 = vsel %vm90, %v4915, 0.0
  %4920 = vadd.xlane.f32.xlu0 %v4919
  %v4921 = vpop.xlane.xlu0 %4920
  %v4922 = vsel %vm90, %v4916, 0.0
  %4923 = vadd.xlane.f32.xlu0 %v4922
  %v4924 = vpop.xlane.xlu0 %4923
  %v4925 = vsel %vm90, %v4917, 0.0
  %4926 = vadd.xlane.f32.xlu0 %v4925
  %v4927 = vpop.xlane.xlu0 %4926
  %v4928 = vsel %vm90, %v4918, 0.0
  %4929 = vadd.xlane.f32.xlu0 %v4928
  %v4930 = vpop.xlane.xlu0 %4929
  %v4931 = vmul.f32 %v4921, %v2258
  %v4932 = vmul.f32 %v4924, %v2258
  %v4933 = vmul.f32 %v4927, %v2258
  %v4934 = vmul.f32 %v4930, %v2258
  %v4935 = vadd.f32 %v4931, 1e-05
  %v4936 = vadd.f32 %v4932, 1e-05
  %v4937 = vadd.f32 %v4933, 1e-05
  %v4938 = vadd.f32 %v4934, 1e-05
  %v4939 = vrsqrt.pop %v4935
  %v4940 = vrsqrt.pop %v4936
  %v4941 = vrsqrt.pop %v4937
  %v4942 = vrsqrt.pop %v4938
  %v4943 = vmul.f32 %v4911, %v4939
  %v4944 = vmul.f32 %v4912, %v4940
  %v4945 = vmul.f32 %v4913, %v4941
  %v4946 = vmul.f32 %v4914, %v4942
  %v4948 = vlaneseq
  %v4949 = vshrl.u32 %v4948, 7
  %v4950 = vsub.s32 0, %v4949
  %v4951 = vrot.slane %v4893, %v4950
  %v4953 = vmul.f32 %v4943, %v4951
  %v4954 = vmul.f32 %v4944, %v4951
  %v4955 = vmul.f32 %v4945, %v4951
  %v4956 = vmul.f32 %v4946, %v4951
  %v4958 = vlaneseq
  %v4959 = vshrl.u32 %v4958, 7
  %v4960 = vsub.s32 0, %v4959
  %v4961 = vrot.slane %v4894, %v4960
  %v4963 = vadd.f32 %v4953, %v4961
  %v4964 = vadd.f32 %v4954, %v4961
  %v4965 = vadd.f32 %v4955, %v4961
  %v4966 = vadd.f32 %v4956, %v4961
  %4967 = vst.msk [vmem:[%s22] sm:$0xff] %vm90, %v4963
  %4968 = vst.msk [vmem:[%s22 + $0x8] sm:$0xff] %vm90, %v4964
  %4969 = vst.msk [vmem:[%s22 + $0x10] sm:$0xff] %vm90, %v4965
  %4970 = vst.msk [vmem:[%s22 + $0x18] sm:$0xff] %vm90, %v4966
  // Predicated region
  $region90: #{_lambda_.10} parent=0 // pred_check
    _
  $region91: #{_lambda_.10} parent=0 // pred_check_branch
    %4972 = sbr.rel (0) target = $region93
  $region92: #{_lambda_.10} parent=0 // pred_region
    _
  $region93: #{_lambda_.10} parent=0 // pred_fallthru
    _
  // Predicated region
  $region94: #{_lambda_.10} parent=0 // pred_check
    _
  $region95: #{_lambda_.10} parent=0 // pred_check_branch
    %4974 = sbr.rel (0) target = $region97
  $region96: #{_lambda_.10} parent=0 // pred_region
    _
  $region97: #{_lambda_.10} parent=0 // pred_fallthru
    _

</llo_original>
